<compile_context>
chip_gen: v5e
topology: v5e:2x2
jax: 0.10.0
libtpu: 0.0.40
codegen_flags: <defaults>
</compile_context>

<pallas_src>
import jax
import jax.numpy as jnp
from jax import lax
from jax.experimental import pallas as pl
from jax.experimental.pallas import tpu as pltpu


def _residual_block_kernel(x_ref, w1_ref, b1_ref, w2_ref, b2_ref, out_ref,
                           xp_s, yp_s):
    """Processes a block of Nb images (NHWC) per grid step.

    x_ref  : (Nb, H, W, C)      unpadded input block
    w*_ref : (3, 3, C, C)       HWIO weights
    b*_ref : (1, 1, C)          biases
    out_ref: (Nb, H, W, C)
    xp_s   : (Nb, H+2, W+2, C)  VMEM scratch: zero-halo padded input
    yp_s   : (Nb, H+2, W+2, C)  VMEM scratch: zero-halo padded intermediate
    """
    Nb, H, W, C = out_ref.shape
    Hp, Wp = H + 2, W + 2

    # ---- zero only the 1-pixel halo of both scratches (interior is fully
    #      overwritten below).  Tiny compared with a full-scratch clear.
    zrow = jnp.zeros((Nb, 1, Wp, C), jnp.float32)
    zcol = jnp.zeros((Nb, Hp, 1, C), jnp.float32)
    for s in (xp_s, yp_s):
        s[:, 0:1, :, :] = zrow
        s[:, Hp - 1:Hp, :, :] = zrow
        s[:, :, 0:1, :] = zcol
        s[:, :, Wp - 1:Wp, :] = zcol

    x = x_ref[...]                                  # (Nb, H, W, C)
    xp_s[:, 1:1 + H, 1:1 + W, :] = x                # pad fused into the kernel

    def conv3x3(src_s, w_ref, b_ref):
        # Take the 3 dw-shifted views once (only dw=1,2 are sublane-unaligned)
        # and reuse them across dh; the dh shift is a cheap major-axis slice.
        shifted = [src_s[:, :, dw:dw + W, :] for dw in range(3)]  # (Nb,Hp,W,C)
        acc = jnp.zeros((Nb * H, W, C), jnp.float32)
        for dh in range(3):
            for dw in range(3):
                patch = shifted[dw][:, dh:dh + H, :, :]           # (Nb,H,W,C)
                patch = patch.reshape(Nb * H, W, C)               # free merge
                acc = acc + lax.dot_general(
                    patch, w_ref[dh, dw],
                    dimension_numbers=(((2,), (0,)), ((), ())),
                    preferred_element_type=jnp.float32)
        return acc + b_ref[...]                                   # (Nb*H,W,C)

    # ---- conv1 + bias + relu, zero-pad into yp_s so conv2 sees "padding=1"
    y1 = jnp.maximum(conv3x3(xp_s, w1_ref, b1_ref), 0.0)
    yp_s[:, 1:1 + H, 1:1 + W, :] = y1.reshape(Nb, H, W, C)

    # ---- conv2 + bias, residual add with the unpadded input, relu
    acc2 = conv3x3(yp_s, w2_ref, b2_ref)
    out = jnp.maximum(acc2 + x.reshape(Nb * H, W, C), 0.0)
    out_ref[...] = out.reshape(Nb, H, W, C).astype(out_ref.dtype)


def _pick_block_n(N, H, W, C, budget_bytes=8 << 20):
    """Largest divisor of N whose per-step VMEM footprint fits the budget."""
    per_image = 16 * H * W * C * 4   # rough f32 live bytes / image (scratches,
                                     # double-buffered I/O blocks, live values)
    cap = max(1, budget_bytes // per_image)
    bn = 1
    for d in range(1, N + 1):
        if N % d == 0 and d <= cap:
            bn = d
    return bn


@jax.jit
def residual_block_nhwc(x_nhwc, w1, b1, w2, b2):
    """Native entry point: x_nhwc (N, H, W, C) f32, weights HWIO (3,3,C,C)."""
    N, H, W, C = x_nhwc.shape
    Nb = _pick_block_n(N, H, W, C)
    Hp, Wp = H + 2, W + 2
    b1r = b1.reshape(1, 1, C)
    b2r = b2.reshape(1, 1, C)

    # Explicit scoped-VMEM limit sized to the real footprint (clamped so it is
    # valid on v5e/v6e/v7x).
    est_bytes = Nb * 16 * H * W * C * 4 + 2 * 3 * 3 * C * C * 4
    vmem_limit = int(min(max(2 * est_bytes, 16 * 2**20), 32 * 2**20))

    # TODO(synk): for very large H*W per image, add spatial (row-band) tiling
    # with a 1-row halo so a single block never exceeds v7x's 64 MiB VMEM.
    return pl.pallas_call(
        _residual_block_kernel,
        out_shape=jax.ShapeDtypeStruct((N, H, W, C), jnp.float32),
        grid=(N // Nb,),
        in_specs=[
            pl.BlockSpec((Nb, H, W, C), lambda n: (n, 0, 0, 0)),
            pl.BlockSpec((3, 3, C, C), lambda n: (0, 0, 0, 0)),
            pl.BlockSpec((1, 1, C), lambda n: (0, 0, 0)),
            pl.BlockSpec((3, 3, C, C), lambda n: (0, 0, 0, 0)),
            pl.BlockSpec((1, 1, C), lambda n: (0, 0, 0)),
        ],
        out_specs=pl.BlockSpec((Nb, H, W, C), lambda n: (n, 0, 0, 0)),
        scratch_shapes=[
            pltpu.VMEM((Nb, Hp, Wp, C), jnp.float32),
            pltpu.VMEM((Nb, Hp, Wp, C), jnp.float32),
        ],
        compiler_params=pltpu.CompilerParams(
            dimension_semantics=("parallel",),
            vmem_limit_bytes=vmem_limit,
        ),
    )(x_nhwc, w1, b1r, w2, b2r)


@jax.jit
def residual_block_nchw(x_nchw, w1, b1, w2, b2):
    """Drop-in PyTorch-style wrapper: x (N, C, H, W) -> out (N, C, H, W)."""
    x_nhwc = jnp.transpose(x_nchw, (0, 2, 3, 1))
    out_nhwc = residual_block_nhwc(x_nhwc, w1, b1, w2, b2)
    return jnp.transpose(out_nhwc, (0, 3, 1, 2))


def _reference_nchw(x_nchw, w1, b1, w2, b2):
    """Plain-JAX reference (NHWC conv) for correctness checking."""
    x = jnp.transpose(x_nchw, (0, 2, 3, 1))
    dn = ("NHWC", "HWIO", "NHWC")
    y = lax.conv_general_dilated(x, w1, (1, 1), "SAME", dimension_numbers=dn) + b1
    y = jnp.maximum(y, 0.0)
    y = lax.conv_general_dilated(y, w2, (1, 1), "SAME", dimension_numbers=dn) + b2
    out = jnp.maximum(x + y, 0.0)
    return jnp.transpose(out, (0, 3, 1, 2))


if __name__ == "__main__":
    # ResidualBlock(channels=4) on a (2, 4, 16, 16) NCHW input.
    N, C, H, W = 2, 4, 16, 16
    key = jax.random.PRNGKey(0)
    kx, k1, kb1, k2, kb2 = jax.random.split(key, 5)

    x = jax.random.normal(kx, (N, C, H, W), jnp.float32)

    # Deterministic init, uniform(-bound, bound) with bound = 1/sqrt(fan_in*3*3)
    # (same scale as PyTorch's default Conv2d init). HWIO layout.
    bound = 1.0 / (C * 3 * 3) ** 0.5
    w1 = jax.random.uniform(k1, (3, 3, C, C), jnp.float32, -bound, bound)
    b1 = jax.random.uniform(kb1, (C,), jnp.float32, -bound, bound)
    w2 = jax.random.uniform(k2, (3, 3, C, C), jnp.float32, -bound, bound)
    b2 = jax.random.uniform(kb2, (C,), jnp.float32, -bound, bound)

    out = residual_block_nchw(x, w1, b1, w2, b2)
    out = jax.block_until_ready(out)

    ref = jax.block_until_ready(_reference_nchw(x, w1, b1, w2, b2))
    assert out.shape == (N, C, H, W)
    assert jnp.allclose(out, ref, atol=1e-5, rtol=1e-5), "mismatch vs reference"

    print("KERNEL_OK")
</pallas_src>

<mosaic_0001>
module attributes {stable_mosaic.version = 11 : i64} {
  func.func @_residual_block_kernel(%arg0: i32, %arg1: memref<2x16x16x4xf32, #tpu.memory_space<vmem>>, %arg2: memref<3x3x4x4xf32, #tpu.memory_space<vmem>>, %arg3: memref<1x1x4xf32, #tpu.memory_space<vmem>>, %arg4: memref<3x3x4x4xf32, #tpu.memory_space<vmem>>, %arg5: memref<1x1x4xf32, #tpu.memory_space<vmem>>, %arg6: memref<2x16x16x4xf32, #tpu.memory_space<vmem>>, %arg7: memref<2x18x18x4xf32, #tpu.memory_space<vmem>>, %arg8: memref<2x18x18x4xf32, #tpu.memory_space<vmem>>) attributes {dimension_semantics = [#tpu.dimension_semantics<parallel>], iteration_bounds = array<i64: 1>, scalar_prefetch = 0 : i64, scratch_operands = 2 : i64, tpu.core_type = #tpu.core_type<tc>, window_params = [{transform_indices = @transform_0, window_bounds = array<i64: 2, 16, 16, 4>}, {pipeline_mode = #tpu.pipeline_mode<synchronous>, transform_indices = @transform_1, window_bounds = array<i64: 3, 3, 4, 4>}, {pipeline_mode = #tpu.pipeline_mode<synchronous>, transform_indices = @transform_2, window_bounds = array<i64: 1, 1, 4>}, {pipeline_mode = #tpu.pipeline_mode<synchronous>, transform_indices = @transform_3, window_bounds = array<i64: 3, 3, 4, 4>}, {pipeline_mode = #tpu.pipeline_mode<synchronous>, transform_indices = @transform_4, window_bounds = array<i64: 1, 1, 4>}, {transform_indices = @transform_5, window_bounds = array<i64: 2, 16, 16, 4>}]} {
    %cst = arith.constant 0.000000e+00 : f32
    %0 = vector.broadcast %cst : f32 to vector<2x1x18x4xf32>
    %cst_0 = arith.constant 0.000000e+00 : f32
    %1 = vector.broadcast %cst_0 : f32 to vector<2x18x1x4xf32>
    %c0 = arith.constant 0 : index
    %c0_1 = arith.constant 0 : index
    %c0_2 = arith.constant 0 : index
    %c0_3 = arith.constant 0 : index
    %2 = vector.load %arg7[%c0, %c0_1, %c0_2, %c0_3] : memref<2x18x18x4xf32, #tpu.memory_space<vmem>>, vector<2x1x18x4xf32>
    tpu.vector_store %arg7[%c0, %c0_1, %c0_2, %c0_3], %0 {strides = array<i32>} : memref<2x18x18x4xf32, #tpu.memory_space<vmem>>, vector<2x1x18x4xf32>,
    %c0_4 = arith.constant 0 : index
    %c17 = arith.constant 17 : index
    %c0_5 = arith.constant 0 : index
    %c0_6 = arith.constant 0 : index
    %3 = vector.load %arg7[%c0_4, %c17, %c0_5, %c0_6] : memref<2x18x18x4xf32, #tpu.memory_space<vmem>>, vector<2x1x18x4xf32>
    tpu.vector_store %arg7[%c0_4, %c17, %c0_5, %c0_6], %0 {strides = array<i32>} : memref<2x18x18x4xf32, #tpu.memory_space<vmem>>, vector<2x1x18x4xf32>,
    %c0_7 = arith.constant 0 : index
    %c0_8 = arith.constant 0 : index
    %c0_9 = arith.constant 0 : index
    %c0_10 = arith.constant 0 : index
    %4 = vector.load %arg7[%c0_7, %c0_8, %c0_9, %c0_10] : memref<2x18x18x4xf32, #tpu.memory_space<vmem>>, vector<2x18x1x4xf32>
    tpu.vector_store %arg7[%c0_7, %c0_8, %c0_9, %c0_10], %1 {strides = array<i32>} : memref<2x18x18x4xf32, #tpu.memory_space<vmem>>, vector<2x18x1x4xf32>,
    %c0_11 = arith.constant 0 : index
    %c0_12 = arith.constant 0 : index
    %c17_13 = arith.constant 17 : index
    %c0_14 = arith.constant 0 : index
    %5 = vector.load %arg7[%c0_11, %c0_12, %c17_13, %c0_14] : memref<2x18x18x4xf32, #tpu.memory_space<vmem>>, vector<2x18x1x4xf32>
    tpu.vector_store %arg7[%c0_11, %c0_12, %c17_13, %c0_14], %1 {strides = array<i32>} : memref<2x18x18x4xf32, #tpu.memory_space<vmem>>, vector<2x18x1x4xf32>,
    %c0_15 = arith.constant 0 : index
    %c0_16 = arith.constant 0 : index
    %c0_17 = arith.constant 0 : index
    %c0_18 = arith.constant 0 : index
    %6 = vector.load %arg8[%c0_15, %c0_16, %c0_17, %c0_18] : memref<2x18x18x4xf32, #tpu.memory_space<vmem>>, vector<2x1x18x4xf32>
    tpu.vector_store %arg8[%c0_15, %c0_16, %c0_17, %c0_18], %0 {strides = array<i32>} : memref<2x18x18x4xf32, #tpu.memory_space<vmem>>, vector<2x1x18x4xf32>,
    %c0_19 = arith.constant 0 : index
    %c17_20 = arith.constant 17 : index
    %c0_21 = arith.constant 0 : index
    %c0_22 = arith.constant 0 : index
    %7 = vector.load %arg8[%c0_19, %c17_20, %c0_21, %c0_22] : memref<2x18x18x4xf32, #tpu.memory_space<vmem>>, vector<2x1x18x4xf32>
    tpu.vector_store %arg8[%c0_19, %c17_20, %c0_21, %c0_22], %0 {strides = array<i32>} : memref<2x18x18x4xf32, #tpu.memory_space<vmem>>, vector<2x1x18x4xf32>,
    %c0_23 = arith.constant 0 : index
    %c0_24 = arith.constant 0 : index
    %c0_25 = arith.constant 0 : index
    %c0_26 = arith.constant 0 : index
    %8 = vector.load %arg8[%c0_23, %c0_24, %c0_25, %c0_26] : memref<2x18x18x4xf32, #tpu.memory_space<vmem>>, vector<2x18x1x4xf32>
    tpu.vector_store %arg8[%c0_23, %c0_24, %c0_25, %c0_26], %1 {strides = array<i32>} : memref<2x18x18x4xf32, #tpu.memory_space<vmem>>, vector<2x18x1x4xf32>,
    %c0_27 = arith.constant 0 : index
    %c0_28 = arith.constant 0 : index
    %c17_29 = arith.constant 17 : index
    %c0_30 = arith.constant 0 : index
    %9 = vector.load %arg8[%c0_27, %c0_28, %c17_29, %c0_30] : memref<2x18x18x4xf32, #tpu.memory_space<vmem>>, vector<2x18x1x4xf32>
    tpu.vector_store %arg8[%c0_27, %c0_28, %c17_29, %c0_30], %1 {strides = array<i32>} : memref<2x18x18x4xf32, #tpu.memory_space<vmem>>, vector<2x18x1x4xf32>,
    %c0_31 = arith.constant 0 : index
    %c0_32 = arith.constant 0 : index
    %c0_33 = arith.constant 0 : index
    %c0_34 = arith.constant 0 : index
    %10 = vector.load %arg1[%c0_31, %c0_32, %c0_33, %c0_34] : memref<2x16x16x4xf32, #tpu.memory_space<vmem>>, vector<2x16x16x4xf32>
    %c0_35 = arith.constant 0 : index
    %c1 = arith.constant 1 : index
    %c1_36 = arith.constant 1 : index
    %c0_37 = arith.constant 0 : index
    %11 = vector.load %arg7[%c0_35, %c1, %c1_36, %c0_37] : memref<2x18x18x4xf32, #tpu.memory_space<vmem>>, vector<2x16x16x4xf32>
    tpu.vector_store %arg7[%c0_35, %c1, %c1_36, %c0_37], %10 {strides = array<i32>} : memref<2x18x18x4xf32, #tpu.memory_space<vmem>>, vector<2x16x16x4xf32>,
    %c0_38 = arith.constant 0 : index
    %c0_39 = arith.constant 0 : index
    %c0_40 = arith.constant 0 : index
    %c0_41 = arith.constant 0 : index
    %12 = vector.load %arg7[%c0_38, %c0_39, %c0_40, %c0_41] : memref<2x18x18x4xf32, #tpu.memory_space<vmem>>, vector<2x18x16x4xf32>
    %c0_42 = arith.constant 0 : index
    %c0_43 = arith.constant 0 : index
    %c1_44 = arith.constant 1 : index
    %c0_45 = arith.constant 0 : index
    %13 = vector.load %arg7[%c0_42, %c0_43, %c1_44, %c0_45] : memref<2x18x18x4xf32, #tpu.memory_space<vmem>>, vector<2x18x16x4xf32>
    %c0_46 = arith.constant 0 : index
    %c0_47 = arith.constant 0 : index
    %c2 = arith.constant 2 : index
    %c0_48 = arith.constant 0 : index
    %14 = vector.load %arg7[%c0_46, %c0_47, %c2, %c0_48] : memref<2x18x18x4xf32, #tpu.memory_space<vmem>>, vector<2x18x16x4xf32>
    %cst_49 = arith.constant 0.000000e+00 : f32
    %15 = vector.broadcast %cst_49 : f32 to vector<32x16x4xf32>
    %16 = vector.extract_strided_slice %12 {offsets = [0, 0, 0, 0], sizes = [2, 16, 16, 4], strides = [1, 1, 1, 1]} : vector<2x18x16x4xf32> to vector<2x16x16x4xf32>
    %17 = vector.shape_cast %16 : vector<2x16x16x4xf32> to vector<32x16x4xf32>
    %c0_50 = arith.constant 0 : index
    %c0_51 = arith.constant 0 : index
    %c0_52 = arith.constant 0 : index
    %c0_53 = arith.constant 0 : index
    %18 = vector.load %arg2[%c0_50, %c0_51, %c0_52, %c0_53] : memref<3x3x4x4xf32, #tpu.memory_space<vmem>>, vector<1x1x4x4xf32>
    %19 = vector.shape_cast %18 : vector<1x1x4x4xf32> to vector<4x4xf32>
    %cst_54 = arith.constant dense<0.000000e+00> : vector<32x16x4xf32>
    %20 = tpu.matmul %17, %19, %cst_54 {dimension_numbers = #tpu.dot_dimension_numbers<[2], [0], [0, 1], [1], [0, 0, 0, 1, 1, 1], [], []>} : vector<32x16x4xf32>, vector<4x4xf32>, vector<32x16x4xf32> -> vector<32x16x4xf32>
    %21 = arith.addf %15, %20 : vector<32x16x4xf32>
    %22 = vector.extract_strided_slice %13 {offsets = [0, 0, 0, 0], sizes = [2, 16, 16, 4], strides = [1, 1, 1, 1]} : vector<2x18x16x4xf32> to vector<2x16x16x4xf32>
    %23 = vector.shape_cast %22 : vector<2x16x16x4xf32> to vector<32x16x4xf32>
    %c0_55 = arith.constant 0 : index
    %c1_56 = arith.constant 1 : index
    %c0_57 = arith.constant 0 : index
    %c0_58 = arith.constant 0 : index
    %24 = vector.load %arg2[%c0_55, %c1_56, %c0_57, %c0_58] : memref<3x3x4x4xf32, #tpu.memory_space<vmem>>, vector<1x1x4x4xf32>
    %25 = vector.shape_cast %24 : vector<1x1x4x4xf32> to vector<4x4xf32>
    %cst_59 = arith.constant dense<0.000000e+00> : vector<32x16x4xf32>
    %26 = tpu.matmul %23, %25, %cst_59 {dimension_numbers = #tpu.dot_dimension_numbers<[2], [0], [0, 1], [1], [0, 0, 0, 1, 1, 1], [], []>} : vector<32x16x4xf32>, vector<4x4xf32>, vector<32x16x4xf32> -> vector<32x16x4xf32>
    %27 = arith.addf %21, %26 : vector<32x16x4xf32>
    %28 = vector.extract_strided_slice %14 {offsets = [0, 0, 0, 0], sizes = [2, 16, 16, 4], strides = [1, 1, 1, 1]} : vector<2x18x16x4xf32> to vector<2x16x16x4xf32>
    %29 = vector.shape_cast %28 : vector<2x16x16x4xf32> to vector<32x16x4xf32>
    %c0_60 = arith.constant 0 : index
    %c2_61 = arith.constant 2 : index
    %c0_62 = arith.constant 0 : index
    %c0_63 = arith.constant 0 : index
    %30 = vector.load %arg2[%c0_60, %c2_61, %c0_62, %c0_63] : memref<3x3x4x4xf32, #tpu.memory_space<vmem>>, vector<1x1x4x4xf32>
    %31 = vector.shape_cast %30 : vector<1x1x4x4xf32> to vector<4x4xf32>
    %cst_64 = arith.constant dense<0.000000e+00> : vector<32x16x4xf32>
    %32 = tpu.matmul %29, %31, %cst_64 {dimension_numbers = #tpu.dot_dimension_numbers<[2], [0], [0, 1], [1], [0, 0, 0, 1, 1, 1], [], []>} : vector<32x16x4xf32>, vector<4x4xf32>, vector<32x16x4xf32> -> vector<32x16x4xf32>
    %33 = arith.addf %27, %32 : vector<32x16x4xf32>
    %34 = vector.extract_strided_slice %12 {offsets = [0, 1, 0, 0], sizes = [2, 16, 16, 4], strides = [1, 1, 1, 1]} : vector<2x18x16x4xf32> to vector<2x16x16x4xf32>
    %35 = vector.shape_cast %34 : vector<2x16x16x4xf32> to vector<32x16x4xf32>
    %c1_65 = arith.constant 1 : index
    %c0_66 = arith.constant 0 : index
    %c0_67 = arith.constant 0 : index
    %c0_68 = arith.constant 0 : index
    %36 = vector.load %arg2[%c1_65, %c0_66, %c0_67, %c0_68] : memref<3x3x4x4xf32, #tpu.memory_space<vmem>>, vector<1x1x4x4xf32>
    %37 = vector.shape_cast %36 : vector<1x1x4x4xf32> to vector<4x4xf32>
    %cst_69 = arith.constant dense<0.000000e+00> : vector<32x16x4xf32>
    %38 = tpu.matmul %35, %37, %cst_69 {dimension_numbers = #tpu.dot_dimension_numbers<[2], [0], [0, 1], [1], [0, 0, 0, 1, 1, 1], [], []>} : vector<32x16x4xf32>, vector<4x4xf32>, vector<32x16x4xf32> -> vector<32x16x4xf32>
    %39 = arith.addf %33, %38 : vector<32x16x4xf32>
    %40 = vector.extract_strided_slice %13 {offsets = [0, 1, 0, 0], sizes = [2, 16, 16, 4], strides = [1, 1, 1, 1]} : vector<2x18x16x4xf32> to vector<2x16x16x4xf32>
    %41 = vector.shape_cast %40 : vector<2x16x16x4xf32> to vector<32x16x4xf32>
    %c1_70 = arith.constant 1 : index
    %c1_71 = arith.constant 1 : index
    %c0_72 = arith.constant 0 : index
    %c0_73 = arith.constant 0 : index
    %42 = vector.load %arg2[%c1_70, %c1_71, %c0_72, %c0_73] : memref<3x3x4x4xf32, #tpu.memory_space<vmem>>, vector<1x1x4x4xf32>
    %43 = vector.shape_cast %42 : vector<1x1x4x4xf32> to vector<4x4xf32>
    %cst_74 = arith.constant dense<0.000000e+00> : vector<32x16x4xf32>
    %44 = tpu.matmul %41, %43, %cst_74 {dimension_numbers = #tpu.dot_dimension_numbers<[2], [0], [0, 1], [1], [0, 0, 0, 1, 1, 1], [], []>} : vector<32x16x4xf32>, vector<4x4xf32>, vector<32x16x4xf32> -> vector<32x16x4xf32>
    %45 = arith.addf %39, %44 : vector<32x16x4xf32>
    %46 = vector.extract_strided_slice %14 {offsets = [0, 1, 0, 0], sizes = [2, 16, 16, 4], strides = [1, 1, 1, 1]} : vector<2x18x16x4xf32> to vector<2x16x16x4xf32>
    %47 = vector.shape_cast %46 : vector<2x16x16x4xf32> to vector<32x16x4xf32>
    %c1_75 = arith.constant 1 : index
    %c2_76 = arith.constant 2 : index
    %c0_77 = arith.constant 0 : index
    %c0_78 = arith.constant 0 : index
    %48 = vector.load %arg2[%c1_75, %c2_76, %c0_77, %c0_78] : memref<3x3x4x4xf32, #tpu.memory_space<vmem>>, vector<1x1x4x4xf32>
    %49 = vector.shape_cast %48 : vector<1x1x4x4xf32> to vector<4x4xf32>
    %cst_79 = arith.constant dense<0.000000e+00> : vector<32x16x4xf32>
    %50 = tpu.matmul %47, %49, %cst_79 {dimension_numbers = #tpu.dot_dimension_numbers<[2], [0], [0, 1], [1], [0, 0, 0, 1, 1, 1], [], []>} : vector<32x16x4xf32>, vector<4x4xf32>, vector<32x16x4xf32> -> vector<32x16x4xf32>
    %51 = arith.addf %45, %50 : vector<32x16x4xf32>
    %52 = vector.extract_strided_slice %12 {offsets = [0, 2, 0, 0], sizes = [2, 16, 16, 4], strides = [1, 1, 1, 1]} : vector<2x18x16x4xf32> to vector<2x16x16x4xf32>
    %53 = vector.shape_cast %52 : vector<2x16x16x4xf32> to vector<32x16x4xf32>
    %c2_80 = arith.constant 2 : index
    %c0_81 = arith.constant 0 : index
    %c0_82 = arith.constant 0 : index
    %c0_83 = arith.constant 0 : index
    %54 = vector.load %arg2[%c2_80, %c0_81, %c0_82, %c0_83] : memref<3x3x4x4xf32, #tpu.memory_space<vmem>>, vector<1x1x4x4xf32>
    %55 = vector.shape_cast %54 : vector<1x1x4x4xf32> to vector<4x4xf32>
    %cst_84 = arith.constant dense<0.000000e+00> : vector<32x16x4xf32>
    %56 = tpu.matmul %53, %55, %cst_84 {dimension_numbers = #tpu.dot_dimension_numbers<[2], [0], [0, 1], [1], [0, 0, 0, 1, 1, 1], [], []>} : vector<32x16x4xf32>, vector<4x4xf32>, vector<32x16x4xf32> -> vector<32x16x4xf32>
    %57 = arith.addf %51, %56 : vector<32x16x4xf32>
    %58 = vector.extract_strided_slice %13 {offsets = [0, 2, 0, 0], sizes = [2, 16, 16, 4], strides = [1, 1, 1, 1]} : vector<2x18x16x4xf32> to vector<2x16x16x4xf32>
    %59 = vector.shape_cast %58 : vector<2x16x16x4xf32> to vector<32x16x4xf32>
    %c2_85 = arith.constant 2 : index
    %c1_86 = arith.constant 1 : index
    %c0_87 = arith.constant 0 : index
    %c0_88 = arith.constant 0 : index
    %60 = vector.load %arg2[%c2_85, %c1_86, %c0_87, %c0_88] : memref<3x3x4x4xf32, #tpu.memory_space<vmem>>, vector<1x1x4x4xf32>
    %61 = vector.shape_cast %60 : vector<1x1x4x4xf32> to vector<4x4xf32>
    %cst_89 = arith.constant dense<0.000000e+00> : vector<32x16x4xf32>
    %62 = tpu.matmul %59, %61, %cst_89 {dimension_numbers = #tpu.dot_dimension_numbers<[2], [0], [0, 1], [1], [0, 0, 0, 1, 1, 1], [], []>} : vector<32x16x4xf32>, vector<4x4xf32>, vector<32x16x4xf32> -> vector<32x16x4xf32>
    %63 = arith.addf %57, %62 : vector<32x16x4xf32>
    %64 = vector.extract_strided_slice %14 {offsets = [0, 2, 0, 0], sizes = [2, 16, 16, 4], strides = [1, 1, 1, 1]} : vector<2x18x16x4xf32> to vector<2x16x16x4xf32>
    %65 = vector.shape_cast %64 : vector<2x16x16x4xf32> to vector<32x16x4xf32>
    %c2_90 = arith.constant 2 : index
    %c2_91 = arith.constant 2 : index
    %c0_92 = arith.constant 0 : index
    %c0_93 = arith.constant 0 : index
    %66 = vector.load %arg2[%c2_90, %c2_91, %c0_92, %c0_93] : memref<3x3x4x4xf32, #tpu.memory_space<vmem>>, vector<1x1x4x4xf32>
    %67 = vector.shape_cast %66 : vector<1x1x4x4xf32> to vector<4x4xf32>
    %cst_94 = arith.constant dense<0.000000e+00> : vector<32x16x4xf32>
    %68 = tpu.matmul %65, %67, %cst_94 {dimension_numbers = #tpu.dot_dimension_numbers<[2], [0], [0, 1], [1], [0, 0, 0, 1, 1, 1], [], []>} : vector<32x16x4xf32>, vector<4x4xf32>, vector<32x16x4xf32> -> vector<32x16x4xf32>
    %69 = arith.addf %63, %68 : vector<32x16x4xf32>
    %c0_95 = arith.constant 0 : index
    %c0_96 = arith.constant 0 : index
    %c0_97 = arith.constant 0 : index
    %70 = vector.load %arg3[%c0_95, %c0_96, %c0_97] : memref<1x1x4xf32, #tpu.memory_space<vmem>>, vector<1x1x4xf32>
    %71 = vector.broadcast %70 : vector<1x1x4xf32> to vector<32x16x4xf32>
    %72 = arith.addf %69, %71 : vector<32x16x4xf32>
    %cst_98 = arith.constant 0.000000e+00 : f32
    %73 = vector.broadcast %cst_98 : f32 to vector<32x16x4xf32>
    %74 = arith.maximumf %72, %73 : vector<32x16x4xf32>
    %75 = vector.shape_cast %74 : vector<32x16x4xf32> to vector<2x16x16x4xf32>
    %c0_99 = arith.constant 0 : index
    %c1_100 = arith.constant 1 : index
    %c1_101 = arith.constant 1 : index
    %c0_102 = arith.constant 0 : index
    %76 = vector.load %arg8[%c0_99, %c1_100, %c1_101, %c0_102] : memref<2x18x18x4xf32, #tpu.memory_space<vmem>>, vector<2x16x16x4xf32>
    tpu.vector_store %arg8[%c0_99, %c1_100, %c1_101, %c0_102], %75 {strides = array<i32>} : memref<2x18x18x4xf32, #tpu.memory_space<vmem>>, vector<2x16x16x4xf32>,
    %c0_103 = arith.constant 0 : index
    %c0_104 = arith.constant 0 : index
    %c0_105 = arith.constant 0 : index
    %c0_106 = arith.constant 0 : index
    %77 = vector.load %arg8[%c0_103, %c0_104, %c0_105, %c0_106] : memref<2x18x18x4xf32, #tpu.memory_space<vmem>>, vector<2x18x16x4xf32>
    %c0_107 = arith.constant 0 : index
    %c0_108 = arith.constant 0 : index
    %c1_109 = arith.constant 1 : index
    %c0_110 = arith.constant 0 : index
    %78 = vector.load %arg8[%c0_107, %c0_108, %c1_109, %c0_110] : memref<2x18x18x4xf32, #tpu.memory_space<vmem>>, vector<2x18x16x4xf32>
    %c0_111 = arith.constant 0 : index
    %c0_112 = arith.constant 0 : index
    %c2_113 = arith.constant 2 : index
    %c0_114 = arith.constant 0 : index
    %79 = vector.load %arg8[%c0_111, %c0_112, %c2_113, %c0_114] : memref<2x18x18x4xf32, #tpu.memory_space<vmem>>, vector<2x18x16x4xf32>
    %cst_115 = arith.constant 0.000000e+00 : f32
    %80 = vector.broadcast %cst_115 : f32 to vector<32x16x4xf32>
    %81 = vector.extract_strided_slice %77 {offsets = [0, 0, 0, 0], sizes = [2, 16, 16, 4], strides = [1, 1, 1, 1]} : vector<2x18x16x4xf32> to vector<2x16x16x4xf32>
    %82 = vector.shape_cast %81 : vector<2x16x16x4xf32> to vector<32x16x4xf32>
    %c0_116 = arith.constant 0 : index
    %c0_117 = arith.constant 0 : index
    %c0_118 = arith.constant 0 : index
    %c0_119 = arith.constant 0 : index
    %83 = vector.load %arg4[%c0_116, %c0_117, %c0_118, %c0_119] : memref<3x3x4x4xf32, #tpu.memory_space<vmem>>, vector<1x1x4x4xf32>
    %84 = vector.shape_cast %83 : vector<1x1x4x4xf32> to vector<4x4xf32>
    %cst_120 = arith.constant dense<0.000000e+00> : vector<32x16x4xf32>
    %85 = tpu.matmul %82, %84, %cst_120 {dimension_numbers = #tpu.dot_dimension_numbers<[2], [0], [0, 1], [1], [0, 0, 0, 1, 1, 1], [], []>} : vector<32x16x4xf32>, vector<4x4xf32>, vector<32x16x4xf32> -> vector<32x16x4xf32>
    %86 = arith.addf %80, %85 : vector<32x16x4xf32>
    %87 = vector.extract_strided_slice %78 {offsets = [0, 0, 0, 0], sizes = [2, 16, 16, 4], strides = [1, 1, 1, 1]} : vector<2x18x16x4xf32> to vector<2x16x16x4xf32>
    %88 = vector.shape_cast %87 : vector<2x16x16x4xf32> to vector<32x16x4xf32>
    %c0_121 = arith.constant 0 : index
    %c1_122 = arith.constant 1 : index
    %c0_123 = arith.constant 0 : index
    %c0_124 = arith.constant 0 : index
    %89 = vector.load %arg4[%c0_121, %c1_122, %c0_123, %c0_124] : memref<3x3x4x4xf32, #tpu.memory_space<vmem>>, vector<1x1x4x4xf32>
    %90 = vector.shape_cast %89 : vector<1x1x4x4xf32> to vector<4x4xf32>
    %cst_125 = arith.constant dense<0.000000e+00> : vector<32x16x4xf32>
    %91 = tpu.matmul %88, %90, %cst_125 {dimension_numbers = #tpu.dot_dimension_numbers<[2], [0], [0, 1], [1], [0, 0, 0, 1, 1, 1], [], []>} : vector<32x16x4xf32>, vector<4x4xf32>, vector<32x16x4xf32> -> vector<32x16x4xf32>
    %92 = arith.addf %86, %91 : vector<32x16x4xf32>
    %93 = vector.extract_strided_slice %79 {offsets = [0, 0, 0, 0], sizes = [2, 16, 16, 4], strides = [1, 1, 1, 1]} : vector<2x18x16x4xf32> to vector<2x16x16x4xf32>
    %94 = vector.shape_cast %93 : vector<2x16x16x4xf32> to vector<32x16x4xf32>
    %c0_126 = arith.constant 0 : index
    %c2_127 = arith.constant 2 : index
    %c0_128 = arith.constant 0 : index
    %c0_129 = arith.constant 0 : index
    %95 = vector.load %arg4[%c0_126, %c2_127, %c0_128, %c0_129] : memref<3x3x4x4xf32, #tpu.memory_space<vmem>>, vector<1x1x4x4xf32>
    %96 = vector.shape_cast %95 : vector<1x1x4x4xf32> to vector<4x4xf32>
    %cst_130 = arith.constant dense<0.000000e+00> : vector<32x16x4xf32>
    %97 = tpu.matmul %94, %96, %cst_130 {dimension_numbers = #tpu.dot_dimension_numbers<[2], [0], [0, 1], [1], [0, 0, 0, 1, 1, 1], [], []>} : vector<32x16x4xf32>, vector<4x4xf32>, vector<32x16x4xf32> -> vector<32x16x4xf32>
    %98 = arith.addf %92, %97 : vector<32x16x4xf32>
    %99 = vector.extract_strided_slice %77 {offsets = [0, 1, 0, 0], sizes = [2, 16, 16, 4], strides = [1, 1, 1, 1]} : vector<2x18x16x4xf32> to vector<2x16x16x4xf32>
    %100 = vector.shape_cast %99 : vector<2x16x16x4xf32> to vector<32x16x4xf32>
    %c1_131 = arith.constant 1 : index
    %c0_132 = arith.constant 0 : index
    %c0_133 = arith.constant 0 : index
    %c0_134 = arith.constant 0 : index
    %101 = vector.load %arg4[%c1_131, %c0_132, %c0_133, %c0_134] : memref<3x3x4x4xf32, #tpu.memory_space<vmem>>, vector<1x1x4x4xf32>
    %102 = vector.shape_cast %101 : vector<1x1x4x4xf32> to vector<4x4xf32>
    %cst_135 = arith.constant dense<0.000000e+00> : vector<32x16x4xf32>
    %103 = tpu.matmul %100, %102, %cst_135 {dimension_numbers = #tpu.dot_dimension_numbers<[2], [0], [0, 1], [1], [0, 0, 0, 1, 1, 1], [], []>} : vector<32x16x4xf32>, vector<4x4xf32>, vector<32x16x4xf32> -> vector<32x16x4xf32>
    %104 = arith.addf %98, %103 : vector<32x16x4xf32>
    %105 = vector.extract_strided_slice %78 {offsets = [0, 1, 0, 0], sizes = [2, 16, 16, 4], strides = [1, 1, 1, 1]} : vector<2x18x16x4xf32> to vector<2x16x16x4xf32>
    %106 = vector.shape_cast %105 : vector<2x16x16x4xf32> to vector<32x16x4xf32>
    %c1_136 = arith.constant 1 : index
    %c1_137 = arith.constant 1 : index
    %c0_138 = arith.constant 0 : index
    %c0_139 = arith.constant 0 : index
    %107 = vector.load %arg4[%c1_136, %c1_137, %c0_138, %c0_139] : memref<3x3x4x4xf32, #tpu.memory_space<vmem>>, vector<1x1x4x4xf32>
    %108 = vector.shape_cast %107 : vector<1x1x4x4xf32> to vector<4x4xf32>
    %cst_140 = arith.constant dense<0.000000e+00> : vector<32x16x4xf32>
    %109 = tpu.matmul %106, %108, %cst_140 {dimension_numbers = #tpu.dot_dimension_numbers<[2], [0], [0, 1], [1], [0, 0, 0, 1, 1, 1], [], []>} : vector<32x16x4xf32>, vector<4x4xf32>, vector<32x16x4xf32> -> vector<32x16x4xf32>
    %110 = arith.addf %104, %109 : vector<32x16x4xf32>
    %111 = vector.extract_strided_slice %79 {offsets = [0, 1, 0, 0], sizes = [2, 16, 16, 4], strides = [1, 1, 1, 1]} : vector<2x18x16x4xf32> to vector<2x16x16x4xf32>
    %112 = vector.shape_cast %111 : vector<2x16x16x4xf32> to vector<32x16x4xf32>
    %c1_141 = arith.constant 1 : index
    %c2_142 = arith.constant 2 : index
    %c0_143 = arith.constant 0 : index
    %c0_144 = arith.constant 0 : index
    %113 = vector.load %arg4[%c1_141, %c2_142, %c0_143, %c0_144] : memref<3x3x4x4xf32, #tpu.memory_space<vmem>>, vector<1x1x4x4xf32>
    %114 = vector.shape_cast %113 : vector<1x1x4x4xf32> to vector<4x4xf32>
    %cst_145 = arith.constant dense<0.000000e+00> : vector<32x16x4xf32>
    %115 = tpu.matmul %112, %114, %cst_145 {dimension_numbers = #tpu.dot_dimension_numbers<[2], [0], [0, 1], [1], [0, 0, 0, 1, 1, 1], [], []>} : vector<32x16x4xf32>, vector<4x4xf32>, vector<32x16x4xf32> -> vector<32x16x4xf32>
    %116 = arith.addf %110, %115 : vector<32x16x4xf32>
    %117 = vector.extract_strided_slice %77 {offsets = [0, 2, 0, 0], sizes = [2, 16, 16, 4], strides = [1, 1, 1, 1]} : vector<2x18x16x4xf32> to vector<2x16x16x4xf32>
    %118 = vector.shape_cast %117 : vector<2x16x16x4xf32> to vector<32x16x4xf32>
    %c2_146 = arith.constant 2 : index
    %c0_147 = arith.constant 0 : index
    %c0_148 = arith.constant 0 : index
    %c0_149 = arith.constant 0 : index
    %119 = vector.load %arg4[%c2_146, %c0_147, %c0_148, %c0_149] : memref<3x3x4x4xf32, #tpu.memory_space<vmem>>, vector<1x1x4x4xf32>
    %120 = vector.shape_cast %119 : vector<1x1x4x4xf32> to vector<4x4xf32>
    %cst_150 = arith.constant dense<0.000000e+00> : vector<32x16x4xf32>
    %121 = tpu.matmul %118, %120, %cst_150 {dimension_numbers = #tpu.dot_dimension_numbers<[2], [0], [0, 1], [1], [0, 0, 0, 1, 1, 1], [], []>} : vector<32x16x4xf32>, vector<4x4xf32>, vector<32x16x4xf32> -> vector<32x16x4xf32>
    %122 = arith.addf %116, %121 : vector<32x16x4xf32>
    %123 = vector.extract_strided_slice %78 {offsets = [0, 2, 0, 0], sizes = [2, 16, 16, 4], strides = [1, 1, 1, 1]} : vector<2x18x16x4xf32> to vector<2x16x16x4xf32>
    %124 = vector.shape_cast %123 : vector<2x16x16x4xf32> to vector<32x16x4xf32>
    %c2_151 = arith.constant 2 : index
    %c1_152 = arith.constant 1 : index
    %c0_153 = arith.constant 0 : index
    %c0_154 = arith.constant 0 : index
    %125 = vector.load %arg4[%c2_151, %c1_152, %c0_153, %c0_154] : memref<3x3x4x4xf32, #tpu.memory_space<vmem>>, vector<1x1x4x4xf32>
    %126 = vector.shape_cast %125 : vector<1x1x4x4xf32> to vector<4x4xf32>
    %cst_155 = arith.constant dense<0.000000e+00> : vector<32x16x4xf32>
    %127 = tpu.matmul %124, %126, %cst_155 {dimension_numbers = #tpu.dot_dimension_numbers<[2], [0], [0, 1], [1], [0, 0, 0, 1, 1, 1], [], []>} : vector<32x16x4xf32>, vector<4x4xf32>, vector<32x16x4xf32> -> vector<32x16x4xf32>
    %128 = arith.addf %122, %127 : vector<32x16x4xf32>
    %129 = vector.extract_strided_slice %79 {offsets = [0, 2, 0, 0], sizes = [2, 16, 16, 4], strides = [1, 1, 1, 1]} : vector<2x18x16x4xf32> to vector<2x16x16x4xf32>
    %130 = vector.shape_cast %129 : vector<2x16x16x4xf32> to vector<32x16x4xf32>
    %c2_156 = arith.constant 2 : index
    %c2_157 = arith.constant 2 : index
    %c0_158 = arith.constant 0 : index
    %c0_159 = arith.constant 0 : index
    %131 = vector.load %arg4[%c2_156, %c2_157, %c0_158, %c0_159] : memref<3x3x4x4xf32, #tpu.memory_space<vmem>>, vector<1x1x4x4xf32>
    %132 = vector.shape_cast %131 : vector<1x1x4x4xf32> to vector<4x4xf32>
    %cst_160 = arith.constant dense<0.000000e+00> : vector<32x16x4xf32>
    %133 = tpu.matmul %130, %132, %cst_160 {dimension_numbers = #tpu.dot_dimension_numbers<[2], [0], [0, 1], [1], [0, 0, 0, 1, 1, 1], [], []>} : vector<32x16x4xf32>, vector<4x4xf32>, vector<32x16x4xf32> -> vector<32x16x4xf32>
    %134 = arith.addf %128, %133 : vector<32x16x4xf32>
    %c0_161 = arith.constant 0 : index
    %c0_162 = arith.constant 0 : index
    %c0_163 = arith.constant 0 : index
    %135 = vector.load %arg5[%c0_161, %c0_162, %c0_163] : memref<1x1x4xf32, #tpu.memory_space<vmem>>, vector<1x1x4xf32>
    %136 = vector.broadcast %135 : vector<1x1x4xf32> to vector<32x16x4xf32>
    %137 = arith.addf %134, %136 : vector<32x16x4xf32>
    %138 = vector.shape_cast %10 : vector<2x16x16x4xf32> to vector<32x16x4xf32>
    %139 = arith.addf %137, %138 : vector<32x16x4xf32>
    %cst_164 = arith.constant 0.000000e+00 : f32
    %140 = vector.broadcast %cst_164 : f32 to vector<32x16x4xf32>
    %141 = arith.maximumf %139, %140 : vector<32x16x4xf32>
    %142 = vector.shape_cast %141 : vector<32x16x4xf32> to vector<2x16x16x4xf32>
    %c0_165 = arith.constant 0 : index
    %c0_166 = arith.constant 0 : index
    %c0_167 = arith.constant 0 : index
    %c0_168 = arith.constant 0 : index
    %143 = vector.load %arg6[%c0_165, %c0_166, %c0_167, %c0_168] : memref<2x16x16x4xf32, #tpu.memory_space<vmem>>, vector<2x16x16x4xf32>
    tpu.vector_store %arg6[%c0_165, %c0_166, %c0_167, %c0_168], %142 {strides = array<i32>} : memref<2x16x16x4xf32, #tpu.memory_space<vmem>>, vector<2x16x16x4xf32>,
    return
  }
  func.func @transform_0(%arg0: i32) -> (i32, i32, i32, i32) {
    %c0_i32 = arith.constant 0 : i32
    %c0_i32_0 = arith.constant 0 : i32
    %c0_i32_1 = arith.constant 0 : i32
    %c0_i32_2 = arith.constant 0 : i32
    return %arg0, %c0_i32, %c0_i32_0, %c0_i32_1 : i32, i32, i32, i32
  }
  func.func @transform_1(%arg0: i32) -> (i32, i32, i32, i32) {
    %c0_i32 = arith.constant 0 : i32
    %c0_i32_0 = arith.constant 0 : i32
    %c0_i32_1 = arith.constant 0 : i32
    %c0_i32_2 = arith.constant 0 : i32
    %c0_i32_3 = arith.constant 0 : i32
    return %c0_i32, %c0_i32_0, %c0_i32_1, %c0_i32_2 : i32, i32, i32, i32
  }
  func.func @transform_2(%arg0: i32) -> (i32, i32, i32) {
    %c0_i32 = arith.constant 0 : i32
    %c0_i32_0 = arith.constant 0 : i32
    %c0_i32_1 = arith.constant 0 : i32
    %c0_i32_2 = arith.constant 0 : i32
    return %c0_i32, %c0_i32_0, %c0_i32_1 : i32, i32, i32
  }
  func.func @transform_3(%arg0: i32) -> (i32, i32, i32, i32) {
    %c0_i32 = arith.constant 0 : i32
    %c0_i32_0 = arith.constant 0 : i32
    %c0_i32_1 = arith.constant 0 : i32
    %c0_i32_2 = arith.constant 0 : i32
    %c0_i32_3 = arith.constant 0 : i32
    return %c0_i32, %c0_i32_0, %c0_i32_1, %c0_i32_2 : i32, i32, i32, i32
  }
  func.func @transform_4(%arg0: i32) -> (i32, i32, i32) {
    %c0_i32 = arith.constant 0 : i32
    %c0_i32_0 = arith.constant 0 : i32
    %c0_i32_1 = arith.constant 0 : i32
    %c0_i32_2 = arith.constant 0 : i32
    return %c0_i32, %c0_i32_0, %c0_i32_1 : i32, i32, i32
  }
  func.func @transform_5(%arg0: i32) -> (i32, i32, i32, i32) {
    %c0_i32 = arith.constant 0 : i32
    %c0_i32_0 = arith.constant 0 : i32
    %c0_i32_1 = arith.constant 0 : i32
    %c0_i32_2 = arith.constant 0 : i32
    return %arg0, %c0_i32, %c0_i32_0, %c0_i32_1 : i32, i32, i32, i32
  }
}

</mosaic_0001>

<llo_original>
// kernel: residual_block_nhwc.1
$region0: #{residual_block_nhwc.1}
  #allocation0 [shape = 'u32[]', space=smem, size = 0x4, offset = 0x4, fixed_abs, tag = 'smem constant byte address 0x4 - core index']
  #allocation1 [shape = 'u32[72,128]{1,0:T(1,128)}', space=vmem, size = 0x9000, scoped, tag = 'internal scratch']
  #allocation2 [shape = 'f32[2,18,18,4]{3,2,1,0:T(8,128)}', space=vmem, size = 0x6c000, scoped, tag = 'scratch operand']
  #allocation3 [shape = 'f32[2,18,18,4]{3,2,1,0:T(8,128)}', space=vmem, size = 0x6c000, scoped, tag = 'scratch operand']
  %s0 = inlined_call_operand.vmem [shape: f32[2,16,16,4], index: 0, kind: input, shape index: {}]
  %s1 = inlined_call_operand.vmem [shape: f32[3,3,4,4], index: 1, kind: input, shape index: {}]
  %s2 = inlined_call_operand.vmem [shape: f32[1,1,4], index: 2, kind: input, shape index: {}]
  %s3 = inlined_call_operand.vmem [shape: f32[3,3,4,4], index: 3, kind: input, shape index: {}]
  %s4 = inlined_call_operand.vmem [shape: f32[1,1,4], index: 4, kind: input, shape index: {}]
  %s5 = inlined_call_operand.vmem [shape: f32[2,16,16,4], index: 5, kind: output, shape index: {}]
  %s6 = sld [smem:[#allocation0]]
  $region30: #{residual_block_nhwc.1} parent=0
    _
  %s8 = ssub.s32 1, %s6
  %s9 = scalar_select 0, %s8, %s6
  // Predicated region
  $region2: #{residual_block_nhwc.1} parent=0 // pred_check
    _
  $region3: #{residual_block_nhwc.1} parent=0 // pred_check_branch
    %11 = sbr.rel (0) target = $region5
  $region4: #{residual_block_nhwc.1} parent=0 // pred_region
    _
  $region5: #{residual_block_nhwc.1} parent=0 // pred_fallthru
    _
  // Predicated region
  $region6: #{residual_block_nhwc.1} parent=0 // pred_check
    _
  $region7: #{residual_block_nhwc.1} parent=0 // pred_check_branch
    %13 = sbr.rel (0) target = $region9
  $region8: #{residual_block_nhwc.1} parent=0 // pred_region
    _
  $region9: #{residual_block_nhwc.1} parent=0 // pred_fallthru
    _
  // Predicated region
  $region10: #{residual_block_nhwc.1} parent=0 // pred_check
    _
  $region11: #{residual_block_nhwc.1} parent=0 // pred_check_branch
    %15 = sbr.rel (0) target = $region13
  $region12: #{residual_block_nhwc.1} parent=0 // pred_region
    _
  $region13: #{residual_block_nhwc.1} parent=0 // pred_fallthru
    _
  // Predicated region
  $region14: #{residual_block_nhwc.1} parent=0 // pred_check
    _
  $region15: #{residual_block_nhwc.1} parent=0 // pred_check_branch
    %17 = sbr.rel (0) target = $region17
  $region16: #{residual_block_nhwc.1} parent=0 // pred_region
    _
  $region17: #{residual_block_nhwc.1} parent=0 // pred_fallthru
    _
  // Predicated region
  $region18: #{residual_block_nhwc.1} parent=0 // pred_check
    _
  $region19: #{residual_block_nhwc.1} parent=0 // pred_check_branch
    %19 = sbr.rel (0) target = $region21
  $region20: #{residual_block_nhwc.1} parent=0 // pred_region
    _
  $region21: #{residual_block_nhwc.1} parent=0 // pred_fallthru
    _
  %vm20 = vcmask 31744
  %21 = vst.msk [vmem:[#allocation2] sm:$0xff] %vm20, 0.0
  %22 = vst.msk [vmem:[#allocation2 + $0x8] sm:$0xff] %vm20, 0.0
  %vm23 = vcmask 25600
  %24 = vst.msk [vmem:[#allocation2 + $0x10] sm:$0x3] %vm23, 0.0
  %25 = vst.msk [vmem:[#allocation2 + $0x1b0] sm:$0xff] %vm20, 0.0
  %26 = vst.msk [vmem:[#allocation2 + $0x1b8] sm:$0xff] %vm20, 0.0
  %27 = vst.msk [vmem:[#allocation2 + $0x1c0] sm:$0x3] %vm23, 0.0
  %s28 = scalar_lea.vmem [#allocation2], 408
  %29 = vst.msk [vmem:[%s28] sm:$0xff] %vm20, 0.0
  %30 = vst.msk [vmem:[%s28 + $0x8] sm:$0xff] %vm20, 0.0
  %31 = vst.msk [vmem:[%s28 + $0x10] sm:$0x3] %vm23, 0.0
  %32 = vst.msk [vmem:[%s28 + $0x1b0] sm:$0xff] %vm20, 0.0
  %33 = vst.msk [vmem:[%s28 + $0x1b8] sm:$0xff] %vm20, 0.0
  %34 = vst.msk [vmem:[%s28 + $0x1c0] sm:$0x3] %vm23, 0.0
  %vm35 = vcmask 24576
  %36 = vst.msk [vmem:[#allocation2] sm:$0x1] %vm35, 0.0
  %37 = vst.msk [vmem:[#allocation2 + $0x18] sm:$0x1] %vm35, 0.0
  %38 = vst.msk [vmem:[#allocation2 + $0x30] sm:$0x1] %vm35, 0.0
  %39 = vst.msk [vmem:[#allocation2 + $0x48] sm:$0x1] %vm35, 0.0
  %40 = vst.msk [vmem:[#allocation2 + $0x60] sm:$0x1] %vm35, 0.0
  %41 = vst.msk [vmem:[#allocation2 + $0x78] sm:$0x1] %vm35, 0.0
  %42 = vst.msk [vmem:[#allocation2 + $0x90] sm:$0x1] %vm35, 0.0
  %43 = vst.msk [vmem:[#allocation2 + $0xa8] sm:$0x1] %vm35, 0.0
  %44 = vst.msk [vmem:[#allocation2 + $0xc0] sm:$0x1] %vm35, 0.0
  %45 = vst.msk [vmem:[#allocation2 + $0xd8] sm:$0x1] %vm35, 0.0
  %46 = vst.msk [vmem:[#allocation2 + $0xf0] sm:$0x1] %vm35, 0.0
  %47 = vst.msk [vmem:[#allocation2 + $0x108] sm:$0x1] %vm35, 0.0
  %48 = vst.msk [vmem:[#allocation2 + $0x120] sm:$0x1] %vm35, 0.0
  %49 = vst.msk [vmem:[#allocation2 + $0x138] sm:$0x1] %vm35, 0.0
  %50 = vst.msk [vmem:[#allocation2 + $0x150] sm:$0x1] %vm35, 0.0
  %51 = vst.msk [vmem:[#allocation2 + $0x168] sm:$0x1] %vm35, 0.0
  %52 = vst.msk [vmem:[#allocation2 + $0x180] sm:$0x1] %vm35, 0.0
  %53 = vst.msk [vmem:[#allocation2 + $0x198] sm:$0x1] %vm35, 0.0
  %54 = vst.msk [vmem:[#allocation2 + $0x1b0] sm:$0x1] %vm35, 0.0
  %55 = vst.msk [vmem:[#allocation2 + $0x1c8] sm:$0x1] %vm35, 0.0
  %56 = vst.msk [vmem:[#allocation2 + $0x1e0] sm:$0x1] %vm35, 0.0
  %57 = vst.msk [vmem:[#allocation2 + $0x1f8] sm:$0x1] %vm35, 0.0
  %58 = vst.msk [vmem:[#allocation2 + $0x210] sm:$0x1] %vm35, 0.0
  %59 = vst.msk [vmem:[#allocation2 + $0x228] sm:$0x1] %vm35, 0.0
  %60 = vst.msk [vmem:[#allocation2 + $0x240] sm:$0x1] %vm35, 0.0
  %61 = vst.msk [vmem:[#allocation2 + $0x258] sm:$0x1] %vm35, 0.0
  %62 = vst.msk [vmem:[#allocation2 + $0x270] sm:$0x1] %vm35, 0.0
  %63 = vst.msk [vmem:[#allocation2 + $0x288] sm:$0x1] %vm35, 0.0
  %64 = vst.msk [vmem:[#allocation2 + $0x2a0] sm:$0x1] %vm35, 0.0
  %65 = vst.msk [vmem:[#allocation2 + $0x2b8] sm:$0x1] %vm35, 0.0
  %66 = vst.msk [vmem:[#allocation2 + $0x2d0] sm:$0x1] %vm35, 0.0
  %67 = vst.msk [vmem:[#allocation2 + $0x2e8] sm:$0x1] %vm35, 0.0
  %68 = vst.msk [vmem:[#allocation2 + $0x300] sm:$0x1] %vm35, 0.0
  %69 = vst.msk [vmem:[#allocation2 + $0x318] sm:$0x1] %vm35, 0.0
  %70 = vst.msk [vmem:[#allocation2 + $0x330] sm:$0x1] %vm35, 0.0
  %71 = vst.msk [vmem:[#allocation2 + $0x348] sm:$0x1] %vm35, 0.0
  %72 = vst.msk [vmem:[#allocation2 + $0x11] sm:$0x1] %vm35, 0.0
  %73 = vst.msk [vmem:[#allocation2 + $0x29] sm:$0x1] %vm35, 0.0
  %74 = vst.msk [vmem:[#allocation2 + $0x41] sm:$0x1] %vm35, 0.0
  %75 = vst.msk [vmem:[#allocation2 + $0x59] sm:$0x1] %vm35, 0.0
  %76 = vst.msk [vmem:[#allocation2 + $0x71] sm:$0x1] %vm35, 0.0
  %77 = vst.msk [vmem:[#allocation2 + $0x89] sm:$0x1] %vm35, 0.0
  %78 = vst.msk [vmem:[#allocation2 + $0xa1] sm:$0x1] %vm35, 0.0
  %79 = vst.msk [vmem:[#allocation2 + $0xb9] sm:$0x1] %vm35, 0.0
  %80 = vst.msk [vmem:[#allocation2 + $0xd1] sm:$0x1] %vm35, 0.0
  %81 = vst.msk [vmem:[#allocation2 + $0xe9] sm:$0x1] %vm35, 0.0
  %82 = vst.msk [vmem:[#allocation2 + $0x101] sm:$0x1] %vm35, 0.0
  %83 = vst.msk [vmem:[#allocation2 + $0x119] sm:$0x1] %vm35, 0.0
  %84 = vst.msk [vmem:[#allocation2 + $0x131] sm:$0x1] %vm35, 0.0
  %85 = vst.msk [vmem:[#allocation2 + $0x149] sm:$0x1] %vm35, 0.0
  %86 = vst.msk [vmem:[#allocation2 + $0x161] sm:$0x1] %vm35, 0.0
  %87 = vst.msk [vmem:[#allocation2 + $0x179] sm:$0x1] %vm35, 0.0
  %88 = vst.msk [vmem:[#allocation2 + $0x191] sm:$0x1] %vm35, 0.0
  %89 = vst.msk [vmem:[#allocation2 + $0x1a9] sm:$0x1] %vm35, 0.0
  %90 = vst.msk [vmem:[#allocation2 + $0x1c1] sm:$0x1] %vm35, 0.0
  %91 = vst.msk [vmem:[#allocation2 + $0x1d9] sm:$0x1] %vm35, 0.0
  %92 = vst.msk [vmem:[#allocation2 + $0x1f1] sm:$0x1] %vm35, 0.0
  %93 = vst.msk [vmem:[#allocation2 + $0x209] sm:$0x1] %vm35, 0.0
  %94 = vst.msk [vmem:[#allocation2 + $0x221] sm:$0x1] %vm35, 0.0
  %95 = vst.msk [vmem:[#allocation2 + $0x239] sm:$0x1] %vm35, 0.0
  %96 = vst.msk [vmem:[#allocation2 + $0x251] sm:$0x1] %vm35, 0.0
  %97 = vst.msk [vmem:[#allocation2 + $0x269] sm:$0x1] %vm35, 0.0
  %98 = vst.msk [vmem:[#allocation2 + $0x281] sm:$0x1] %vm35, 0.0
  %99 = vst.msk [vmem:[#allocation2 + $0x299] sm:$0x1] %vm35, 0.0
  %100 = vst.msk [vmem:[#allocation2 + $0x2b1] sm:$0x1] %vm35, 0.0
  %101 = vst.msk [vmem:[#allocation2 + $0x2c9] sm:$0x1] %vm35, 0.0
  %102 = vst.msk [vmem:[#allocation2 + $0x2e1] sm:$0x1] %vm35, 0.0
  %103 = vst.msk [vmem:[#allocation2 + $0x2f9] sm:$0x1] %vm35, 0.0
  %104 = vst.msk [vmem:[#allocation2 + $0x311] sm:$0x1] %vm35, 0.0
  %105 = vst.msk [vmem:[#allocation2 + $0x329] sm:$0x1] %vm35, 0.0
  %106 = vst.msk [vmem:[#allocation2 + $0x341] sm:$0x1] %vm35, 0.0
  %107 = vst.msk [vmem:[#allocation2 + $0x359] sm:$0x1] %vm35, 0.0
  %108 = vst.msk [vmem:[#allocation3] sm:$0xff] %vm20, 0.0
  %109 = vst.msk [vmem:[#allocation3 + $0x8] sm:$0xff] %vm20, 0.0
  %110 = vst.msk [vmem:[#allocation3 + $0x10] sm:$0x3] %vm23, 0.0
  %111 = vst.msk [vmem:[#allocation3 + $0x1b0] sm:$0xff] %vm20, 0.0
  %112 = vst.msk [vmem:[#allocation3 + $0x1b8] sm:$0xff] %vm20, 0.0
  %113 = vst.msk [vmem:[#allocation3 + $0x1c0] sm:$0x3] %vm23, 0.0
  %s114 = scalar_lea.vmem [#allocation3], 408
  %115 = vst.msk [vmem:[%s114] sm:$0xff] %vm20, 0.0
  %116 = vst.msk [vmem:[%s114 + $0x8] sm:$0xff] %vm20, 0.0
  %117 = vst.msk [vmem:[%s114 + $0x10] sm:$0x3] %vm23, 0.0
  %118 = vst.msk [vmem:[%s114 + $0x1b0] sm:$0xff] %vm20, 0.0
  %119 = vst.msk [vmem:[%s114 + $0x1b8] sm:$0xff] %vm20, 0.0
  %120 = vst.msk [vmem:[%s114 + $0x1c0] sm:$0x3] %vm23, 0.0
  %121 = vst.msk [vmem:[#allocation3] sm:$0x1] %vm35, 0.0
  %122 = vst.msk [vmem:[#allocation3 + $0x18] sm:$0x1] %vm35, 0.0
  %123 = vst.msk [vmem:[#allocation3 + $0x30] sm:$0x1] %vm35, 0.0
  %124 = vst.msk [vmem:[#allocation3 + $0x48] sm:$0x1] %vm35, 0.0
  %125 = vst.msk [vmem:[#allocation3 + $0x60] sm:$0x1] %vm35, 0.0
  %126 = vst.msk [vmem:[#allocation3 + $0x78] sm:$0x1] %vm35, 0.0
  %127 = vst.msk [vmem:[#allocation3 + $0x90] sm:$0x1] %vm35, 0.0
  %128 = vst.msk [vmem:[#allocation3 + $0xa8] sm:$0x1] %vm35, 0.0
  %129 = vst.msk [vmem:[#allocation3 + $0xc0] sm:$0x1] %vm35, 0.0
  %130 = vst.msk [vmem:[#allocation3 + $0xd8] sm:$0x1] %vm35, 0.0
  %131 = vst.msk [vmem:[#allocation3 + $0xf0] sm:$0x1] %vm35, 0.0
  %132 = vst.msk [vmem:[#allocation3 + $0x108] sm:$0x1] %vm35, 0.0
  %133 = vst.msk [vmem:[#allocation3 + $0x120] sm:$0x1] %vm35, 0.0
  %134 = vst.msk [vmem:[#allocation3 + $0x138] sm:$0x1] %vm35, 0.0
  %135 = vst.msk [vmem:[#allocation3 + $0x150] sm:$0x1] %vm35, 0.0
  %136 = vst.msk [vmem:[#allocation3 + $0x168] sm:$0x1] %vm35, 0.0
  %137 = vst.msk [vmem:[#allocation3 + $0x180] sm:$0x1] %vm35, 0.0
  %138 = vst.msk [vmem:[#allocation3 + $0x198] sm:$0x1] %vm35, 0.0
  %139 = vst.msk [vmem:[#allocation3 + $0x1b0] sm:$0x1] %vm35, 0.0
  %140 = vst.msk [vmem:[#allocation3 + $0x1c8] sm:$0x1] %vm35, 0.0
  %141 = vst.msk [vmem:[#allocation3 + $0x1e0] sm:$0x1] %vm35, 0.0
  %142 = vst.msk [vmem:[#allocation3 + $0x1f8] sm:$0x1] %vm35, 0.0
  %143 = vst.msk [vmem:[#allocation3 + $0x210] sm:$0x1] %vm35, 0.0
  %144 = vst.msk [vmem:[#allocation3 + $0x228] sm:$0x1] %vm35, 0.0
  %145 = vst.msk [vmem:[#allocation3 + $0x240] sm:$0x1] %vm35, 0.0
  %146 = vst.msk [vmem:[#allocation3 + $0x258] sm:$0x1] %vm35, 0.0
  %147 = vst.msk [vmem:[#allocation3 + $0x270] sm:$0x1] %vm35, 0.0
  %148 = vst.msk [vmem:[#allocation3 + $0x288] sm:$0x1] %vm35, 0.0
  %149 = vst.msk [vmem:[#allocation3 + $0x2a0] sm:$0x1] %vm35, 0.0
  %150 = vst.msk [vmem:[#allocation3 + $0x2b8] sm:$0x1] %vm35, 0.0
  %151 = vst.msk [vmem:[#allocation3 + $0x2d0] sm:$0x1] %vm35, 0.0
  %152 = vst.msk [vmem:[#allocation3 + $0x2e8] sm:$0x1] %vm35, 0.0
  %153 = vst.msk [vmem:[#allocation3 + $0x300] sm:$0x1] %vm35, 0.0
  %154 = vst.msk [vmem:[#allocation3 + $0x318] sm:$0x1] %vm35, 0.0
  %155 = vst.msk [vmem:[#allocation3 + $0x330] sm:$0x1] %vm35, 0.0
  %156 = vst.msk [vmem:[#allocation3 + $0x348] sm:$0x1] %vm35, 0.0
  %157 = vst.msk [vmem:[#allocation3 + $0x11] sm:$0x1] %vm35, 0.0
  %158 = vst.msk [vmem:[#allocation3 + $0x29] sm:$0x1] %vm35, 0.0
  %159 = vst.msk [vmem:[#allocation3 + $0x41] sm:$0x1] %vm35, 0.0
  %160 = vst.msk [vmem:[#allocation3 + $0x59] sm:$0x1] %vm35, 0.0
  %161 = vst.msk [vmem:[#allocation3 + $0x71] sm:$0x1] %vm35, 0.0
  %162 = vst.msk [vmem:[#allocation3 + $0x89] sm:$0x1] %vm35, 0.0
  %163 = vst.msk [vmem:[#allocation3 + $0xa1] sm:$0x1] %vm35, 0.0
  %164 = vst.msk [vmem:[#allocation3 + $0xb9] sm:$0x1] %vm35, 0.0
  %165 = vst.msk [vmem:[#allocation3 + $0xd1] sm:$0x1] %vm35, 0.0
  %166 = vst.msk [vmem:[#allocation3 + $0xe9] sm:$0x1] %vm35, 0.0
  %167 = vst.msk [vmem:[#allocation3 + $0x101] sm:$0x1] %vm35, 0.0
  %168 = vst.msk [vmem:[#allocation3 + $0x119] sm:$0x1] %vm35, 0.0
  %169 = vst.msk [vmem:[#allocation3 + $0x131] sm:$0x1] %vm35, 0.0
  %170 = vst.msk [vmem:[#allocation3 + $0x149] sm:$0x1] %vm35, 0.0
  %171 = vst.msk [vmem:[#allocation3 + $0x161] sm:$0x1] %vm35, 0.0
  %172 = vst.msk [vmem:[#allocation3 + $0x179] sm:$0x1] %vm35, 0.0
  %173 = vst.msk [vmem:[#allocation3 + $0x191] sm:$0x1] %vm35, 0.0
  %174 = vst.msk [vmem:[#allocation3 + $0x1a9] sm:$0x1] %vm35, 0.0
  %175 = vst.msk [vmem:[#allocation3 + $0x1c1] sm:$0x1] %vm35, 0.0
  %176 = vst.msk [vmem:[#allocation3 + $0x1d9] sm:$0x1] %vm35, 0.0
  %177 = vst.msk [vmem:[#allocation3 + $0x1f1] sm:$0x1] %vm35, 0.0
  %178 = vst.msk [vmem:[#allocation3 + $0x209] sm:$0x1] %vm35, 0.0
  %179 = vst.msk [vmem:[#allocation3 + $0x221] sm:$0x1] %vm35, 0.0
  %180 = vst.msk [vmem:[#allocation3 + $0x239] sm:$0x1] %vm35, 0.0
  %181 = vst.msk [vmem:[#allocation3 + $0x251] sm:$0x1] %vm35, 0.0
  %182 = vst.msk [vmem:[#allocation3 + $0x269] sm:$0x1] %vm35, 0.0
  %183 = vst.msk [vmem:[#allocation3 + $0x281] sm:$0x1] %vm35, 0.0
  %184 = vst.msk [vmem:[#allocation3 + $0x299] sm:$0x1] %vm35, 0.0
  %185 = vst.msk [vmem:[#allocation3 + $0x2b1] sm:$0x1] %vm35, 0.0
  %186 = vst.msk [vmem:[#allocation3 + $0x2c9] sm:$0x1] %vm35, 0.0
  %187 = vst.msk [vmem:[#allocation3 + $0x2e1] sm:$0x1] %vm35, 0.0
  %188 = vst.msk [vmem:[#allocation3 + $0x2f9] sm:$0x1] %vm35, 0.0
  %189 = vst.msk [vmem:[#allocation3 + $0x311] sm:$0x1] %vm35, 0.0
  %190 = vst.msk [vmem:[#allocation3 + $0x329] sm:$0x1] %vm35, 0.0
  %191 = vst.msk [vmem:[#allocation3 + $0x341] sm:$0x1] %vm35, 0.0
  %192 = vst.msk [vmem:[#allocation3 + $0x359] sm:$0x1] %vm35, 0.0
  %v193 = vld [vmem:[%s0] sm:$0xff]
  %v194 = vld [vmem:[%s0 + $0x8] sm:$0xff]
  %v195 = vld [vmem:[%s0 + $0x10] sm:$0xff]
  %v196 = vld [vmem:[%s0 + $0x18] sm:$0xff]
  %v197 = vld [vmem:[%s0 + $0x20] sm:$0xff]
  %v198 = vld [vmem:[%s0 + $0x28] sm:$0xff]
  %v199 = vld [vmem:[%s0 + $0x30] sm:$0xff]
  %v200 = vld [vmem:[%s0 + $0x38] sm:$0xff]
  %v201 = vld [vmem:[%s0 + $0x40] sm:$0xff]
  %v202 = vld [vmem:[%s0 + $0x48] sm:$0xff]
  %v203 = vld [vmem:[%s0 + $0x50] sm:$0xff]
  %v204 = vld [vmem:[%s0 + $0x58] sm:$0xff]
  %v205 = vld [vmem:[%s0 + $0x60] sm:$0xff]
  %v206 = vld [vmem:[%s0 + $0x68] sm:$0xff]
  %v207 = vld [vmem:[%s0 + $0x70] sm:$0xff]
  %v208 = vld [vmem:[%s0 + $0x78] sm:$0xff]
  %v209 = vld [vmem:[%s0 + $0x80] sm:$0xff]
  %v210 = vld [vmem:[%s0 + $0x88] sm:$0xff]
  %v211 = vld [vmem:[%s0 + $0x90] sm:$0xff]
  %v212 = vld [vmem:[%s0 + $0x98] sm:$0xff]
  %v213 = vld [vmem:[%s0 + $0xa0] sm:$0xff]
  %v214 = vld [vmem:[%s0 + $0xa8] sm:$0xff]
  %v215 = vld [vmem:[%s0 + $0xb0] sm:$0xff]
  %v216 = vld [vmem:[%s0 + $0xb8] sm:$0xff]
  %v217 = vld [vmem:[%s0 + $0xc0] sm:$0xff]
  %v218 = vld [vmem:[%s0 + $0xc8] sm:$0xff]
  %v219 = vld [vmem:[%s0 + $0xd0] sm:$0xff]
  %v220 = vld [vmem:[%s0 + $0xd8] sm:$0xff]
  %v221 = vld [vmem:[%s0 + $0xe0] sm:$0xff]
  %v222 = vld [vmem:[%s0 + $0xe8] sm:$0xff]
  %v223 = vld [vmem:[%s0 + $0xf0] sm:$0xff]
  %v224 = vld [vmem:[%s0 + $0xf8] sm:$0xff]
  %v225 = vld [vmem:[%s0 + $0x100] sm:$0xff]
  %v226 = vld [vmem:[%s0 + $0x108] sm:$0xff]
  %v227 = vld [vmem:[%s0 + $0x110] sm:$0xff]
  %v228 = vld [vmem:[%s0 + $0x118] sm:$0xff]
  %v229 = vld [vmem:[%s0 + $0x120] sm:$0xff]
  %v230 = vld [vmem:[%s0 + $0x128] sm:$0xff]
  %v231 = vld [vmem:[%s0 + $0x130] sm:$0xff]
  %v232 = vld [vmem:[%s0 + $0x138] sm:$0xff]
  %v233 = vld [vmem:[%s0 + $0x140] sm:$0xff]
  %v234 = vld [vmem:[%s0 + $0x148] sm:$0xff]
  %v235 = vld [vmem:[%s0 + $0x150] sm:$0xff]
  %v236 = vld [vmem:[%s0 + $0x158] sm:$0xff]
  %v237 = vld [vmem:[%s0 + $0x160] sm:$0xff]
  %v238 = vld [vmem:[%s0 + $0x168] sm:$0xff]
  %v239 = vld [vmem:[%s0 + $0x170] sm:$0xff]
  %v240 = vld [vmem:[%s0 + $0x178] sm:$0xff]
  %v241 = vld [vmem:[%s0 + $0x180] sm:$0xff]
  %v242 = vld [vmem:[%s0 + $0x188] sm:$0xff]
  %v243 = vld [vmem:[%s0 + $0x190] sm:$0xff]
  %v244 = vld [vmem:[%s0 + $0x198] sm:$0xff]
  %v245 = vld [vmem:[%s0 + $0x1a0] sm:$0xff]
  %v246 = vld [vmem:[%s0 + $0x1a8] sm:$0xff]
  %v247 = vld [vmem:[%s0 + $0x1b0] sm:$0xff]
  %v248 = vld [vmem:[%s0 + $0x1b8] sm:$0xff]
  %v249 = vld [vmem:[%s0 + $0x1c0] sm:$0xff]
  %v250 = vld [vmem:[%s0 + $0x1c8] sm:$0xff]
  %v251 = vld [vmem:[%s0 + $0x1d0] sm:$0xff]
  %v252 = vld [vmem:[%s0 + $0x1d8] sm:$0xff]
  %v253 = vld [vmem:[%s0 + $0x1e0] sm:$0xff]
  %v254 = vld [vmem:[%s0 + $0x1e8] sm:$0xff]
  %v255 = vld [vmem:[%s0 + $0x1f0] sm:$0xff]
  %v256 = vld [vmem:[%s0 + $0x1f8] sm:$0xff]
  %s257 = scalar_lea.vmem [#allocation2], 24
  %258 = vst.msk [vmem:[%s257 + $0x1] sm:$0xff] %vm20, %v193
  %259 = vst.msk [vmem:[%s257 + $0x9] sm:$0xff] %vm20, %v194
  %260 = vst.msk [vmem:[%s257 + $0x19] sm:$0xff] %vm20, %v195
  %261 = vst.msk [vmem:[%s257 + $0x21] sm:$0xff] %vm20, %v196
  %262 = vst.msk [vmem:[%s257 + $0x31] sm:$0xff] %vm20, %v197
  %263 = vst.msk [vmem:[%s257 + $0x39] sm:$0xff] %vm20, %v198
  %264 = vst.msk [vmem:[%s257 + $0x49] sm:$0xff] %vm20, %v199
  %265 = vst.msk [vmem:[%s257 + $0x51] sm:$0xff] %vm20, %v200
  %266 = vst.msk [vmem:[%s257 + $0x61] sm:$0xff] %vm20, %v201
  %267 = vst.msk [vmem:[%s257 + $0x69] sm:$0xff] %vm20, %v202
  %268 = vst.msk [vmem:[%s257 + $0x79] sm:$0xff] %vm20, %v203
  %269 = vst.msk [vmem:[%s257 + $0x81] sm:$0xff] %vm20, %v204
  %270 = vst.msk [vmem:[%s257 + $0x91] sm:$0xff] %vm20, %v205
  %271 = vst.msk [vmem:[%s257 + $0x99] sm:$0xff] %vm20, %v206
  %272 = vst.msk [vmem:[%s257 + $0xa9] sm:$0xff] %vm20, %v207
  %273 = vst.msk [vmem:[%s257 + $0xb1] sm:$0xff] %vm20, %v208
  %274 = vst.msk [vmem:[%s257 + $0xc1] sm:$0xff] %vm20, %v209
  %275 = vst.msk [vmem:[%s257 + $0xc9] sm:$0xff] %vm20, %v210
  %276 = vst.msk [vmem:[%s257 + $0xd9] sm:$0xff] %vm20, %v211
  %277 = vst.msk [vmem:[%s257 + $0xe1] sm:$0xff] %vm20, %v212
  %278 = vst.msk [vmem:[%s257 + $0xf1] sm:$0xff] %vm20, %v213
  %279 = vst.msk [vmem:[%s257 + $0xf9] sm:$0xff] %vm20, %v214
  %280 = vst.msk [vmem:[%s257 + $0x109] sm:$0xff] %vm20, %v215
  %281 = vst.msk [vmem:[%s257 + $0x111] sm:$0xff] %vm20, %v216
  %282 = vst.msk [vmem:[%s257 + $0x121] sm:$0xff] %vm20, %v217
  %283 = vst.msk [vmem:[%s257 + $0x129] sm:$0xff] %vm20, %v218
  %284 = vst.msk [vmem:[%s257 + $0x139] sm:$0xff] %vm20, %v219
  %285 = vst.msk [vmem:[%s257 + $0x141] sm:$0xff] %vm20, %v220
  %286 = vst.msk [vmem:[%s257 + $0x151] sm:$0xff] %vm20, %v221
  %287 = vst.msk [vmem:[%s257 + $0x159] sm:$0xff] %vm20, %v222
  %288 = vst.msk [vmem:[%s257 + $0x169] sm:$0xff] %vm20, %v223
  %289 = vst.msk [vmem:[%s257 + $0x171] sm:$0xff] %vm20, %v224
  %290 = vst.msk [vmem:[%s257 + $0x1b1] sm:$0xff] %vm20, %v225
  %291 = vst.msk [vmem:[%s257 + $0x1b9] sm:$0xff] %vm20, %v226
  %292 = vst.msk [vmem:[%s257 + $0x1c9] sm:$0xff] %vm20, %v227
  %293 = vst.msk [vmem:[%s257 + $0x1d1] sm:$0xff] %vm20, %v228
  %294 = vst.msk [vmem:[%s257 + $0x1e1] sm:$0xff] %vm20, %v229
  %295 = vst.msk [vmem:[%s257 + $0x1e9] sm:$0xff] %vm20, %v230
  %296 = vst.msk [vmem:[%s257 + $0x1f9] sm:$0xff] %vm20, %v231
  %297 = vst.msk [vmem:[%s257 + $0x201] sm:$0xff] %vm20, %v232
  %298 = vst.msk [vmem:[%s257 + $0x211] sm:$0xff] %vm20, %v233
  %299 = vst.msk [vmem:[%s257 + $0x219] sm:$0xff] %vm20, %v234
  %300 = vst.msk [vmem:[%s257 + $0x229] sm:$0xff] %vm20, %v235
  %301 = vst.msk [vmem:[%s257 + $0x231] sm:$0xff] %vm20, %v236
  %302 = vst.msk [vmem:[%s257 + $0x241] sm:$0xff] %vm20, %v237
  %303 = vst.msk [vmem:[%s257 + $0x249] sm:$0xff] %vm20, %v238
  %304 = vst.msk [vmem:[%s257 + $0x259] sm:$0xff] %vm20, %v239
  %305 = vst.msk [vmem:[%s257 + $0x261] sm:$0xff] %vm20, %v240
  %306 = vst.msk [vmem:[%s257 + $0x271] sm:$0xff] %vm20, %v241
  %307 = vst.msk [vmem:[%s257 + $0x279] sm:$0xff] %vm20, %v242
  %308 = vst.msk [vmem:[%s257 + $0x289] sm:$0xff] %vm20, %v243
  %309 = vst.msk [vmem:[%s257 + $0x291] sm:$0xff] %vm20, %v244
  %310 = vst.msk [vmem:[%s257 + $0x2a1] sm:$0xff] %vm20, %v245
  %311 = vst.msk [vmem:[%s257 + $0x2a9] sm:$0xff] %vm20, %v246
  %312 = vst.msk [vmem:[%s257 + $0x2b9] sm:$0xff] %vm20, %v247
  %313 = vst.msk [vmem:[%s257 + $0x2c1] sm:$0xff] %vm20, %v248
  %314 = vst.msk [vmem:[%s257 + $0x2d1] sm:$0xff] %vm20, %v249
  %315 = vst.msk [vmem:[%s257 + $0x2d9] sm:$0xff] %vm20, %v250
  %316 = vst.msk [vmem:[%s257 + $0x2e9] sm:$0xff] %vm20, %v251
  %317 = vst.msk [vmem:[%s257 + $0x2f1] sm:$0xff] %vm20, %v252
  %318 = vst.msk [vmem:[%s257 + $0x301] sm:$0xff] %vm20, %v253
  %319 = vst.msk [vmem:[%s257 + $0x309] sm:$0xff] %vm20, %v254
  %320 = vst.msk [vmem:[%s257 + $0x319] sm:$0xff] %vm20, %v255
  %321 = vst.msk [vmem:[%s257 + $0x321] sm:$0xff] %vm20, %v256
  %v322 = vld [vmem:[#allocation2] sm:$0xff]
  %v323 = vld [vmem:[#allocation2 + $0x8] sm:$0xff]
  %v324 = vld [vmem:[#allocation2 + $0x18] sm:$0xff]
  %v325 = vld [vmem:[#allocation2 + $0x20] sm:$0xff]
  %v326 = vld [vmem:[#allocation2 + $0x30] sm:$0xff]
  %v327 = vld [vmem:[#allocation2 + $0x38] sm:$0xff]
  %v328 = vld [vmem:[#allocation2 + $0x48] sm:$0xff]
  %v329 = vld [vmem:[#allocation2 + $0x50] sm:$0xff]
  %v330 = vld [vmem:[#allocation2 + $0x60] sm:$0xff]
  %v331 = vld [vmem:[#allocation2 + $0x68] sm:$0xff]
  %v332 = vld [vmem:[#allocation2 + $0x78] sm:$0xff]
  %v333 = vld [vmem:[#allocation2 + $0x80] sm:$0xff]
  %v334 = vld [vmem:[#allocation2 + $0x90] sm:$0xff]
  %v335 = vld [vmem:[#allocation2 + $0x98] sm:$0xff]
  %v336 = vld [vmem:[#allocation2 + $0xa8] sm:$0xff]
  %v337 = vld [vmem:[#allocation2 + $0xb0] sm:$0xff]
  %v338 = vld [vmem:[#allocation2 + $0xc0] sm:$0xff]
  %v339 = vld [vmem:[#allocation2 + $0xc8] sm:$0xff]
  %v340 = vld [vmem:[#allocation2 + $0xd8] sm:$0xff]
  %v341 = vld [vmem:[#allocation2 + $0xe0] sm:$0xff]
  %v342 = vld [vmem:[#allocation2 + $0xf0] sm:$0xff]
  %v343 = vld [vmem:[#allocation2 + $0xf8] sm:$0xff]
  %v344 = vld [vmem:[#allocation2 + $0x108] sm:$0xff]
  %v345 = vld [vmem:[#allocation2 + $0x110] sm:$0xff]
  %v346 = vld [vmem:[#allocation2 + $0x120] sm:$0xff]
  %v347 = vld [vmem:[#allocation2 + $0x128] sm:$0xff]
  %v348 = vld [vmem:[#allocation2 + $0x138] sm:$0xff]
  %v349 = vld [vmem:[#allocation2 + $0x140] sm:$0xff]
  %v350 = vld [vmem:[#allocation2 + $0x150] sm:$0xff]
  %v351 = vld [vmem:[#allocation2 + $0x158] sm:$0xff]
  %v352 = vld [vmem:[#allocation2 + $0x168] sm:$0xff]
  %v353 = vld [vmem:[#allocation2 + $0x170] sm:$0xff]
  %v354 = vld [vmem:[#allocation2 + $0x180] sm:$0xff]
  %v355 = vld [vmem:[#allocation2 + $0x188] sm:$0xff]
  %v356 = vld [vmem:[#allocation2 + $0x198] sm:$0xff]
  %v357 = vld [vmem:[#allocation2 + $0x1a0] sm:$0xff]
  %v358 = vld [vmem:[#allocation2 + $0x1b0] sm:$0xff]
  %v359 = vld [vmem:[#allocation2 + $0x1b8] sm:$0xff]
  %v360 = vld [vmem:[#allocation2 + $0x1c8] sm:$0xff]
  %v361 = vld [vmem:[#allocation2 + $0x1d0] sm:$0xff]
  %v362 = vld [vmem:[#allocation2 + $0x1e0] sm:$0xff]
  %v363 = vld [vmem:[#allocation2 + $0x1e8] sm:$0xff]
  %v364 = vld [vmem:[#allocation2 + $0x1f8] sm:$0xff]
  %v365 = vld [vmem:[#allocation2 + $0x200] sm:$0xff]
  %v366 = vld [vmem:[#allocation2 + $0x210] sm:$0xff]
  %v367 = vld [vmem:[#allocation2 + $0x218] sm:$0xff]
  %v368 = vld [vmem:[#allocation2 + $0x228] sm:$0xff]
  %v369 = vld [vmem:[#allocation2 + $0x230] sm:$0xff]
  %v370 = vld [vmem:[#allocation2 + $0x240] sm:$0xff]
  %v371 = vld [vmem:[#allocation2 + $0x248] sm:$0xff]
  %v372 = vld [vmem:[#allocation2 + $0x258] sm:$0xff]
  %v373 = vld [vmem:[#allocation2 + $0x260] sm:$0xff]
  %v374 = vld [vmem:[#allocation2 + $0x270] sm:$0xff]
  %v375 = vld [vmem:[#allocation2 + $0x278] sm:$0xff]
  %v376 = vld [vmem:[#allocation2 + $0x288] sm:$0xff]
  %v377 = vld [vmem:[#allocation2 + $0x290] sm:$0xff]
  %v378 = vld [vmem:[#allocation2 + $0x2a0] sm:$0xff]
  %v379 = vld [vmem:[#allocation2 + $0x2a8] sm:$0xff]
  %v380 = vld [vmem:[#allocation2 + $0x2b8] sm:$0xff]
  %v381 = vld [vmem:[#allocation2 + $0x2c0] sm:$0xff]
  %v382 = vld [vmem:[#allocation2 + $0x2d0] sm:$0xff]
  %v383 = vld [vmem:[#allocation2 + $0x2d8] sm:$0xff]
  %v384 = vld [vmem:[#allocation2 + $0x2e8] sm:$0xff]
  %v385 = vld [vmem:[#allocation2 + $0x2f0] sm:$0xff]
  %v386 = vld [vmem:[#allocation2 + $0x300] sm:$0xff]
  %v387 = vld [vmem:[#allocation2 + $0x308] sm:$0xff]
  %v388 = vld [vmem:[#allocation2 + $0x318] sm:$0xff]
  %v389 = vld [vmem:[#allocation2 + $0x320] sm:$0xff]
  %v390 = vld [vmem:[#allocation2 + $0x330] sm:$0xff]
  %v391 = vld [vmem:[#allocation2 + $0x338] sm:$0xff]
  %v392 = vld [vmem:[#allocation2 + $0x348] sm:$0xff]
  %v393 = vld [vmem:[#allocation2 + $0x350] sm:$0xff]
  %v394 = vld [vmem:[#allocation2 + $0x1] sm:$0xff]
  %v395 = vld [vmem:[#allocation2 + $0x9] sm:$0xff]
  %v396 = vld [vmem:[#allocation2 + $0x19] sm:$0xff]
  %v397 = vld [vmem:[#allocation2 + $0x21] sm:$0xff]
  %v398 = vld [vmem:[#allocation2 + $0x31] sm:$0xff]
  %v399 = vld [vmem:[#allocation2 + $0x39] sm:$0xff]
  %v400 = vld [vmem:[#allocation2 + $0x49] sm:$0xff]
  %v401 = vld [vmem:[#allocation2 + $0x51] sm:$0xff]
  %v402 = vld [vmem:[#allocation2 + $0x61] sm:$0xff]
  %v403 = vld [vmem:[#allocation2 + $0x69] sm:$0xff]
  %v404 = vld [vmem:[#allocation2 + $0x79] sm:$0xff]
  %v405 = vld [vmem:[#allocation2 + $0x81] sm:$0xff]
  %v406 = vld [vmem:[#allocation2 + $0x91] sm:$0xff]
  %v407 = vld [vmem:[#allocation2 + $0x99] sm:$0xff]
  %v408 = vld [vmem:[#allocation2 + $0xa9] sm:$0xff]
  %v409 = vld [vmem:[#allocation2 + $0xb1] sm:$0xff]
  %v410 = vld [vmem:[#allocation2 + $0xc1] sm:$0xff]
  %v411 = vld [vmem:[#allocation2 + $0xc9] sm:$0xff]
  %v412 = vld [vmem:[#allocation2 + $0xd9] sm:$0xff]
  %v413 = vld [vmem:[#allocation2 + $0xe1] sm:$0xff]
  %v414 = vld [vmem:[#allocation2 + $0xf1] sm:$0xff]
  %v415 = vld [vmem:[#allocation2 + $0xf9] sm:$0xff]
  %v416 = vld [vmem:[#allocation2 + $0x109] sm:$0xff]
  %v417 = vld [vmem:[#allocation2 + $0x111] sm:$0xff]
  %v418 = vld [vmem:[#allocation2 + $0x121] sm:$0xff]
  %v419 = vld [vmem:[#allocation2 + $0x129] sm:$0xff]
  %v420 = vld [vmem:[#allocation2 + $0x139] sm:$0xff]
  %v421 = vld [vmem:[#allocation2 + $0x141] sm:$0xff]
  %v422 = vld [vmem:[#allocation2 + $0x151] sm:$0xff]
  %v423 = vld [vmem:[#allocation2 + $0x159] sm:$0xff]
  %v424 = vld [vmem:[#allocation2 + $0x169] sm:$0xff]
  %v425 = vld [vmem:[#allocation2 + $0x171] sm:$0xff]
  %v426 = vld [vmem:[#allocation2 + $0x181] sm:$0xff]
  %v427 = vld [vmem:[#allocation2 + $0x189] sm:$0xff]
  %v428 = vld [vmem:[#allocation2 + $0x199] sm:$0xff]
  %v429 = vld [vmem:[#allocation2 + $0x1a1] sm:$0xff]
  %v430 = vld [vmem:[#allocation2 + $0x1b1] sm:$0xff]
  %v431 = vld [vmem:[#allocation2 + $0x1b9] sm:$0xff]
  %v432 = vld [vmem:[#allocation2 + $0x1c9] sm:$0xff]
  %v433 = vld [vmem:[#allocation2 + $0x1d1] sm:$0xff]
  %v434 = vld [vmem:[#allocation2 + $0x1e1] sm:$0xff]
  %v435 = vld [vmem:[#allocation2 + $0x1e9] sm:$0xff]
  %v436 = vld [vmem:[#allocation2 + $0x1f9] sm:$0xff]
  %v437 = vld [vmem:[#allocation2 + $0x201] sm:$0xff]
  %v438 = vld [vmem:[#allocation2 + $0x211] sm:$0xff]
  %v439 = vld [vmem:[#allocation2 + $0x219] sm:$0xff]
  %v440 = vld [vmem:[#allocation2 + $0x229] sm:$0xff]
  %v441 = vld [vmem:[#allocation2 + $0x231] sm:$0xff]
  %v442 = vld [vmem:[#allocation2 + $0x241] sm:$0xff]
  %v443 = vld [vmem:[#allocation2 + $0x249] sm:$0xff]
  %v444 = vld [vmem:[#allocation2 + $0x259] sm:$0xff]
  %v445 = vld [vmem:[#allocation2 + $0x261] sm:$0xff]
  %v446 = vld [vmem:[#allocation2 + $0x271] sm:$0xff]
  %v447 = vld [vmem:[#allocation2 + $0x279] sm:$0xff]
  %v448 = vld [vmem:[#allocation2 + $0x289] sm:$0xff]
  %v449 = vld [vmem:[#allocation2 + $0x291] sm:$0xff]
  %v450 = vld [vmem:[#allocation2 + $0x2a1] sm:$0xff]
  %v451 = vld [vmem:[#allocation2 + $0x2a9] sm:$0xff]
  %v452 = vld [vmem:[#allocation2 + $0x2b9] sm:$0xff]
  %v453 = vld [vmem:[#allocation2 + $0x2c1] sm:$0xff]
  %v454 = vld [vmem:[#allocation2 + $0x2d1] sm:$0xff]
  %v455 = vld [vmem:[#allocation2 + $0x2d9] sm:$0xff]
  %v456 = vld [vmem:[#allocation2 + $0x2e9] sm:$0xff]
  %v457 = vld [vmem:[#allocation2 + $0x2f1] sm:$0xff]
  %v458 = vld [vmem:[#allocation2 + $0x301] sm:$0xff]
  %v459 = vld [vmem:[#allocation2 + $0x309] sm:$0xff]
  %v460 = vld [vmem:[#allocation2 + $0x319] sm:$0xff]
  %v461 = vld [vmem:[#allocation2 + $0x321] sm:$0xff]
  %v462 = vld [vmem:[#allocation2 + $0x331] sm:$0xff]
  %v463 = vld [vmem:[#allocation2 + $0x339] sm:$0xff]
  %v464 = vld [vmem:[#allocation2 + $0x349] sm:$0xff]
  %v465 = vld [vmem:[#allocation2 + $0x351] sm:$0xff]
  %v466 = vld [vmem:[#allocation2 + $0x2] sm:$0xff]
  %v467 = vld [vmem:[#allocation2 + $0xa] sm:$0xff]
  %v468 = vld [vmem:[#allocation2 + $0x1a] sm:$0xff]
  %v469 = vld [vmem:[#allocation2 + $0x22] sm:$0xff]
  %v470 = vld [vmem:[#allocation2 + $0x32] sm:$0xff]
  %v471 = vld [vmem:[#allocation2 + $0x3a] sm:$0xff]
  %v472 = vld [vmem:[#allocation2 + $0x4a] sm:$0xff]
  %v473 = vld [vmem:[#allocation2 + $0x52] sm:$0xff]
  %v474 = vld [vmem:[#allocation2 + $0x62] sm:$0xff]
  %v475 = vld [vmem:[#allocation2 + $0x6a] sm:$0xff]
  %v476 = vld [vmem:[#allocation2 + $0x7a] sm:$0xff]
  %v477 = vld [vmem:[#allocation2 + $0x82] sm:$0xff]
  %v478 = vld [vmem:[#allocation2 + $0x92] sm:$0xff]
  %v479 = vld [vmem:[#allocation2 + $0x9a] sm:$0xff]
  %v480 = vld [vmem:[#allocation2 + $0xaa] sm:$0xff]
  %v481 = vld [vmem:[#allocation2 + $0xb2] sm:$0xff]
  %v482 = vld [vmem:[#allocation2 + $0xc2] sm:$0xff]
  %v483 = vld [vmem:[#allocation2 + $0xca] sm:$0xff]
  %v484 = vld [vmem:[#allocation2 + $0xda] sm:$0xff]
  %v485 = vld [vmem:[#allocation2 + $0xe2] sm:$0xff]
  %v486 = vld [vmem:[#allocation2 + $0xf2] sm:$0xff]
  %v487 = vld [vmem:[#allocation2 + $0xfa] sm:$0xff]
  %v488 = vld [vmem:[#allocation2 + $0x10a] sm:$0xff]
  %v489 = vld [vmem:[#allocation2 + $0x112] sm:$0xff]
  %v490 = vld [vmem:[#allocation2 + $0x122] sm:$0xff]
  %v491 = vld [vmem:[#allocation2 + $0x12a] sm:$0xff]
  %v492 = vld [vmem:[#allocation2 + $0x13a] sm:$0xff]
  %v493 = vld [vmem:[#allocation2 + $0x142] sm:$0xff]
  %v494 = vld [vmem:[#allocation2 + $0x152] sm:$0xff]
  %v495 = vld [vmem:[#allocation2 + $0x15a] sm:$0xff]
  %v496 = vld [vmem:[#allocation2 + $0x16a] sm:$0xff]
  %v497 = vld [vmem:[#allocation2 + $0x172] sm:$0xff]
  %v498 = vld [vmem:[#allocation2 + $0x182] sm:$0xff]
  %v499 = vld [vmem:[#allocation2 + $0x18a] sm:$0xff]
  %v500 = vld [vmem:[#allocation2 + $0x19a] sm:$0xff]
  %v501 = vld [vmem:[#allocation2 + $0x1a2] sm:$0xff]
  %v502 = vld [vmem:[#allocation2 + $0x1b2] sm:$0xff]
  %v503 = vld [vmem:[#allocation2 + $0x1ba] sm:$0xff]
  %v504 = vld [vmem:[#allocation2 + $0x1ca] sm:$0xff]
  %v505 = vld [vmem:[#allocation2 + $0x1d2] sm:$0xff]
  %v506 = vld [vmem:[#allocation2 + $0x1e2] sm:$0xff]
  %v507 = vld [vmem:[#allocation2 + $0x1ea] sm:$0xff]
  %v508 = vld [vmem:[#allocation2 + $0x1fa] sm:$0xff]
  %v509 = vld [vmem:[#allocation2 + $0x202] sm:$0xff]
  %v510 = vld [vmem:[#allocation2 + $0x212] sm:$0xff]
  %v511 = vld [vmem:[#allocation2 + $0x21a] sm:$0xff]
  %v512 = vld [vmem:[#allocation2 + $0x22a] sm:$0xff]
  %v513 = vld [vmem:[#allocation2 + $0x232] sm:$0xff]
  %v514 = vld [vmem:[#allocation2 + $0x242] sm:$0xff]
  %v515 = vld [vmem:[#allocation2 + $0x24a] sm:$0xff]
  %v516 = vld [vmem:[#allocation2 + $0x25a] sm:$0xff]
  %v517 = vld [vmem:[#allocation2 + $0x262] sm:$0xff]
  %v518 = vld [vmem:[#allocation2 + $0x272] sm:$0xff]
  %v519 = vld [vmem:[#allocation2 + $0x27a] sm:$0xff]
  %v520 = vld [vmem:[#allocation2 + $0x28a] sm:$0xff]
  %v521 = vld [vmem:[#allocation2 + $0x292] sm:$0xff]
  %v522 = vld [vmem:[#allocation2 + $0x2a2] sm:$0xff]
  %v523 = vld [vmem:[#allocation2 + $0x2aa] sm:$0xff]
  %v524 = vld [vmem:[#allocation2 + $0x2ba] sm:$0xff]
  %v525 = vld [vmem:[#allocation2 + $0x2c2] sm:$0xff]
  %v526 = vld [vmem:[#allocation2 + $0x2d2] sm:$0xff]
  %v527 = vld [vmem:[#allocation2 + $0x2da] sm:$0xff]
  %v528 = vld [vmem:[#allocation2 + $0x2ea] sm:$0xff]
  %v529 = vld [vmem:[#allocation2 + $0x2f2] sm:$0xff]
  %v530 = vld [vmem:[#allocation2 + $0x302] sm:$0xff]
  %v531 = vld [vmem:[#allocation2 + $0x30a] sm:$0xff]
  %v532 = vld [vmem:[#allocation2 + $0x31a] sm:$0xff]
  %v533 = vld [vmem:[#allocation2 + $0x322] sm:$0xff]
  %v534 = vld [vmem:[#allocation2 + $0x332] sm:$0xff]
  %v535 = vld [vmem:[#allocation2 + $0x33a] sm:$0xff]
  %v536 = vld [vmem:[#allocation2 + $0x34a] sm:$0xff]
  %v537 = vld [vmem:[#allocation2 + $0x352] sm:$0xff]
  %v538 = vld [vmem:[%s1] sm:$0xf]
  %s539 = scalar_lea.vmem %s1, 4
  %v540 = vld [vmem:[%s539] sm:$0xf]
  %v542 = vsel %vm20, %v394, 0
  %v545 = vsel %vm20, %v395, 0
  %v548 = vsel %vm20, %v396, 0
  %v551 = vsel %vm20, %v397, 0
  %v554 = vsel %vm20, %v398, 0
  %v557 = vsel %vm20, %v399, 0
  %v560 = vsel %vm20, %v400, 0
  %v563 = vsel %vm20, %v401, 0
  %v566 = vsel %vm20, %v402, 0
  %v569 = vsel %vm20, %v403, 0
  %v572 = vsel %vm20, %v404, 0
  %v575 = vsel %vm20, %v405, 0
  %v578 = vsel %vm20, %v406, 0
  %v581 = vsel %vm20, %v407, 0
  %v584 = vsel %vm20, %v408, 0
  %v587 = vsel %vm20, %v409, 0
  %v590 = vsel %vm20, %v410, 0
  %v593 = vsel %vm20, %v411, 0
  %v596 = vsel %vm20, %v412, 0
  %v599 = vsel %vm20, %v413, 0
  %v602 = vsel %vm20, %v414, 0
  %v605 = vsel %vm20, %v415, 0
  %v608 = vsel %vm20, %v416, 0
  %v611 = vsel %vm20, %v417, 0
  %v614 = vsel %vm20, %v418, 0
  %v617 = vsel %vm20, %v419, 0
  %v620 = vsel %vm20, %v420, 0
  %v623 = vsel %vm20, %v421, 0
  %v626 = vsel %vm20, %v422, 0
  %v629 = vsel %vm20, %v423, 0
  %v632 = vsel %vm20, %v424, 0
  %v635 = vsel %vm20, %v425, 0
  %v638 = vsel %vm20, %v430, 0
  %v641 = vsel %vm20, %v431, 0
  %v644 = vsel %vm20, %v432, 0
  %v647 = vsel %vm20, %v433, 0
  %v650 = vsel %vm20, %v434, 0
  %v653 = vsel %vm20, %v435, 0
  %v656 = vsel %vm20, %v436, 0
  %v659 = vsel %vm20, %v437, 0
  %v662 = vsel %vm20, %v438, 0
  %v665 = vsel %vm20, %v439, 0
  %v668 = vsel %vm20, %v440, 0
  %v671 = vsel %vm20, %v441, 0
  %v674 = vsel %vm20, %v442, 0
  %v677 = vsel %vm20, %v443, 0
  %v680 = vsel %vm20, %v444, 0
  %v683 = vsel %vm20, %v445, 0
  %v686 = vsel %vm20, %v446, 0
  %v689 = vsel %vm20, %v447, 0
  %v692 = vsel %vm20, %v448, 0
  %v695 = vsel %vm20, %v449, 0
  %v698 = vsel %vm20, %v450, 0
  %v701 = vsel %vm20, %v451, 0
  %v704 = vsel %vm20, %v452, 0
  %v707 = vsel %vm20, %v453, 0
  %v710 = vsel %vm20, %v454, 0
  %v713 = vsel %vm20, %v455, 0
  %v716 = vsel %vm20, %v456, 0
  %v719 = vsel %vm20, %v457, 0
  %v722 = vsel %vm20, %v458, 0
  %v725 = vsel %vm20, %v459, 0
  %v728 = vsel %vm20, %v460, 0
  %v731 = vsel %vm20, %v461, 0
  %vm733 = vcmask 1043456
  %v735 = vsel %vm733, %v540, 0
  %737 = vmatpush.msra.mxu0 0.0
  %738 = vmatpush.msra.mxu0 0.0
  %739 = vmatpush.msra.mxu0 0.0
  %740 = vmatpush.msra.mxu0 0.0
  %741 = vmatpush.msra.mxu0 0.0
  %742 = vmatpush.msra.mxu0 0.0
  %743 = vmatpush.msra.mxu0 0.0
  %744 = vmatpush.msra.mxu0 0.0
  %745 = vmatpush.msra.mxu0 0.0
  %746 = vmatpush.msra.mxu0 0.0
  %747 = vmatpush.msra.mxu0 0.0
  %748 = vmatpush.msra.mxu0 0.0
  %749 = vmatpush.msra.mxu0 0.0
  %750 = vmatpush.msra.mxu0 0.0
  %751 = vmatpush.msra.mxu0 0.0
  %752 = vmatpush.msra.mxu0 %v735
  %753 = vmatmul.f32.gmra.mxu0 %v542
  %v754 = vpop.f32.mrf.mxu0
  %v755 = vadd.f32 0.0, %v754
  %756 = vmatmul.f32.gmra.mxu0 %v545
  %v757 = vpop.f32.mrf.mxu0
  %v758 = vadd.f32 0.0, %v757
  %759 = vmatmul.f32.gmra.mxu0 %v548
  %v760 = vpop.f32.mrf.mxu0
  %v761 = vadd.f32 0.0, %v760
  %762 = vmatmul.f32.gmra.mxu0 %v551
  %v763 = vpop.f32.mrf.mxu0
  %v764 = vadd.f32 0.0, %v763
  %765 = vmatmul.f32.gmra.mxu0 %v554
  %v766 = vpop.f32.mrf.mxu0
  %v767 = vadd.f32 0.0, %v766
  %768 = vmatmul.f32.gmra.mxu0 %v557
  %v769 = vpop.f32.mrf.mxu0
  %v770 = vadd.f32 0.0, %v769
  %771 = vmatmul.f32.gmra.mxu0 %v560
  %v772 = vpop.f32.mrf.mxu0
  %v773 = vadd.f32 0.0, %v772
  %774 = vmatmul.f32.gmra.mxu0 %v563
  %v775 = vpop.f32.mrf.mxu0
  %v776 = vadd.f32 0.0, %v775
  %777 = vmatmul.f32.gmra.mxu0 %v566
  %v778 = vpop.f32.mrf.mxu0
  %v779 = vadd.f32 0.0, %v778
  %780 = vmatmul.f32.gmra.mxu0 %v569
  %v781 = vpop.f32.mrf.mxu0
  %v782 = vadd.f32 0.0, %v781
  %783 = vmatmul.f32.gmra.mxu0 %v572
  %v784 = vpop.f32.mrf.mxu0
  %v785 = vadd.f32 0.0, %v784
  %786 = vmatmul.f32.gmra.mxu0 %v575
  %v787 = vpop.f32.mrf.mxu0
  %v788 = vadd.f32 0.0, %v787
  %789 = vmatmul.f32.gmra.mxu0 %v578
  %v790 = vpop.f32.mrf.mxu0
  %v791 = vadd.f32 0.0, %v790
  %792 = vmatmul.f32.gmra.mxu0 %v581
  %v793 = vpop.f32.mrf.mxu0
  %v794 = vadd.f32 0.0, %v793
  %795 = vmatmul.f32.gmra.mxu0 %v584
  %v796 = vpop.f32.mrf.mxu0
  %v797 = vadd.f32 0.0, %v796
  %798 = vmatmul.f32.gmra.mxu0 %v587
  %v799 = vpop.f32.mrf.mxu0
  %v800 = vadd.f32 0.0, %v799
  %801 = vmatmul.f32.gmra.mxu0 %v590
  %v802 = vpop.f32.mrf.mxu0
  %v803 = vadd.f32 0.0, %v802
  %804 = vmatmul.f32.gmra.mxu0 %v593
  %v805 = vpop.f32.mrf.mxu0
  %v806 = vadd.f32 0.0, %v805
  %807 = vmatmul.f32.gmra.mxu0 %v596
  %v808 = vpop.f32.mrf.mxu0
  %v809 = vadd.f32 0.0, %v808
  %810 = vmatmul.f32.gmra.mxu0 %v599
  %v811 = vpop.f32.mrf.mxu0
  %v812 = vadd.f32 0.0, %v811
  %813 = vmatmul.f32.gmra.mxu0 %v602
  %v814 = vpop.f32.mrf.mxu0
  %v815 = vadd.f32 0.0, %v814
  %816 = vmatmul.f32.gmra.mxu0 %v605
  %v817 = vpop.f32.mrf.mxu0
  %v818 = vadd.f32 0.0, %v817
  %819 = vmatmul.f32.gmra.mxu0 %v608
  %v820 = vpop.f32.mrf.mxu0
  %v821 = vadd.f32 0.0, %v820
  %822 = vmatmul.f32.gmra.mxu0 %v611
  %v823 = vpop.f32.mrf.mxu0
  %v824 = vadd.f32 0.0, %v823
  %825 = vmatmul.f32.gmra.mxu0 %v614
  %v826 = vpop.f32.mrf.mxu0
  %v827 = vadd.f32 0.0, %v826
  %828 = vmatmul.f32.gmra.mxu0 %v617
  %v829 = vpop.f32.mrf.mxu0
  %v830 = vadd.f32 0.0, %v829
  %831 = vmatmul.f32.gmra.mxu0 %v620
  %v832 = vpop.f32.mrf.mxu0
  %v833 = vadd.f32 0.0, %v832
  %834 = vmatmul.f32.gmra.mxu0 %v623
  %v835 = vpop.f32.mrf.mxu0
  %v836 = vadd.f32 0.0, %v835
  %837 = vmatmul.f32.gmra.mxu0 %v626
  %v838 = vpop.f32.mrf.mxu0
  %v839 = vadd.f32 0.0, %v838
  %840 = vmatmul.f32.gmra.mxu0 %v629
  %v841 = vpop.f32.mrf.mxu0
  %v842 = vadd.f32 0.0, %v841
  %843 = vmatmul.f32.gmra.mxu0 %v632
  %v844 = vpop.f32.mrf.mxu0
  %v845 = vadd.f32 0.0, %v844
  %846 = vmatmul.f32.gmra.mxu0 %v635
  %v847 = vpop.f32.mrf.mxu0
  %v848 = vadd.f32 0.0, %v847
  %849 = vmatmul.f32.gmra.mxu0 %v638
  %v850 = vpop.f32.mrf.mxu0
  %v851 = vadd.f32 0.0, %v850
  %852 = vmatmul.f32.gmra.mxu0 %v641
  %v853 = vpop.f32.mrf.mxu0
  %v854 = vadd.f32 0.0, %v853
  %855 = vmatmul.f32.gmra.mxu0 %v644
  %v856 = vpop.f32.mrf.mxu0
  %v857 = vadd.f32 0.0, %v856
  %858 = vmatmul.f32.gmra.mxu0 %v647
  %v859 = vpop.f32.mrf.mxu0
  %v860 = vadd.f32 0.0, %v859
  %861 = vmatmul.f32.gmra.mxu0 %v650
  %v862 = vpop.f32.mrf.mxu0
  %v863 = vadd.f32 0.0, %v862
  %864 = vmatmul.f32.gmra.mxu0 %v653
  %v865 = vpop.f32.mrf.mxu0
  %v866 = vadd.f32 0.0, %v865
  %867 = vmatmul.f32.gmra.mxu0 %v656
  %v868 = vpop.f32.mrf.mxu0
  %v869 = vadd.f32 0.0, %v868
  %870 = vmatmul.f32.gmra.mxu0 %v659
  %v871 = vpop.f32.mrf.mxu0
  %v872 = vadd.f32 0.0, %v871
  %873 = vmatmul.f32.gmra.mxu0 %v662
  %v874 = vpop.f32.mrf.mxu0
  %v875 = vadd.f32 0.0, %v874
  %876 = vmatmul.f32.gmra.mxu0 %v665
  %v877 = vpop.f32.mrf.mxu0
  %v878 = vadd.f32 0.0, %v877
  %879 = vmatmul.f32.gmra.mxu0 %v668
  %v880 = vpop.f32.mrf.mxu0
  %v881 = vadd.f32 0.0, %v880
  %882 = vmatmul.f32.gmra.mxu0 %v671
  %v883 = vpop.f32.mrf.mxu0
  %v884 = vadd.f32 0.0, %v883
  %885 = vmatmul.f32.gmra.mxu0 %v674
  %v886 = vpop.f32.mrf.mxu0
  %v887 = vadd.f32 0.0, %v886
  %888 = vmatmul.f32.gmra.mxu0 %v677
  %v889 = vpop.f32.mrf.mxu0
  %v890 = vadd.f32 0.0, %v889
  %891 = vmatmul.f32.gmra.mxu0 %v680
  %v892 = vpop.f32.mrf.mxu0
  %v893 = vadd.f32 0.0, %v892
  %894 = vmatmul.f32.gmra.mxu0 %v683
  %v895 = vpop.f32.mrf.mxu0
  %v896 = vadd.f32 0.0, %v895
  %897 = vmatmul.f32.gmra.mxu0 %v686
  %v898 = vpop.f32.mrf.mxu0
  %v899 = vadd.f32 0.0, %v898
  %900 = vmatmul.f32.gmra.mxu0 %v689
  %v901 = vpop.f32.mrf.mxu0
  %v902 = vadd.f32 0.0, %v901
  %903 = vmatmul.f32.gmra.mxu0 %v692
  %v904 = vpop.f32.mrf.mxu0
  %v905 = vadd.f32 0.0, %v904
  %906 = vmatmul.f32.gmra.mxu0 %v695
  %v907 = vpop.f32.mrf.mxu0
  %v908 = vadd.f32 0.0, %v907
  %909 = vmatmul.f32.gmra.mxu0 %v698
  %v910 = vpop.f32.mrf.mxu0
  %v911 = vadd.f32 0.0, %v910
  %912 = vmatmul.f32.gmra.mxu0 %v701
  %v913 = vpop.f32.mrf.mxu0
  %v914 = vadd.f32 0.0, %v913
  %915 = vmatmul.f32.gmra.mxu0 %v704
  %v916 = vpop.f32.mrf.mxu0
  %v917 = vadd.f32 0.0, %v916
  %918 = vmatmul.f32.gmra.mxu0 %v707
  %v919 = vpop.f32.mrf.mxu0
  %v920 = vadd.f32 0.0, %v919
  %921 = vmatmul.f32.gmra.mxu0 %v710
  %v922 = vpop.f32.mrf.mxu0
  %v923 = vadd.f32 0.0, %v922
  %924 = vmatmul.f32.gmra.mxu0 %v713
  %v925 = vpop.f32.mrf.mxu0
  %v926 = vadd.f32 0.0, %v925
  %927 = vmatmul.f32.gmra.mxu0 %v716
  %v928 = vpop.f32.mrf.mxu0
  %v929 = vadd.f32 0.0, %v928
  %930 = vmatmul.f32.gmra.mxu0 %v719
  %v931 = vpop.f32.mrf.mxu0
  %v932 = vadd.f32 0.0, %v931
  %933 = vmatmul.f32.gmra.mxu0 %v722
  %v934 = vpop.f32.mrf.mxu0
  %v935 = vadd.f32 0.0, %v934
  %936 = vmatmul.f32.gmra.mxu0 %v725
  %v937 = vpop.f32.mrf.mxu0
  %v938 = vadd.f32 0.0, %v937
  %939 = vmatmul.f32.gmra.mxu0 %v728
  %v940 = vpop.f32.mrf.mxu0
  %v941 = vadd.f32 0.0, %v940
  %942 = vmatmul.f32.gmra.mxu0 %v731
  %v943 = vpop.f32.mrf.mxu0
  %v944 = vadd.f32 0.0, %v943
  %945 = vdwg.mxu0
  %v947 = vsel %vm20, %v322, 0
  %v950 = vsel %vm20, %v323, 0
  %v953 = vsel %vm20, %v324, 0
  %v956 = vsel %vm20, %v325, 0
  %v959 = vsel %vm20, %v326, 0
  %v962 = vsel %vm20, %v327, 0
  %v965 = vsel %vm20, %v328, 0
  %v968 = vsel %vm20, %v329, 0
  %v971 = vsel %vm20, %v330, 0
  %v974 = vsel %vm20, %v331, 0
  %v977 = vsel %vm20, %v332, 0
  %v980 = vsel %vm20, %v333, 0
  %v983 = vsel %vm20, %v334, 0
  %v986 = vsel %vm20, %v335, 0
  %v989 = vsel %vm20, %v336, 0
  %v992 = vsel %vm20, %v337, 0
  %v995 = vsel %vm20, %v338, 0
  %v998 = vsel %vm20, %v339, 0
  %v1001 = vsel %vm20, %v340, 0
  %v1004 = vsel %vm20, %v341, 0
  %v1007 = vsel %vm20, %v342, 0
  %v1010 = vsel %vm20, %v343, 0
  %v1013 = vsel %vm20, %v344, 0
  %v1016 = vsel %vm20, %v345, 0
  %v1019 = vsel %vm20, %v346, 0
  %v1022 = vsel %vm20, %v347, 0
  %v1025 = vsel %vm20, %v348, 0
  %v1028 = vsel %vm20, %v349, 0
  %v1031 = vsel %vm20, %v350, 0
  %v1034 = vsel %vm20, %v351, 0
  %v1037 = vsel %vm20, %v352, 0
  %v1040 = vsel %vm20, %v353, 0
  %v1043 = vsel %vm20, %v358, 0
  %v1046 = vsel %vm20, %v359, 0
  %v1049 = vsel %vm20, %v360, 0
  %v1052 = vsel %vm20, %v361, 0
  %v1055 = vsel %vm20, %v362, 0
  %v1058 = vsel %vm20, %v363, 0
  %v1061 = vsel %vm20, %v364, 0
  %v1064 = vsel %vm20, %v365, 0
  %v1067 = vsel %vm20, %v366, 0
  %v1070 = vsel %vm20, %v367, 0
  %v1073 = vsel %vm20, %v368, 0
  %v1076 = vsel %vm20, %v369, 0
  %v1079 = vsel %vm20, %v370, 0
  %v1082 = vsel %vm20, %v371, 0
  %v1085 = vsel %vm20, %v372, 0
  %v1088 = vsel %vm20, %v373, 0
  %v1091 = vsel %vm20, %v374, 0
  %v1094 = vsel %vm20, %v375, 0
  %v1097 = vsel %vm20, %v376, 0
  %v1100 = vsel %vm20, %v377, 0
  %v1103 = vsel %vm20, %v378, 0
  %v1106 = vsel %vm20, %v379, 0
  %v1109 = vsel %vm20, %v380, 0
  %v1112 = vsel %vm20, %v381, 0
  %v1115 = vsel %vm20, %v382, 0
  %v1118 = vsel %vm20, %v383, 0
  %v1121 = vsel %vm20, %v384, 0
  %v1124 = vsel %vm20, %v385, 0
  %v1127 = vsel %vm20, %v386, 0
  %v1130 = vsel %vm20, %v387, 0
  %v1133 = vsel %vm20, %v388, 0
  %v1136 = vsel %vm20, %v389, 0
  %v1139 = vsel %vm733, %v538, 0
  %1141 = vmatpush.msra.mxu0 0.0
  %1142 = vmatpush.msra.mxu0 0.0
  %1143 = vmatpush.msra.mxu0 0.0
  %1144 = vmatpush.msra.mxu0 0.0
  %1145 = vmatpush.msra.mxu0 0.0
  %1146 = vmatpush.msra.mxu0 0.0
  %1147 = vmatpush.msra.mxu0 0.0
  %1148 = vmatpush.msra.mxu0 0.0
  %1149 = vmatpush.msra.mxu0 0.0
  %1150 = vmatpush.msra.mxu0 0.0
  %1151 = vmatpush.msra.mxu0 0.0
  %1152 = vmatpush.msra.mxu0 0.0
  %1153 = vmatpush.msra.mxu0 0.0
  %1154 = vmatpush.msra.mxu0 0.0
  %1155 = vmatpush.msra.mxu0 0.0
  %1156 = vmatpush.msra.mxu0 %v1139
  %1157 = vmatmul.f32.gmra.mxu0 %v947
  %v1158 = vpop.f32.mrf.mxu0
  %v1159 = vadd.f32 %v755, %v1158
  %1160 = vmatmul.f32.gmra.mxu0 %v950
  %v1161 = vpop.f32.mrf.mxu0
  %v1162 = vadd.f32 %v758, %v1161
  %1163 = vmatmul.f32.gmra.mxu0 %v953
  %v1164 = vpop.f32.mrf.mxu0
  %v1165 = vadd.f32 %v761, %v1164
  %1166 = vmatmul.f32.gmra.mxu0 %v956
  %v1167 = vpop.f32.mrf.mxu0
  %v1168 = vadd.f32 %v764, %v1167
  %1169 = vmatmul.f32.gmra.mxu0 %v959
  %v1170 = vpop.f32.mrf.mxu0
  %v1171 = vadd.f32 %v767, %v1170
  %1172 = vmatmul.f32.gmra.mxu0 %v962
  %v1173 = vpop.f32.mrf.mxu0
  %v1174 = vadd.f32 %v770, %v1173
  %1175 = vmatmul.f32.gmra.mxu0 %v965
  %v1176 = vpop.f32.mrf.mxu0
  %v1177 = vadd.f32 %v773, %v1176
  %1178 = vmatmul.f32.gmra.mxu0 %v968
  %v1179 = vpop.f32.mrf.mxu0
  %v1180 = vadd.f32 %v776, %v1179
  %1181 = vmatmul.f32.gmra.mxu0 %v971
  %v1182 = vpop.f32.mrf.mxu0
  %v1183 = vadd.f32 %v779, %v1182
  %1184 = vmatmul.f32.gmra.mxu0 %v974
  %v1185 = vpop.f32.mrf.mxu0
  %v1186 = vadd.f32 %v782, %v1185
  %1187 = vmatmul.f32.gmra.mxu0 %v977
  %v1188 = vpop.f32.mrf.mxu0
  %v1189 = vadd.f32 %v785, %v1188
  %1190 = vmatmul.f32.gmra.mxu0 %v980
  %v1191 = vpop.f32.mrf.mxu0
  %v1192 = vadd.f32 %v788, %v1191
  %1193 = vmatmul.f32.gmra.mxu0 %v983
  %v1194 = vpop.f32.mrf.mxu0
  %v1195 = vadd.f32 %v791, %v1194
  %1196 = vmatmul.f32.gmra.mxu0 %v986
  %v1197 = vpop.f32.mrf.mxu0
  %v1198 = vadd.f32 %v794, %v1197
  %1199 = vmatmul.f32.gmra.mxu0 %v989
  %v1200 = vpop.f32.mrf.mxu0
  %v1201 = vadd.f32 %v797, %v1200
  %1202 = vmatmul.f32.gmra.mxu0 %v992
  %v1203 = vpop.f32.mrf.mxu0
  %v1204 = vadd.f32 %v800, %v1203
  %1205 = vmatmul.f32.gmra.mxu0 %v995
  %v1206 = vpop.f32.mrf.mxu0
  %v1207 = vadd.f32 %v803, %v1206
  %1208 = vmatmul.f32.gmra.mxu0 %v998
  %v1209 = vpop.f32.mrf.mxu0
  %v1210 = vadd.f32 %v806, %v1209
  %1211 = vmatmul.f32.gmra.mxu0 %v1001
  %v1212 = vpop.f32.mrf.mxu0
  %v1213 = vadd.f32 %v809, %v1212
  %1214 = vmatmul.f32.gmra.mxu0 %v1004
  %v1215 = vpop.f32.mrf.mxu0
  %v1216 = vadd.f32 %v812, %v1215
  %1217 = vmatmul.f32.gmra.mxu0 %v1007
  %v1218 = vpop.f32.mrf.mxu0
  %v1219 = vadd.f32 %v815, %v1218
  %1220 = vmatmul.f32.gmra.mxu0 %v1010
  %v1221 = vpop.f32.mrf.mxu0
  %v1222 = vadd.f32 %v818, %v1221
  %1223 = vmatmul.f32.gmra.mxu0 %v1013
  %v1224 = vpop.f32.mrf.mxu0
  %v1225 = vadd.f32 %v821, %v1224
  %1226 = vmatmul.f32.gmra.mxu0 %v1016
  %v1227 = vpop.f32.mrf.mxu0
  %v1228 = vadd.f32 %v824, %v1227
  %1229 = vmatmul.f32.gmra.mxu0 %v1019
  %v1230 = vpop.f32.mrf.mxu0
  %v1231 = vadd.f32 %v827, %v1230
  %1232 = vmatmul.f32.gmra.mxu0 %v1022
  %v1233 = vpop.f32.mrf.mxu0
  %v1234 = vadd.f32 %v830, %v1233
  %1235 = vmatmul.f32.gmra.mxu0 %v1025
  %v1236 = vpop.f32.mrf.mxu0
  %v1237 = vadd.f32 %v833, %v1236
  %1238 = vmatmul.f32.gmra.mxu0 %v1028
  %v1239 = vpop.f32.mrf.mxu0
  %v1240 = vadd.f32 %v836, %v1239
  %1241 = vmatmul.f32.gmra.mxu0 %v1031
  %v1242 = vpop.f32.mrf.mxu0
  %v1243 = vadd.f32 %v839, %v1242
  %1244 = vmatmul.f32.gmra.mxu0 %v1034
  %v1245 = vpop.f32.mrf.mxu0
  %v1246 = vadd.f32 %v842, %v1245
  %1247 = vmatmul.f32.gmra.mxu0 %v1037
  %v1248 = vpop.f32.mrf.mxu0
  %v1249 = vadd.f32 %v845, %v1248
  %1250 = vmatmul.f32.gmra.mxu0 %v1040
  %v1251 = vpop.f32.mrf.mxu0
  %v1252 = vadd.f32 %v848, %v1251
  %1253 = vmatmul.f32.gmra.mxu0 %v1043
  %v1254 = vpop.f32.mrf.mxu0
  %v1255 = vadd.f32 %v851, %v1254
  %1256 = vmatmul.f32.gmra.mxu0 %v1046
  %v1257 = vpop.f32.mrf.mxu0
  %v1258 = vadd.f32 %v854, %v1257
  %1259 = vmatmul.f32.gmra.mxu0 %v1049
  %v1260 = vpop.f32.mrf.mxu0
  %v1261 = vadd.f32 %v857, %v1260
  %1262 = vmatmul.f32.gmra.mxu0 %v1052
  %v1263 = vpop.f32.mrf.mxu0
  %v1264 = vadd.f32 %v860, %v1263
  %1265 = vmatmul.f32.gmra.mxu0 %v1055
  %v1266 = vpop.f32.mrf.mxu0
  %v1267 = vadd.f32 %v863, %v1266
  %1268 = vmatmul.f32.gmra.mxu0 %v1058
  %v1269 = vpop.f32.mrf.mxu0
  %v1270 = vadd.f32 %v866, %v1269
  %1271 = vmatmul.f32.gmra.mxu0 %v1061
  %v1272 = vpop.f32.mrf.mxu0
  %v1273 = vadd.f32 %v869, %v1272
  %1274 = vmatmul.f32.gmra.mxu0 %v1064
  %v1275 = vpop.f32.mrf.mxu0
  %v1276 = vadd.f32 %v872, %v1275
  %1277 = vmatmul.f32.gmra.mxu0 %v1067
  %v1278 = vpop.f32.mrf.mxu0
  %v1279 = vadd.f32 %v875, %v1278
  %1280 = vmatmul.f32.gmra.mxu0 %v1070
  %v1281 = vpop.f32.mrf.mxu0
  %v1282 = vadd.f32 %v878, %v1281
  %1283 = vmatmul.f32.gmra.mxu0 %v1073
  %v1284 = vpop.f32.mrf.mxu0
  %v1285 = vadd.f32 %v881, %v1284
  %1286 = vmatmul.f32.gmra.mxu0 %v1076
  %v1287 = vpop.f32.mrf.mxu0
  %v1288 = vadd.f32 %v884, %v1287
  %1289 = vmatmul.f32.gmra.mxu0 %v1079
  %v1290 = vpop.f32.mrf.mxu0
  %v1291 = vadd.f32 %v887, %v1290
  %1292 = vmatmul.f32.gmra.mxu0 %v1082
  %v1293 = vpop.f32.mrf.mxu0
  %v1294 = vadd.f32 %v890, %v1293
  %1295 = vmatmul.f32.gmra.mxu0 %v1085
  %v1296 = vpop.f32.mrf.mxu0
  %v1297 = vadd.f32 %v893, %v1296
  %1298 = vmatmul.f32.gmra.mxu0 %v1088
  %v1299 = vpop.f32.mrf.mxu0
  %v1300 = vadd.f32 %v896, %v1299
  %1301 = vmatmul.f32.gmra.mxu0 %v1091
  %v1302 = vpop.f32.mrf.mxu0
  %v1303 = vadd.f32 %v899, %v1302
  %1304 = vmatmul.f32.gmra.mxu0 %v1094
  %v1305 = vpop.f32.mrf.mxu0
  %v1306 = vadd.f32 %v902, %v1305
  %1307 = vmatmul.f32.gmra.mxu0 %v1097
  %v1308 = vpop.f32.mrf.mxu0
  %v1309 = vadd.f32 %v905, %v1308
  %1310 = vmatmul.f32.gmra.mxu0 %v1100
  %v1311 = vpop.f32.mrf.mxu0
  %v1312 = vadd.f32 %v908, %v1311
  %1313 = vmatmul.f32.gmra.mxu0 %v1103
  %v1314 = vpop.f32.mrf.mxu0
  %v1315 = vadd.f32 %v911, %v1314
  %1316 = vmatmul.f32.gmra.mxu0 %v1106
  %v1317 = vpop.f32.mrf.mxu0
  %v1318 = vadd.f32 %v914, %v1317
  %1319 = vmatmul.f32.gmra.mxu0 %v1109
  %v1320 = vpop.f32.mrf.mxu0
  %v1321 = vadd.f32 %v917, %v1320
  %1322 = vmatmul.f32.gmra.mxu0 %v1112
  %v1323 = vpop.f32.mrf.mxu0
  %v1324 = vadd.f32 %v920, %v1323
  %1325 = vmatmul.f32.gmra.mxu0 %v1115
  %v1326 = vpop.f32.mrf.mxu0
  %v1327 = vadd.f32 %v923, %v1326
  %1328 = vmatmul.f32.gmra.mxu0 %v1118
  %v1329 = vpop.f32.mrf.mxu0
  %v1330 = vadd.f32 %v926, %v1329
  %1331 = vmatmul.f32.gmra.mxu0 %v1121
  %v1332 = vpop.f32.mrf.mxu0
  %v1333 = vadd.f32 %v929, %v1332
  %1334 = vmatmul.f32.gmra.mxu0 %v1124
  %v1335 = vpop.f32.mrf.mxu0
  %v1336 = vadd.f32 %v932, %v1335
  %1337 = vmatmul.f32.gmra.mxu0 %v1127
  %v1338 = vpop.f32.mrf.mxu0
  %v1339 = vadd.f32 %v935, %v1338
  %1340 = vmatmul.f32.gmra.mxu0 %v1130
  %v1341 = vpop.f32.mrf.mxu0
  %v1342 = vadd.f32 %v938, %v1341
  %1343 = vmatmul.f32.gmra.mxu0 %v1133
  %v1344 = vpop.f32.mrf.mxu0
  %v1345 = vadd.f32 %v941, %v1344
  %1346 = vmatmul.f32.gmra.mxu0 %v1136
  %v1347 = vpop.f32.mrf.mxu0
  %v1348 = vadd.f32 %v944, %v1347
  %1349 = vdwg.mxu0
  %s1350 = scalar_lea.vmem %s1, 8
  %v1351 = vld [vmem:[%s1350] sm:$0xf]
  %v1353 = vsel %vm20, %v466, 0
  %v1356 = vsel %vm20, %v467, 0
  %v1359 = vsel %vm20, %v468, 0
  %v1362 = vsel %vm20, %v469, 0
  %v1365 = vsel %vm20, %v470, 0
  %v1368 = vsel %vm20, %v471, 0
  %v1371 = vsel %vm20, %v472, 0
  %v1374 = vsel %vm20, %v473, 0
  %v1377 = vsel %vm20, %v474, 0
  %v1380 = vsel %vm20, %v475, 0
  %v1383 = vsel %vm20, %v476, 0
  %v1386 = vsel %vm20, %v477, 0
  %v1389 = vsel %vm20, %v478, 0
  %v1392 = vsel %vm20, %v479, 0
  %v1395 = vsel %vm20, %v480, 0
  %v1398 = vsel %vm20, %v481, 0
  %v1401 = vsel %vm20, %v482, 0
  %v1404 = vsel %vm20, %v483, 0
  %v1407 = vsel %vm20, %v484, 0
  %v1410 = vsel %vm20, %v485, 0
  %v1413 = vsel %vm20, %v486, 0
  %v1416 = vsel %vm20, %v487, 0
  %v1419 = vsel %vm20, %v488, 0
  %v1422 = vsel %vm20, %v489, 0
  %v1425 = vsel %vm20, %v490, 0
  %v1428 = vsel %vm20, %v491, 0
  %v1431 = vsel %vm20, %v492, 0
  %v1434 = vsel %vm20, %v493, 0
  %v1437 = vsel %vm20, %v494, 0
  %v1440 = vsel %vm20, %v495, 0
  %v1443 = vsel %vm20, %v496, 0
  %v1446 = vsel %vm20, %v497, 0
  %v1449 = vsel %vm20, %v502, 0
  %v1452 = vsel %vm20, %v503, 0
  %v1455 = vsel %vm20, %v504, 0
  %v1458 = vsel %vm20, %v505, 0
  %v1461 = vsel %vm20, %v506, 0
  %v1464 = vsel %vm20, %v507, 0
  %v1467 = vsel %vm20, %v508, 0
  %v1470 = vsel %vm20, %v509, 0
  %v1473 = vsel %vm20, %v510, 0
  %v1476 = vsel %vm20, %v511, 0
  %v1479 = vsel %vm20, %v512, 0
  %v1482 = vsel %vm20, %v513, 0
  %v1485 = vsel %vm20, %v514, 0
  %v1488 = vsel %vm20, %v515, 0
  %v1491 = vsel %vm20, %v516, 0
  %v1494 = vsel %vm20, %v517, 0
  %v1497 = vsel %vm20, %v518, 0
  %v1500 = vsel %vm20, %v519, 0
  %v1503 = vsel %vm20, %v520, 0
  %v1506 = vsel %vm20, %v521, 0
  %v1509 = vsel %vm20, %v522, 0
  %v1512 = vsel %vm20, %v523, 0
  %v1515 = vsel %vm20, %v524, 0
  %v1518 = vsel %vm20, %v525, 0
  %v1521 = vsel %vm20, %v526, 0
  %v1524 = vsel %vm20, %v527, 0
  %v1527 = vsel %vm20, %v528, 0
  %v1530 = vsel %vm20, %v529, 0
  %v1533 = vsel %vm20, %v530, 0
  %v1536 = vsel %vm20, %v531, 0
  %v1539 = vsel %vm20, %v532, 0
  %v1542 = vsel %vm20, %v533, 0
  %v1545 = vsel %vm733, %v1351, 0
  %1547 = vmatpush.msra.mxu0 0.0
  %1548 = vmatpush.msra.mxu0 0.0
  %1549 = vmatpush.msra.mxu0 0.0
  %1550 = vmatpush.msra.mxu0 0.0
  %1551 = vmatpush.msra.mxu0 0.0
  %1552 = vmatpush.msra.mxu0 0.0
  %1553 = vmatpush.msra.mxu0 0.0
  %1554 = vmatpush.msra.mxu0 0.0
  %1555 = vmatpush.msra.mxu0 0.0
  %1556 = vmatpush.msra.mxu0 0.0
  %1557 = vmatpush.msra.mxu0 0.0
  %1558 = vmatpush.msra.mxu0 0.0
  %1559 = vmatpush.msra.mxu0 0.0
  %1560 = vmatpush.msra.mxu0 0.0
  %1561 = vmatpush.msra.mxu0 0.0
  %1562 = vmatpush.msra.mxu0 %v1545
  %1563 = vmatmul.f32.gmra.mxu0 %v1353
  %v1564 = vpop.f32.mrf.mxu0
  %v1565 = vadd.f32 0.0, %v1564
  %1566 = vmatmul.f32.gmra.mxu0 %v1356
  %v1567 = vpop.f32.mrf.mxu0
  %v1568 = vadd.f32 0.0, %v1567
  %1569 = vmatmul.f32.gmra.mxu0 %v1359
  %v1570 = vpop.f32.mrf.mxu0
  %v1571 = vadd.f32 0.0, %v1570
  %1572 = vmatmul.f32.gmra.mxu0 %v1362
  %v1573 = vpop.f32.mrf.mxu0
  %v1574 = vadd.f32 0.0, %v1573
  %1575 = vmatmul.f32.gmra.mxu0 %v1365
  %v1576 = vpop.f32.mrf.mxu0
  %v1577 = vadd.f32 0.0, %v1576
  %1578 = vmatmul.f32.gmra.mxu0 %v1368
  %v1579 = vpop.f32.mrf.mxu0
  %v1580 = vadd.f32 0.0, %v1579
  %1581 = vmatmul.f32.gmra.mxu0 %v1371
  %v1582 = vpop.f32.mrf.mxu0
  %v1583 = vadd.f32 0.0, %v1582
  %1584 = vmatmul.f32.gmra.mxu0 %v1374
  %v1585 = vpop.f32.mrf.mxu0
  %v1586 = vadd.f32 0.0, %v1585
  %1587 = vmatmul.f32.gmra.mxu0 %v1377
  %v1588 = vpop.f32.mrf.mxu0
  %v1589 = vadd.f32 0.0, %v1588
  %1590 = vmatmul.f32.gmra.mxu0 %v1380
  %v1591 = vpop.f32.mrf.mxu0
  %v1592 = vadd.f32 0.0, %v1591
  %1593 = vmatmul.f32.gmra.mxu0 %v1383
  %v1594 = vpop.f32.mrf.mxu0
  %v1595 = vadd.f32 0.0, %v1594
  %1596 = vmatmul.f32.gmra.mxu0 %v1386
  %v1597 = vpop.f32.mrf.mxu0
  %v1598 = vadd.f32 0.0, %v1597
  %1599 = vmatmul.f32.gmra.mxu0 %v1389
  %v1600 = vpop.f32.mrf.mxu0
  %v1601 = vadd.f32 0.0, %v1600
  %1602 = vmatmul.f32.gmra.mxu0 %v1392
  %v1603 = vpop.f32.mrf.mxu0
  %v1604 = vadd.f32 0.0, %v1603
  %1605 = vmatmul.f32.gmra.mxu0 %v1395
  %v1606 = vpop.f32.mrf.mxu0
  %v1607 = vadd.f32 0.0, %v1606
  %1608 = vmatmul.f32.gmra.mxu0 %v1398
  %v1609 = vpop.f32.mrf.mxu0
  %v1610 = vadd.f32 0.0, %v1609
  %1611 = vmatmul.f32.gmra.mxu0 %v1401
  %v1612 = vpop.f32.mrf.mxu0
  %v1613 = vadd.f32 0.0, %v1612
  %1614 = vmatmul.f32.gmra.mxu0 %v1404
  %v1615 = vpop.f32.mrf.mxu0
  %v1616 = vadd.f32 0.0, %v1615
  %1617 = vmatmul.f32.gmra.mxu0 %v1407
  %v1618 = vpop.f32.mrf.mxu0
  %v1619 = vadd.f32 0.0, %v1618
  %1620 = vmatmul.f32.gmra.mxu0 %v1410
  %v1621 = vpop.f32.mrf.mxu0
  %v1622 = vadd.f32 0.0, %v1621
  %1623 = vmatmul.f32.gmra.mxu0 %v1413
  %v1624 = vpop.f32.mrf.mxu0
  %v1625 = vadd.f32 0.0, %v1624
  %1626 = vmatmul.f32.gmra.mxu0 %v1416
  %v1627 = vpop.f32.mrf.mxu0
  %v1628 = vadd.f32 0.0, %v1627
  %1629 = vmatmul.f32.gmra.mxu0 %v1419
  %v1630 = vpop.f32.mrf.mxu0
  %v1631 = vadd.f32 0.0, %v1630
  %1632 = vmatmul.f32.gmra.mxu0 %v1422
  %v1633 = vpop.f32.mrf.mxu0
  %v1634 = vadd.f32 0.0, %v1633
  %1635 = vmatmul.f32.gmra.mxu0 %v1425
  %v1636 = vpop.f32.mrf.mxu0
  %v1637 = vadd.f32 0.0, %v1636
  %1638 = vmatmul.f32.gmra.mxu0 %v1428
  %v1639 = vpop.f32.mrf.mxu0
  %v1640 = vadd.f32 0.0, %v1639
  %1641 = vmatmul.f32.gmra.mxu0 %v1431
  %v1642 = vpop.f32.mrf.mxu0
  %v1643 = vadd.f32 0.0, %v1642
  %1644 = vmatmul.f32.gmra.mxu0 %v1434
  %v1645 = vpop.f32.mrf.mxu0
  %v1646 = vadd.f32 0.0, %v1645
  %1647 = vmatmul.f32.gmra.mxu0 %v1437
  %v1648 = vpop.f32.mrf.mxu0
  %v1649 = vadd.f32 0.0, %v1648
  %1650 = vmatmul.f32.gmra.mxu0 %v1440
  %v1651 = vpop.f32.mrf.mxu0
  %v1652 = vadd.f32 0.0, %v1651
  %1653 = vmatmul.f32.gmra.mxu0 %v1443
  %v1654 = vpop.f32.mrf.mxu0
  %v1655 = vadd.f32 0.0, %v1654
  %1656 = vmatmul.f32.gmra.mxu0 %v1446
  %v1657 = vpop.f32.mrf.mxu0
  %v1658 = vadd.f32 0.0, %v1657
  %1659 = vmatmul.f32.gmra.mxu0 %v1449
  %v1660 = vpop.f32.mrf.mxu0
  %v1661 = vadd.f32 0.0, %v1660
  %1662 = vmatmul.f32.gmra.mxu0 %v1452
  %v1663 = vpop.f32.mrf.mxu0
  %v1664 = vadd.f32 0.0, %v1663
  %1665 = vmatmul.f32.gmra.mxu0 %v1455
  %v1666 = vpop.f32.mrf.mxu0
  %v1667 = vadd.f32 0.0, %v1666
  %1668 = vmatmul.f32.gmra.mxu0 %v1458
  %v1669 = vpop.f32.mrf.mxu0
  %v1670 = vadd.f32 0.0, %v1669
  %1671 = vmatmul.f32.gmra.mxu0 %v1461
  %v1672 = vpop.f32.mrf.mxu0
  %v1673 = vadd.f32 0.0, %v1672
  %1674 = vmatmul.f32.gmra.mxu0 %v1464
  %v1675 = vpop.f32.mrf.mxu0
  %v1676 = vadd.f32 0.0, %v1675
  %1677 = vmatmul.f32.gmra.mxu0 %v1467
  %v1678 = vpop.f32.mrf.mxu0
  %v1679 = vadd.f32 0.0, %v1678
  %1680 = vmatmul.f32.gmra.mxu0 %v1470
  %v1681 = vpop.f32.mrf.mxu0
  %v1682 = vadd.f32 0.0, %v1681
  %1683 = vmatmul.f32.gmra.mxu0 %v1473
  %v1684 = vpop.f32.mrf.mxu0
  %v1685 = vadd.f32 0.0, %v1684
  %1686 = vmatmul.f32.gmra.mxu0 %v1476
  %v1687 = vpop.f32.mrf.mxu0
  %v1688 = vadd.f32 0.0, %v1687
  %1689 = vmatmul.f32.gmra.mxu0 %v1479
  %v1690 = vpop.f32.mrf.mxu0
  %v1691 = vadd.f32 0.0, %v1690
  %1692 = vmatmul.f32.gmra.mxu0 %v1482
  %v1693 = vpop.f32.mrf.mxu0
  %v1694 = vadd.f32 0.0, %v1693
  %1695 = vmatmul.f32.gmra.mxu0 %v1485
  %v1696 = vpop.f32.mrf.mxu0
  %v1697 = vadd.f32 0.0, %v1696
  %1698 = vmatmul.f32.gmra.mxu0 %v1488
  %v1699 = vpop.f32.mrf.mxu0
  %v1700 = vadd.f32 0.0, %v1699
  %1701 = vmatmul.f32.gmra.mxu0 %v1491
  %v1702 = vpop.f32.mrf.mxu0
  %v1703 = vadd.f32 0.0, %v1702
  %1704 = vmatmul.f32.gmra.mxu0 %v1494
  %v1705 = vpop.f32.mrf.mxu0
  %v1706 = vadd.f32 0.0, %v1705
  %1707 = vmatmul.f32.gmra.mxu0 %v1497
  %v1708 = vpop.f32.mrf.mxu0
  %v1709 = vadd.f32 0.0, %v1708
  %1710 = vmatmul.f32.gmra.mxu0 %v1500
  %v1711 = vpop.f32.mrf.mxu0
  %v1712 = vadd.f32 0.0, %v1711
  %1713 = vmatmul.f32.gmra.mxu0 %v1503
  %v1714 = vpop.f32.mrf.mxu0
  %v1715 = vadd.f32 0.0, %v1714
  %1716 = vmatmul.f32.gmra.mxu0 %v1506
  %v1717 = vpop.f32.mrf.mxu0
  %v1718 = vadd.f32 0.0, %v1717
  %1719 = vmatmul.f32.gmra.mxu0 %v1509
  %v1720 = vpop.f32.mrf.mxu0
  %v1721 = vadd.f32 0.0, %v1720
  %1722 = vmatmul.f32.gmra.mxu0 %v1512
  %v1723 = vpop.f32.mrf.mxu0
  %v1724 = vadd.f32 0.0, %v1723
  %1725 = vmatmul.f32.gmra.mxu0 %v1515
  %v1726 = vpop.f32.mrf.mxu0
  %v1727 = vadd.f32 0.0, %v1726
  %1728 = vmatmul.f32.gmra.mxu0 %v1518
  %v1729 = vpop.f32.mrf.mxu0
  %v1730 = vadd.f32 0.0, %v1729
  %1731 = vmatmul.f32.gmra.mxu0 %v1521
  %v1732 = vpop.f32.mrf.mxu0
  %v1733 = vadd.f32 0.0, %v1732
  %1734 = vmatmul.f32.gmra.mxu0 %v1524
  %v1735 = vpop.f32.mrf.mxu0
  %v1736 = vadd.f32 0.0, %v1735
  %1737 = vmatmul.f32.gmra.mxu0 %v1527
  %v1738 = vpop.f32.mrf.mxu0
  %v1739 = vadd.f32 0.0, %v1738
  %1740 = vmatmul.f32.gmra.mxu0 %v1530
  %v1741 = vpop.f32.mrf.mxu0
  %v1742 = vadd.f32 0.0, %v1741
  %1743 = vmatmul.f32.gmra.mxu0 %v1533
  %v1744 = vpop.f32.mrf.mxu0
  %v1745 = vadd.f32 0.0, %v1744
  %1746 = vmatmul.f32.gmra.mxu0 %v1536
  %v1747 = vpop.f32.mrf.mxu0
  %v1748 = vadd.f32 0.0, %v1747
  %1749 = vmatmul.f32.gmra.mxu0 %v1539
  %v1750 = vpop.f32.mrf.mxu0
  %v1751 = vadd.f32 0.0, %v1750
  %1752 = vmatmul.f32.gmra.mxu0 %v1542
  %v1753 = vpop.f32.mrf.mxu0
  %v1754 = vadd.f32 0.0, %v1753
  %1755 = vdwg.mxu0
  %v1756 = vadd.f32 %v1159, %v1565
  %v1757 = vadd.f32 %v1162, %v1568
  %v1758 = vadd.f32 %v1165, %v1571
  %v1759 = vadd.f32 %v1168, %v1574
  %v1760 = vadd.f32 %v1171, %v1577
  %v1761 = vadd.f32 %v1174, %v1580
  %v1762 = vadd.f32 %v1177, %v1583
  %v1763 = vadd.f32 %v1180, %v1586
  %v1764 = vadd.f32 %v1183, %v1589
  %v1765 = vadd.f32 %v1186, %v1592
  %v1766 = vadd.f32 %v1189, %v1595
  %v1767 = vadd.f32 %v1192, %v1598
  %v1768 = vadd.f32 %v1195, %v1601
  %v1769 = vadd.f32 %v1198, %v1604
  %v1770 = vadd.f32 %v1201, %v1607
  %v1771 = vadd.f32 %v1204, %v1610
  %v1772 = vadd.f32 %v1207, %v1613
  %v1773 = vadd.f32 %v1210, %v1616
  %v1774 = vadd.f32 %v1213, %v1619
  %v1775 = vadd.f32 %v1216, %v1622
  %v1776 = vadd.f32 %v1219, %v1625
  %v1777 = vadd.f32 %v1222, %v1628
  %v1778 = vadd.f32 %v1225, %v1631
  %v1779 = vadd.f32 %v1228, %v1634
  %v1780 = vadd.f32 %v1231, %v1637
  %v1781 = vadd.f32 %v1234, %v1640
  %v1782 = vadd.f32 %v1237, %v1643
  %v1783 = vadd.f32 %v1240, %v1646
  %v1784 = vadd.f32 %v1243, %v1649
  %v1785 = vadd.f32 %v1246, %v1652
  %v1786 = vadd.f32 %v1249, %v1655
  %v1787 = vadd.f32 %v1252, %v1658
  %v1788 = vadd.f32 %v1255, %v1661
  %v1789 = vadd.f32 %v1258, %v1664
  %v1790 = vadd.f32 %v1261, %v1667
  %v1791 = vadd.f32 %v1264, %v1670
  %v1792 = vadd.f32 %v1267, %v1673
  %v1793 = vadd.f32 %v1270, %v1676
  %v1794 = vadd.f32 %v1273, %v1679
  %v1795 = vadd.f32 %v1276, %v1682
  %v1796 = vadd.f32 %v1279, %v1685
  %v1797 = vadd.f32 %v1282, %v1688
  %v1798 = vadd.f32 %v1285, %v1691
  %v1799 = vadd.f32 %v1288, %v1694
  %v1800 = vadd.f32 %v1291, %v1697
  %v1801 = vadd.f32 %v1294, %v1700
  %v1802 = vadd.f32 %v1297, %v1703
  %v1803 = vadd.f32 %v1300, %v1706
  %v1804 = vadd.f32 %v1303, %v1709
  %v1805 = vadd.f32 %v1306, %v1712
  %v1806 = vadd.f32 %v1309, %v1715
  %v1807 = vadd.f32 %v1312, %v1718
  %v1808 = vadd.f32 %v1315, %v1721
  %v1809 = vadd.f32 %v1318, %v1724
  %v1810 = vadd.f32 %v1321, %v1727
  %v1811 = vadd.f32 %v1324, %v1730
  %v1812 = vadd.f32 %v1327, %v1733
  %v1813 = vadd.f32 %v1330, %v1736
  %v1814 = vadd.f32 %v1333, %v1739
  %v1815 = vadd.f32 %v1336, %v1742
  %v1816 = vadd.f32 %v1339, %v1745
  %v1817 = vadd.f32 %v1342, %v1748
  %v1818 = vadd.f32 %v1345, %v1751
  %v1819 = vadd.f32 %v1348, %v1754
  %s1820 = scalar_lea.vmem %s1, 12
  %v1821 = vld [vmem:[%s1820] sm:$0xf]
  %v1823 = vsel %vm20, %v354, 0
  %v1826 = vsel %vm20, %v355, 0
  %v1829 = vsel %vm20, %v390, 0
  %v1832 = vsel %vm20, %v391, 0
  %v1835 = vsel %vm733, %v1821, 0
  %1837 = vmatpush.msra.mxu0 0.0
  %1838 = vmatpush.msra.mxu0 0.0
  %1839 = vmatpush.msra.mxu0 0.0
  %1840 = vmatpush.msra.mxu0 0.0
  %1841 = vmatpush.msra.mxu0 0.0
  %1842 = vmatpush.msra.mxu0 0.0
  %1843 = vmatpush.msra.mxu0 0.0
  %1844 = vmatpush.msra.mxu0 0.0
  %1845 = vmatpush.msra.mxu0 0.0
  %1846 = vmatpush.msra.mxu0 0.0
  %1847 = vmatpush.msra.mxu0 0.0
  %1848 = vmatpush.msra.mxu0 0.0
  %1849 = vmatpush.msra.mxu0 0.0
  %1850 = vmatpush.msra.mxu0 0.0
  %1851 = vmatpush.msra.mxu0 0.0
  %1852 = vmatpush.msra.mxu0 %v1835
  %1853 = vmatmul.f32.gmra.mxu0 %v953
  %v1854 = vpop.f32.mrf.mxu0
  %v1855 = vadd.f32 0.0, %v1854
  %1856 = vmatmul.f32.gmra.mxu0 %v956
  %v1857 = vpop.f32.mrf.mxu0
  %v1858 = vadd.f32 0.0, %v1857
  %1859 = vmatmul.f32.gmra.mxu0 %v959
  %v1860 = vpop.f32.mrf.mxu0
  %v1861 = vadd.f32 0.0, %v1860
  %1862 = vmatmul.f32.gmra.mxu0 %v962
  %v1863 = vpop.f32.mrf.mxu0
  %v1864 = vadd.f32 0.0, %v1863
  %1865 = vmatmul.f32.gmra.mxu0 %v965
  %v1866 = vpop.f32.mrf.mxu0
  %v1867 = vadd.f32 0.0, %v1866
  %1868 = vmatmul.f32.gmra.mxu0 %v968
  %v1869 = vpop.f32.mrf.mxu0
  %v1870 = vadd.f32 0.0, %v1869
  %1871 = vmatmul.f32.gmra.mxu0 %v971
  %v1872 = vpop.f32.mrf.mxu0
  %v1873 = vadd.f32 0.0, %v1872
  %1874 = vmatmul.f32.gmra.mxu0 %v974
  %v1875 = vpop.f32.mrf.mxu0
  %v1876 = vadd.f32 0.0, %v1875
  %1877 = vmatmul.f32.gmra.mxu0 %v977
  %v1878 = vpop.f32.mrf.mxu0
  %v1879 = vadd.f32 0.0, %v1878
  %1880 = vmatmul.f32.gmra.mxu0 %v980
  %v1881 = vpop.f32.mrf.mxu0
  %v1882 = vadd.f32 0.0, %v1881
  %1883 = vmatmul.f32.gmra.mxu0 %v983
  %v1884 = vpop.f32.mrf.mxu0
  %v1885 = vadd.f32 0.0, %v1884
  %1886 = vmatmul.f32.gmra.mxu0 %v986
  %v1887 = vpop.f32.mrf.mxu0
  %v1888 = vadd.f32 0.0, %v1887
  %1889 = vmatmul.f32.gmra.mxu0 %v989
  %v1890 = vpop.f32.mrf.mxu0
  %v1891 = vadd.f32 0.0, %v1890
  %1892 = vmatmul.f32.gmra.mxu0 %v992
  %v1893 = vpop.f32.mrf.mxu0
  %v1894 = vadd.f32 0.0, %v1893
  %1895 = vmatmul.f32.gmra.mxu0 %v995
  %v1896 = vpop.f32.mrf.mxu0
  %v1897 = vadd.f32 0.0, %v1896
  %1898 = vmatmul.f32.gmra.mxu0 %v998
  %v1899 = vpop.f32.mrf.mxu0
  %v1900 = vadd.f32 0.0, %v1899
  %1901 = vmatmul.f32.gmra.mxu0 %v1001
  %v1902 = vpop.f32.mrf.mxu0
  %v1903 = vadd.f32 0.0, %v1902
  %1904 = vmatmul.f32.gmra.mxu0 %v1004
  %v1905 = vpop.f32.mrf.mxu0
  %v1906 = vadd.f32 0.0, %v1905
  %1907 = vmatmul.f32.gmra.mxu0 %v1007
  %v1908 = vpop.f32.mrf.mxu0
  %v1909 = vadd.f32 0.0, %v1908
  %1910 = vmatmul.f32.gmra.mxu0 %v1010
  %v1911 = vpop.f32.mrf.mxu0
  %v1912 = vadd.f32 0.0, %v1911
  %1913 = vmatmul.f32.gmra.mxu0 %v1013
  %v1914 = vpop.f32.mrf.mxu0
  %v1915 = vadd.f32 0.0, %v1914
  %1916 = vmatmul.f32.gmra.mxu0 %v1016
  %v1917 = vpop.f32.mrf.mxu0
  %v1918 = vadd.f32 0.0, %v1917
  %1919 = vmatmul.f32.gmra.mxu0 %v1019
  %v1920 = vpop.f32.mrf.mxu0
  %v1921 = vadd.f32 0.0, %v1920
  %1922 = vmatmul.f32.gmra.mxu0 %v1022
  %v1923 = vpop.f32.mrf.mxu0
  %v1924 = vadd.f32 0.0, %v1923
  %1925 = vmatmul.f32.gmra.mxu0 %v1025
  %v1926 = vpop.f32.mrf.mxu0
  %v1927 = vadd.f32 0.0, %v1926
  %1928 = vmatmul.f32.gmra.mxu0 %v1028
  %v1929 = vpop.f32.mrf.mxu0
  %v1930 = vadd.f32 0.0, %v1929
  %1931 = vmatmul.f32.gmra.mxu0 %v1031
  %v1932 = vpop.f32.mrf.mxu0
  %v1933 = vadd.f32 0.0, %v1932
  %1934 = vmatmul.f32.gmra.mxu0 %v1034
  %v1935 = vpop.f32.mrf.mxu0
  %v1936 = vadd.f32 0.0, %v1935
  %1937 = vmatmul.f32.gmra.mxu0 %v1037
  %v1938 = vpop.f32.mrf.mxu0
  %v1939 = vadd.f32 0.0, %v1938
  %1940 = vmatmul.f32.gmra.mxu0 %v1040
  %v1941 = vpop.f32.mrf.mxu0
  %v1942 = vadd.f32 0.0, %v1941
  %1943 = vmatmul.f32.gmra.mxu0 %v1823
  %v1944 = vpop.f32.mrf.mxu0
  %v1945 = vadd.f32 0.0, %v1944
  %1946 = vmatmul.f32.gmra.mxu0 %v1826
  %v1947 = vpop.f32.mrf.mxu0
  %v1948 = vadd.f32 0.0, %v1947
  %1949 = vmatmul.f32.gmra.mxu0 %v1049
  %v1950 = vpop.f32.mrf.mxu0
  %v1951 = vadd.f32 0.0, %v1950
  %1952 = vmatmul.f32.gmra.mxu0 %v1052
  %v1953 = vpop.f32.mrf.mxu0
  %v1954 = vadd.f32 0.0, %v1953
  %1955 = vmatmul.f32.gmra.mxu0 %v1055
  %v1956 = vpop.f32.mrf.mxu0
  %v1957 = vadd.f32 0.0, %v1956
  %1958 = vmatmul.f32.gmra.mxu0 %v1058
  %v1959 = vpop.f32.mrf.mxu0
  %v1960 = vadd.f32 0.0, %v1959
  %1961 = vmatmul.f32.gmra.mxu0 %v1061
  %v1962 = vpop.f32.mrf.mxu0
  %v1963 = vadd.f32 0.0, %v1962
  %1964 = vmatmul.f32.gmra.mxu0 %v1064
  %v1965 = vpop.f32.mrf.mxu0
  %v1966 = vadd.f32 0.0, %v1965
  %1967 = vmatmul.f32.gmra.mxu0 %v1067
  %v1968 = vpop.f32.mrf.mxu0
  %v1969 = vadd.f32 0.0, %v1968
  %1970 = vmatmul.f32.gmra.mxu0 %v1070
  %v1971 = vpop.f32.mrf.mxu0
  %v1972 = vadd.f32 0.0, %v1971
  %1973 = vmatmul.f32.gmra.mxu0 %v1073
  %v1974 = vpop.f32.mrf.mxu0
  %v1975 = vadd.f32 0.0, %v1974
  %1976 = vmatmul.f32.gmra.mxu0 %v1076
  %v1977 = vpop.f32.mrf.mxu0
  %v1978 = vadd.f32 0.0, %v1977
  %1979 = vmatmul.f32.gmra.mxu0 %v1079
  %v1980 = vpop.f32.mrf.mxu0
  %v1981 = vadd.f32 0.0, %v1980
  %1982 = vmatmul.f32.gmra.mxu0 %v1082
  %v1983 = vpop.f32.mrf.mxu0
  %v1984 = vadd.f32 0.0, %v1983
  %1985 = vmatmul.f32.gmra.mxu0 %v1085
  %v1986 = vpop.f32.mrf.mxu0
  %v1987 = vadd.f32 0.0, %v1986
  %1988 = vmatmul.f32.gmra.mxu0 %v1088
  %v1989 = vpop.f32.mrf.mxu0
  %v1990 = vadd.f32 0.0, %v1989
  %1991 = vmatmul.f32.gmra.mxu0 %v1091
  %v1992 = vpop.f32.mrf.mxu0
  %v1993 = vadd.f32 0.0, %v1992
  %1994 = vmatmul.f32.gmra.mxu0 %v1094
  %v1995 = vpop.f32.mrf.mxu0
  %v1996 = vadd.f32 0.0, %v1995
  %1997 = vmatmul.f32.gmra.mxu0 %v1097
  %v1998 = vpop.f32.mrf.mxu0
  %v1999 = vadd.f32 0.0, %v1998
  %2000 = vmatmul.f32.gmra.mxu0 %v1100
  %v2001 = vpop.f32.mrf.mxu0
  %v2002 = vadd.f32 0.0, %v2001
  %2003 = vmatmul.f32.gmra.mxu0 %v1103
  %v2004 = vpop.f32.mrf.mxu0
  %v2005 = vadd.f32 0.0, %v2004
  %2006 = vmatmul.f32.gmra.mxu0 %v1106
  %v2007 = vpop.f32.mrf.mxu0
  %v2008 = vadd.f32 0.0, %v2007
  %2009 = vmatmul.f32.gmra.mxu0 %v1109
  %v2010 = vpop.f32.mrf.mxu0
  %v2011 = vadd.f32 0.0, %v2010
  %2012 = vmatmul.f32.gmra.mxu0 %v1112
  %v2013 = vpop.f32.mrf.mxu0
  %v2014 = vadd.f32 0.0, %v2013
  %2015 = vmatmul.f32.gmra.mxu0 %v1115
  %v2016 = vpop.f32.mrf.mxu0
  %v2017 = vadd.f32 0.0, %v2016
  %2018 = vmatmul.f32.gmra.mxu0 %v1118
  %v2019 = vpop.f32.mrf.mxu0
  %v2020 = vadd.f32 0.0, %v2019
  %2021 = vmatmul.f32.gmra.mxu0 %v1121
  %v2022 = vpop.f32.mrf.mxu0
  %v2023 = vadd.f32 0.0, %v2022
  %2024 = vmatmul.f32.gmra.mxu0 %v1124
  %v2025 = vpop.f32.mrf.mxu0
  %v2026 = vadd.f32 0.0, %v2025
  %2027 = vmatmul.f32.gmra.mxu0 %v1127
  %v2028 = vpop.f32.mrf.mxu0
  %v2029 = vadd.f32 0.0, %v2028
  %2030 = vmatmul.f32.gmra.mxu0 %v1130
  %v2031 = vpop.f32.mrf.mxu0
  %v2032 = vadd.f32 0.0, %v2031
  %2033 = vmatmul.f32.gmra.mxu0 %v1133
  %v2034 = vpop.f32.mrf.mxu0
  %v2035 = vadd.f32 0.0, %v2034
  %2036 = vmatmul.f32.gmra.mxu0 %v1136
  %v2037 = vpop.f32.mrf.mxu0
  %v2038 = vadd.f32 0.0, %v2037
  %2039 = vmatmul.f32.gmra.mxu0 %v1829
  %v2040 = vpop.f32.mrf.mxu0
  %v2041 = vadd.f32 0.0, %v2040
  %2042 = vmatmul.f32.gmra.mxu0 %v1832
  %v2043 = vpop.f32.mrf.mxu0
  %v2044 = vadd.f32 0.0, %v2043
  %2045 = vdwg.mxu0
  %v2046 = vadd.f32 %v1756, %v1855
  %v2047 = vadd.f32 %v1757, %v1858
  %v2048 = vadd.f32 %v1758, %v1861
  %v2049 = vadd.f32 %v1759, %v1864
  %v2050 = vadd.f32 %v1760, %v1867
  %v2051 = vadd.f32 %v1761, %v1870
  %v2052 = vadd.f32 %v1762, %v1873
  %v2053 = vadd.f32 %v1763, %v1876
  %v2054 = vadd.f32 %v1764, %v1879
  %v2055 = vadd.f32 %v1765, %v1882
  %v2056 = vadd.f32 %v1766, %v1885
  %v2057 = vadd.f32 %v1767, %v1888
  %v2058 = vadd.f32 %v1768, %v1891
  %v2059 = vadd.f32 %v1769, %v1894
  %v2060 = vadd.f32 %v1770, %v1897
  %v2061 = vadd.f32 %v1771, %v1900
  %v2062 = vadd.f32 %v1772, %v1903
  %v2063 = vadd.f32 %v1773, %v1906
  %v2064 = vadd.f32 %v1774, %v1909
  %v2065 = vadd.f32 %v1775, %v1912
  %v2066 = vadd.f32 %v1776, %v1915
  %v2067 = vadd.f32 %v1777, %v1918
  %v2068 = vadd.f32 %v1778, %v1921
  %v2069 = vadd.f32 %v1779, %v1924
  %v2070 = vadd.f32 %v1780, %v1927
  %v2071 = vadd.f32 %v1781, %v1930
  %v2072 = vadd.f32 %v1782, %v1933
  %v2073 = vadd.f32 %v1783, %v1936
  %v2074 = vadd.f32 %v1784, %v1939
  %v2075 = vadd.f32 %v1785, %v1942
  %v2076 = vadd.f32 %v1786, %v1945
  %v2077 = vadd.f32 %v1787, %v1948
  %v2078 = vadd.f32 %v1788, %v1951
  %v2079 = vadd.f32 %v1789, %v1954
  %v2080 = vadd.f32 %v1790, %v1957
  %v2081 = vadd.f32 %v1791, %v1960
  %v2082 = vadd.f32 %v1792, %v1963
  %v2083 = vadd.f32 %v1793, %v1966
  %v2084 = vadd.f32 %v1794, %v1969
  %v2085 = vadd.f32 %v1795, %v1972
  %v2086 = vadd.f32 %v1796, %v1975
  %v2087 = vadd.f32 %v1797, %v1978
  %v2088 = vadd.f32 %v1798, %v1981
  %v2089 = vadd.f32 %v1799, %v1984
  %v2090 = vadd.f32 %v1800, %v1987
  %v2091 = vadd.f32 %v1801, %v1990
  %v2092 = vadd.f32 %v1802, %v1993
  %v2093 = vadd.f32 %v1803, %v1996
  %v2094 = vadd.f32 %v1804, %v1999
  %v2095 = vadd.f32 %v1805, %v2002
  %v2096 = vadd.f32 %v1806, %v2005
  %v2097 = vadd.f32 %v1807, %v2008
  %v2098 = vadd.f32 %v1808, %v2011
  %v2099 = vadd.f32 %v1809, %v2014
  %v2100 = vadd.f32 %v1810, %v2017
  %v2101 = vadd.f32 %v1811, %v2020
  %v2102 = vadd.f32 %v1812, %v2023
  %v2103 = vadd.f32 %v1813, %v2026
  %v2104 = vadd.f32 %v1814, %v2029
  %v2105 = vadd.f32 %v1815, %v2032
  %v2106 = vadd.f32 %v1816, %v2035
  %v2107 = vadd.f32 %v1817, %v2038
  %v2108 = vadd.f32 %v1818, %v2041
  %v2109 = vadd.f32 %v1819, %v2044
  %s2110 = scalar_lea.vmem %s1, 16
  %v2111 = vld [vmem:[%s2110] sm:$0xf]
  %v2113 = vsel %vm20, %v426, 0
  %v2116 = vsel %vm20, %v427, 0
  %v2119 = vsel %vm20, %v462, 0
  %v2122 = vsel %vm20, %v463, 0
  %v2125 = vsel %vm733, %v2111, 0
  %2127 = vmatpush.msra.mxu0 0.0
  %2128 = vmatpush.msra.mxu0 0.0
  %2129 = vmatpush.msra.mxu0 0.0
  %2130 = vmatpush.msra.mxu0 0.0
  %2131 = vmatpush.msra.mxu0 0.0
  %2132 = vmatpush.msra.mxu0 0.0
  %2133 = vmatpush.msra.mxu0 0.0
  %2134 = vmatpush.msra.mxu0 0.0
  %2135 = vmatpush.msra.mxu0 0.0
  %2136 = vmatpush.msra.mxu0 0.0
  %2137 = vmatpush.msra.mxu0 0.0
  %2138 = vmatpush.msra.mxu0 0.0
  %2139 = vmatpush.msra.mxu0 0.0
  %2140 = vmatpush.msra.mxu0 0.0
  %2141 = vmatpush.msra.mxu0 0.0
  %2142 = vmatpush.msra.mxu0 %v2125
  %2143 = vmatmul.f32.gmra.mxu0 %v548
  %v2144 = vpop.f32.mrf.mxu0
  %v2145 = vadd.f32 0.0, %v2144
  %2146 = vmatmul.f32.gmra.mxu0 %v551
  %v2147 = vpop.f32.mrf.mxu0
  %v2148 = vadd.f32 0.0, %v2147
  %2149 = vmatmul.f32.gmra.mxu0 %v554
  %v2150 = vpop.f32.mrf.mxu0
  %v2151 = vadd.f32 0.0, %v2150
  %2152 = vmatmul.f32.gmra.mxu0 %v557
  %v2153 = vpop.f32.mrf.mxu0
  %v2154 = vadd.f32 0.0, %v2153
  %2155 = vmatmul.f32.gmra.mxu0 %v560
  %v2156 = vpop.f32.mrf.mxu0
  %v2157 = vadd.f32 0.0, %v2156
  %2158 = vmatmul.f32.gmra.mxu0 %v563
  %v2159 = vpop.f32.mrf.mxu0
  %v2160 = vadd.f32 0.0, %v2159
  %2161 = vmatmul.f32.gmra.mxu0 %v566
  %v2162 = vpop.f32.mrf.mxu0
  %v2163 = vadd.f32 0.0, %v2162
  %2164 = vmatmul.f32.gmra.mxu0 %v569
  %v2165 = vpop.f32.mrf.mxu0
  %v2166 = vadd.f32 0.0, %v2165
  %2167 = vmatmul.f32.gmra.mxu0 %v572
  %v2168 = vpop.f32.mrf.mxu0
  %v2169 = vadd.f32 0.0, %v2168
  %2170 = vmatmul.f32.gmra.mxu0 %v575
  %v2171 = vpop.f32.mrf.mxu0
  %v2172 = vadd.f32 0.0, %v2171
  %2173 = vmatmul.f32.gmra.mxu0 %v578
  %v2174 = vpop.f32.mrf.mxu0
  %v2175 = vadd.f32 0.0, %v2174
  %2176 = vmatmul.f32.gmra.mxu0 %v581
  %v2177 = vpop.f32.mrf.mxu0
  %v2178 = vadd.f32 0.0, %v2177
  %2179 = vmatmul.f32.gmra.mxu0 %v584
  %v2180 = vpop.f32.mrf.mxu0
  %v2181 = vadd.f32 0.0, %v2180
  %2182 = vmatmul.f32.gmra.mxu0 %v587
  %v2183 = vpop.f32.mrf.mxu0
  %v2184 = vadd.f32 0.0, %v2183
  %2185 = vmatmul.f32.gmra.mxu0 %v590
  %v2186 = vpop.f32.mrf.mxu0
  %v2187 = vadd.f32 0.0, %v2186
  %2188 = vmatmul.f32.gmra.mxu0 %v593
  %v2189 = vpop.f32.mrf.mxu0
  %v2190 = vadd.f32 0.0, %v2189
  %2191 = vmatmul.f32.gmra.mxu0 %v596
  %v2192 = vpop.f32.mrf.mxu0
  %v2193 = vadd.f32 0.0, %v2192
  %2194 = vmatmul.f32.gmra.mxu0 %v599
  %v2195 = vpop.f32.mrf.mxu0
  %v2196 = vadd.f32 0.0, %v2195
  %2197 = vmatmul.f32.gmra.mxu0 %v602
  %v2198 = vpop.f32.mrf.mxu0
  %v2199 = vadd.f32 0.0, %v2198
  %2200 = vmatmul.f32.gmra.mxu0 %v605
  %v2201 = vpop.f32.mrf.mxu0
  %v2202 = vadd.f32 0.0, %v2201
  %2203 = vmatmul.f32.gmra.mxu0 %v608
  %v2204 = vpop.f32.mrf.mxu0
  %v2205 = vadd.f32 0.0, %v2204
  %2206 = vmatmul.f32.gmra.mxu0 %v611
  %v2207 = vpop.f32.mrf.mxu0
  %v2208 = vadd.f32 0.0, %v2207
  %2209 = vmatmul.f32.gmra.mxu0 %v614
  %v2210 = vpop.f32.mrf.mxu0
  %v2211 = vadd.f32 0.0, %v2210
  %2212 = vmatmul.f32.gmra.mxu0 %v617
  %v2213 = vpop.f32.mrf.mxu0
  %v2214 = vadd.f32 0.0, %v2213
  %2215 = vmatmul.f32.gmra.mxu0 %v620
  %v2216 = vpop.f32.mrf.mxu0
  %v2217 = vadd.f32 0.0, %v2216
  %2218 = vmatmul.f32.gmra.mxu0 %v623
  %v2219 = vpop.f32.mrf.mxu0
  %v2220 = vadd.f32 0.0, %v2219
  %2221 = vmatmul.f32.gmra.mxu0 %v626
  %v2222 = vpop.f32.mrf.mxu0
  %v2223 = vadd.f32 0.0, %v2222
  %2224 = vmatmul.f32.gmra.mxu0 %v629
  %v2225 = vpop.f32.mrf.mxu0
  %v2226 = vadd.f32 0.0, %v2225
  %2227 = vmatmul.f32.gmra.mxu0 %v632
  %v2228 = vpop.f32.mrf.mxu0
  %v2229 = vadd.f32 0.0, %v2228
  %2230 = vmatmul.f32.gmra.mxu0 %v635
  %v2231 = vpop.f32.mrf.mxu0
  %v2232 = vadd.f32 0.0, %v2231
  %2233 = vmatmul.f32.gmra.mxu0 %v2113
  %v2234 = vpop.f32.mrf.mxu0
  %v2235 = vadd.f32 0.0, %v2234
  %2236 = vmatmul.f32.gmra.mxu0 %v2116
  %v2237 = vpop.f32.mrf.mxu0
  %v2238 = vadd.f32 0.0, %v2237
  %2239 = vmatmul.f32.gmra.mxu0 %v644
  %v2240 = vpop.f32.mrf.mxu0
  %v2241 = vadd.f32 0.0, %v2240
  %2242 = vmatmul.f32.gmra.mxu0 %v647
  %v2243 = vpop.f32.mrf.mxu0
  %v2244 = vadd.f32 0.0, %v2243
  %2245 = vmatmul.f32.gmra.mxu0 %v650
  %v2246 = vpop.f32.mrf.mxu0
  %v2247 = vadd.f32 0.0, %v2246
  %2248 = vmatmul.f32.gmra.mxu0 %v653
  %v2249 = vpop.f32.mrf.mxu0
  %v2250 = vadd.f32 0.0, %v2249
  %2251 = vmatmul.f32.gmra.mxu0 %v656
  %v2252 = vpop.f32.mrf.mxu0
  %v2253 = vadd.f32 0.0, %v2252
  %2254 = vmatmul.f32.gmra.mxu0 %v659
  %v2255 = vpop.f32.mrf.mxu0
  %v2256 = vadd.f32 0.0, %v2255
  %2257 = vmatmul.f32.gmra.mxu0 %v662
  %v2258 = vpop.f32.mrf.mxu0
  %v2259 = vadd.f32 0.0, %v2258
  %2260 = vmatmul.f32.gmra.mxu0 %v665
  %v2261 = vpop.f32.mrf.mxu0
  %v2262 = vadd.f32 0.0, %v2261
  %2263 = vmatmul.f32.gmra.mxu0 %v668
  %v2264 = vpop.f32.mrf.mxu0
  %v2265 = vadd.f32 0.0, %v2264
  %2266 = vmatmul.f32.gmra.mxu0 %v671
  %v2267 = vpop.f32.mrf.mxu0
  %v2268 = vadd.f32 0.0, %v2267
  %2269 = vmatmul.f32.gmra.mxu0 %v674
  %v2270 = vpop.f32.mrf.mxu0
  %v2271 = vadd.f32 0.0, %v2270
  %2272 = vmatmul.f32.gmra.mxu0 %v677
  %v2273 = vpop.f32.mrf.mxu0
  %v2274 = vadd.f32 0.0, %v2273
  %2275 = vmatmul.f32.gmra.mxu0 %v680
  %v2276 = vpop.f32.mrf.mxu0
  %v2277 = vadd.f32 0.0, %v2276
  %2278 = vmatmul.f32.gmra.mxu0 %v683
  %v2279 = vpop.f32.mrf.mxu0
  %v2280 = vadd.f32 0.0, %v2279
  %2281 = vmatmul.f32.gmra.mxu0 %v686
  %v2282 = vpop.f32.mrf.mxu0
  %v2283 = vadd.f32 0.0, %v2282
  %2284 = vmatmul.f32.gmra.mxu0 %v689
  %v2285 = vpop.f32.mrf.mxu0
  %v2286 = vadd.f32 0.0, %v2285
  %2287 = vmatmul.f32.gmra.mxu0 %v692
  %v2288 = vpop.f32.mrf.mxu0
  %v2289 = vadd.f32 0.0, %v2288
  %2290 = vmatmul.f32.gmra.mxu0 %v695
  %v2291 = vpop.f32.mrf.mxu0
  %v2292 = vadd.f32 0.0, %v2291
  %2293 = vmatmul.f32.gmra.mxu0 %v698
  %v2294 = vpop.f32.mrf.mxu0
  %v2295 = vadd.f32 0.0, %v2294
  %2296 = vmatmul.f32.gmra.mxu0 %v701
  %v2297 = vpop.f32.mrf.mxu0
  %v2298 = vadd.f32 0.0, %v2297
  %2299 = vmatmul.f32.gmra.mxu0 %v704
  %v2300 = vpop.f32.mrf.mxu0
  %v2301 = vadd.f32 0.0, %v2300
  %2302 = vmatmul.f32.gmra.mxu0 %v707
  %v2303 = vpop.f32.mrf.mxu0
  %v2304 = vadd.f32 0.0, %v2303
  %2305 = vmatmul.f32.gmra.mxu0 %v710
  %v2306 = vpop.f32.mrf.mxu0
  %v2307 = vadd.f32 0.0, %v2306
  %2308 = vmatmul.f32.gmra.mxu0 %v713
  %v2309 = vpop.f32.mrf.mxu0
  %v2310 = vadd.f32 0.0, %v2309
  %2311 = vmatmul.f32.gmra.mxu0 %v716
  %v2312 = vpop.f32.mrf.mxu0
  %v2313 = vadd.f32 0.0, %v2312
  %2314 = vmatmul.f32.gmra.mxu0 %v719
  %v2315 = vpop.f32.mrf.mxu0
  %v2316 = vadd.f32 0.0, %v2315
  %2317 = vmatmul.f32.gmra.mxu0 %v722
  %v2318 = vpop.f32.mrf.mxu0
  %v2319 = vadd.f32 0.0, %v2318
  %2320 = vmatmul.f32.gmra.mxu0 %v725
  %v2321 = vpop.f32.mrf.mxu0
  %v2322 = vadd.f32 0.0, %v2321
  %2323 = vmatmul.f32.gmra.mxu0 %v728
  %v2324 = vpop.f32.mrf.mxu0
  %v2325 = vadd.f32 0.0, %v2324
  %2326 = vmatmul.f32.gmra.mxu0 %v731
  %v2327 = vpop.f32.mrf.mxu0
  %v2328 = vadd.f32 0.0, %v2327
  %2329 = vmatmul.f32.gmra.mxu0 %v2119
  %v2330 = vpop.f32.mrf.mxu0
  %v2331 = vadd.f32 0.0, %v2330
  %2332 = vmatmul.f32.gmra.mxu0 %v2122
  %v2333 = vpop.f32.mrf.mxu0
  %v2334 = vadd.f32 0.0, %v2333
  %2335 = vdwg.mxu0
  %v2336 = vadd.f32 %v2046, %v2145
  %v2337 = vadd.f32 %v2047, %v2148
  %v2338 = vadd.f32 %v2048, %v2151
  %v2339 = vadd.f32 %v2049, %v2154
  %v2340 = vadd.f32 %v2050, %v2157
  %v2341 = vadd.f32 %v2051, %v2160
  %v2342 = vadd.f32 %v2052, %v2163
  %v2343 = vadd.f32 %v2053, %v2166
  %v2344 = vadd.f32 %v2054, %v2169
  %v2345 = vadd.f32 %v2055, %v2172
  %v2346 = vadd.f32 %v2056, %v2175
  %v2347 = vadd.f32 %v2057, %v2178
  %v2348 = vadd.f32 %v2058, %v2181
  %v2349 = vadd.f32 %v2059, %v2184
  %v2350 = vadd.f32 %v2060, %v2187
  %v2351 = vadd.f32 %v2061, %v2190
  %v2352 = vadd.f32 %v2062, %v2193
  %v2353 = vadd.f32 %v2063, %v2196
  %v2354 = vadd.f32 %v2064, %v2199
  %v2355 = vadd.f32 %v2065, %v2202
  %v2356 = vadd.f32 %v2066, %v2205
  %v2357 = vadd.f32 %v2067, %v2208
  %v2358 = vadd.f32 %v2068, %v2211
  %v2359 = vadd.f32 %v2069, %v2214
  %v2360 = vadd.f32 %v2070, %v2217
  %v2361 = vadd.f32 %v2071, %v2220
  %v2362 = vadd.f32 %v2072, %v2223
  %v2363 = vadd.f32 %v2073, %v2226
  %v2364 = vadd.f32 %v2074, %v2229
  %v2365 = vadd.f32 %v2075, %v2232
  %v2366 = vadd.f32 %v2076, %v2235
  %v2367 = vadd.f32 %v2077, %v2238
  %v2368 = vadd.f32 %v2078, %v2241
  %v2369 = vadd.f32 %v2079, %v2244
  %v2370 = vadd.f32 %v2080, %v2247
  %v2371 = vadd.f32 %v2081, %v2250
  %v2372 = vadd.f32 %v2082, %v2253
  %v2373 = vadd.f32 %v2083, %v2256
  %v2374 = vadd.f32 %v2084, %v2259
  %v2375 = vadd.f32 %v2085, %v2262
  %v2376 = vadd.f32 %v2086, %v2265
  %v2377 = vadd.f32 %v2087, %v2268
  %v2378 = vadd.f32 %v2088, %v2271
  %v2379 = vadd.f32 %v2089, %v2274
  %v2380 = vadd.f32 %v2090, %v2277
  %v2381 = vadd.f32 %v2091, %v2280
  %v2382 = vadd.f32 %v2092, %v2283
  %v2383 = vadd.f32 %v2093, %v2286
  %v2384 = vadd.f32 %v2094, %v2289
  %v2385 = vadd.f32 %v2095, %v2292
  %v2386 = vadd.f32 %v2096, %v2295
  %v2387 = vadd.f32 %v2097, %v2298
  %v2388 = vadd.f32 %v2098, %v2301
  %v2389 = vadd.f32 %v2099, %v2304
  %v2390 = vadd.f32 %v2100, %v2307
  %v2391 = vadd.f32 %v2101, %v2310
  %v2392 = vadd.f32 %v2102, %v2313
  %v2393 = vadd.f32 %v2103, %v2316
  %v2394 = vadd.f32 %v2104, %v2319
  %v2395 = vadd.f32 %v2105, %v2322
  %v2396 = vadd.f32 %v2106, %v2325
  %v2397 = vadd.f32 %v2107, %v2328
  %v2398 = vadd.f32 %v2108, %v2331
  %v2399 = vadd.f32 %v2109, %v2334
  %s2400 = scalar_lea.vmem %s1, 20
  %v2401 = vld [vmem:[%s2400] sm:$0xf]
  %v2403 = vsel %vm20, %v498, 0
  %v2406 = vsel %vm20, %v499, 0
  %v2409 = vsel %vm20, %v534, 0
  %v2412 = vsel %vm20, %v535, 0
  %v2415 = vsel %vm733, %v2401, 0
  %2417 = vmatpush.msra.mxu0 0.0
  %2418 = vmatpush.msra.mxu0 0.0
  %2419 = vmatpush.msra.mxu0 0.0
  %2420 = vmatpush.msra.mxu0 0.0
  %2421 = vmatpush.msra.mxu0 0.0
  %2422 = vmatpush.msra.mxu0 0.0
  %2423 = vmatpush.msra.mxu0 0.0
  %2424 = vmatpush.msra.mxu0 0.0
  %2425 = vmatpush.msra.mxu0 0.0
  %2426 = vmatpush.msra.mxu0 0.0
  %2427 = vmatpush.msra.mxu0 0.0
  %2428 = vmatpush.msra.mxu0 0.0
  %2429 = vmatpush.msra.mxu0 0.0
  %2430 = vmatpush.msra.mxu0 0.0
  %2431 = vmatpush.msra.mxu0 0.0
  %2432 = vmatpush.msra.mxu0 %v2415
  %2433 = vmatmul.f32.gmra.mxu0 %v1359
  %v2434 = vpop.f32.mrf.mxu0
  %v2435 = vadd.f32 0.0, %v2434
  %2436 = vmatmul.f32.gmra.mxu0 %v1362
  %v2437 = vpop.f32.mrf.mxu0
  %v2438 = vadd.f32 0.0, %v2437
  %2439 = vmatmul.f32.gmra.mxu0 %v1365
  %v2440 = vpop.f32.mrf.mxu0
  %v2441 = vadd.f32 0.0, %v2440
  %2442 = vmatmul.f32.gmra.mxu0 %v1368
  %v2443 = vpop.f32.mrf.mxu0
  %v2444 = vadd.f32 0.0, %v2443
  %2445 = vmatmul.f32.gmra.mxu0 %v1371
  %v2446 = vpop.f32.mrf.mxu0
  %v2447 = vadd.f32 0.0, %v2446
  %2448 = vmatmul.f32.gmra.mxu0 %v1374
  %v2449 = vpop.f32.mrf.mxu0
  %v2450 = vadd.f32 0.0, %v2449
  %2451 = vmatmul.f32.gmra.mxu0 %v1377
  %v2452 = vpop.f32.mrf.mxu0
  %v2453 = vadd.f32 0.0, %v2452
  %2454 = vmatmul.f32.gmra.mxu0 %v1380
  %v2455 = vpop.f32.mrf.mxu0
  %v2456 = vadd.f32 0.0, %v2455
  %2457 = vmatmul.f32.gmra.mxu0 %v1383
  %v2458 = vpop.f32.mrf.mxu0
  %v2459 = vadd.f32 0.0, %v2458
  %2460 = vmatmul.f32.gmra.mxu0 %v1386
  %v2461 = vpop.f32.mrf.mxu0
  %v2462 = vadd.f32 0.0, %v2461
  %2463 = vmatmul.f32.gmra.mxu0 %v1389
  %v2464 = vpop.f32.mrf.mxu0
  %v2465 = vadd.f32 0.0, %v2464
  %2466 = vmatmul.f32.gmra.mxu0 %v1392
  %v2467 = vpop.f32.mrf.mxu0
  %v2468 = vadd.f32 0.0, %v2467
  %2469 = vmatmul.f32.gmra.mxu0 %v1395
  %v2470 = vpop.f32.mrf.mxu0
  %v2471 = vadd.f32 0.0, %v2470
  %2472 = vmatmul.f32.gmra.mxu0 %v1398
  %v2473 = vpop.f32.mrf.mxu0
  %v2474 = vadd.f32 0.0, %v2473
  %2475 = vmatmul.f32.gmra.mxu0 %v1401
  %v2476 = vpop.f32.mrf.mxu0
  %v2477 = vadd.f32 0.0, %v2476
  %2478 = vmatmul.f32.gmra.mxu0 %v1404
  %v2479 = vpop.f32.mrf.mxu0
  %v2480 = vadd.f32 0.0, %v2479
  %2481 = vmatmul.f32.gmra.mxu0 %v1407
  %v2482 = vpop.f32.mrf.mxu0
  %v2483 = vadd.f32 0.0, %v2482
  %2484 = vmatmul.f32.gmra.mxu0 %v1410
  %v2485 = vpop.f32.mrf.mxu0
  %v2486 = vadd.f32 0.0, %v2485
  %2487 = vmatmul.f32.gmra.mxu0 %v1413
  %v2488 = vpop.f32.mrf.mxu0
  %v2489 = vadd.f32 0.0, %v2488
  %2490 = vmatmul.f32.gmra.mxu0 %v1416
  %v2491 = vpop.f32.mrf.mxu0
  %v2492 = vadd.f32 0.0, %v2491
  %2493 = vmatmul.f32.gmra.mxu0 %v1419
  %v2494 = vpop.f32.mrf.mxu0
  %v2495 = vadd.f32 0.0, %v2494
  %2496 = vmatmul.f32.gmra.mxu0 %v1422
  %v2497 = vpop.f32.mrf.mxu0
  %v2498 = vadd.f32 0.0, %v2497
  %2499 = vmatmul.f32.gmra.mxu0 %v1425
  %v2500 = vpop.f32.mrf.mxu0
  %v2501 = vadd.f32 0.0, %v2500
  %2502 = vmatmul.f32.gmra.mxu0 %v1428
  %v2503 = vpop.f32.mrf.mxu0
  %v2504 = vadd.f32 0.0, %v2503
  %2505 = vmatmul.f32.gmra.mxu0 %v1431
  %v2506 = vpop.f32.mrf.mxu0
  %v2507 = vadd.f32 0.0, %v2506
  %2508 = vmatmul.f32.gmra.mxu0 %v1434
  %v2509 = vpop.f32.mrf.mxu0
  %v2510 = vadd.f32 0.0, %v2509
  %2511 = vmatmul.f32.gmra.mxu0 %v1437
  %v2512 = vpop.f32.mrf.mxu0
  %v2513 = vadd.f32 0.0, %v2512
  %2514 = vmatmul.f32.gmra.mxu0 %v1440
  %v2515 = vpop.f32.mrf.mxu0
  %v2516 = vadd.f32 0.0, %v2515
  %2517 = vmatmul.f32.gmra.mxu0 %v1443
  %v2518 = vpop.f32.mrf.mxu0
  %v2519 = vadd.f32 0.0, %v2518
  %2520 = vmatmul.f32.gmra.mxu0 %v1446
  %v2521 = vpop.f32.mrf.mxu0
  %v2522 = vadd.f32 0.0, %v2521
  %2523 = vmatmul.f32.gmra.mxu0 %v2403
  %v2524 = vpop.f32.mrf.mxu0
  %v2525 = vadd.f32 0.0, %v2524
  %2526 = vmatmul.f32.gmra.mxu0 %v2406
  %v2527 = vpop.f32.mrf.mxu0
  %v2528 = vadd.f32 0.0, %v2527
  %2529 = vmatmul.f32.gmra.mxu0 %v1455
  %v2530 = vpop.f32.mrf.mxu0
  %v2531 = vadd.f32 0.0, %v2530
  %2532 = vmatmul.f32.gmra.mxu0 %v1458
  %v2533 = vpop.f32.mrf.mxu0
  %v2534 = vadd.f32 0.0, %v2533
  %2535 = vmatmul.f32.gmra.mxu0 %v1461
  %v2536 = vpop.f32.mrf.mxu0
  %v2537 = vadd.f32 0.0, %v2536
  %2538 = vmatmul.f32.gmra.mxu0 %v1464
  %v2539 = vpop.f32.mrf.mxu0
  %v2540 = vadd.f32 0.0, %v2539
  %2541 = vmatmul.f32.gmra.mxu0 %v1467
  %v2542 = vpop.f32.mrf.mxu0
  %v2543 = vadd.f32 0.0, %v2542
  %2544 = vmatmul.f32.gmra.mxu0 %v1470
  %v2545 = vpop.f32.mrf.mxu0
  %v2546 = vadd.f32 0.0, %v2545
  %2547 = vmatmul.f32.gmra.mxu0 %v1473
  %v2548 = vpop.f32.mrf.mxu0
  %v2549 = vadd.f32 0.0, %v2548
  %2550 = vmatmul.f32.gmra.mxu0 %v1476
  %v2551 = vpop.f32.mrf.mxu0
  %v2552 = vadd.f32 0.0, %v2551
  %2553 = vmatmul.f32.gmra.mxu0 %v1479
  %v2554 = vpop.f32.mrf.mxu0
  %v2555 = vadd.f32 0.0, %v2554
  %2556 = vmatmul.f32.gmra.mxu0 %v1482
  %v2557 = vpop.f32.mrf.mxu0
  %v2558 = vadd.f32 0.0, %v2557
  %2559 = vmatmul.f32.gmra.mxu0 %v1485
  %v2560 = vpop.f32.mrf.mxu0
  %v2561 = vadd.f32 0.0, %v2560
  %2562 = vmatmul.f32.gmra.mxu0 %v1488
  %v2563 = vpop.f32.mrf.mxu0
  %v2564 = vadd.f32 0.0, %v2563
  %2565 = vmatmul.f32.gmra.mxu0 %v1491
  %v2566 = vpop.f32.mrf.mxu0
  %v2567 = vadd.f32 0.0, %v2566
  %2568 = vmatmul.f32.gmra.mxu0 %v1494
  %v2569 = vpop.f32.mrf.mxu0
  %v2570 = vadd.f32 0.0, %v2569
  %2571 = vmatmul.f32.gmra.mxu0 %v1497
  %v2572 = vpop.f32.mrf.mxu0
  %v2573 = vadd.f32 0.0, %v2572
  %2574 = vmatmul.f32.gmra.mxu0 %v1500
  %v2575 = vpop.f32.mrf.mxu0
  %v2576 = vadd.f32 0.0, %v2575
  %2577 = vmatmul.f32.gmra.mxu0 %v1503
  %v2578 = vpop.f32.mrf.mxu0
  %v2579 = vadd.f32 0.0, %v2578
  %2580 = vmatmul.f32.gmra.mxu0 %v1506
  %v2581 = vpop.f32.mrf.mxu0
  %v2582 = vadd.f32 0.0, %v2581
  %2583 = vmatmul.f32.gmra.mxu0 %v1509
  %v2584 = vpop.f32.mrf.mxu0
  %v2585 = vadd.f32 0.0, %v2584
  %2586 = vmatmul.f32.gmra.mxu0 %v1512
  %v2587 = vpop.f32.mrf.mxu0
  %v2588 = vadd.f32 0.0, %v2587
  %2589 = vmatmul.f32.gmra.mxu0 %v1515
  %v2590 = vpop.f32.mrf.mxu0
  %v2591 = vadd.f32 0.0, %v2590
  %2592 = vmatmul.f32.gmra.mxu0 %v1518
  %v2593 = vpop.f32.mrf.mxu0
  %v2594 = vadd.f32 0.0, %v2593
  %2595 = vmatmul.f32.gmra.mxu0 %v1521
  %v2596 = vpop.f32.mrf.mxu0
  %v2597 = vadd.f32 0.0, %v2596
  %2598 = vmatmul.f32.gmra.mxu0 %v1524
  %v2599 = vpop.f32.mrf.mxu0
  %v2600 = vadd.f32 0.0, %v2599
  %2601 = vmatmul.f32.gmra.mxu0 %v1527
  %v2602 = vpop.f32.mrf.mxu0
  %v2603 = vadd.f32 0.0, %v2602
  %2604 = vmatmul.f32.gmra.mxu0 %v1530
  %v2605 = vpop.f32.mrf.mxu0
  %v2606 = vadd.f32 0.0, %v2605
  %2607 = vmatmul.f32.gmra.mxu0 %v1533
  %v2608 = vpop.f32.mrf.mxu0
  %v2609 = vadd.f32 0.0, %v2608
  %2610 = vmatmul.f32.gmra.mxu0 %v1536
  %v2611 = vpop.f32.mrf.mxu0
  %v2612 = vadd.f32 0.0, %v2611
  %2613 = vmatmul.f32.gmra.mxu0 %v1539
  %v2614 = vpop.f32.mrf.mxu0
  %v2615 = vadd.f32 0.0, %v2614
  %2616 = vmatmul.f32.gmra.mxu0 %v1542
  %v2617 = vpop.f32.mrf.mxu0
  %v2618 = vadd.f32 0.0, %v2617
  %2619 = vmatmul.f32.gmra.mxu0 %v2409
  %v2620 = vpop.f32.mrf.mxu0
  %v2621 = vadd.f32 0.0, %v2620
  %2622 = vmatmul.f32.gmra.mxu0 %v2412
  %v2623 = vpop.f32.mrf.mxu0
  %v2624 = vadd.f32 0.0, %v2623
  %2625 = vdwg.mxu0
  %v2626 = vadd.f32 %v2336, %v2435
  %v2627 = vadd.f32 %v2337, %v2438
  %v2628 = vadd.f32 %v2338, %v2441
  %v2629 = vadd.f32 %v2339, %v2444
  %v2630 = vadd.f32 %v2340, %v2447
  %v2631 = vadd.f32 %v2341, %v2450
  %v2632 = vadd.f32 %v2342, %v2453
  %v2633 = vadd.f32 %v2343, %v2456
  %v2634 = vadd.f32 %v2344, %v2459
  %v2635 = vadd.f32 %v2345, %v2462
  %v2636 = vadd.f32 %v2346, %v2465
  %v2637 = vadd.f32 %v2347, %v2468
  %v2638 = vadd.f32 %v2348, %v2471
  %v2639 = vadd.f32 %v2349, %v2474
  %v2640 = vadd.f32 %v2350, %v2477
  %v2641 = vadd.f32 %v2351, %v2480
  %v2642 = vadd.f32 %v2352, %v2483
  %v2643 = vadd.f32 %v2353, %v2486
  %v2644 = vadd.f32 %v2354, %v2489
  %v2645 = vadd.f32 %v2355, %v2492
  %v2646 = vadd.f32 %v2356, %v2495
  %v2647 = vadd.f32 %v2357, %v2498
  %v2648 = vadd.f32 %v2358, %v2501
  %v2649 = vadd.f32 %v2359, %v2504
  %v2650 = vadd.f32 %v2360, %v2507
  %v2651 = vadd.f32 %v2361, %v2510
  %v2652 = vadd.f32 %v2362, %v2513
  %v2653 = vadd.f32 %v2363, %v2516
  %v2654 = vadd.f32 %v2364, %v2519
  %v2655 = vadd.f32 %v2365, %v2522
  %v2656 = vadd.f32 %v2366, %v2525
  %v2657 = vadd.f32 %v2367, %v2528
  %v2658 = vadd.f32 %v2368, %v2531
  %v2659 = vadd.f32 %v2369, %v2534
  %v2660 = vadd.f32 %v2370, %v2537
  %v2661 = vadd.f32 %v2371, %v2540
  %v2662 = vadd.f32 %v2372, %v2543
  %v2663 = vadd.f32 %v2373, %v2546
  %v2664 = vadd.f32 %v2374, %v2549
  %v2665 = vadd.f32 %v2375, %v2552
  %v2666 = vadd.f32 %v2376, %v2555
  %v2667 = vadd.f32 %v2377, %v2558
  %v2668 = vadd.f32 %v2378, %v2561
  %v2669 = vadd.f32 %v2379, %v2564
  %v2670 = vadd.f32 %v2380, %v2567
  %v2671 = vadd.f32 %v2381, %v2570
  %v2672 = vadd.f32 %v2382, %v2573
  %v2673 = vadd.f32 %v2383, %v2576
  %v2674 = vadd.f32 %v2384, %v2579
  %v2675 = vadd.f32 %v2385, %v2582
  %v2676 = vadd.f32 %v2386, %v2585
  %v2677 = vadd.f32 %v2387, %v2588
  %v2678 = vadd.f32 %v2388, %v2591
  %v2679 = vadd.f32 %v2389, %v2594
  %v2680 = vadd.f32 %v2390, %v2597
  %v2681 = vadd.f32 %v2391, %v2600
  %v2682 = vadd.f32 %v2392, %v2603
  %v2683 = vadd.f32 %v2393, %v2606
  %v2684 = vadd.f32 %v2394, %v2609
  %v2685 = vadd.f32 %v2395, %v2612
  %v2686 = vadd.f32 %v2396, %v2615
  %v2687 = vadd.f32 %v2397, %v2618
  %v2688 = vadd.f32 %v2398, %v2621
  %v2689 = vadd.f32 %v2399, %v2624
  %s2690 = scalar_lea.vmem %s1, 24
  %v2691 = vld [vmem:[%s2690] sm:$0xf]
  %v2693 = vsel %vm20, %v356, 0
  %v2696 = vsel %vm20, %v357, 0
  %v2699 = vsel %vm20, %v392, 0
  %v2702 = vsel %vm20, %v393, 0
  %v2705 = vsel %vm733, %v2691, 0
  %2707 = vmatpush.msra.mxu0 0.0
  %2708 = vmatpush.msra.mxu0 0.0
  %2709 = vmatpush.msra.mxu0 0.0
  %2710 = vmatpush.msra.mxu0 0.0
  %2711 = vmatpush.msra.mxu0 0.0
  %2712 = vmatpush.msra.mxu0 0.0
  %2713 = vmatpush.msra.mxu0 0.0
  %2714 = vmatpush.msra.mxu0 0.0
  %2715 = vmatpush.msra.mxu0 0.0
  %2716 = vmatpush.msra.mxu0 0.0
  %2717 = vmatpush.msra.mxu0 0.0
  %2718 = vmatpush.msra.mxu0 0.0
  %2719 = vmatpush.msra.mxu0 0.0
  %2720 = vmatpush.msra.mxu0 0.0
  %2721 = vmatpush.msra.mxu0 0.0
  %2722 = vmatpush.msra.mxu0 %v2705
  %2723 = vmatmul.f32.gmra.mxu0 %v959
  %v2724 = vpop.f32.mrf.mxu0
  %v2725 = vadd.f32 0.0, %v2724
  %2726 = vmatmul.f32.gmra.mxu0 %v962
  %v2727 = vpop.f32.mrf.mxu0
  %v2728 = vadd.f32 0.0, %v2727
  %2729 = vmatmul.f32.gmra.mxu0 %v965
  %v2730 = vpop.f32.mrf.mxu0
  %v2731 = vadd.f32 0.0, %v2730
  %2732 = vmatmul.f32.gmra.mxu0 %v968
  %v2733 = vpop.f32.mrf.mxu0
  %v2734 = vadd.f32 0.0, %v2733
  %2735 = vmatmul.f32.gmra.mxu0 %v971
  %v2736 = vpop.f32.mrf.mxu0
  %v2737 = vadd.f32 0.0, %v2736
  %2738 = vmatmul.f32.gmra.mxu0 %v974
  %v2739 = vpop.f32.mrf.mxu0
  %v2740 = vadd.f32 0.0, %v2739
  %2741 = vmatmul.f32.gmra.mxu0 %v977
  %v2742 = vpop.f32.mrf.mxu0
  %v2743 = vadd.f32 0.0, %v2742
  %2744 = vmatmul.f32.gmra.mxu0 %v980
  %v2745 = vpop.f32.mrf.mxu0
  %v2746 = vadd.f32 0.0, %v2745
  %2747 = vmatmul.f32.gmra.mxu0 %v983
  %v2748 = vpop.f32.mrf.mxu0
  %v2749 = vadd.f32 0.0, %v2748
  %2750 = vmatmul.f32.gmra.mxu0 %v986
  %v2751 = vpop.f32.mrf.mxu0
  %v2752 = vadd.f32 0.0, %v2751
  %2753 = vmatmul.f32.gmra.mxu0 %v989
  %v2754 = vpop.f32.mrf.mxu0
  %v2755 = vadd.f32 0.0, %v2754
  %2756 = vmatmul.f32.gmra.mxu0 %v992
  %v2757 = vpop.f32.mrf.mxu0
  %v2758 = vadd.f32 0.0, %v2757
  %2759 = vmatmul.f32.gmra.mxu0 %v995
  %v2760 = vpop.f32.mrf.mxu0
  %v2761 = vadd.f32 0.0, %v2760
  %2762 = vmatmul.f32.gmra.mxu0 %v998
  %v2763 = vpop.f32.mrf.mxu0
  %v2764 = vadd.f32 0.0, %v2763
  %2765 = vmatmul.f32.gmra.mxu0 %v1001
  %v2766 = vpop.f32.mrf.mxu0
  %v2767 = vadd.f32 0.0, %v2766
  %2768 = vmatmul.f32.gmra.mxu0 %v1004
  %v2769 = vpop.f32.mrf.mxu0
  %v2770 = vadd.f32 0.0, %v2769
  %2771 = vmatmul.f32.gmra.mxu0 %v1007
  %v2772 = vpop.f32.mrf.mxu0
  %v2773 = vadd.f32 0.0, %v2772
  %2774 = vmatmul.f32.gmra.mxu0 %v1010
  %v2775 = vpop.f32.mrf.mxu0
  %v2776 = vadd.f32 0.0, %v2775
  %2777 = vmatmul.f32.gmra.mxu0 %v1013
  %v2778 = vpop.f32.mrf.mxu0
  %v2779 = vadd.f32 0.0, %v2778
  %2780 = vmatmul.f32.gmra.mxu0 %v1016
  %v2781 = vpop.f32.mrf.mxu0
  %v2782 = vadd.f32 0.0, %v2781
  %2783 = vmatmul.f32.gmra.mxu0 %v1019
  %v2784 = vpop.f32.mrf.mxu0
  %v2785 = vadd.f32 0.0, %v2784
  %2786 = vmatmul.f32.gmra.mxu0 %v1022
  %v2787 = vpop.f32.mrf.mxu0
  %v2788 = vadd.f32 0.0, %v2787
  %2789 = vmatmul.f32.gmra.mxu0 %v1025
  %v2790 = vpop.f32.mrf.mxu0
  %v2791 = vadd.f32 0.0, %v2790
  %2792 = vmatmul.f32.gmra.mxu0 %v1028
  %v2793 = vpop.f32.mrf.mxu0
  %v2794 = vadd.f32 0.0, %v2793
  %2795 = vmatmul.f32.gmra.mxu0 %v1031
  %v2796 = vpop.f32.mrf.mxu0
  %v2797 = vadd.f32 0.0, %v2796
  %2798 = vmatmul.f32.gmra.mxu0 %v1034
  %v2799 = vpop.f32.mrf.mxu0
  %v2800 = vadd.f32 0.0, %v2799
  %2801 = vmatmul.f32.gmra.mxu0 %v1037
  %v2802 = vpop.f32.mrf.mxu0
  %v2803 = vadd.f32 0.0, %v2802
  %2804 = vmatmul.f32.gmra.mxu0 %v1040
  %v2805 = vpop.f32.mrf.mxu0
  %v2806 = vadd.f32 0.0, %v2805
  %2807 = vmatmul.f32.gmra.mxu0 %v1823
  %v2808 = vpop.f32.mrf.mxu0
  %v2809 = vadd.f32 0.0, %v2808
  %2810 = vmatmul.f32.gmra.mxu0 %v1826
  %v2811 = vpop.f32.mrf.mxu0
  %v2812 = vadd.f32 0.0, %v2811
  %2813 = vmatmul.f32.gmra.mxu0 %v2693
  %v2814 = vpop.f32.mrf.mxu0
  %v2815 = vadd.f32 0.0, %v2814
  %2816 = vmatmul.f32.gmra.mxu0 %v2696
  %v2817 = vpop.f32.mrf.mxu0
  %v2818 = vadd.f32 0.0, %v2817
  %2819 = vmatmul.f32.gmra.mxu0 %v1055
  %v2820 = vpop.f32.mrf.mxu0
  %v2821 = vadd.f32 0.0, %v2820
  %2822 = vmatmul.f32.gmra.mxu0 %v1058
  %v2823 = vpop.f32.mrf.mxu0
  %v2824 = vadd.f32 0.0, %v2823
  %2825 = vmatmul.f32.gmra.mxu0 %v1061
  %v2826 = vpop.f32.mrf.mxu0
  %v2827 = vadd.f32 0.0, %v2826
  %2828 = vmatmul.f32.gmra.mxu0 %v1064
  %v2829 = vpop.f32.mrf.mxu0
  %v2830 = vadd.f32 0.0, %v2829
  %2831 = vmatmul.f32.gmra.mxu0 %v1067
  %v2832 = vpop.f32.mrf.mxu0
  %v2833 = vadd.f32 0.0, %v2832
  %2834 = vmatmul.f32.gmra.mxu0 %v1070
  %v2835 = vpop.f32.mrf.mxu0
  %v2836 = vadd.f32 0.0, %v2835
  %2837 = vmatmul.f32.gmra.mxu0 %v1073
  %v2838 = vpop.f32.mrf.mxu0
  %v2839 = vadd.f32 0.0, %v2838
  %2840 = vmatmul.f32.gmra.mxu0 %v1076
  %v2841 = vpop.f32.mrf.mxu0
  %v2842 = vadd.f32 0.0, %v2841
  %2843 = vmatmul.f32.gmra.mxu0 %v1079
  %v2844 = vpop.f32.mrf.mxu0
  %v2845 = vadd.f32 0.0, %v2844
  %2846 = vmatmul.f32.gmra.mxu0 %v1082
  %v2847 = vpop.f32.mrf.mxu0
  %v2848 = vadd.f32 0.0, %v2847
  %2849 = vmatmul.f32.gmra.mxu0 %v1085
  %v2850 = vpop.f32.mrf.mxu0
  %v2851 = vadd.f32 0.0, %v2850
  %2852 = vmatmul.f32.gmra.mxu0 %v1088
  %v2853 = vpop.f32.mrf.mxu0
  %v2854 = vadd.f32 0.0, %v2853
  %2855 = vmatmul.f32.gmra.mxu0 %v1091
  %v2856 = vpop.f32.mrf.mxu0
  %v2857 = vadd.f32 0.0, %v2856
  %2858 = vmatmul.f32.gmra.mxu0 %v1094
  %v2859 = vpop.f32.mrf.mxu0
  %v2860 = vadd.f32 0.0, %v2859
  %2861 = vmatmul.f32.gmra.mxu0 %v1097
  %v2862 = vpop.f32.mrf.mxu0
  %v2863 = vadd.f32 0.0, %v2862
  %2864 = vmatmul.f32.gmra.mxu0 %v1100
  %v2865 = vpop.f32.mrf.mxu0
  %v2866 = vadd.f32 0.0, %v2865
  %2867 = vmatmul.f32.gmra.mxu0 %v1103
  %v2868 = vpop.f32.mrf.mxu0
  %v2869 = vadd.f32 0.0, %v2868
  %2870 = vmatmul.f32.gmra.mxu0 %v1106
  %v2871 = vpop.f32.mrf.mxu0
  %v2872 = vadd.f32 0.0, %v2871
  %2873 = vmatmul.f32.gmra.mxu0 %v1109
  %v2874 = vpop.f32.mrf.mxu0
  %v2875 = vadd.f32 0.0, %v2874
  %2876 = vmatmul.f32.gmra.mxu0 %v1112
  %v2877 = vpop.f32.mrf.mxu0
  %v2878 = vadd.f32 0.0, %v2877
  %2879 = vmatmul.f32.gmra.mxu0 %v1115
  %v2880 = vpop.f32.mrf.mxu0
  %v2881 = vadd.f32 0.0, %v2880
  %2882 = vmatmul.f32.gmra.mxu0 %v1118
  %v2883 = vpop.f32.mrf.mxu0
  %v2884 = vadd.f32 0.0, %v2883
  %2885 = vmatmul.f32.gmra.mxu0 %v1121
  %v2886 = vpop.f32.mrf.mxu0
  %v2887 = vadd.f32 0.0, %v2886
  %2888 = vmatmul.f32.gmra.mxu0 %v1124
  %v2889 = vpop.f32.mrf.mxu0
  %v2890 = vadd.f32 0.0, %v2889
  %2891 = vmatmul.f32.gmra.mxu0 %v1127
  %v2892 = vpop.f32.mrf.mxu0
  %v2893 = vadd.f32 0.0, %v2892
  %2894 = vmatmul.f32.gmra.mxu0 %v1130
  %v2895 = vpop.f32.mrf.mxu0
  %v2896 = vadd.f32 0.0, %v2895
  %2897 = vmatmul.f32.gmra.mxu0 %v1133
  %v2898 = vpop.f32.mrf.mxu0
  %v2899 = vadd.f32 0.0, %v2898
  %2900 = vmatmul.f32.gmra.mxu0 %v1136
  %v2901 = vpop.f32.mrf.mxu0
  %v2902 = vadd.f32 0.0, %v2901
  %2903 = vmatmul.f32.gmra.mxu0 %v1829
  %v2904 = vpop.f32.mrf.mxu0
  %v2905 = vadd.f32 0.0, %v2904
  %2906 = vmatmul.f32.gmra.mxu0 %v1832
  %v2907 = vpop.f32.mrf.mxu0
  %v2908 = vadd.f32 0.0, %v2907
  %2909 = vmatmul.f32.gmra.mxu0 %v2699
  %v2910 = vpop.f32.mrf.mxu0
  %v2911 = vadd.f32 0.0, %v2910
  %2912 = vmatmul.f32.gmra.mxu0 %v2702
  %v2913 = vpop.f32.mrf.mxu0
  %v2914 = vadd.f32 0.0, %v2913
  %2915 = vdwg.mxu0
  %v2916 = vadd.f32 %v2626, %v2725
  %v2917 = vadd.f32 %v2627, %v2728
  %v2918 = vadd.f32 %v2628, %v2731
  %v2919 = vadd.f32 %v2629, %v2734
  %v2920 = vadd.f32 %v2630, %v2737
  %v2921 = vadd.f32 %v2631, %v2740
  %v2922 = vadd.f32 %v2632, %v2743
  %v2923 = vadd.f32 %v2633, %v2746
  %v2924 = vadd.f32 %v2634, %v2749
  %v2925 = vadd.f32 %v2635, %v2752
  %v2926 = vadd.f32 %v2636, %v2755
  %v2927 = vadd.f32 %v2637, %v2758
  %v2928 = vadd.f32 %v2638, %v2761
  %v2929 = vadd.f32 %v2639, %v2764
  %v2930 = vadd.f32 %v2640, %v2767
  %v2931 = vadd.f32 %v2641, %v2770
  %v2932 = vadd.f32 %v2642, %v2773
  %v2933 = vadd.f32 %v2643, %v2776
  %v2934 = vadd.f32 %v2644, %v2779
  %v2935 = vadd.f32 %v2645, %v2782
  %v2936 = vadd.f32 %v2646, %v2785
  %v2937 = vadd.f32 %v2647, %v2788
  %v2938 = vadd.f32 %v2648, %v2791
  %v2939 = vadd.f32 %v2649, %v2794
  %v2940 = vadd.f32 %v2650, %v2797
  %v2941 = vadd.f32 %v2651, %v2800
  %v2942 = vadd.f32 %v2652, %v2803
  %v2943 = vadd.f32 %v2653, %v2806
  %v2944 = vadd.f32 %v2654, %v2809
  %v2945 = vadd.f32 %v2655, %v2812
  %v2946 = vadd.f32 %v2656, %v2815
  %v2947 = vadd.f32 %v2657, %v2818
  %v2948 = vadd.f32 %v2658, %v2821
  %v2949 = vadd.f32 %v2659, %v2824
  %v2950 = vadd.f32 %v2660, %v2827
  %v2951 = vadd.f32 %v2661, %v2830
  %v2952 = vadd.f32 %v2662, %v2833
  %v2953 = vadd.f32 %v2663, %v2836
  %v2954 = vadd.f32 %v2664, %v2839
  %v2955 = vadd.f32 %v2665, %v2842
  %v2956 = vadd.f32 %v2666, %v2845
  %v2957 = vadd.f32 %v2667, %v2848
  %v2958 = vadd.f32 %v2668, %v2851
  %v2959 = vadd.f32 %v2669, %v2854
  %v2960 = vadd.f32 %v2670, %v2857
  %v2961 = vadd.f32 %v2671, %v2860
  %v2962 = vadd.f32 %v2672, %v2863
  %v2963 = vadd.f32 %v2673, %v2866
  %v2964 = vadd.f32 %v2674, %v2869
  %v2965 = vadd.f32 %v2675, %v2872
  %v2966 = vadd.f32 %v2676, %v2875
  %v2967 = vadd.f32 %v2677, %v2878
  %v2968 = vadd.f32 %v2678, %v2881
  %v2969 = vadd.f32 %v2679, %v2884
  %v2970 = vadd.f32 %v2680, %v2887
  %v2971 = vadd.f32 %v2681, %v2890
  %v2972 = vadd.f32 %v2682, %v2893
  %v2973 = vadd.f32 %v2683, %v2896
  %v2974 = vadd.f32 %v2684, %v2899
  %v2975 = vadd.f32 %v2685, %v2902
  %v2976 = vadd.f32 %v2686, %v2905
  %v2977 = vadd.f32 %v2687, %v2908
  %v2978 = vadd.f32 %v2688, %v2911
  %v2979 = vadd.f32 %v2689, %v2914
  %s2980 = scalar_lea.vmem %s1, 28
  %v2981 = vld [vmem:[%s2980] sm:$0xf]
  %v2983 = vsel %vm20, %v428, 0
  %v2986 = vsel %vm20, %v429, 0
  %v2989 = vsel %vm20, %v464, 0
  %v2992 = vsel %vm20, %v465, 0
  %v2995 = vsel %vm733, %v2981, 0
  %2997 = vmatpush.msra.mxu0 0.0
  %2998 = vmatpush.msra.mxu0 0.0
  %2999 = vmatpush.msra.mxu0 0.0
  %3000 = vmatpush.msra.mxu0 0.0
  %3001 = vmatpush.msra.mxu0 0.0
  %3002 = vmatpush.msra.mxu0 0.0
  %3003 = vmatpush.msra.mxu0 0.0
  %3004 = vmatpush.msra.mxu0 0.0
  %3005 = vmatpush.msra.mxu0 0.0
  %3006 = vmatpush.msra.mxu0 0.0
  %3007 = vmatpush.msra.mxu0 0.0
  %3008 = vmatpush.msra.mxu0 0.0
  %3009 = vmatpush.msra.mxu0 0.0
  %3010 = vmatpush.msra.mxu0 0.0
  %3011 = vmatpush.msra.mxu0 0.0
  %3012 = vmatpush.msra.mxu0 %v2995
  %3013 = vmatmul.f32.gmra.mxu0 %v554
  %v3014 = vpop.f32.mrf.mxu0
  %v3015 = vadd.f32 0.0, %v3014
  %3016 = vmatmul.f32.gmra.mxu0 %v557
  %v3017 = vpop.f32.mrf.mxu0
  %v3018 = vadd.f32 0.0, %v3017
  %3019 = vmatmul.f32.gmra.mxu0 %v560
  %v3020 = vpop.f32.mrf.mxu0
  %v3021 = vadd.f32 0.0, %v3020
  %3022 = vmatmul.f32.gmra.mxu0 %v563
  %v3023 = vpop.f32.mrf.mxu0
  %v3024 = vadd.f32 0.0, %v3023
  %3025 = vmatmul.f32.gmra.mxu0 %v566
  %v3026 = vpop.f32.mrf.mxu0
  %v3027 = vadd.f32 0.0, %v3026
  %3028 = vmatmul.f32.gmra.mxu0 %v569
  %v3029 = vpop.f32.mrf.mxu0
  %v3030 = vadd.f32 0.0, %v3029
  %3031 = vmatmul.f32.gmra.mxu0 %v572
  %v3032 = vpop.f32.mrf.mxu0
  %v3033 = vadd.f32 0.0, %v3032
  %3034 = vmatmul.f32.gmra.mxu0 %v575
  %v3035 = vpop.f32.mrf.mxu0
  %v3036 = vadd.f32 0.0, %v3035
  %3037 = vmatmul.f32.gmra.mxu0 %v578
  %v3038 = vpop.f32.mrf.mxu0
  %v3039 = vadd.f32 0.0, %v3038
  %3040 = vmatmul.f32.gmra.mxu0 %v581
  %v3041 = vpop.f32.mrf.mxu0
  %v3042 = vadd.f32 0.0, %v3041
  %3043 = vmatmul.f32.gmra.mxu0 %v584
  %v3044 = vpop.f32.mrf.mxu0
  %v3045 = vadd.f32 0.0, %v3044
  %3046 = vmatmul.f32.gmra.mxu0 %v587
  %v3047 = vpop.f32.mrf.mxu0
  %v3048 = vadd.f32 0.0, %v3047
  %3049 = vmatmul.f32.gmra.mxu0 %v590
  %v3050 = vpop.f32.mrf.mxu0
  %v3051 = vadd.f32 0.0, %v3050
  %3052 = vmatmul.f32.gmra.mxu0 %v593
  %v3053 = vpop.f32.mrf.mxu0
  %v3054 = vadd.f32 0.0, %v3053
  %3055 = vmatmul.f32.gmra.mxu0 %v596
  %v3056 = vpop.f32.mrf.mxu0
  %v3057 = vadd.f32 0.0, %v3056
  %3058 = vmatmul.f32.gmra.mxu0 %v599
  %v3059 = vpop.f32.mrf.mxu0
  %v3060 = vadd.f32 0.0, %v3059
  %3061 = vmatmul.f32.gmra.mxu0 %v602
  %v3062 = vpop.f32.mrf.mxu0
  %v3063 = vadd.f32 0.0, %v3062
  %3064 = vmatmul.f32.gmra.mxu0 %v605
  %v3065 = vpop.f32.mrf.mxu0
  %v3066 = vadd.f32 0.0, %v3065
  %3067 = vmatmul.f32.gmra.mxu0 %v608
  %v3068 = vpop.f32.mrf.mxu0
  %v3069 = vadd.f32 0.0, %v3068
  %3070 = vmatmul.f32.gmra.mxu0 %v611
  %v3071 = vpop.f32.mrf.mxu0
  %v3072 = vadd.f32 0.0, %v3071
  %3073 = vmatmul.f32.gmra.mxu0 %v614
  %v3074 = vpop.f32.mrf.mxu0
  %v3075 = vadd.f32 0.0, %v3074
  %3076 = vmatmul.f32.gmra.mxu0 %v617
  %v3077 = vpop.f32.mrf.mxu0
  %v3078 = vadd.f32 0.0, %v3077
  %3079 = vmatmul.f32.gmra.mxu0 %v620
  %v3080 = vpop.f32.mrf.mxu0
  %v3081 = vadd.f32 0.0, %v3080
  %3082 = vmatmul.f32.gmra.mxu0 %v623
  %v3083 = vpop.f32.mrf.mxu0
  %v3084 = vadd.f32 0.0, %v3083
  %3085 = vmatmul.f32.gmra.mxu0 %v626
  %v3086 = vpop.f32.mrf.mxu0
  %v3087 = vadd.f32 0.0, %v3086
  %3088 = vmatmul.f32.gmra.mxu0 %v629
  %v3089 = vpop.f32.mrf.mxu0
  %v3090 = vadd.f32 0.0, %v3089
  %3091 = vmatmul.f32.gmra.mxu0 %v632
  %v3092 = vpop.f32.mrf.mxu0
  %v3093 = vadd.f32 0.0, %v3092
  %3094 = vmatmul.f32.gmra.mxu0 %v635
  %v3095 = vpop.f32.mrf.mxu0
  %v3096 = vadd.f32 0.0, %v3095
  %3097 = vmatmul.f32.gmra.mxu0 %v2113
  %v3098 = vpop.f32.mrf.mxu0
  %v3099 = vadd.f32 0.0, %v3098
  %3100 = vmatmul.f32.gmra.mxu0 %v2116
  %v3101 = vpop.f32.mrf.mxu0
  %v3102 = vadd.f32 0.0, %v3101
  %3103 = vmatmul.f32.gmra.mxu0 %v2983
  %v3104 = vpop.f32.mrf.mxu0
  %v3105 = vadd.f32 0.0, %v3104
  %3106 = vmatmul.f32.gmra.mxu0 %v2986
  %v3107 = vpop.f32.mrf.mxu0
  %v3108 = vadd.f32 0.0, %v3107
  %3109 = vmatmul.f32.gmra.mxu0 %v650
  %v3110 = vpop.f32.mrf.mxu0
  %v3111 = vadd.f32 0.0, %v3110
  %3112 = vmatmul.f32.gmra.mxu0 %v653
  %v3113 = vpop.f32.mrf.mxu0
  %v3114 = vadd.f32 0.0, %v3113
  %3115 = vmatmul.f32.gmra.mxu0 %v656
  %v3116 = vpop.f32.mrf.mxu0
  %v3117 = vadd.f32 0.0, %v3116
  %3118 = vmatmul.f32.gmra.mxu0 %v659
  %v3119 = vpop.f32.mrf.mxu0
  %v3120 = vadd.f32 0.0, %v3119
  %3121 = vmatmul.f32.gmra.mxu0 %v662
  %v3122 = vpop.f32.mrf.mxu0
  %v3123 = vadd.f32 0.0, %v3122
  %3124 = vmatmul.f32.gmra.mxu0 %v665
  %v3125 = vpop.f32.mrf.mxu0
  %v3126 = vadd.f32 0.0, %v3125
  %3127 = vmatmul.f32.gmra.mxu0 %v668
  %v3128 = vpop.f32.mrf.mxu0
  %v3129 = vadd.f32 0.0, %v3128
  %3130 = vmatmul.f32.gmra.mxu0 %v671
  %v3131 = vpop.f32.mrf.mxu0
  %v3132 = vadd.f32 0.0, %v3131
  %3133 = vmatmul.f32.gmra.mxu0 %v674
  %v3134 = vpop.f32.mrf.mxu0
  %v3135 = vadd.f32 0.0, %v3134
  %3136 = vmatmul.f32.gmra.mxu0 %v677
  %v3137 = vpop.f32.mrf.mxu0
  %v3138 = vadd.f32 0.0, %v3137
  %3139 = vmatmul.f32.gmra.mxu0 %v680
  %v3140 = vpop.f32.mrf.mxu0
  %v3141 = vadd.f32 0.0, %v3140
  %3142 = vmatmul.f32.gmra.mxu0 %v683
  %v3143 = vpop.f32.mrf.mxu0
  %v3144 = vadd.f32 0.0, %v3143
  %3145 = vmatmul.f32.gmra.mxu0 %v686
  %v3146 = vpop.f32.mrf.mxu0
  %v3147 = vadd.f32 0.0, %v3146
  %3148 = vmatmul.f32.gmra.mxu0 %v689
  %v3149 = vpop.f32.mrf.mxu0
  %v3150 = vadd.f32 0.0, %v3149
  %3151 = vmatmul.f32.gmra.mxu0 %v692
  %v3152 = vpop.f32.mrf.mxu0
  %v3153 = vadd.f32 0.0, %v3152
  %3154 = vmatmul.f32.gmra.mxu0 %v695
  %v3155 = vpop.f32.mrf.mxu0
  %v3156 = vadd.f32 0.0, %v3155
  %3157 = vmatmul.f32.gmra.mxu0 %v698
  %v3158 = vpop.f32.mrf.mxu0
  %v3159 = vadd.f32 0.0, %v3158
  %3160 = vmatmul.f32.gmra.mxu0 %v701
  %v3161 = vpop.f32.mrf.mxu0
  %v3162 = vadd.f32 0.0, %v3161
  %3163 = vmatmul.f32.gmra.mxu0 %v704
  %v3164 = vpop.f32.mrf.mxu0
  %v3165 = vadd.f32 0.0, %v3164
  %3166 = vmatmul.f32.gmra.mxu0 %v707
  %v3167 = vpop.f32.mrf.mxu0
  %v3168 = vadd.f32 0.0, %v3167
  %3169 = vmatmul.f32.gmra.mxu0 %v710
  %v3170 = vpop.f32.mrf.mxu0
  %v3171 = vadd.f32 0.0, %v3170
  %3172 = vmatmul.f32.gmra.mxu0 %v713
  %v3173 = vpop.f32.mrf.mxu0
  %v3174 = vadd.f32 0.0, %v3173
  %3175 = vmatmul.f32.gmra.mxu0 %v716
  %v3176 = vpop.f32.mrf.mxu0
  %v3177 = vadd.f32 0.0, %v3176
  %3178 = vmatmul.f32.gmra.mxu0 %v719
  %v3179 = vpop.f32.mrf.mxu0
  %v3180 = vadd.f32 0.0, %v3179
  %3181 = vmatmul.f32.gmra.mxu0 %v722
  %v3182 = vpop.f32.mrf.mxu0
  %v3183 = vadd.f32 0.0, %v3182
  %3184 = vmatmul.f32.gmra.mxu0 %v725
  %v3185 = vpop.f32.mrf.mxu0
  %v3186 = vadd.f32 0.0, %v3185
  %3187 = vmatmul.f32.gmra.mxu0 %v728
  %v3188 = vpop.f32.mrf.mxu0
  %v3189 = vadd.f32 0.0, %v3188
  %3190 = vmatmul.f32.gmra.mxu0 %v731
  %v3191 = vpop.f32.mrf.mxu0
  %v3192 = vadd.f32 0.0, %v3191
  %3193 = vmatmul.f32.gmra.mxu0 %v2119
  %v3194 = vpop.f32.mrf.mxu0
  %v3195 = vadd.f32 0.0, %v3194
  %3196 = vmatmul.f32.gmra.mxu0 %v2122
  %v3197 = vpop.f32.mrf.mxu0
  %v3198 = vadd.f32 0.0, %v3197
  %3199 = vmatmul.f32.gmra.mxu0 %v2989
  %v3200 = vpop.f32.mrf.mxu0
  %v3201 = vadd.f32 0.0, %v3200
  %3202 = vmatmul.f32.gmra.mxu0 %v2992
  %v3203 = vpop.f32.mrf.mxu0
  %v3204 = vadd.f32 0.0, %v3203
  %3205 = vdwg.mxu0
  %v3206 = vadd.f32 %v2916, %v3015
  %v3207 = vadd.f32 %v2917, %v3018
  %v3208 = vadd.f32 %v2918, %v3021
  %v3209 = vadd.f32 %v2919, %v3024
  %v3210 = vadd.f32 %v2920, %v3027
  %v3211 = vadd.f32 %v2921, %v3030
  %v3212 = vadd.f32 %v2922, %v3033
  %v3213 = vadd.f32 %v2923, %v3036
  %v3214 = vadd.f32 %v2924, %v3039
  %v3215 = vadd.f32 %v2925, %v3042
  %v3216 = vadd.f32 %v2926, %v3045
  %v3217 = vadd.f32 %v2927, %v3048
  %v3218 = vadd.f32 %v2928, %v3051
  %v3219 = vadd.f32 %v2929, %v3054
  %v3220 = vadd.f32 %v2930, %v3057
  %v3221 = vadd.f32 %v2931, %v3060
  %v3222 = vadd.f32 %v2932, %v3063
  %v3223 = vadd.f32 %v2933, %v3066
  %v3224 = vadd.f32 %v2934, %v3069
  %v3225 = vadd.f32 %v2935, %v3072
  %v3226 = vadd.f32 %v2936, %v3075
  %v3227 = vadd.f32 %v2937, %v3078
  %v3228 = vadd.f32 %v2938, %v3081
  %v3229 = vadd.f32 %v2939, %v3084
  %v3230 = vadd.f32 %v2940, %v3087
  %v3231 = vadd.f32 %v2941, %v3090
  %v3232 = vadd.f32 %v2942, %v3093
  %v3233 = vadd.f32 %v2943, %v3096
  %v3234 = vadd.f32 %v2944, %v3099
  %v3235 = vadd.f32 %v2945, %v3102
  %v3236 = vadd.f32 %v2946, %v3105
  %v3237 = vadd.f32 %v2947, %v3108
  %v3238 = vadd.f32 %v2948, %v3111
  %v3239 = vadd.f32 %v2949, %v3114
  %v3240 = vadd.f32 %v2950, %v3117
  %v3241 = vadd.f32 %v2951, %v3120
  %v3242 = vadd.f32 %v2952, %v3123
  %v3243 = vadd.f32 %v2953, %v3126
  %v3244 = vadd.f32 %v2954, %v3129
  %v3245 = vadd.f32 %v2955, %v3132
  %v3246 = vadd.f32 %v2956, %v3135
  %v3247 = vadd.f32 %v2957, %v3138
  %v3248 = vadd.f32 %v2958, %v3141
  %v3249 = vadd.f32 %v2959, %v3144
  %v3250 = vadd.f32 %v2960, %v3147
  %v3251 = vadd.f32 %v2961, %v3150
  %v3252 = vadd.f32 %v2962, %v3153
  %v3253 = vadd.f32 %v2963, %v3156
  %v3254 = vadd.f32 %v2964, %v3159
  %v3255 = vadd.f32 %v2965, %v3162
  %v3256 = vadd.f32 %v2966, %v3165
  %v3257 = vadd.f32 %v2967, %v3168
  %v3258 = vadd.f32 %v2968, %v3171
  %v3259 = vadd.f32 %v2969, %v3174
  %v3260 = vadd.f32 %v2970, %v3177
  %v3261 = vadd.f32 %v2971, %v3180
  %v3262 = vadd.f32 %v2972, %v3183
  %v3263 = vadd.f32 %v2973, %v3186
  %v3264 = vadd.f32 %v2974, %v3189
  %v3265 = vadd.f32 %v2975, %v3192
  %v3266 = vadd.f32 %v2976, %v3195
  %v3267 = vadd.f32 %v2977, %v3198
  %v3268 = vadd.f32 %v2978, %v3201
  %v3269 = vadd.f32 %v2979, %v3204
  %s3270 = scalar_lea.vmem %s1, 32
  %v3271 = vld [vmem:[%s3270] sm:$0xf]
  %v3273 = vsel %vm20, %v500, 0
  %v3276 = vsel %vm20, %v501, 0
  %v3279 = vsel %vm20, %v536, 0
  %v3282 = vsel %vm20, %v537, 0
  %v3285 = vsel %vm733, %v3271, 0
  %3287 = vmatpush.msra.mxu0 0.0
  %3288 = vmatpush.msra.mxu0 0.0
  %3289 = vmatpush.msra.mxu0 0.0
  %3290 = vmatpush.msra.mxu0 0.0
  %3291 = vmatpush.msra.mxu0 0.0
  %3292 = vmatpush.msra.mxu0 0.0
  %3293 = vmatpush.msra.mxu0 0.0
  %3294 = vmatpush.msra.mxu0 0.0
  %3295 = vmatpush.msra.mxu0 0.0
  %3296 = vmatpush.msra.mxu0 0.0
  %3297 = vmatpush.msra.mxu0 0.0
  %3298 = vmatpush.msra.mxu0 0.0
  %3299 = vmatpush.msra.mxu0 0.0
  %3300 = vmatpush.msra.mxu0 0.0
  %3301 = vmatpush.msra.mxu0 0.0
  %3302 = vmatpush.msra.mxu0 %v3285
  %3303 = vmatmul.f32.gmra.mxu0 %v1365
  %v3304 = vpop.f32.mrf.mxu0
  %v3305 = vadd.f32 0.0, %v3304
  %3306 = vmatmul.f32.gmra.mxu0 %v1368
  %v3307 = vpop.f32.mrf.mxu0
  %v3308 = vadd.f32 0.0, %v3307
  %3309 = vmatmul.f32.gmra.mxu0 %v1371
  %v3310 = vpop.f32.mrf.mxu0
  %v3311 = vadd.f32 0.0, %v3310
  %3312 = vmatmul.f32.gmra.mxu0 %v1374
  %v3313 = vpop.f32.mrf.mxu0
  %v3314 = vadd.f32 0.0, %v3313
  %3315 = vmatmul.f32.gmra.mxu0 %v1377
  %v3316 = vpop.f32.mrf.mxu0
  %v3317 = vadd.f32 0.0, %v3316
  %3318 = vmatmul.f32.gmra.mxu0 %v1380
  %v3319 = vpop.f32.mrf.mxu0
  %v3320 = vadd.f32 0.0, %v3319
  %3321 = vmatmul.f32.gmra.mxu0 %v1383
  %v3322 = vpop.f32.mrf.mxu0
  %v3323 = vadd.f32 0.0, %v3322
  %3324 = vmatmul.f32.gmra.mxu0 %v1386
  %v3325 = vpop.f32.mrf.mxu0
  %v3326 = vadd.f32 0.0, %v3325
  %3327 = vmatmul.f32.gmra.mxu0 %v1389
  %v3328 = vpop.f32.mrf.mxu0
  %v3329 = vadd.f32 0.0, %v3328
  %3330 = vmatmul.f32.gmra.mxu0 %v1392
  %v3331 = vpop.f32.mrf.mxu0
  %v3332 = vadd.f32 0.0, %v3331
  %3333 = vmatmul.f32.gmra.mxu0 %v1395
  %v3334 = vpop.f32.mrf.mxu0
  %v3335 = vadd.f32 0.0, %v3334
  %3336 = vmatmul.f32.gmra.mxu0 %v1398
  %v3337 = vpop.f32.mrf.mxu0
  %v3338 = vadd.f32 0.0, %v3337
  %3339 = vmatmul.f32.gmra.mxu0 %v1401
  %v3340 = vpop.f32.mrf.mxu0
  %v3341 = vadd.f32 0.0, %v3340
  %3342 = vmatmul.f32.gmra.mxu0 %v1404
  %v3343 = vpop.f32.mrf.mxu0
  %v3344 = vadd.f32 0.0, %v3343
  %3345 = vmatmul.f32.gmra.mxu0 %v1407
  %v3346 = vpop.f32.mrf.mxu0
  %v3347 = vadd.f32 0.0, %v3346
  %3348 = vmatmul.f32.gmra.mxu0 %v1410
  %v3349 = vpop.f32.mrf.mxu0
  %v3350 = vadd.f32 0.0, %v3349
  %3351 = vmatmul.f32.gmra.mxu0 %v1413
  %v3352 = vpop.f32.mrf.mxu0
  %v3353 = vadd.f32 0.0, %v3352
  %3354 = vmatmul.f32.gmra.mxu0 %v1416
  %v3355 = vpop.f32.mrf.mxu0
  %v3356 = vadd.f32 0.0, %v3355
  %3357 = vmatmul.f32.gmra.mxu0 %v1419
  %v3358 = vpop.f32.mrf.mxu0
  %v3359 = vadd.f32 0.0, %v3358
  %3360 = vmatmul.f32.gmra.mxu0 %v1422
  %v3361 = vpop.f32.mrf.mxu0
  %v3362 = vadd.f32 0.0, %v3361
  %3363 = vmatmul.f32.gmra.mxu0 %v1425
  %v3364 = vpop.f32.mrf.mxu0
  %v3365 = vadd.f32 0.0, %v3364
  %3366 = vmatmul.f32.gmra.mxu0 %v1428
  %v3367 = vpop.f32.mrf.mxu0
  %v3368 = vadd.f32 0.0, %v3367
  %3369 = vmatmul.f32.gmra.mxu0 %v1431
  %v3370 = vpop.f32.mrf.mxu0
  %v3371 = vadd.f32 0.0, %v3370
  %3372 = vmatmul.f32.gmra.mxu0 %v1434
  %v3373 = vpop.f32.mrf.mxu0
  %v3374 = vadd.f32 0.0, %v3373
  %3375 = vmatmul.f32.gmra.mxu0 %v1437
  %v3376 = vpop.f32.mrf.mxu0
  %v3377 = vadd.f32 0.0, %v3376
  %3378 = vmatmul.f32.gmra.mxu0 %v1440
  %v3379 = vpop.f32.mrf.mxu0
  %v3380 = vadd.f32 0.0, %v3379
  %3381 = vmatmul.f32.gmra.mxu0 %v1443
  %v3382 = vpop.f32.mrf.mxu0
  %v3383 = vadd.f32 0.0, %v3382
  %3384 = vmatmul.f32.gmra.mxu0 %v1446
  %v3385 = vpop.f32.mrf.mxu0
  %v3386 = vadd.f32 0.0, %v3385
  %3387 = vmatmul.f32.gmra.mxu0 %v2403
  %v3388 = vpop.f32.mrf.mxu0
  %v3389 = vadd.f32 0.0, %v3388
  %3390 = vmatmul.f32.gmra.mxu0 %v2406
  %v3391 = vpop.f32.mrf.mxu0
  %v3392 = vadd.f32 0.0, %v3391
  %3393 = vmatmul.f32.gmra.mxu0 %v3273
  %v3394 = vpop.f32.mrf.mxu0
  %v3395 = vadd.f32 0.0, %v3394
  %3396 = vmatmul.f32.gmra.mxu0 %v3276
  %v3397 = vpop.f32.mrf.mxu0
  %v3398 = vadd.f32 0.0, %v3397
  %3399 = vmatmul.f32.gmra.mxu0 %v1461
  %v3400 = vpop.f32.mrf.mxu0
  %v3401 = vadd.f32 0.0, %v3400
  %3402 = vmatmul.f32.gmra.mxu0 %v1464
  %v3403 = vpop.f32.mrf.mxu0
  %v3404 = vadd.f32 0.0, %v3403
  %3405 = vmatmul.f32.gmra.mxu0 %v1467
  %v3406 = vpop.f32.mrf.mxu0
  %v3407 = vadd.f32 0.0, %v3406
  %3408 = vmatmul.f32.gmra.mxu0 %v1470
  %v3409 = vpop.f32.mrf.mxu0
  %v3410 = vadd.f32 0.0, %v3409
  %3411 = vmatmul.f32.gmra.mxu0 %v1473
  %v3412 = vpop.f32.mrf.mxu0
  %v3413 = vadd.f32 0.0, %v3412
  %3414 = vmatmul.f32.gmra.mxu0 %v1476
  %v3415 = vpop.f32.mrf.mxu0
  %v3416 = vadd.f32 0.0, %v3415
  %3417 = vmatmul.f32.gmra.mxu0 %v1479
  %v3418 = vpop.f32.mrf.mxu0
  %v3419 = vadd.f32 0.0, %v3418
  %3420 = vmatmul.f32.gmra.mxu0 %v1482
  %v3421 = vpop.f32.mrf.mxu0
  %v3422 = vadd.f32 0.0, %v3421
  %3423 = vmatmul.f32.gmra.mxu0 %v1485
  %v3424 = vpop.f32.mrf.mxu0
  %v3425 = vadd.f32 0.0, %v3424
  %3426 = vmatmul.f32.gmra.mxu0 %v1488
  %v3427 = vpop.f32.mrf.mxu0
  %v3428 = vadd.f32 0.0, %v3427
  %3429 = vmatmul.f32.gmra.mxu0 %v1491
  %v3430 = vpop.f32.mrf.mxu0
  %v3431 = vadd.f32 0.0, %v3430
  %3432 = vmatmul.f32.gmra.mxu0 %v1494
  %v3433 = vpop.f32.mrf.mxu0
  %v3434 = vadd.f32 0.0, %v3433
  %3435 = vmatmul.f32.gmra.mxu0 %v1497
  %v3436 = vpop.f32.mrf.mxu0
  %v3437 = vadd.f32 0.0, %v3436
  %3438 = vmatmul.f32.gmra.mxu0 %v1500
  %v3439 = vpop.f32.mrf.mxu0
  %v3440 = vadd.f32 0.0, %v3439
  %3441 = vmatmul.f32.gmra.mxu0 %v1503
  %v3442 = vpop.f32.mrf.mxu0
  %v3443 = vadd.f32 0.0, %v3442
  %3444 = vmatmul.f32.gmra.mxu0 %v1506
  %v3445 = vpop.f32.mrf.mxu0
  %v3446 = vadd.f32 0.0, %v3445
  %3447 = vmatmul.f32.gmra.mxu0 %v1509
  %v3448 = vpop.f32.mrf.mxu0
  %v3449 = vadd.f32 0.0, %v3448
  %3450 = vmatmul.f32.gmra.mxu0 %v1512
  %v3451 = vpop.f32.mrf.mxu0
  %v3452 = vadd.f32 0.0, %v3451
  %3453 = vmatmul.f32.gmra.mxu0 %v1515
  %v3454 = vpop.f32.mrf.mxu0
  %v3455 = vadd.f32 0.0, %v3454
  %3456 = vmatmul.f32.gmra.mxu0 %v1518
  %v3457 = vpop.f32.mrf.mxu0
  %v3458 = vadd.f32 0.0, %v3457
  %3459 = vmatmul.f32.gmra.mxu0 %v1521
  %v3460 = vpop.f32.mrf.mxu0
  %v3461 = vadd.f32 0.0, %v3460
  %3462 = vmatmul.f32.gmra.mxu0 %v1524
  %v3463 = vpop.f32.mrf.mxu0
  %v3464 = vadd.f32 0.0, %v3463
  %3465 = vmatmul.f32.gmra.mxu0 %v1527
  %v3466 = vpop.f32.mrf.mxu0
  %v3467 = vadd.f32 0.0, %v3466
  %3468 = vmatmul.f32.gmra.mxu0 %v1530
  %v3469 = vpop.f32.mrf.mxu0
  %v3470 = vadd.f32 0.0, %v3469
  %3471 = vmatmul.f32.gmra.mxu0 %v1533
  %v3472 = vpop.f32.mrf.mxu0
  %v3473 = vadd.f32 0.0, %v3472
  %3474 = vmatmul.f32.gmra.mxu0 %v1536
  %v3475 = vpop.f32.mrf.mxu0
  %v3476 = vadd.f32 0.0, %v3475
  %3477 = vmatmul.f32.gmra.mxu0 %v1539
  %v3478 = vpop.f32.mrf.mxu0
  %v3479 = vadd.f32 0.0, %v3478
  %3480 = vmatmul.f32.gmra.mxu0 %v1542
  %v3481 = vpop.f32.mrf.mxu0
  %v3482 = vadd.f32 0.0, %v3481
  %3483 = vmatmul.f32.gmra.mxu0 %v2409
  %v3484 = vpop.f32.mrf.mxu0
  %v3485 = vadd.f32 0.0, %v3484
  %3486 = vmatmul.f32.gmra.mxu0 %v2412
  %v3487 = vpop.f32.mrf.mxu0
  %v3488 = vadd.f32 0.0, %v3487
  %3489 = vmatmul.f32.gmra.mxu0 %v3279
  %v3490 = vpop.f32.mrf.mxu0
  %v3491 = vadd.f32 0.0, %v3490
  %3492 = vmatmul.f32.gmra.mxu0 %v3282
  %v3493 = vpop.f32.mrf.mxu0
  %v3494 = vadd.f32 0.0, %v3493
  %3495 = vdwg.mxu0
  %v3496 = vadd.f32 %v3206, %v3305
  %v3497 = vadd.f32 %v3207, %v3308
  %v3498 = vadd.f32 %v3208, %v3311
  %v3499 = vadd.f32 %v3209, %v3314
  %v3500 = vadd.f32 %v3210, %v3317
  %v3501 = vadd.f32 %v3211, %v3320
  %v3502 = vadd.f32 %v3212, %v3323
  %v3503 = vadd.f32 %v3213, %v3326
  %v3504 = vadd.f32 %v3214, %v3329
  %v3505 = vadd.f32 %v3215, %v3332
  %v3506 = vadd.f32 %v3216, %v3335
  %v3507 = vadd.f32 %v3217, %v3338
  %v3508 = vadd.f32 %v3218, %v3341
  %v3509 = vadd.f32 %v3219, %v3344
  %v3510 = vadd.f32 %v3220, %v3347
  %v3511 = vadd.f32 %v3221, %v3350
  %v3512 = vadd.f32 %v3222, %v3353
  %v3513 = vadd.f32 %v3223, %v3356
  %v3514 = vadd.f32 %v3224, %v3359
  %v3515 = vadd.f32 %v3225, %v3362
  %v3516 = vadd.f32 %v3226, %v3365
  %v3517 = vadd.f32 %v3227, %v3368
  %v3518 = vadd.f32 %v3228, %v3371
  %v3519 = vadd.f32 %v3229, %v3374
  %v3520 = vadd.f32 %v3230, %v3377
  %v3521 = vadd.f32 %v3231, %v3380
  %v3522 = vadd.f32 %v3232, %v3383
  %v3523 = vadd.f32 %v3233, %v3386
  %v3524 = vadd.f32 %v3234, %v3389
  %v3525 = vadd.f32 %v3235, %v3392
  %v3526 = vadd.f32 %v3236, %v3395
  %v3527 = vadd.f32 %v3237, %v3398
  %v3528 = vadd.f32 %v3238, %v3401
  %v3529 = vadd.f32 %v3239, %v3404
  %v3530 = vadd.f32 %v3240, %v3407
  %v3531 = vadd.f32 %v3241, %v3410
  %v3532 = vadd.f32 %v3242, %v3413
  %v3533 = vadd.f32 %v3243, %v3416
  %v3534 = vadd.f32 %v3244, %v3419
  %v3535 = vadd.f32 %v3245, %v3422
  %v3536 = vadd.f32 %v3246, %v3425
  %v3537 = vadd.f32 %v3247, %v3428
  %v3538 = vadd.f32 %v3248, %v3431
  %v3539 = vadd.f32 %v3249, %v3434
  %v3540 = vadd.f32 %v3250, %v3437
  %v3541 = vadd.f32 %v3251, %v3440
  %v3542 = vadd.f32 %v3252, %v3443
  %v3543 = vadd.f32 %v3253, %v3446
  %v3544 = vadd.f32 %v3254, %v3449
  %v3545 = vadd.f32 %v3255, %v3452
  %v3546 = vadd.f32 %v3256, %v3455
  %v3547 = vadd.f32 %v3257, %v3458
  %v3548 = vadd.f32 %v3258, %v3461
  %v3549 = vadd.f32 %v3259, %v3464
  %v3550 = vadd.f32 %v3260, %v3467
  %v3551 = vadd.f32 %v3261, %v3470
  %v3552 = vadd.f32 %v3262, %v3473
  %v3553 = vadd.f32 %v3263, %v3476
  %v3554 = vadd.f32 %v3264, %v3479
  %v3555 = vadd.f32 %v3265, %v3482
  %v3556 = vadd.f32 %v3266, %v3485
  %v3557 = vadd.f32 %v3267, %v3488
  %v3558 = vadd.f32 %v3268, %v3491
  %v3559 = vadd.f32 %v3269, %v3494
  %v3560 = vld [vmem:[%s2] sm:$0x1]
  %v3562 = vperm.slane %v3560, 0
  %v3564 = vadd.f32 %v3496, %v3562
  %v3565 = vadd.f32 %v3497, %v3562
  %v3566 = vadd.f32 %v3498, %v3562
  %v3567 = vadd.f32 %v3499, %v3562
  %v3568 = vadd.f32 %v3500, %v3562
  %v3569 = vadd.f32 %v3501, %v3562
  %v3570 = vadd.f32 %v3502, %v3562
  %v3571 = vadd.f32 %v3503, %v3562
  %v3572 = vadd.f32 %v3504, %v3562
  %v3573 = vadd.f32 %v3505, %v3562
  %v3574 = vadd.f32 %v3506, %v3562
  %v3575 = vadd.f32 %v3507, %v3562
  %v3576 = vadd.f32 %v3508, %v3562
  %v3577 = vadd.f32 %v3509, %v3562
  %v3578 = vadd.f32 %v3510, %v3562
  %v3579 = vadd.f32 %v3511, %v3562
  %v3580 = vadd.f32 %v3512, %v3562
  %v3581 = vadd.f32 %v3513, %v3562
  %v3582 = vadd.f32 %v3514, %v3562
  %v3583 = vadd.f32 %v3515, %v3562
  %v3584 = vadd.f32 %v3516, %v3562
  %v3585 = vadd.f32 %v3517, %v3562
  %v3586 = vadd.f32 %v3518, %v3562
  %v3587 = vadd.f32 %v3519, %v3562
  %v3588 = vadd.f32 %v3520, %v3562
  %v3589 = vadd.f32 %v3521, %v3562
  %v3590 = vadd.f32 %v3522, %v3562
  %v3591 = vadd.f32 %v3523, %v3562
  %v3592 = vadd.f32 %v3524, %v3562
  %v3593 = vadd.f32 %v3525, %v3562
  %v3594 = vadd.f32 %v3526, %v3562
  %v3595 = vadd.f32 %v3527, %v3562
  %v3596 = vadd.f32 %v3528, %v3562
  %v3597 = vadd.f32 %v3529, %v3562
  %v3598 = vadd.f32 %v3530, %v3562
  %v3599 = vadd.f32 %v3531, %v3562
  %v3600 = vadd.f32 %v3532, %v3562
  %v3601 = vadd.f32 %v3533, %v3562
  %v3602 = vadd.f32 %v3534, %v3562
  %v3603 = vadd.f32 %v3535, %v3562
  %v3604 = vadd.f32 %v3536, %v3562
  %v3605 = vadd.f32 %v3537, %v3562
  %v3606 = vadd.f32 %v3538, %v3562
  %v3607 = vadd.f32 %v3539, %v3562
  %v3608 = vadd.f32 %v3540, %v3562
  %v3609 = vadd.f32 %v3541, %v3562
  %v3610 = vadd.f32 %v3542, %v3562
  %v3611 = vadd.f32 %v3543, %v3562
  %v3612 = vadd.f32 %v3544, %v3562
  %v3613 = vadd.f32 %v3545, %v3562
  %v3614 = vadd.f32 %v3546, %v3562
  %v3615 = vadd.f32 %v3547, %v3562
  %v3616 = vadd.f32 %v3548, %v3562
  %v3617 = vadd.f32 %v3549, %v3562
  %v3618 = vadd.f32 %v3550, %v3562
  %v3619 = vadd.f32 %v3551, %v3562
  %v3620 = vadd.f32 %v3552, %v3562
  %v3621 = vadd.f32 %v3553, %v3562
  %v3622 = vadd.f32 %v3554, %v3562
  %v3623 = vadd.f32 %v3555, %v3562
  %v3624 = vadd.f32 %v3556, %v3562
  %v3625 = vadd.f32 %v3557, %v3562
  %v3626 = vadd.f32 %v3558, %v3562
  %v3627 = vadd.f32 %v3559, %v3562
  %v3628 = vmax.f32 %v3564, 0.0
  %v3629 = vmax.f32 %v3565, 0.0
  %v3630 = vmax.f32 %v3566, 0.0
  %v3631 = vmax.f32 %v3567, 0.0
  %v3632 = vmax.f32 %v3568, 0.0
  %v3633 = vmax.f32 %v3569, 0.0
  %v3634 = vmax.f32 %v3570, 0.0
  %v3635 = vmax.f32 %v3571, 0.0
  %v3636 = vmax.f32 %v3572, 0.0
  %v3637 = vmax.f32 %v3573, 0.0
  %v3638 = vmax.f32 %v3574, 0.0
  %v3639 = vmax.f32 %v3575, 0.0
  %v3640 = vmax.f32 %v3576, 0.0
  %v3641 = vmax.f32 %v3577, 0.0
  %v3642 = vmax.f32 %v3578, 0.0
  %v3643 = vmax.f32 %v3579, 0.0
  %v3644 = vmax.f32 %v3580, 0.0
  %v3645 = vmax.f32 %v3581, 0.0
  %v3646 = vmax.f32 %v3582, 0.0
  %v3647 = vmax.f32 %v3583, 0.0
  %v3648 = vmax.f32 %v3584, 0.0
  %v3649 = vmax.f32 %v3585, 0.0
  %v3650 = vmax.f32 %v3586, 0.0
  %v3651 = vmax.f32 %v3587, 0.0
  %v3652 = vmax.f32 %v3588, 0.0
  %v3653 = vmax.f32 %v3589, 0.0
  %v3654 = vmax.f32 %v3590, 0.0
  %v3655 = vmax.f32 %v3591, 0.0
  %v3656 = vmax.f32 %v3592, 0.0
  %v3657 = vmax.f32 %v3593, 0.0
  %v3658 = vmax.f32 %v3594, 0.0
  %v3659 = vmax.f32 %v3595, 0.0
  %v3660 = vmax.f32 %v3596, 0.0
  %v3661 = vmax.f32 %v3597, 0.0
  %v3662 = vmax.f32 %v3598, 0.0
  %v3663 = vmax.f32 %v3599, 0.0
  %v3664 = vmax.f32 %v3600, 0.0
  %v3665 = vmax.f32 %v3601, 0.0
  %v3666 = vmax.f32 %v3602, 0.0
  %v3667 = vmax.f32 %v3603, 0.0
  %v3668 = vmax.f32 %v3604, 0.0
  %v3669 = vmax.f32 %v3605, 0.0
  %v3670 = vmax.f32 %v3606, 0.0
  %v3671 = vmax.f32 %v3607, 0.0
  %v3672 = vmax.f32 %v3608, 0.0
  %v3673 = vmax.f32 %v3609, 0.0
  %v3674 = vmax.f32 %v3610, 0.0
  %v3675 = vmax.f32 %v3611, 0.0
  %v3676 = vmax.f32 %v3612, 0.0
  %v3677 = vmax.f32 %v3613, 0.0
  %v3678 = vmax.f32 %v3614, 0.0
  %v3679 = vmax.f32 %v3615, 0.0
  %v3680 = vmax.f32 %v3616, 0.0
  %v3681 = vmax.f32 %v3617, 0.0
  %v3682 = vmax.f32 %v3618, 0.0
  %v3683 = vmax.f32 %v3619, 0.0
  %v3684 = vmax.f32 %v3620, 0.0
  %v3685 = vmax.f32 %v3621, 0.0
  %v3686 = vmax.f32 %v3622, 0.0
  %v3687 = vmax.f32 %v3623, 0.0
  %v3688 = vmax.f32 %v3624, 0.0
  %v3689 = vmax.f32 %v3625, 0.0
  %v3690 = vmax.f32 %v3626, 0.0
  %v3691 = vmax.f32 %v3627, 0.0
  %s3692 = scalar_lea.vmem [#allocation3], 24
  %3693 = vst.msk [vmem:[%s3692 + $0x1] sm:$0xff] %vm20, %v3628
  %3694 = vst.msk [vmem:[%s3692 + $0x9] sm:$0xff] %vm20, %v3629
  %3695 = vst.msk [vmem:[%s3692 + $0x19] sm:$0xff] %vm20, %v3630
  %3696 = vst.msk [vmem:[%s3692 + $0x21] sm:$0xff] %vm20, %v3631
  %3697 = vst.msk [vmem:[%s3692 + $0x31] sm:$0xff] %vm20, %v3632
  %3698 = vst.msk [vmem:[%s3692 + $0x39] sm:$0xff] %vm20, %v3633
  %3699 = vst.msk [vmem:[%s3692 + $0x49] sm:$0xff] %vm20, %v3634
  %3700 = vst.msk [vmem:[%s3692 + $0x51] sm:$0xff] %vm20, %v3635
  %3701 = vst.msk [vmem:[%s3692 + $0x61] sm:$0xff] %vm20, %v3636
  %3702 = vst.msk [vmem:[%s3692 + $0x69] sm:$0xff] %vm20, %v3637
  %3703 = vst.msk [vmem:[%s3692 + $0x79] sm:$0xff] %vm20, %v3638
  %3704 = vst.msk [vmem:[%s3692 + $0x81] sm:$0xff] %vm20, %v3639
  %3705 = vst.msk [vmem:[%s3692 + $0x91] sm:$0xff] %vm20, %v3640
  %3706 = vst.msk [vmem:[%s3692 + $0x99] sm:$0xff] %vm20, %v3641
  %3707 = vst.msk [vmem:[%s3692 + $0xa9] sm:$0xff] %vm20, %v3642
  %3708 = vst.msk [vmem:[%s3692 + $0xb1] sm:$0xff] %vm20, %v3643
  %3709 = vst.msk [vmem:[%s3692 + $0xc1] sm:$0xff] %vm20, %v3644
  %3710 = vst.msk [vmem:[%s3692 + $0xc9] sm:$0xff] %vm20, %v3645
  %3711 = vst.msk [vmem:[%s3692 + $0xd9] sm:$0xff] %vm20, %v3646
  %3712 = vst.msk [vmem:[%s3692 + $0xe1] sm:$0xff] %vm20, %v3647
  %3713 = vst.msk [vmem:[%s3692 + $0xf1] sm:$0xff] %vm20, %v3648
  %3714 = vst.msk [vmem:[%s3692 + $0xf9] sm:$0xff] %vm20, %v3649
  %3715 = vst.msk [vmem:[%s3692 + $0x109] sm:$0xff] %vm20, %v3650
  %3716 = vst.msk [vmem:[%s3692 + $0x111] sm:$0xff] %vm20, %v3651
  %3717 = vst.msk [vmem:[%s3692 + $0x121] sm:$0xff] %vm20, %v3652
  %3718 = vst.msk [vmem:[%s3692 + $0x129] sm:$0xff] %vm20, %v3653
  %3719 = vst.msk [vmem:[%s3692 + $0x139] sm:$0xff] %vm20, %v3654
  %3720 = vst.msk [vmem:[%s3692 + $0x141] sm:$0xff] %vm20, %v3655
  %3721 = vst.msk [vmem:[%s3692 + $0x151] sm:$0xff] %vm20, %v3656
  %3722 = vst.msk [vmem:[%s3692 + $0x159] sm:$0xff] %vm20, %v3657
  %3723 = vst.msk [vmem:[%s3692 + $0x169] sm:$0xff] %vm20, %v3658
  %3724 = vst.msk [vmem:[%s3692 + $0x171] sm:$0xff] %vm20, %v3659
  %3725 = vst.msk [vmem:[%s3692 + $0x1b1] sm:$0xff] %vm20, %v3660
  %3726 = vst.msk [vmem:[%s3692 + $0x1b9] sm:$0xff] %vm20, %v3661
  %3727 = vst.msk [vmem:[%s3692 + $0x1c9] sm:$0xff] %vm20, %v3662
  %3728 = vst.msk [vmem:[%s3692 + $0x1d1] sm:$0xff] %vm20, %v3663
  %3729 = vst.msk [vmem:[%s3692 + $0x1e1] sm:$0xff] %vm20, %v3664
  %3730 = vst.msk [vmem:[%s3692 + $0x1e9] sm:$0xff] %vm20, %v3665
  %3731 = vst.msk [vmem:[%s3692 + $0x1f9] sm:$0xff] %vm20, %v3666
  %3732 = vst.msk [vmem:[%s3692 + $0x201] sm:$0xff] %vm20, %v3667
  %3733 = vst.msk [vmem:[%s3692 + $0x211] sm:$0xff] %vm20, %v3668
  %3734 = vst.msk [vmem:[%s3692 + $0x219] sm:$0xff] %vm20, %v3669
  %3735 = vst.msk [vmem:[%s3692 + $0x229] sm:$0xff] %vm20, %v3670
  %3736 = vst.msk [vmem:[%s3692 + $0x231] sm:$0xff] %vm20, %v3671
  %3737 = vst.msk [vmem:[%s3692 + $0x241] sm:$0xff] %vm20, %v3672
  %3738 = vst.msk [vmem:[%s3692 + $0x249] sm:$0xff] %vm20, %v3673
  %3739 = vst.msk [vmem:[%s3692 + $0x259] sm:$0xff] %vm20, %v3674
  %3740 = vst.msk [vmem:[%s3692 + $0x261] sm:$0xff] %vm20, %v3675
  %3741 = vst.msk [vmem:[%s3692 + $0x271] sm:$0xff] %vm20, %v3676
  %3742 = vst.msk [vmem:[%s3692 + $0x279] sm:$0xff] %vm20, %v3677
  %3743 = vst.msk [vmem:[%s3692 + $0x289] sm:$0xff] %vm20, %v3678
  %3744 = vst.msk [vmem:[%s3692 + $0x291] sm:$0xff] %vm20, %v3679
  %3745 = vst.msk [vmem:[%s3692 + $0x2a1] sm:$0xff] %vm20, %v3680
  %3746 = vst.msk [vmem:[%s3692 + $0x2a9] sm:$0xff] %vm20, %v3681
  %3747 = vst.msk [vmem:[%s3692 + $0x2b9] sm:$0xff] %vm20, %v3682
  %3748 = vst.msk [vmem:[%s3692 + $0x2c1] sm:$0xff] %vm20, %v3683
  %3749 = vst.msk [vmem:[%s3692 + $0x2d1] sm:$0xff] %vm20, %v3684
  %3750 = vst.msk [vmem:[%s3692 + $0x2d9] sm:$0xff] %vm20, %v3685
  %3751 = vst.msk [vmem:[%s3692 + $0x2e9] sm:$0xff] %vm20, %v3686
  %3752 = vst.msk [vmem:[%s3692 + $0x2f1] sm:$0xff] %vm20, %v3687
  %3753 = vst.msk [vmem:[%s3692 + $0x301] sm:$0xff] %vm20, %v3688
  %3754 = vst.msk [vmem:[%s3692 + $0x309] sm:$0xff] %vm20, %v3689
  %3755 = vst.msk [vmem:[%s3692 + $0x319] sm:$0xff] %vm20, %v3690
  %3756 = vst.msk [vmem:[%s3692 + $0x321] sm:$0xff] %vm20, %v3691
  %v3757 = vld [vmem:[#allocation3] sm:$0xff]
  %v3758 = vld [vmem:[#allocation3 + $0x8] sm:$0xff]
  %v3759 = vld [vmem:[#allocation3 + $0x18] sm:$0xff]
  %v3760 = vld [vmem:[#allocation3 + $0x20] sm:$0xff]
  %v3761 = vld [vmem:[#allocation3 + $0x30] sm:$0xff]
  %v3762 = vld [vmem:[#allocation3 + $0x38] sm:$0xff]
  %v3763 = vld [vmem:[#allocation3 + $0x48] sm:$0xff]
  %v3764 = vld [vmem:[#allocation3 + $0x50] sm:$0xff]
  %v3765 = vld [vmem:[#allocation3 + $0x60] sm:$0xff]
  %v3766 = vld [vmem:[#allocation3 + $0x68] sm:$0xff]
  %v3767 = vld [vmem:[#allocation3 + $0x78] sm:$0xff]
  %v3768 = vld [vmem:[#allocation3 + $0x80] sm:$0xff]
  %v3769 = vld [vmem:[#allocation3 + $0x90] sm:$0xff]
  %v3770 = vld [vmem:[#allocation3 + $0x98] sm:$0xff]
  %v3771 = vld [vmem:[#allocation3 + $0xa8] sm:$0xff]
  %v3772 = vld [vmem:[#allocation3 + $0xb0] sm:$0xff]
  %v3773 = vld [vmem:[#allocation3 + $0xc0] sm:$0xff]
  %v3774 = vld [vmem:[#allocation3 + $0xc8] sm:$0xff]
  %v3775 = vld [vmem:[#allocation3 + $0xd8] sm:$0xff]
  %v3776 = vld [vmem:[#allocation3 + $0xe0] sm:$0xff]
  %v3777 = vld [vmem:[#allocation3 + $0xf0] sm:$0xff]
  %v3778 = vld [vmem:[#allocation3 + $0xf8] sm:$0xff]
  %v3779 = vld [vmem:[#allocation3 + $0x108] sm:$0xff]
  %v3780 = vld [vmem:[#allocation3 + $0x110] sm:$0xff]
  %v3781 = vld [vmem:[#allocation3 + $0x120] sm:$0xff]
  %v3782 = vld [vmem:[#allocation3 + $0x128] sm:$0xff]
  %v3783 = vld [vmem:[#allocation3 + $0x138] sm:$0xff]
  %v3784 = vld [vmem:[#allocation3 + $0x140] sm:$0xff]
  %v3785 = vld [vmem:[#allocation3 + $0x150] sm:$0xff]
  %v3786 = vld [vmem:[#allocation3 + $0x158] sm:$0xff]
  %v3787 = vld [vmem:[#allocation3 + $0x168] sm:$0xff]
  %v3788 = vld [vmem:[#allocation3 + $0x170] sm:$0xff]
  %v3789 = vld [vmem:[#allocation3 + $0x180] sm:$0xff]
  %v3790 = vld [vmem:[#allocation3 + $0x188] sm:$0xff]
  %v3791 = vld [vmem:[#allocation3 + $0x198] sm:$0xff]
  %v3792 = vld [vmem:[#allocation3 + $0x1a0] sm:$0xff]
  %v3793 = vld [vmem:[#allocation3 + $0x1b0] sm:$0xff]
  %v3794 = vld [vmem:[#allocation3 + $0x1b8] sm:$0xff]
  %v3795 = vld [vmem:[#allocation3 + $0x1c8] sm:$0xff]
  %v3796 = vld [vmem:[#allocation3 + $0x1d0] sm:$0xff]
  %v3797 = vld [vmem:[#allocation3 + $0x1e0] sm:$0xff]
  %v3798 = vld [vmem:[#allocation3 + $0x1e8] sm:$0xff]
  %v3799 = vld [vmem:[#allocation3 + $0x1f8] sm:$0xff]
  %v3800 = vld [vmem:[#allocation3 + $0x200] sm:$0xff]
  %v3801 = vld [vmem:[#allocation3 + $0x210] sm:$0xff]
  %v3802 = vld [vmem:[#allocation3 + $0x218] sm:$0xff]
  %v3803 = vld [vmem:[#allocation3 + $0x228] sm:$0xff]
  %v3804 = vld [vmem:[#allocation3 + $0x230] sm:$0xff]
  %v3805 = vld [vmem:[#allocation3 + $0x240] sm:$0xff]
  %v3806 = vld [vmem:[#allocation3 + $0x248] sm:$0xff]
  %v3807 = vld [vmem:[#allocation3 + $0x258] sm:$0xff]
  %v3808 = vld [vmem:[#allocation3 + $0x260] sm:$0xff]
  %v3809 = vld [vmem:[#allocation3 + $0x270] sm:$0xff]
  %v3810 = vld [vmem:[#allocation3 + $0x278] sm:$0xff]
  %v3811 = vld [vmem:[#allocation3 + $0x288] sm:$0xff]
  %v3812 = vld [vmem:[#allocation3 + $0x290] sm:$0xff]
  %v3813 = vld [vmem:[#allocation3 + $0x2a0] sm:$0xff]
  %v3814 = vld [vmem:[#allocation3 + $0x2a8] sm:$0xff]
  %v3815 = vld [vmem:[#allocation3 + $0x2b8] sm:$0xff]
  %v3816 = vld [vmem:[#allocation3 + $0x2c0] sm:$0xff]
  %v3817 = vld [vmem:[#allocation3 + $0x2d0] sm:$0xff]
  %v3818 = vld [vmem:[#allocation3 + $0x2d8] sm:$0xff]
  %v3819 = vld [vmem:[#allocation3 + $0x2e8] sm:$0xff]
  %v3820 = vld [vmem:[#allocation3 + $0x2f0] sm:$0xff]
  %v3821 = vld [vmem:[#allocation3 + $0x300] sm:$0xff]
  %v3822 = vld [vmem:[#allocation3 + $0x308] sm:$0xff]
  %v3823 = vld [vmem:[#allocation3 + $0x318] sm:$0xff]
  %v3824 = vld [vmem:[#allocation3 + $0x320] sm:$0xff]
  %v3825 = vld [vmem:[#allocation3 + $0x330] sm:$0xff]
  %v3826 = vld [vmem:[#allocation3 + $0x338] sm:$0xff]
  %v3827 = vld [vmem:[#allocation3 + $0x348] sm:$0xff]
  %v3828 = vld [vmem:[#allocation3 + $0x350] sm:$0xff]
  %v3829 = vld [vmem:[#allocation3 + $0x1] sm:$0xff]
  %v3830 = vld [vmem:[#allocation3 + $0x9] sm:$0xff]
  %v3831 = vld [vmem:[#allocation3 + $0x19] sm:$0xff]
  %v3832 = vld [vmem:[#allocation3 + $0x21] sm:$0xff]
  %v3833 = vld [vmem:[#allocation3 + $0x31] sm:$0xff]
  %v3834 = vld [vmem:[#allocation3 + $0x39] sm:$0xff]
  %v3835 = vld [vmem:[#allocation3 + $0x49] sm:$0xff]
  %v3836 = vld [vmem:[#allocation3 + $0x51] sm:$0xff]
  %v3837 = vld [vmem:[#allocation3 + $0x61] sm:$0xff]
  %v3838 = vld [vmem:[#allocation3 + $0x69] sm:$0xff]
  %v3839 = vld [vmem:[#allocation3 + $0x79] sm:$0xff]
  %v3840 = vld [vmem:[#allocation3 + $0x81] sm:$0xff]
  %v3841 = vld [vmem:[#allocation3 + $0x91] sm:$0xff]
  %v3842 = vld [vmem:[#allocation3 + $0x99] sm:$0xff]
  %v3843 = vld [vmem:[#allocation3 + $0xa9] sm:$0xff]
  %v3844 = vld [vmem:[#allocation3 + $0xb1] sm:$0xff]
  %v3845 = vld [vmem:[#allocation3 + $0xc1] sm:$0xff]
  %v3846 = vld [vmem:[#allocation3 + $0xc9] sm:$0xff]
  %v3847 = vld [vmem:[#allocation3 + $0xd9] sm:$0xff]
  %v3848 = vld [vmem:[#allocation3 + $0xe1] sm:$0xff]
  %v3849 = vld [vmem:[#allocation3 + $0xf1] sm:$0xff]
  %v3850 = vld [vmem:[#allocation3 + $0xf9] sm:$0xff]
  %v3851 = vld [vmem:[#allocation3 + $0x109] sm:$0xff]
  %v3852 = vld [vmem:[#allocation3 + $0x111] sm:$0xff]
  %v3853 = vld [vmem:[#allocation3 + $0x121] sm:$0xff]
  %v3854 = vld [vmem:[#allocation3 + $0x129] sm:$0xff]
  %v3855 = vld [vmem:[#allocation3 + $0x139] sm:$0xff]
  %v3856 = vld [vmem:[#allocation3 + $0x141] sm:$0xff]
  %v3857 = vld [vmem:[#allocation3 + $0x151] sm:$0xff]
  %v3858 = vld [vmem:[#allocation3 + $0x159] sm:$0xff]
  %v3859 = vld [vmem:[#allocation3 + $0x169] sm:$0xff]
  %v3860 = vld [vmem:[#allocation3 + $0x171] sm:$0xff]
  %v3861 = vld [vmem:[#allocation3 + $0x181] sm:$0xff]
  %v3862 = vld [vmem:[#allocation3 + $0x189] sm:$0xff]
  %v3863 = vld [vmem:[#allocation3 + $0x199] sm:$0xff]
  %v3864 = vld [vmem:[#allocation3 + $0x1a1] sm:$0xff]
  %v3865 = vld [vmem:[#allocation3 + $0x1b1] sm:$0xff]
  %v3866 = vld [vmem:[#allocation3 + $0x1b9] sm:$0xff]
  %v3867 = vld [vmem:[#allocation3 + $0x1c9] sm:$0xff]
  %v3868 = vld [vmem:[#allocation3 + $0x1d1] sm:$0xff]
  %v3869 = vld [vmem:[#allocation3 + $0x1e1] sm:$0xff]
  %v3870 = vld [vmem:[#allocation3 + $0x1e9] sm:$0xff]
  %v3871 = vld [vmem:[#allocation3 + $0x1f9] sm:$0xff]
  %v3872 = vld [vmem:[#allocation3 + $0x201] sm:$0xff]
  %v3873 = vld [vmem:[#allocation3 + $0x211] sm:$0xff]
  %v3874 = vld [vmem:[#allocation3 + $0x219] sm:$0xff]
  %v3875 = vld [vmem:[#allocation3 + $0x229] sm:$0xff]
  %v3876 = vld [vmem:[#allocation3 + $0x231] sm:$0xff]
  %v3877 = vld [vmem:[#allocation3 + $0x241] sm:$0xff]
  %v3878 = vld [vmem:[#allocation3 + $0x249] sm:$0xff]
  %v3879 = vld [vmem:[#allocation3 + $0x259] sm:$0xff]
  %v3880 = vld [vmem:[#allocation3 + $0x261] sm:$0xff]
  %v3881 = vld [vmem:[#allocation3 + $0x271] sm:$0xff]
  %v3882 = vld [vmem:[#allocation3 + $0x279] sm:$0xff]
  %v3883 = vld [vmem:[#allocation3 + $0x289] sm:$0xff]
  %v3884 = vld [vmem:[#allocation3 + $0x291] sm:$0xff]
  %v3885 = vld [vmem:[#allocation3 + $0x2a1] sm:$0xff]
  %v3886 = vld [vmem:[#allocation3 + $0x2a9] sm:$0xff]
  %v3887 = vld [vmem:[#allocation3 + $0x2b9] sm:$0xff]
  %v3888 = vld [vmem:[#allocation3 + $0x2c1] sm:$0xff]
  %v3889 = vld [vmem:[#allocation3 + $0x2d1] sm:$0xff]
  %v3890 = vld [vmem:[#allocation3 + $0x2d9] sm:$0xff]
  %v3891 = vld [vmem:[#allocation3 + $0x2e9] sm:$0xff]
  %v3892 = vld [vmem:[#allocation3 + $0x2f1] sm:$0xff]
  %v3893 = vld [vmem:[#allocation3 + $0x301] sm:$0xff]
  %v3894 = vld [vmem:[#allocation3 + $0x309] sm:$0xff]
  %v3895 = vld [vmem:[#allocation3 + $0x319] sm:$0xff]
  %v3896 = vld [vmem:[#allocation3 + $0x321] sm:$0xff]
  %v3897 = vld [vmem:[#allocation3 + $0x331] sm:$0xff]
  %v3898 = vld [vmem:[#allocation3 + $0x339] sm:$0xff]
  %v3899 = vld [vmem:[#allocation3 + $0x349] sm:$0xff]
  %v3900 = vld [vmem:[#allocation3 + $0x351] sm:$0xff]
  %v3901 = vld [vmem:[#allocation3 + $0x2] sm:$0xff]
  %v3902 = vld [vmem:[#allocation3 + $0xa] sm:$0xff]
  %v3903 = vld [vmem:[#allocation3 + $0x1a] sm:$0xff]
  %v3904 = vld [vmem:[#allocation3 + $0x22] sm:$0xff]
  %v3905 = vld [vmem:[#allocation3 + $0x32] sm:$0xff]
  %v3906 = vld [vmem:[#allocation3 + $0x3a] sm:$0xff]
  %v3907 = vld [vmem:[#allocation3 + $0x4a] sm:$0xff]
  %v3908 = vld [vmem:[#allocation3 + $0x52] sm:$0xff]
  %v3909 = vld [vmem:[#allocation3 + $0x62] sm:$0xff]
  %v3910 = vld [vmem:[#allocation3 + $0x6a] sm:$0xff]
  %v3911 = vld [vmem:[#allocation3 + $0x7a] sm:$0xff]
  %v3912 = vld [vmem:[#allocation3 + $0x82] sm:$0xff]
  %v3913 = vld [vmem:[#allocation3 + $0x92] sm:$0xff]
  %v3914 = vld [vmem:[#allocation3 + $0x9a] sm:$0xff]
  %v3915 = vld [vmem:[#allocation3 + $0xaa] sm:$0xff]
  %v3916 = vld [vmem:[#allocation3 + $0xb2] sm:$0xff]
  %v3917 = vld [vmem:[#allocation3 + $0xc2] sm:$0xff]
  %v3918 = vld [vmem:[#allocation3 + $0xca] sm:$0xff]
  %v3919 = vld [vmem:[#allocation3 + $0xda] sm:$0xff]
  %v3920 = vld [vmem:[#allocation3 + $0xe2] sm:$0xff]
  %v3921 = vld [vmem:[#allocation3 + $0xf2] sm:$0xff]
  %v3922 = vld [vmem:[#allocation3 + $0xfa] sm:$0xff]
  %v3923 = vld [vmem:[#allocation3 + $0x10a] sm:$0xff]
  %v3924 = vld [vmem:[#allocation3 + $0x112] sm:$0xff]
  %v3925 = vld [vmem:[#allocation3 + $0x122] sm:$0xff]
  %v3926 = vld [vmem:[#allocation3 + $0x12a] sm:$0xff]
  %v3927 = vld [vmem:[#allocation3 + $0x13a] sm:$0xff]
  %v3928 = vld [vmem:[#allocation3 + $0x142] sm:$0xff]
  %v3929 = vld [vmem:[#allocation3 + $0x152] sm:$0xff]
  %v3930 = vld [vmem:[#allocation3 + $0x15a] sm:$0xff]
  %v3931 = vld [vmem:[#allocation3 + $0x16a] sm:$0xff]
  %v3932 = vld [vmem:[#allocation3 + $0x172] sm:$0xff]
  %v3933 = vld [vmem:[#allocation3 + $0x182] sm:$0xff]
  %v3934 = vld [vmem:[#allocation3 + $0x18a] sm:$0xff]
  %v3935 = vld [vmem:[#allocation3 + $0x19a] sm:$0xff]
  %v3936 = vld [vmem:[#allocation3 + $0x1a2] sm:$0xff]
  %v3937 = vld [vmem:[#allocation3 + $0x1b2] sm:$0xff]
  %v3938 = vld [vmem:[#allocation3 + $0x1ba] sm:$0xff]
  %v3939 = vld [vmem:[#allocation3 + $0x1ca] sm:$0xff]
  %v3940 = vld [vmem:[#allocation3 + $0x1d2] sm:$0xff]
  %v3941 = vld [vmem:[#allocation3 + $0x1e2] sm:$0xff]
  %v3942 = vld [vmem:[#allocation3 + $0x1ea] sm:$0xff]
  %v3943 = vld [vmem:[#allocation3 + $0x1fa] sm:$0xff]
  %v3944 = vld [vmem:[#allocation3 + $0x202] sm:$0xff]
  %v3945 = vld [vmem:[#allocation3 + $0x212] sm:$0xff]
  %v3946 = vld [vmem:[#allocation3 + $0x21a] sm:$0xff]
  %v3947 = vld [vmem:[#allocation3 + $0x22a] sm:$0xff]
  %v3948 = vld [vmem:[#allocation3 + $0x232] sm:$0xff]
  %v3949 = vld [vmem:[#allocation3 + $0x242] sm:$0xff]
  %v3950 = vld [vmem:[#allocation3 + $0x24a] sm:$0xff]
  %v3951 = vld [vmem:[#allocation3 + $0x25a] sm:$0xff]
  %v3952 = vld [vmem:[#allocation3 + $0x262] sm:$0xff]
  %v3953 = vld [vmem:[#allocation3 + $0x272] sm:$0xff]
  %v3954 = vld [vmem:[#allocation3 + $0x27a] sm:$0xff]
  %v3955 = vld [vmem:[#allocation3 + $0x28a] sm:$0xff]
  %v3956 = vld [vmem:[#allocation3 + $0x292] sm:$0xff]
  %v3957 = vld [vmem:[#allocation3 + $0x2a2] sm:$0xff]
  %v3958 = vld [vmem:[#allocation3 + $0x2aa] sm:$0xff]
  %v3959 = vld [vmem:[#allocation3 + $0x2ba] sm:$0xff]
  %v3960 = vld [vmem:[#allocation3 + $0x2c2] sm:$0xff]
  %v3961 = vld [vmem:[#allocation3 + $0x2d2] sm:$0xff]
  %v3962 = vld [vmem:[#allocation3 + $0x2da] sm:$0xff]
  %v3963 = vld [vmem:[#allocation3 + $0x2ea] sm:$0xff]
  %v3964 = vld [vmem:[#allocation3 + $0x2f2] sm:$0xff]
  %v3965 = vld [vmem:[#allocation3 + $0x302] sm:$0xff]
  %v3966 = vld [vmem:[#allocation3 + $0x30a] sm:$0xff]
  %v3967 = vld [vmem:[#allocation3 + $0x31a] sm:$0xff]
  %v3968 = vld [vmem:[#allocation3 + $0x322] sm:$0xff]
  %v3969 = vld [vmem:[#allocation3 + $0x332] sm:$0xff]
  %v3970 = vld [vmem:[#allocation3 + $0x33a] sm:$0xff]
  %v3971 = vld [vmem:[#allocation3 + $0x34a] sm:$0xff]
  %v3972 = vld [vmem:[#allocation3 + $0x352] sm:$0xff]
  %v3973 = vld [vmem:[%s3] sm:$0xf]
  %s3974 = scalar_lea.vmem %s3, 4
  %v3975 = vld [vmem:[%s3974] sm:$0xf]
  %v3977 = vsel %vm20, %v3829, 0
  %v3980 = vsel %vm20, %v3830, 0
  %v3983 = vsel %vm20, %v3831, 0
  %v3986 = vsel %vm20, %v3832, 0
  %v3989 = vsel %vm20, %v3833, 0
  %v3992 = vsel %vm20, %v3834, 0
  %v3995 = vsel %vm20, %v3835, 0
  %v3998 = vsel %vm20, %v3836, 0
  %v4001 = vsel %vm20, %v3837, 0
  %v4004 = vsel %vm20, %v3838, 0
  %v4007 = vsel %vm20, %v3839, 0
  %v4010 = vsel %vm20, %v3840, 0
  %v4013 = vsel %vm20, %v3841, 0
  %v4016 = vsel %vm20, %v3842, 0
  %v4019 = vsel %vm20, %v3843, 0
  %v4022 = vsel %vm20, %v3844, 0
  %v4025 = vsel %vm20, %v3845, 0
  %v4028 = vsel %vm20, %v3846, 0
  %v4031 = vsel %vm20, %v3847, 0
  %v4034 = vsel %vm20, %v3848, 0
  %v4037 = vsel %vm20, %v3849, 0
  %v4040 = vsel %vm20, %v3850, 0
  %v4043 = vsel %vm20, %v3851, 0
  %v4046 = vsel %vm20, %v3852, 0
  %v4049 = vsel %vm20, %v3853, 0
  %v4052 = vsel %vm20, %v3854, 0
  %v4055 = vsel %vm20, %v3855, 0
  %v4058 = vsel %vm20, %v3856, 0
  %v4061 = vsel %vm20, %v3857, 0
  %v4064 = vsel %vm20, %v3858, 0
  %v4067 = vsel %vm20, %v3859, 0
  %v4070 = vsel %vm20, %v3860, 0
  %v4073 = vsel %vm20, %v3865, 0
  %v4076 = vsel %vm20, %v3866, 0
  %v4079 = vsel %vm20, %v3867, 0
  %v4082 = vsel %vm20, %v3868, 0
  %v4085 = vsel %vm20, %v3869, 0
  %v4088 = vsel %vm20, %v3870, 0
  %v4091 = vsel %vm20, %v3871, 0
  %v4094 = vsel %vm20, %v3872, 0
  %v4097 = vsel %vm20, %v3873, 0
  %v4100 = vsel %vm20, %v3874, 0
  %v4103 = vsel %vm20, %v3875, 0
  %v4106 = vsel %vm20, %v3876, 0
  %v4109 = vsel %vm20, %v3877, 0
  %v4112 = vsel %vm20, %v3878, 0
  %v4115 = vsel %vm20, %v3879, 0
  %v4118 = vsel %vm20, %v3880, 0
  %v4121 = vsel %vm20, %v3881, 0
  %v4124 = vsel %vm20, %v3882, 0
  %v4127 = vsel %vm20, %v3883, 0
  %v4130 = vsel %vm20, %v3884, 0
  %v4133 = vsel %vm20, %v3885, 0
  %v4136 = vsel %vm20, %v3886, 0
  %v4139 = vsel %vm20, %v3887, 0
  %v4142 = vsel %vm20, %v3888, 0
  %v4145 = vsel %vm20, %v3889, 0
  %v4148 = vsel %vm20, %v3890, 0
  %v4151 = vsel %vm20, %v3891, 0
  %v4154 = vsel %vm20, %v3892, 0
  %v4157 = vsel %vm20, %v3893, 0
  %v4160 = vsel %vm20, %v3894, 0
  %v4163 = vsel %vm20, %v3895, 0
  %v4166 = vsel %vm20, %v3896, 0
  %v4169 = vsel %vm733, %v3975, 0
  %4171 = vmatpush.msra.mxu0 0.0
  %4172 = vmatpush.msra.mxu0 0.0
  %4173 = vmatpush.msra.mxu0 0.0
  %4174 = vmatpush.msra.mxu0 0.0
  %4175 = vmatpush.msra.mxu0 0.0
  %4176 = vmatpush.msra.mxu0 0.0
  %4177 = vmatpush.msra.mxu0 0.0
  %4178 = vmatpush.msra.mxu0 0.0
  %4179 = vmatpush.msra.mxu0 0.0
  %4180 = vmatpush.msra.mxu0 0.0
  %4181 = vmatpush.msra.mxu0 0.0
  %4182 = vmatpush.msra.mxu0 0.0
  %4183 = vmatpush.msra.mxu0 0.0
  %4184 = vmatpush.msra.mxu0 0.0
  %4185 = vmatpush.msra.mxu0 0.0
  %4186 = vmatpush.msra.mxu0 %v4169
  %4187 = vmatmul.f32.gmra.mxu0 %v3977
  %v4188 = vpop.f32.mrf.mxu0
  %v4189 = vadd.f32 0.0, %v4188
  %4190 = vmatmul.f32.gmra.mxu0 %v3980
  %v4191 = vpop.f32.mrf.mxu0
  %v4192 = vadd.f32 0.0, %v4191
  %4193 = vmatmul.f32.gmra.mxu0 %v3983
  %v4194 = vpop.f32.mrf.mxu0
  %v4195 = vadd.f32 0.0, %v4194
  %4196 = vmatmul.f32.gmra.mxu0 %v3986
  %v4197 = vpop.f32.mrf.mxu0
  %v4198 = vadd.f32 0.0, %v4197
  %4199 = vmatmul.f32.gmra.mxu0 %v3989
  %v4200 = vpop.f32.mrf.mxu0
  %v4201 = vadd.f32 0.0, %v4200
  %4202 = vmatmul.f32.gmra.mxu0 %v3992
  %v4203 = vpop.f32.mrf.mxu0
  %v4204 = vadd.f32 0.0, %v4203
  %4205 = vmatmul.f32.gmra.mxu0 %v3995
  %v4206 = vpop.f32.mrf.mxu0
  %v4207 = vadd.f32 0.0, %v4206
  %4208 = vmatmul.f32.gmra.mxu0 %v3998
  %v4209 = vpop.f32.mrf.mxu0
  %v4210 = vadd.f32 0.0, %v4209
  %4211 = vmatmul.f32.gmra.mxu0 %v4001
  %v4212 = vpop.f32.mrf.mxu0
  %v4213 = vadd.f32 0.0, %v4212
  %4214 = vmatmul.f32.gmra.mxu0 %v4004
  %v4215 = vpop.f32.mrf.mxu0
  %v4216 = vadd.f32 0.0, %v4215
  %4217 = vmatmul.f32.gmra.mxu0 %v4007
  %v4218 = vpop.f32.mrf.mxu0
  %v4219 = vadd.f32 0.0, %v4218
  %4220 = vmatmul.f32.gmra.mxu0 %v4010
  %v4221 = vpop.f32.mrf.mxu0
  %v4222 = vadd.f32 0.0, %v4221
  %4223 = vmatmul.f32.gmra.mxu0 %v4013
  %v4224 = vpop.f32.mrf.mxu0
  %v4225 = vadd.f32 0.0, %v4224
  %4226 = vmatmul.f32.gmra.mxu0 %v4016
  %v4227 = vpop.f32.mrf.mxu0
  %v4228 = vadd.f32 0.0, %v4227
  %4229 = vmatmul.f32.gmra.mxu0 %v4019
  %v4230 = vpop.f32.mrf.mxu0
  %v4231 = vadd.f32 0.0, %v4230
  %4232 = vmatmul.f32.gmra.mxu0 %v4022
  %v4233 = vpop.f32.mrf.mxu0
  %v4234 = vadd.f32 0.0, %v4233
  %4235 = vmatmul.f32.gmra.mxu0 %v4025
  %v4236 = vpop.f32.mrf.mxu0
  %v4237 = vadd.f32 0.0, %v4236
  %4238 = vmatmul.f32.gmra.mxu0 %v4028
  %v4239 = vpop.f32.mrf.mxu0
  %v4240 = vadd.f32 0.0, %v4239
  %4241 = vmatmul.f32.gmra.mxu0 %v4031
  %v4242 = vpop.f32.mrf.mxu0
  %v4243 = vadd.f32 0.0, %v4242
  %4244 = vmatmul.f32.gmra.mxu0 %v4034
  %v4245 = vpop.f32.mrf.mxu0
  %v4246 = vadd.f32 0.0, %v4245
  %4247 = vmatmul.f32.gmra.mxu0 %v4037
  %v4248 = vpop.f32.mrf.mxu0
  %v4249 = vadd.f32 0.0, %v4248
  %4250 = vmatmul.f32.gmra.mxu0 %v4040
  %v4251 = vpop.f32.mrf.mxu0
  %v4252 = vadd.f32 0.0, %v4251
  %4253 = vmatmul.f32.gmra.mxu0 %v4043
  %v4254 = vpop.f32.mrf.mxu0
  %v4255 = vadd.f32 0.0, %v4254
  %4256 = vmatmul.f32.gmra.mxu0 %v4046
  %v4257 = vpop.f32.mrf.mxu0
  %v4258 = vadd.f32 0.0, %v4257
  %4259 = vmatmul.f32.gmra.mxu0 %v4049
  %v4260 = vpop.f32.mrf.mxu0
  %v4261 = vadd.f32 0.0, %v4260
  %4262 = vmatmul.f32.gmra.mxu0 %v4052
  %v4263 = vpop.f32.mrf.mxu0
  %v4264 = vadd.f32 0.0, %v4263
  %4265 = vmatmul.f32.gmra.mxu0 %v4055
  %v4266 = vpop.f32.mrf.mxu0
  %v4267 = vadd.f32 0.0, %v4266
  %4268 = vmatmul.f32.gmra.mxu0 %v4058
  %v4269 = vpop.f32.mrf.mxu0
  %v4270 = vadd.f32 0.0, %v4269
  %4271 = vmatmul.f32.gmra.mxu0 %v4061
  %v4272 = vpop.f32.mrf.mxu0
  %v4273 = vadd.f32 0.0, %v4272
  %4274 = vmatmul.f32.gmra.mxu0 %v4064
  %v4275 = vpop.f32.mrf.mxu0
  %v4276 = vadd.f32 0.0, %v4275
  %4277 = vmatmul.f32.gmra.mxu0 %v4067
  %v4278 = vpop.f32.mrf.mxu0
  %v4279 = vadd.f32 0.0, %v4278
  %4280 = vmatmul.f32.gmra.mxu0 %v4070
  %v4281 = vpop.f32.mrf.mxu0
  %v4282 = vadd.f32 0.0, %v4281
  %4283 = vmatmul.f32.gmra.mxu0 %v4073
  %v4284 = vpop.f32.mrf.mxu0
  %v4285 = vadd.f32 0.0, %v4284
  %4286 = vmatmul.f32.gmra.mxu0 %v4076
  %v4287 = vpop.f32.mrf.mxu0
  %v4288 = vadd.f32 0.0, %v4287
  %4289 = vmatmul.f32.gmra.mxu0 %v4079
  %v4290 = vpop.f32.mrf.mxu0
  %v4291 = vadd.f32 0.0, %v4290
  %4292 = vmatmul.f32.gmra.mxu0 %v4082
  %v4293 = vpop.f32.mrf.mxu0
  %v4294 = vadd.f32 0.0, %v4293
  %4295 = vmatmul.f32.gmra.mxu0 %v4085
  %v4296 = vpop.f32.mrf.mxu0
  %v4297 = vadd.f32 0.0, %v4296
  %4298 = vmatmul.f32.gmra.mxu0 %v4088
  %v4299 = vpop.f32.mrf.mxu0
  %v4300 = vadd.f32 0.0, %v4299
  %4301 = vmatmul.f32.gmra.mxu0 %v4091
  %v4302 = vpop.f32.mrf.mxu0
  %v4303 = vadd.f32 0.0, %v4302
  %4304 = vmatmul.f32.gmra.mxu0 %v4094
  %v4305 = vpop.f32.mrf.mxu0
  %v4306 = vadd.f32 0.0, %v4305
  %4307 = vmatmul.f32.gmra.mxu0 %v4097
  %v4308 = vpop.f32.mrf.mxu0
  %v4309 = vadd.f32 0.0, %v4308
  %4310 = vmatmul.f32.gmra.mxu0 %v4100
  %v4311 = vpop.f32.mrf.mxu0
  %v4312 = vadd.f32 0.0, %v4311
  %4313 = vmatmul.f32.gmra.mxu0 %v4103
  %v4314 = vpop.f32.mrf.mxu0
  %v4315 = vadd.f32 0.0, %v4314
  %4316 = vmatmul.f32.gmra.mxu0 %v4106
  %v4317 = vpop.f32.mrf.mxu0
  %v4318 = vadd.f32 0.0, %v4317
  %4319 = vmatmul.f32.gmra.mxu0 %v4109
  %v4320 = vpop.f32.mrf.mxu0
  %v4321 = vadd.f32 0.0, %v4320
  %4322 = vmatmul.f32.gmra.mxu0 %v4112
  %v4323 = vpop.f32.mrf.mxu0
  %v4324 = vadd.f32 0.0, %v4323
  %4325 = vmatmul.f32.gmra.mxu0 %v4115
  %v4326 = vpop.f32.mrf.mxu0
  %v4327 = vadd.f32 0.0, %v4326
  %4328 = vmatmul.f32.gmra.mxu0 %v4118
  %v4329 = vpop.f32.mrf.mxu0
  %v4330 = vadd.f32 0.0, %v4329
  %4331 = vmatmul.f32.gmra.mxu0 %v4121
  %v4332 = vpop.f32.mrf.mxu0
  %v4333 = vadd.f32 0.0, %v4332
  %4334 = vmatmul.f32.gmra.mxu0 %v4124
  %v4335 = vpop.f32.mrf.mxu0
  %v4336 = vadd.f32 0.0, %v4335
  %4337 = vmatmul.f32.gmra.mxu0 %v4127
  %v4338 = vpop.f32.mrf.mxu0
  %v4339 = vadd.f32 0.0, %v4338
  %4340 = vmatmul.f32.gmra.mxu0 %v4130
  %v4341 = vpop.f32.mrf.mxu0
  %v4342 = vadd.f32 0.0, %v4341
  %4343 = vmatmul.f32.gmra.mxu0 %v4133
  %v4344 = vpop.f32.mrf.mxu0
  %v4345 = vadd.f32 0.0, %v4344
  %4346 = vmatmul.f32.gmra.mxu0 %v4136
  %v4347 = vpop.f32.mrf.mxu0
  %v4348 = vadd.f32 0.0, %v4347
  %4349 = vmatmul.f32.gmra.mxu0 %v4139
  %v4350 = vpop.f32.mrf.mxu0
  %v4351 = vadd.f32 0.0, %v4350
  %4352 = vmatmul.f32.gmra.mxu0 %v4142
  %v4353 = vpop.f32.mrf.mxu0
  %v4354 = vadd.f32 0.0, %v4353
  %4355 = vmatmul.f32.gmra.mxu0 %v4145
  %v4356 = vpop.f32.mrf.mxu0
  %v4357 = vadd.f32 0.0, %v4356
  %4358 = vmatmul.f32.gmra.mxu0 %v4148
  %v4359 = vpop.f32.mrf.mxu0
  %v4360 = vadd.f32 0.0, %v4359
  %4361 = vmatmul.f32.gmra.mxu0 %v4151
  %v4362 = vpop.f32.mrf.mxu0
  %v4363 = vadd.f32 0.0, %v4362
  %4364 = vmatmul.f32.gmra.mxu0 %v4154
  %v4365 = vpop.f32.mrf.mxu0
  %v4366 = vadd.f32 0.0, %v4365
  %4367 = vmatmul.f32.gmra.mxu0 %v4157
  %v4368 = vpop.f32.mrf.mxu0
  %v4369 = vadd.f32 0.0, %v4368
  %4370 = vmatmul.f32.gmra.mxu0 %v4160
  %v4371 = vpop.f32.mrf.mxu0
  %v4372 = vadd.f32 0.0, %v4371
  %4373 = vmatmul.f32.gmra.mxu0 %v4163
  %v4374 = vpop.f32.mrf.mxu0
  %v4375 = vadd.f32 0.0, %v4374
  %4376 = vmatmul.f32.gmra.mxu0 %v4166
  %v4377 = vpop.f32.mrf.mxu0
  %v4378 = vadd.f32 0.0, %v4377
  %4379 = vdwg.mxu0
  %v4381 = vsel %vm20, %v3757, 0
  %v4384 = vsel %vm20, %v3758, 0
  %v4387 = vsel %vm20, %v3759, 0
  %v4390 = vsel %vm20, %v3760, 0
  %v4393 = vsel %vm20, %v3761, 0
  %v4396 = vsel %vm20, %v3762, 0
  %v4399 = vsel %vm20, %v3763, 0
  %v4402 = vsel %vm20, %v3764, 0
  %v4405 = vsel %vm20, %v3765, 0
  %v4408 = vsel %vm20, %v3766, 0
  %v4411 = vsel %vm20, %v3767, 0
  %v4414 = vsel %vm20, %v3768, 0
  %v4417 = vsel %vm20, %v3769, 0
  %v4420 = vsel %vm20, %v3770, 0
  %v4423 = vsel %vm20, %v3771, 0
  %v4426 = vsel %vm20, %v3772, 0
  %v4429 = vsel %vm20, %v3773, 0
  %v4432 = vsel %vm20, %v3774, 0
  %v4435 = vsel %vm20, %v3775, 0
  %v4438 = vsel %vm20, %v3776, 0
  %v4441 = vsel %vm20, %v3777, 0
  %v4444 = vsel %vm20, %v3778, 0
  %v4447 = vsel %vm20, %v3779, 0
  %v4450 = vsel %vm20, %v3780, 0
  %v4453 = vsel %vm20, %v3781, 0
  %v4456 = vsel %vm20, %v3782, 0
  %v4459 = vsel %vm20, %v3783, 0
  %v4462 = vsel %vm20, %v3784, 0
  %v4465 = vsel %vm20, %v3785, 0
  %v4468 = vsel %vm20, %v3786, 0
  %v4471 = vsel %vm20, %v3787, 0
  %v4474 = vsel %vm20, %v3788, 0
  %v4477 = vsel %vm20, %v3793, 0
  %v4480 = vsel %vm20, %v3794, 0
  %v4483 = vsel %vm20, %v3795, 0
  %v4486 = vsel %vm20, %v3796, 0
  %v4489 = vsel %vm20, %v3797, 0
  %v4492 = vsel %vm20, %v3798, 0
  %v4495 = vsel %vm20, %v3799, 0
  %v4498 = vsel %vm20, %v3800, 0
  %v4501 = vsel %vm20, %v3801, 0
  %v4504 = vsel %vm20, %v3802, 0
  %v4507 = vsel %vm20, %v3803, 0
  %v4510 = vsel %vm20, %v3804, 0
  %v4513 = vsel %vm20, %v3805, 0
  %v4516 = vsel %vm20, %v3806, 0
  %v4519 = vsel %vm20, %v3807, 0
  %v4522 = vsel %vm20, %v3808, 0
  %v4525 = vsel %vm20, %v3809, 0
  %v4528 = vsel %vm20, %v3810, 0
  %v4531 = vsel %vm20, %v3811, 0
  %v4534 = vsel %vm20, %v3812, 0
  %v4537 = vsel %vm20, %v3813, 0
  %v4540 = vsel %vm20, %v3814, 0
  %v4543 = vsel %vm20, %v3815, 0
  %v4546 = vsel %vm20, %v3816, 0
  %v4549 = vsel %vm20, %v3817, 0
  %v4552 = vsel %vm20, %v3818, 0
  %v4555 = vsel %vm20, %v3819, 0
  %v4558 = vsel %vm20, %v3820, 0
  %v4561 = vsel %vm20, %v3821, 0
  %v4564 = vsel %vm20, %v3822, 0
  %v4567 = vsel %vm20, %v3823, 0
  %v4570 = vsel %vm20, %v3824, 0
  %v4573 = vsel %vm733, %v3973, 0
  %4575 = vmatpush.msra.mxu0 0.0
  %4576 = vmatpush.msra.mxu0 0.0
  %4577 = vmatpush.msra.mxu0 0.0
  %4578 = vmatpush.msra.mxu0 0.0
  %4579 = vmatpush.msra.mxu0 0.0
  %4580 = vmatpush.msra.mxu0 0.0
  %4581 = vmatpush.msra.mxu0 0.0
  %4582 = vmatpush.msra.mxu0 0.0
  %4583 = vmatpush.msra.mxu0 0.0
  %4584 = vmatpush.msra.mxu0 0.0
  %4585 = vmatpush.msra.mxu0 0.0
  %4586 = vmatpush.msra.mxu0 0.0
  %4587 = vmatpush.msra.mxu0 0.0
  %4588 = vmatpush.msra.mxu0 0.0
  %4589 = vmatpush.msra.mxu0 0.0
  %4590 = vmatpush.msra.mxu0 %v4573
  %4591 = vmatmul.f32.gmra.mxu0 %v4381
  %v4592 = vpop.f32.mrf.mxu0
  %v4593 = vadd.f32 %v4189, %v4592
  %4594 = vmatmul.f32.gmra.mxu0 %v4384
  %v4595 = vpop.f32.mrf.mxu0
  %v4596 = vadd.f32 %v4192, %v4595
  %4597 = vmatmul.f32.gmra.mxu0 %v4387
  %v4598 = vpop.f32.mrf.mxu0
  %v4599 = vadd.f32 %v4195, %v4598
  %4600 = vmatmul.f32.gmra.mxu0 %v4390
  %v4601 = vpop.f32.mrf.mxu0
  %v4602 = vadd.f32 %v4198, %v4601
  %4603 = vmatmul.f32.gmra.mxu0 %v4393
  %v4604 = vpop.f32.mrf.mxu0
  %v4605 = vadd.f32 %v4201, %v4604
  %4606 = vmatmul.f32.gmra.mxu0 %v4396
  %v4607 = vpop.f32.mrf.mxu0
  %v4608 = vadd.f32 %v4204, %v4607
  %4609 = vmatmul.f32.gmra.mxu0 %v4399
  %v4610 = vpop.f32.mrf.mxu0
  %v4611 = vadd.f32 %v4207, %v4610
  %4612 = vmatmul.f32.gmra.mxu0 %v4402
  %v4613 = vpop.f32.mrf.mxu0
  %v4614 = vadd.f32 %v4210, %v4613
  %4615 = vmatmul.f32.gmra.mxu0 %v4405
  %v4616 = vpop.f32.mrf.mxu0
  %v4617 = vadd.f32 %v4213, %v4616
  %4618 = vmatmul.f32.gmra.mxu0 %v4408
  %v4619 = vpop.f32.mrf.mxu0
  %v4620 = vadd.f32 %v4216, %v4619
  %4621 = vmatmul.f32.gmra.mxu0 %v4411
  %v4622 = vpop.f32.mrf.mxu0
  %v4623 = vadd.f32 %v4219, %v4622
  %4624 = vmatmul.f32.gmra.mxu0 %v4414
  %v4625 = vpop.f32.mrf.mxu0
  %v4626 = vadd.f32 %v4222, %v4625
  %4627 = vmatmul.f32.gmra.mxu0 %v4417
  %v4628 = vpop.f32.mrf.mxu0
  %v4629 = vadd.f32 %v4225, %v4628
  %4630 = vmatmul.f32.gmra.mxu0 %v4420
  %v4631 = vpop.f32.mrf.mxu0
  %v4632 = vadd.f32 %v4228, %v4631
  %4633 = vmatmul.f32.gmra.mxu0 %v4423
  %v4634 = vpop.f32.mrf.mxu0
  %v4635 = vadd.f32 %v4231, %v4634
  %4636 = vmatmul.f32.gmra.mxu0 %v4426
  %v4637 = vpop.f32.mrf.mxu0
  %v4638 = vadd.f32 %v4234, %v4637
  %4639 = vmatmul.f32.gmra.mxu0 %v4429
  %v4640 = vpop.f32.mrf.mxu0
  %v4641 = vadd.f32 %v4237, %v4640
  %4642 = vmatmul.f32.gmra.mxu0 %v4432
  %v4643 = vpop.f32.mrf.mxu0
  %v4644 = vadd.f32 %v4240, %v4643
  %4645 = vmatmul.f32.gmra.mxu0 %v4435
  %v4646 = vpop.f32.mrf.mxu0
  %v4647 = vadd.f32 %v4243, %v4646
  %4648 = vmatmul.f32.gmra.mxu0 %v4438
  %v4649 = vpop.f32.mrf.mxu0
  %v4650 = vadd.f32 %v4246, %v4649
  %4651 = vmatmul.f32.gmra.mxu0 %v4441
  %v4652 = vpop.f32.mrf.mxu0
  %v4653 = vadd.f32 %v4249, %v4652
  %4654 = vmatmul.f32.gmra.mxu0 %v4444
  %v4655 = vpop.f32.mrf.mxu0
  %v4656 = vadd.f32 %v4252, %v4655
  %4657 = vmatmul.f32.gmra.mxu0 %v4447
  %v4658 = vpop.f32.mrf.mxu0
  %v4659 = vadd.f32 %v4255, %v4658
  %4660 = vmatmul.f32.gmra.mxu0 %v4450
  %v4661 = vpop.f32.mrf.mxu0
  %v4662 = vadd.f32 %v4258, %v4661
  %4663 = vmatmul.f32.gmra.mxu0 %v4453
  %v4664 = vpop.f32.mrf.mxu0
  %v4665 = vadd.f32 %v4261, %v4664
  %4666 = vmatmul.f32.gmra.mxu0 %v4456
  %v4667 = vpop.f32.mrf.mxu0
  %v4668 = vadd.f32 %v4264, %v4667
  %4669 = vmatmul.f32.gmra.mxu0 %v4459
  %v4670 = vpop.f32.mrf.mxu0
  %v4671 = vadd.f32 %v4267, %v4670
  %4672 = vmatmul.f32.gmra.mxu0 %v4462
  %v4673 = vpop.f32.mrf.mxu0
  %v4674 = vadd.f32 %v4270, %v4673
  %4675 = vmatmul.f32.gmra.mxu0 %v4465
  %v4676 = vpop.f32.mrf.mxu0
  %v4677 = vadd.f32 %v4273, %v4676
  %4678 = vmatmul.f32.gmra.mxu0 %v4468
  %v4679 = vpop.f32.mrf.mxu0
  %v4680 = vadd.f32 %v4276, %v4679
  %4681 = vmatmul.f32.gmra.mxu0 %v4471
  %v4682 = vpop.f32.mrf.mxu0
  %v4683 = vadd.f32 %v4279, %v4682
  %4684 = vmatmul.f32.gmra.mxu0 %v4474
  %v4685 = vpop.f32.mrf.mxu0
  %v4686 = vadd.f32 %v4282, %v4685
  %4687 = vmatmul.f32.gmra.mxu0 %v4477
  %v4688 = vpop.f32.mrf.mxu0
  %v4689 = vadd.f32 %v4285, %v4688
  %4690 = vmatmul.f32.gmra.mxu0 %v4480
  %v4691 = vpop.f32.mrf.mxu0
  %v4692 = vadd.f32 %v4288, %v4691
  %4693 = vmatmul.f32.gmra.mxu0 %v4483
  %v4694 = vpop.f32.mrf.mxu0
  %v4695 = vadd.f32 %v4291, %v4694
  %4696 = vmatmul.f32.gmra.mxu0 %v4486
  %v4697 = vpop.f32.mrf.mxu0
  %v4698 = vadd.f32 %v4294, %v4697
  %4699 = vmatmul.f32.gmra.mxu0 %v4489
  %v4700 = vpop.f32.mrf.mxu0
  %v4701 = vadd.f32 %v4297, %v4700
  %4702 = vmatmul.f32.gmra.mxu0 %v4492
  %v4703 = vpop.f32.mrf.mxu0
  %v4704 = vadd.f32 %v4300, %v4703
  %4705 = vmatmul.f32.gmra.mxu0 %v4495
  %v4706 = vpop.f32.mrf.mxu0
  %v4707 = vadd.f32 %v4303, %v4706
  %4708 = vmatmul.f32.gmra.mxu0 %v4498
  %v4709 = vpop.f32.mrf.mxu0
  %v4710 = vadd.f32 %v4306, %v4709
  %4711 = vmatmul.f32.gmra.mxu0 %v4501
  %v4712 = vpop.f32.mrf.mxu0
  %v4713 = vadd.f32 %v4309, %v4712
  %4714 = vmatmul.f32.gmra.mxu0 %v4504
  %v4715 = vpop.f32.mrf.mxu0
  %v4716 = vadd.f32 %v4312, %v4715
  %4717 = vmatmul.f32.gmra.mxu0 %v4507
  %v4718 = vpop.f32.mrf.mxu0
  %v4719 = vadd.f32 %v4315, %v4718
  %4720 = vmatmul.f32.gmra.mxu0 %v4510
  %v4721 = vpop.f32.mrf.mxu0
  %v4722 = vadd.f32 %v4318, %v4721
  %4723 = vmatmul.f32.gmra.mxu0 %v4513
  %v4724 = vpop.f32.mrf.mxu0
  %v4725 = vadd.f32 %v4321, %v4724
  %4726 = vmatmul.f32.gmra.mxu0 %v4516
  %v4727 = vpop.f32.mrf.mxu0
  %v4728 = vadd.f32 %v4324, %v4727
  %4729 = vmatmul.f32.gmra.mxu0 %v4519
  %v4730 = vpop.f32.mrf.mxu0
  %v4731 = vadd.f32 %v4327, %v4730
  %4732 = vmatmul.f32.gmra.mxu0 %v4522
  %v4733 = vpop.f32.mrf.mxu0
  %v4734 = vadd.f32 %v4330, %v4733
  %4735 = vmatmul.f32.gmra.mxu0 %v4525
  %v4736 = vpop.f32.mrf.mxu0
  %v4737 = vadd.f32 %v4333, %v4736
  %4738 = vmatmul.f32.gmra.mxu0 %v4528
  %v4739 = vpop.f32.mrf.mxu0
  %v4740 = vadd.f32 %v4336, %v4739
  %4741 = vmatmul.f32.gmra.mxu0 %v4531
  %v4742 = vpop.f32.mrf.mxu0
  %v4743 = vadd.f32 %v4339, %v4742
  %4744 = vmatmul.f32.gmra.mxu0 %v4534
  %v4745 = vpop.f32.mrf.mxu0
  %v4746 = vadd.f32 %v4342, %v4745
  %4747 = vmatmul.f32.gmra.mxu0 %v4537
  %v4748 = vpop.f32.mrf.mxu0
  %v4749 = vadd.f32 %v4345, %v4748
  %4750 = vmatmul.f32.gmra.mxu0 %v4540
  %v4751 = vpop.f32.mrf.mxu0
  %v4752 = vadd.f32 %v4348, %v4751
  %4753 = vmatmul.f32.gmra.mxu0 %v4543
  %v4754 = vpop.f32.mrf.mxu0
  %v4755 = vadd.f32 %v4351, %v4754
  %4756 = vmatmul.f32.gmra.mxu0 %v4546
  %v4757 = vpop.f32.mrf.mxu0
  %v4758 = vadd.f32 %v4354, %v4757
  %4759 = vmatmul.f32.gmra.mxu0 %v4549
  %v4760 = vpop.f32.mrf.mxu0
  %v4761 = vadd.f32 %v4357, %v4760
  %4762 = vmatmul.f32.gmra.mxu0 %v4552
  %v4763 = vpop.f32.mrf.mxu0
  %v4764 = vadd.f32 %v4360, %v4763
  %4765 = vmatmul.f32.gmra.mxu0 %v4555
  %v4766 = vpop.f32.mrf.mxu0
  %v4767 = vadd.f32 %v4363, %v4766
  %4768 = vmatmul.f32.gmra.mxu0 %v4558
  %v4769 = vpop.f32.mrf.mxu0
  %v4770 = vadd.f32 %v4366, %v4769
  %4771 = vmatmul.f32.gmra.mxu0 %v4561
  %v4772 = vpop.f32.mrf.mxu0
  %v4773 = vadd.f32 %v4369, %v4772
  %4774 = vmatmul.f32.gmra.mxu0 %v4564
  %v4775 = vpop.f32.mrf.mxu0
  %v4776 = vadd.f32 %v4372, %v4775
  %4777 = vmatmul.f32.gmra.mxu0 %v4567
  %v4778 = vpop.f32.mrf.mxu0
  %v4779 = vadd.f32 %v4375, %v4778
  %4780 = vmatmul.f32.gmra.mxu0 %v4570
  %v4781 = vpop.f32.mrf.mxu0
  %v4782 = vadd.f32 %v4378, %v4781
  %4783 = vdwg.mxu0
  %s4784 = scalar_lea.vmem %s3, 8
  %v4785 = vld [vmem:[%s4784] sm:$0xf]
  %v4787 = vsel %vm20, %v3901, 0
  %v4790 = vsel %vm20, %v3902, 0
  %v4793 = vsel %vm20, %v3903, 0
  %v4796 = vsel %vm20, %v3904, 0
  %v4799 = vsel %vm20, %v3905, 0
  %v4802 = vsel %vm20, %v3906, 0
  %v4805 = vsel %vm20, %v3907, 0
  %v4808 = vsel %vm20, %v3908, 0
  %v4811 = vsel %vm20, %v3909, 0
  %v4814 = vsel %vm20, %v3910, 0
  %v4817 = vsel %vm20, %v3911, 0
  %v4820 = vsel %vm20, %v3912, 0
  %v4823 = vsel %vm20, %v3913, 0
  %v4826 = vsel %vm20, %v3914, 0
  %v4829 = vsel %vm20, %v3915, 0
  %v4832 = vsel %vm20, %v3916, 0
  %v4835 = vsel %vm20, %v3917, 0
  %v4838 = vsel %vm20, %v3918, 0
  %v4841 = vsel %vm20, %v3919, 0
  %v4844 = vsel %vm20, %v3920, 0
  %v4847 = vsel %vm20, %v3921, 0
  %v4850 = vsel %vm20, %v3922, 0
  %v4853 = vsel %vm20, %v3923, 0
  %v4856 = vsel %vm20, %v3924, 0
  %v4859 = vsel %vm20, %v3925, 0
  %v4862 = vsel %vm20, %v3926, 0
  %v4865 = vsel %vm20, %v3927, 0
  %v4868 = vsel %vm20, %v3928, 0
  %v4871 = vsel %vm20, %v3929, 0
  %v4874 = vsel %vm20, %v3930, 0
  %v4877 = vsel %vm20, %v3931, 0
  %v4880 = vsel %vm20, %v3932, 0
  %v4883 = vsel %vm20, %v3937, 0
  %v4886 = vsel %vm20, %v3938, 0
  %v4889 = vsel %vm20, %v3939, 0
  %v4892 = vsel %vm20, %v3940, 0
  %v4895 = vsel %vm20, %v3941, 0
  %v4898 = vsel %vm20, %v3942, 0
  %v4901 = vsel %vm20, %v3943, 0
  %v4904 = vsel %vm20, %v3944, 0
  %v4907 = vsel %vm20, %v3945, 0
  %v4910 = vsel %vm20, %v3946, 0
  %v4913 = vsel %vm20, %v3947, 0
  %v4916 = vsel %vm20, %v3948, 0
  %v4919 = vsel %vm20, %v3949, 0
  %v4922 = vsel %vm20, %v3950, 0
  %v4925 = vsel %vm20, %v3951, 0
  %v4928 = vsel %vm20, %v3952, 0
  %v4931 = vsel %vm20, %v3953, 0
  %v4934 = vsel %vm20, %v3954, 0
  %v4937 = vsel %vm20, %v3955, 0
  %v4940 = vsel %vm20, %v3956, 0
  %v4943 = vsel %vm20, %v3957, 0
  %v4946 = vsel %vm20, %v3958, 0
  %v4949 = vsel %vm20, %v3959, 0
  %v4952 = vsel %vm20, %v3960, 0
  %v4955 = vsel %vm20, %v3961, 0
  %v4958 = vsel %vm20, %v3962, 0
  %v4961 = vsel %vm20, %v3963, 0
  %v4964 = vsel %vm20, %v3964, 0
  %v4967 = vsel %vm20, %v3965, 0
  %v4970 = vsel %vm20, %v3966, 0
  %v4973 = vsel %vm20, %v3967, 0
  %v4976 = vsel %vm20, %v3968, 0
  %v4979 = vsel %vm733, %v4785, 0
  %4981 = vmatpush.msra.mxu0 0.0
  %4982 = vmatpush.msra.mxu0 0.0
  %4983 = vmatpush.msra.mxu0 0.0
  %4984 = vmatpush.msra.mxu0 0.0
  %4985 = vmatpush.msra.mxu0 0.0
  %4986 = vmatpush.msra.mxu0 0.0
  %4987 = vmatpush.msra.mxu0 0.0
  %4988 = vmatpush.msra.mxu0 0.0
  %4989 = vmatpush.msra.mxu0 0.0
  %4990 = vmatpush.msra.mxu0 0.0
  %4991 = vmatpush.msra.mxu0 0.0
  %4992 = vmatpush.msra.mxu0 0.0
  %4993 = vmatpush.msra.mxu0 0.0
  %4994 = vmatpush.msra.mxu0 0.0
  %4995 = vmatpush.msra.mxu0 0.0
  %4996 = vmatpush.msra.mxu0 %v4979
  %4997 = vmatmul.f32.gmra.mxu0 %v4787
  %v4998 = vpop.f32.mrf.mxu0
  %v4999 = vadd.f32 0.0, %v4998
  %5000 = vmatmul.f32.gmra.mxu0 %v4790
  %v5001 = vpop.f32.mrf.mxu0
  %v5002 = vadd.f32 0.0, %v5001
  %5003 = vmatmul.f32.gmra.mxu0 %v4793
  %v5004 = vpop.f32.mrf.mxu0
  %v5005 = vadd.f32 0.0, %v5004
  %5006 = vmatmul.f32.gmra.mxu0 %v4796
  %v5007 = vpop.f32.mrf.mxu0
  %v5008 = vadd.f32 0.0, %v5007
  %5009 = vmatmul.f32.gmra.mxu0 %v4799
  %v5010 = vpop.f32.mrf.mxu0
  %v5011 = vadd.f32 0.0, %v5010
  %5012 = vmatmul.f32.gmra.mxu0 %v4802
  %v5013 = vpop.f32.mrf.mxu0
  %v5014 = vadd.f32 0.0, %v5013
  %5015 = vmatmul.f32.gmra.mxu0 %v4805
  %v5016 = vpop.f32.mrf.mxu0
  %v5017 = vadd.f32 0.0, %v5016
  %5018 = vmatmul.f32.gmra.mxu0 %v4808
  %v5019 = vpop.f32.mrf.mxu0
  %v5020 = vadd.f32 0.0, %v5019
  %5021 = vmatmul.f32.gmra.mxu0 %v4811
  %v5022 = vpop.f32.mrf.mxu0
  %v5023 = vadd.f32 0.0, %v5022
  %5024 = vmatmul.f32.gmra.mxu0 %v4814
  %v5025 = vpop.f32.mrf.mxu0
  %v5026 = vadd.f32 0.0, %v5025
  %5027 = vmatmul.f32.gmra.mxu0 %v4817
  %v5028 = vpop.f32.mrf.mxu0
  %v5029 = vadd.f32 0.0, %v5028
  %5030 = vmatmul.f32.gmra.mxu0 %v4820
  %v5031 = vpop.f32.mrf.mxu0
  %v5032 = vadd.f32 0.0, %v5031
  %5033 = vmatmul.f32.gmra.mxu0 %v4823
  %v5034 = vpop.f32.mrf.mxu0
  %v5035 = vadd.f32 0.0, %v5034
  %5036 = vmatmul.f32.gmra.mxu0 %v4826
  %v5037 = vpop.f32.mrf.mxu0
  %v5038 = vadd.f32 0.0, %v5037
  %5039 = vmatmul.f32.gmra.mxu0 %v4829
  %v5040 = vpop.f32.mrf.mxu0
  %v5041 = vadd.f32 0.0, %v5040
  %5042 = vmatmul.f32.gmra.mxu0 %v4832
  %v5043 = vpop.f32.mrf.mxu0
  %v5044 = vadd.f32 0.0, %v5043
  %5045 = vmatmul.f32.gmra.mxu0 %v4835
  %v5046 = vpop.f32.mrf.mxu0
  %v5047 = vadd.f32 0.0, %v5046
  %5048 = vmatmul.f32.gmra.mxu0 %v4838
  %v5049 = vpop.f32.mrf.mxu0
  %v5050 = vadd.f32 0.0, %v5049
  %5051 = vmatmul.f32.gmra.mxu0 %v4841
  %v5052 = vpop.f32.mrf.mxu0
  %v5053 = vadd.f32 0.0, %v5052
  %5054 = vmatmul.f32.gmra.mxu0 %v4844
  %v5055 = vpop.f32.mrf.mxu0
  %v5056 = vadd.f32 0.0, %v5055
  %5057 = vmatmul.f32.gmra.mxu0 %v4847
  %v5058 = vpop.f32.mrf.mxu0
  %v5059 = vadd.f32 0.0, %v5058
  %5060 = vmatmul.f32.gmra.mxu0 %v4850
  %v5061 = vpop.f32.mrf.mxu0
  %v5062 = vadd.f32 0.0, %v5061
  %5063 = vmatmul.f32.gmra.mxu0 %v4853
  %v5064 = vpop.f32.mrf.mxu0
  %v5065 = vadd.f32 0.0, %v5064
  %5066 = vmatmul.f32.gmra.mxu0 %v4856
  %v5067 = vpop.f32.mrf.mxu0
  %v5068 = vadd.f32 0.0, %v5067
  %5069 = vmatmul.f32.gmra.mxu0 %v4859
  %v5070 = vpop.f32.mrf.mxu0
  %v5071 = vadd.f32 0.0, %v5070
  %5072 = vmatmul.f32.gmra.mxu0 %v4862
  %v5073 = vpop.f32.mrf.mxu0
  %v5074 = vadd.f32 0.0, %v5073
  %5075 = vmatmul.f32.gmra.mxu0 %v4865
  %v5076 = vpop.f32.mrf.mxu0
  %v5077 = vadd.f32 0.0, %v5076
  %5078 = vmatmul.f32.gmra.mxu0 %v4868
  %v5079 = vpop.f32.mrf.mxu0
  %v5080 = vadd.f32 0.0, %v5079
  %5081 = vmatmul.f32.gmra.mxu0 %v4871
  %v5082 = vpop.f32.mrf.mxu0
  %v5083 = vadd.f32 0.0, %v5082
  %5084 = vmatmul.f32.gmra.mxu0 %v4874
  %v5085 = vpop.f32.mrf.mxu0
  %v5086 = vadd.f32 0.0, %v5085
  %5087 = vmatmul.f32.gmra.mxu0 %v4877
  %v5088 = vpop.f32.mrf.mxu0
  %v5089 = vadd.f32 0.0, %v5088
  %5090 = vmatmul.f32.gmra.mxu0 %v4880
  %v5091 = vpop.f32.mrf.mxu0
  %v5092 = vadd.f32 0.0, %v5091
  %5093 = vmatmul.f32.gmra.mxu0 %v4883
  %v5094 = vpop.f32.mrf.mxu0
  %v5095 = vadd.f32 0.0, %v5094
  %5096 = vmatmul.f32.gmra.mxu0 %v4886
  %v5097 = vpop.f32.mrf.mxu0
  %v5098 = vadd.f32 0.0, %v5097
  %5099 = vmatmul.f32.gmra.mxu0 %v4889
  %v5100 = vpop.f32.mrf.mxu0
  %v5101 = vadd.f32 0.0, %v5100
  %5102 = vmatmul.f32.gmra.mxu0 %v4892
  %v5103 = vpop.f32.mrf.mxu0
  %v5104 = vadd.f32 0.0, %v5103
  %5105 = vmatmul.f32.gmra.mxu0 %v4895
  %v5106 = vpop.f32.mrf.mxu0
  %v5107 = vadd.f32 0.0, %v5106
  %5108 = vmatmul.f32.gmra.mxu0 %v4898
  %v5109 = vpop.f32.mrf.mxu0
  %v5110 = vadd.f32 0.0, %v5109
  %5111 = vmatmul.f32.gmra.mxu0 %v4901
  %v5112 = vpop.f32.mrf.mxu0
  %v5113 = vadd.f32 0.0, %v5112
  %5114 = vmatmul.f32.gmra.mxu0 %v4904
  %v5115 = vpop.f32.mrf.mxu0
  %v5116 = vadd.f32 0.0, %v5115
  %5117 = vmatmul.f32.gmra.mxu0 %v4907
  %v5118 = vpop.f32.mrf.mxu0
  %v5119 = vadd.f32 0.0, %v5118
  %5120 = vmatmul.f32.gmra.mxu0 %v4910
  %v5121 = vpop.f32.mrf.mxu0
  %v5122 = vadd.f32 0.0, %v5121
  %5123 = vmatmul.f32.gmra.mxu0 %v4913
  %v5124 = vpop.f32.mrf.mxu0
  %v5125 = vadd.f32 0.0, %v5124
  %5126 = vmatmul.f32.gmra.mxu0 %v4916
  %v5127 = vpop.f32.mrf.mxu0
  %v5128 = vadd.f32 0.0, %v5127
  %5129 = vmatmul.f32.gmra.mxu0 %v4919
  %v5130 = vpop.f32.mrf.mxu0
  %v5131 = vadd.f32 0.0, %v5130
  %5132 = vmatmul.f32.gmra.mxu0 %v4922
  %v5133 = vpop.f32.mrf.mxu0
  %v5134 = vadd.f32 0.0, %v5133
  %5135 = vmatmul.f32.gmra.mxu0 %v4925
  %v5136 = vpop.f32.mrf.mxu0
  %v5137 = vadd.f32 0.0, %v5136
  %5138 = vmatmul.f32.gmra.mxu0 %v4928
  %v5139 = vpop.f32.mrf.mxu0
  %v5140 = vadd.f32 0.0, %v5139
  %5141 = vmatmul.f32.gmra.mxu0 %v4931
  %v5142 = vpop.f32.mrf.mxu0
  %v5143 = vadd.f32 0.0, %v5142
  %5144 = vmatmul.f32.gmra.mxu0 %v4934
  %v5145 = vpop.f32.mrf.mxu0
  %v5146 = vadd.f32 0.0, %v5145
  %5147 = vmatmul.f32.gmra.mxu0 %v4937
  %v5148 = vpop.f32.mrf.mxu0
  %v5149 = vadd.f32 0.0, %v5148
  %5150 = vmatmul.f32.gmra.mxu0 %v4940
  %v5151 = vpop.f32.mrf.mxu0
  %v5152 = vadd.f32 0.0, %v5151
  %5153 = vmatmul.f32.gmra.mxu0 %v4943
  %v5154 = vpop.f32.mrf.mxu0
  %v5155 = vadd.f32 0.0, %v5154
  %5156 = vmatmul.f32.gmra.mxu0 %v4946
  %v5157 = vpop.f32.mrf.mxu0
  %v5158 = vadd.f32 0.0, %v5157
  %5159 = vmatmul.f32.gmra.mxu0 %v4949
  %v5160 = vpop.f32.mrf.mxu0
  %v5161 = vadd.f32 0.0, %v5160
  %5162 = vmatmul.f32.gmra.mxu0 %v4952
  %v5163 = vpop.f32.mrf.mxu0
  %v5164 = vadd.f32 0.0, %v5163
  %5165 = vmatmul.f32.gmra.mxu0 %v4955
  %v5166 = vpop.f32.mrf.mxu0
  %v5167 = vadd.f32 0.0, %v5166
  %5168 = vmatmul.f32.gmra.mxu0 %v4958
  %v5169 = vpop.f32.mrf.mxu0
  %v5170 = vadd.f32 0.0, %v5169
  %5171 = vmatmul.f32.gmra.mxu0 %v4961
  %v5172 = vpop.f32.mrf.mxu0
  %v5173 = vadd.f32 0.0, %v5172
  %5174 = vmatmul.f32.gmra.mxu0 %v4964
  %v5175 = vpop.f32.mrf.mxu0
  %v5176 = vadd.f32 0.0, %v5175
  %5177 = vmatmul.f32.gmra.mxu0 %v4967
  %v5178 = vpop.f32.mrf.mxu0
  %v5179 = vadd.f32 0.0, %v5178
  %5180 = vmatmul.f32.gmra.mxu0 %v4970
  %v5181 = vpop.f32.mrf.mxu0
  %v5182 = vadd.f32 0.0, %v5181
  %5183 = vmatmul.f32.gmra.mxu0 %v4973
  %v5184 = vpop.f32.mrf.mxu0
  %v5185 = vadd.f32 0.0, %v5184
  %5186 = vmatmul.f32.gmra.mxu0 %v4976
  %v5187 = vpop.f32.mrf.mxu0
  %v5188 = vadd.f32 0.0, %v5187
  %5189 = vdwg.mxu0
  %v5190 = vadd.f32 %v4593, %v4999
  %v5191 = vadd.f32 %v4596, %v5002
  %v5192 = vadd.f32 %v4599, %v5005
  %v5193 = vadd.f32 %v4602, %v5008
  %v5194 = vadd.f32 %v4605, %v5011
  %v5195 = vadd.f32 %v4608, %v5014
  %v5196 = vadd.f32 %v4611, %v5017
  %v5197 = vadd.f32 %v4614, %v5020
  %v5198 = vadd.f32 %v4617, %v5023
  %v5199 = vadd.f32 %v4620, %v5026
  %v5200 = vadd.f32 %v4623, %v5029
  %v5201 = vadd.f32 %v4626, %v5032
  %v5202 = vadd.f32 %v4629, %v5035
  %v5203 = vadd.f32 %v4632, %v5038
  %v5204 = vadd.f32 %v4635, %v5041
  %v5205 = vadd.f32 %v4638, %v5044
  %v5206 = vadd.f32 %v4641, %v5047
  %v5207 = vadd.f32 %v4644, %v5050
  %v5208 = vadd.f32 %v4647, %v5053
  %v5209 = vadd.f32 %v4650, %v5056
  %v5210 = vadd.f32 %v4653, %v5059
  %v5211 = vadd.f32 %v4656, %v5062
  %v5212 = vadd.f32 %v4659, %v5065
  %v5213 = vadd.f32 %v4662, %v5068
  %v5214 = vadd.f32 %v4665, %v5071
  %v5215 = vadd.f32 %v4668, %v5074
  %v5216 = vadd.f32 %v4671, %v5077
  %v5217 = vadd.f32 %v4674, %v5080
  %v5218 = vadd.f32 %v4677, %v5083
  %v5219 = vadd.f32 %v4680, %v5086
  %v5220 = vadd.f32 %v4683, %v5089
  %v5221 = vadd.f32 %v4686, %v5092
  %v5222 = vadd.f32 %v4689, %v5095
  %v5223 = vadd.f32 %v4692, %v5098
  %v5224 = vadd.f32 %v4695, %v5101
  %v5225 = vadd.f32 %v4698, %v5104
  %v5226 = vadd.f32 %v4701, %v5107
  %v5227 = vadd.f32 %v4704, %v5110
  %v5228 = vadd.f32 %v4707, %v5113
  %v5229 = vadd.f32 %v4710, %v5116
  %v5230 = vadd.f32 %v4713, %v5119
  %v5231 = vadd.f32 %v4716, %v5122
  %v5232 = vadd.f32 %v4719, %v5125
  %v5233 = vadd.f32 %v4722, %v5128
  %v5234 = vadd.f32 %v4725, %v5131
  %v5235 = vadd.f32 %v4728, %v5134
  %v5236 = vadd.f32 %v4731, %v5137
  %v5237 = vadd.f32 %v4734, %v5140
  %v5238 = vadd.f32 %v4737, %v5143
  %v5239 = vadd.f32 %v4740, %v5146
  %v5240 = vadd.f32 %v4743, %v5149
  %v5241 = vadd.f32 %v4746, %v5152
  %v5242 = vadd.f32 %v4749, %v5155
  %v5243 = vadd.f32 %v4752, %v5158
  %v5244 = vadd.f32 %v4755, %v5161
  %v5245 = vadd.f32 %v4758, %v5164
  %v5246 = vadd.f32 %v4761, %v5167
  %v5247 = vadd.f32 %v4764, %v5170
  %v5248 = vadd.f32 %v4767, %v5173
  %v5249 = vadd.f32 %v4770, %v5176
  %v5250 = vadd.f32 %v4773, %v5179
  %v5251 = vadd.f32 %v4776, %v5182
  %v5252 = vadd.f32 %v4779, %v5185
  %v5253 = vadd.f32 %v4782, %v5188
  %s5254 = scalar_lea.vmem %s3, 12
  %v5255 = vld [vmem:[%s5254] sm:$0xf]
  %v5257 = vsel %vm20, %v3789, 0
  %v5260 = vsel %vm20, %v3790, 0
  %v5263 = vsel %vm20, %v3825, 0
  %v5266 = vsel %vm20, %v3826, 0
  %v5269 = vsel %vm733, %v5255, 0
  %5271 = vmatpush.msra.mxu0 0.0
  %5272 = vmatpush.msra.mxu0 0.0
  %5273 = vmatpush.msra.mxu0 0.0
  %5274 = vmatpush.msra.mxu0 0.0
  %5275 = vmatpush.msra.mxu0 0.0
  %5276 = vmatpush.msra.mxu0 0.0
  %5277 = vmatpush.msra.mxu0 0.0
  %5278 = vmatpush.msra.mxu0 0.0
  %5279 = vmatpush.msra.mxu0 0.0
  %5280 = vmatpush.msra.mxu0 0.0
  %5281 = vmatpush.msra.mxu0 0.0
  %5282 = vmatpush.msra.mxu0 0.0
  %5283 = vmatpush.msra.mxu0 0.0
  %5284 = vmatpush.msra.mxu0 0.0
  %5285 = vmatpush.msra.mxu0 0.0
  %5286 = vmatpush.msra.mxu0 %v5269
  %5287 = vmatmul.f32.gmra.mxu0 %v4387
  %v5288 = vpop.f32.mrf.mxu0
  %v5289 = vadd.f32 0.0, %v5288
  %5290 = vmatmul.f32.gmra.mxu0 %v4390
  %v5291 = vpop.f32.mrf.mxu0
  %v5292 = vadd.f32 0.0, %v5291
  %5293 = vmatmul.f32.gmra.mxu0 %v4393
  %v5294 = vpop.f32.mrf.mxu0
  %v5295 = vadd.f32 0.0, %v5294
  %5296 = vmatmul.f32.gmra.mxu0 %v4396
  %v5297 = vpop.f32.mrf.mxu0
  %v5298 = vadd.f32 0.0, %v5297
  %5299 = vmatmul.f32.gmra.mxu0 %v4399
  %v5300 = vpop.f32.mrf.mxu0
  %v5301 = vadd.f32 0.0, %v5300
  %5302 = vmatmul.f32.gmra.mxu0 %v4402
  %v5303 = vpop.f32.mrf.mxu0
  %v5304 = vadd.f32 0.0, %v5303
  %5305 = vmatmul.f32.gmra.mxu0 %v4405
  %v5306 = vpop.f32.mrf.mxu0
  %v5307 = vadd.f32 0.0, %v5306
  %5308 = vmatmul.f32.gmra.mxu0 %v4408
  %v5309 = vpop.f32.mrf.mxu0
  %v5310 = vadd.f32 0.0, %v5309
  %5311 = vmatmul.f32.gmra.mxu0 %v4411
  %v5312 = vpop.f32.mrf.mxu0
  %v5313 = vadd.f32 0.0, %v5312
  %5314 = vmatmul.f32.gmra.mxu0 %v4414
  %v5315 = vpop.f32.mrf.mxu0
  %v5316 = vadd.f32 0.0, %v5315
  %5317 = vmatmul.f32.gmra.mxu0 %v4417
  %v5318 = vpop.f32.mrf.mxu0
  %v5319 = vadd.f32 0.0, %v5318
  %5320 = vmatmul.f32.gmra.mxu0 %v4420
  %v5321 = vpop.f32.mrf.mxu0
  %v5322 = vadd.f32 0.0, %v5321
  %5323 = vmatmul.f32.gmra.mxu0 %v4423
  %v5324 = vpop.f32.mrf.mxu0
  %v5325 = vadd.f32 0.0, %v5324
  %5326 = vmatmul.f32.gmra.mxu0 %v4426
  %v5327 = vpop.f32.mrf.mxu0
  %v5328 = vadd.f32 0.0, %v5327
  %5329 = vmatmul.f32.gmra.mxu0 %v4429
  %v5330 = vpop.f32.mrf.mxu0
  %v5331 = vadd.f32 0.0, %v5330
  %5332 = vmatmul.f32.gmra.mxu0 %v4432
  %v5333 = vpop.f32.mrf.mxu0
  %v5334 = vadd.f32 0.0, %v5333
  %5335 = vmatmul.f32.gmra.mxu0 %v4435
  %v5336 = vpop.f32.mrf.mxu0
  %v5337 = vadd.f32 0.0, %v5336
  %5338 = vmatmul.f32.gmra.mxu0 %v4438
  %v5339 = vpop.f32.mrf.mxu0
  %v5340 = vadd.f32 0.0, %v5339
  %5341 = vmatmul.f32.gmra.mxu0 %v4441
  %v5342 = vpop.f32.mrf.mxu0
  %v5343 = vadd.f32 0.0, %v5342
  %5344 = vmatmul.f32.gmra.mxu0 %v4444
  %v5345 = vpop.f32.mrf.mxu0
  %v5346 = vadd.f32 0.0, %v5345
  %5347 = vmatmul.f32.gmra.mxu0 %v4447
  %v5348 = vpop.f32.mrf.mxu0
  %v5349 = vadd.f32 0.0, %v5348
  %5350 = vmatmul.f32.gmra.mxu0 %v4450
  %v5351 = vpop.f32.mrf.mxu0
  %v5352 = vadd.f32 0.0, %v5351
  %5353 = vmatmul.f32.gmra.mxu0 %v4453
  %v5354 = vpop.f32.mrf.mxu0
  %v5355 = vadd.f32 0.0, %v5354
  %5356 = vmatmul.f32.gmra.mxu0 %v4456
  %v5357 = vpop.f32.mrf.mxu0
  %v5358 = vadd.f32 0.0, %v5357
  %5359 = vmatmul.f32.gmra.mxu0 %v4459
  %v5360 = vpop.f32.mrf.mxu0
  %v5361 = vadd.f32 0.0, %v5360
  %5362 = vmatmul.f32.gmra.mxu0 %v4462
  %v5363 = vpop.f32.mrf.mxu0
  %v5364 = vadd.f32 0.0, %v5363
  %5365 = vmatmul.f32.gmra.mxu0 %v4465
  %v5366 = vpop.f32.mrf.mxu0
  %v5367 = vadd.f32 0.0, %v5366
  %5368 = vmatmul.f32.gmra.mxu0 %v4468
  %v5369 = vpop.f32.mrf.mxu0
  %v5370 = vadd.f32 0.0, %v5369
  %5371 = vmatmul.f32.gmra.mxu0 %v4471
  %v5372 = vpop.f32.mrf.mxu0
  %v5373 = vadd.f32 0.0, %v5372
  %5374 = vmatmul.f32.gmra.mxu0 %v4474
  %v5375 = vpop.f32.mrf.mxu0
  %v5376 = vadd.f32 0.0, %v5375
  %5377 = vmatmul.f32.gmra.mxu0 %v5257
  %v5378 = vpop.f32.mrf.mxu0
  %v5379 = vadd.f32 0.0, %v5378
  %5380 = vmatmul.f32.gmra.mxu0 %v5260
  %v5381 = vpop.f32.mrf.mxu0
  %v5382 = vadd.f32 0.0, %v5381
  %5383 = vmatmul.f32.gmra.mxu0 %v4483
  %v5384 = vpop.f32.mrf.mxu0
  %v5385 = vadd.f32 0.0, %v5384
  %5386 = vmatmul.f32.gmra.mxu0 %v4486
  %v5387 = vpop.f32.mrf.mxu0
  %v5388 = vadd.f32 0.0, %v5387
  %5389 = vmatmul.f32.gmra.mxu0 %v4489
  %v5390 = vpop.f32.mrf.mxu0
  %v5391 = vadd.f32 0.0, %v5390
  %5392 = vmatmul.f32.gmra.mxu0 %v4492
  %v5393 = vpop.f32.mrf.mxu0
  %v5394 = vadd.f32 0.0, %v5393
  %5395 = vmatmul.f32.gmra.mxu0 %v4495
  %v5396 = vpop.f32.mrf.mxu0
  %v5397 = vadd.f32 0.0, %v5396
  %5398 = vmatmul.f32.gmra.mxu0 %v4498
  %v5399 = vpop.f32.mrf.mxu0
  %v5400 = vadd.f32 0.0, %v5399
  %5401 = vmatmul.f32.gmra.mxu0 %v4501
  %v5402 = vpop.f32.mrf.mxu0
  %v5403 = vadd.f32 0.0, %v5402
  %5404 = vmatmul.f32.gmra.mxu0 %v4504
  %v5405 = vpop.f32.mrf.mxu0
  %v5406 = vadd.f32 0.0, %v5405
  %5407 = vmatmul.f32.gmra.mxu0 %v4507
  %v5408 = vpop.f32.mrf.mxu0
  %v5409 = vadd.f32 0.0, %v5408
  %5410 = vmatmul.f32.gmra.mxu0 %v4510
  %v5411 = vpop.f32.mrf.mxu0
  %v5412 = vadd.f32 0.0, %v5411
  %5413 = vmatmul.f32.gmra.mxu0 %v4513
  %v5414 = vpop.f32.mrf.mxu0
  %v5415 = vadd.f32 0.0, %v5414
  %5416 = vmatmul.f32.gmra.mxu0 %v4516
  %v5417 = vpop.f32.mrf.mxu0
  %v5418 = vadd.f32 0.0, %v5417
  %5419 = vmatmul.f32.gmra.mxu0 %v4519
  %v5420 = vpop.f32.mrf.mxu0
  %v5421 = vadd.f32 0.0, %v5420
  %5422 = vmatmul.f32.gmra.mxu0 %v4522
  %v5423 = vpop.f32.mrf.mxu0
  %v5424 = vadd.f32 0.0, %v5423
  %5425 = vmatmul.f32.gmra.mxu0 %v4525
  %v5426 = vpop.f32.mrf.mxu0
  %v5427 = vadd.f32 0.0, %v5426
  %5428 = vmatmul.f32.gmra.mxu0 %v4528
  %v5429 = vpop.f32.mrf.mxu0
  %v5430 = vadd.f32 0.0, %v5429
  %5431 = vmatmul.f32.gmra.mxu0 %v4531
  %v5432 = vpop.f32.mrf.mxu0
  %v5433 = vadd.f32 0.0, %v5432
  %5434 = vmatmul.f32.gmra.mxu0 %v4534
  %v5435 = vpop.f32.mrf.mxu0
  %v5436 = vadd.f32 0.0, %v5435
  %5437 = vmatmul.f32.gmra.mxu0 %v4537
  %v5438 = vpop.f32.mrf.mxu0
  %v5439 = vadd.f32 0.0, %v5438
  %5440 = vmatmul.f32.gmra.mxu0 %v4540
  %v5441 = vpop.f32.mrf.mxu0
  %v5442 = vadd.f32 0.0, %v5441
  %5443 = vmatmul.f32.gmra.mxu0 %v4543
  %v5444 = vpop.f32.mrf.mxu0
  %v5445 = vadd.f32 0.0, %v5444
  %5446 = vmatmul.f32.gmra.mxu0 %v4546
  %v5447 = vpop.f32.mrf.mxu0
  %v5448 = vadd.f32 0.0, %v5447
  %5449 = vmatmul.f32.gmra.mxu0 %v4549
  %v5450 = vpop.f32.mrf.mxu0
  %v5451 = vadd.f32 0.0, %v5450
  %5452 = vmatmul.f32.gmra.mxu0 %v4552
  %v5453 = vpop.f32.mrf.mxu0
  %v5454 = vadd.f32 0.0, %v5453
  %5455 = vmatmul.f32.gmra.mxu0 %v4555
  %v5456 = vpop.f32.mrf.mxu0
  %v5457 = vadd.f32 0.0, %v5456
  %5458 = vmatmul.f32.gmra.mxu0 %v4558
  %v5459 = vpop.f32.mrf.mxu0
  %v5460 = vadd.f32 0.0, %v5459
  %5461 = vmatmul.f32.gmra.mxu0 %v4561
  %v5462 = vpop.f32.mrf.mxu0
  %v5463 = vadd.f32 0.0, %v5462
  %5464 = vmatmul.f32.gmra.mxu0 %v4564
  %v5465 = vpop.f32.mrf.mxu0
  %v5466 = vadd.f32 0.0, %v5465
  %5467 = vmatmul.f32.gmra.mxu0 %v4567
  %v5468 = vpop.f32.mrf.mxu0
  %v5469 = vadd.f32 0.0, %v5468
  %5470 = vmatmul.f32.gmra.mxu0 %v4570
  %v5471 = vpop.f32.mrf.mxu0
  %v5472 = vadd.f32 0.0, %v5471
  %5473 = vmatmul.f32.gmra.mxu0 %v5263
  %v5474 = vpop.f32.mrf.mxu0
  %v5475 = vadd.f32 0.0, %v5474
  %5476 = vmatmul.f32.gmra.mxu0 %v5266
  %v5477 = vpop.f32.mrf.mxu0
  %v5478 = vadd.f32 0.0, %v5477
  %5479 = vdwg.mxu0
  %v5480 = vadd.f32 %v5190, %v5289
  %v5481 = vadd.f32 %v5191, %v5292
  %v5482 = vadd.f32 %v5192, %v5295
  %v5483 = vadd.f32 %v5193, %v5298
  %v5484 = vadd.f32 %v5194, %v5301
  %v5485 = vadd.f32 %v5195, %v5304
  %v5486 = vadd.f32 %v5196, %v5307
  %v5487 = vadd.f32 %v5197, %v5310
  %v5488 = vadd.f32 %v5198, %v5313
  %v5489 = vadd.f32 %v5199, %v5316
  %v5490 = vadd.f32 %v5200, %v5319
  %v5491 = vadd.f32 %v5201, %v5322
  %v5492 = vadd.f32 %v5202, %v5325
  %v5493 = vadd.f32 %v5203, %v5328
  %v5494 = vadd.f32 %v5204, %v5331
  %v5495 = vadd.f32 %v5205, %v5334
  %v5496 = vadd.f32 %v5206, %v5337
  %v5497 = vadd.f32 %v5207, %v5340
  %v5498 = vadd.f32 %v5208, %v5343
  %v5499 = vadd.f32 %v5209, %v5346
  %v5500 = vadd.f32 %v5210, %v5349
  %v5501 = vadd.f32 %v5211, %v5352
  %v5502 = vadd.f32 %v5212, %v5355
  %v5503 = vadd.f32 %v5213, %v5358
  %v5504 = vadd.f32 %v5214, %v5361
  %v5505 = vadd.f32 %v5215, %v5364
  %v5506 = vadd.f32 %v5216, %v5367
  %v5507 = vadd.f32 %v5217, %v5370
  %v5508 = vadd.f32 %v5218, %v5373
  %v5509 = vadd.f32 %v5219, %v5376
  %v5510 = vadd.f32 %v5220, %v5379
  %v5511 = vadd.f32 %v5221, %v5382
  %v5512 = vadd.f32 %v5222, %v5385
  %v5513 = vadd.f32 %v5223, %v5388
  %v5514 = vadd.f32 %v5224, %v5391
  %v5515 = vadd.f32 %v5225, %v5394
  %v5516 = vadd.f32 %v5226, %v5397
  %v5517 = vadd.f32 %v5227, %v5400
  %v5518 = vadd.f32 %v5228, %v5403
  %v5519 = vadd.f32 %v5229, %v5406
  %v5520 = vadd.f32 %v5230, %v5409
  %v5521 = vadd.f32 %v5231, %v5412
  %v5522 = vadd.f32 %v5232, %v5415
  %v5523 = vadd.f32 %v5233, %v5418
  %v5524 = vadd.f32 %v5234, %v5421
  %v5525 = vadd.f32 %v5235, %v5424
  %v5526 = vadd.f32 %v5236, %v5427
  %v5527 = vadd.f32 %v5237, %v5430
  %v5528 = vadd.f32 %v5238, %v5433
  %v5529 = vadd.f32 %v5239, %v5436
  %v5530 = vadd.f32 %v5240, %v5439
  %v5531 = vadd.f32 %v5241, %v5442
  %v5532 = vadd.f32 %v5242, %v5445
  %v5533 = vadd.f32 %v5243, %v5448
  %v5534 = vadd.f32 %v5244, %v5451
  %v5535 = vadd.f32 %v5245, %v5454
  %v5536 = vadd.f32 %v5246, %v5457
  %v5537 = vadd.f32 %v5247, %v5460
  %v5538 = vadd.f32 %v5248, %v5463
  %v5539 = vadd.f32 %v5249, %v5466
  %v5540 = vadd.f32 %v5250, %v5469
  %v5541 = vadd.f32 %v5251, %v5472
  %v5542 = vadd.f32 %v5252, %v5475
  %v5543 = vadd.f32 %v5253, %v5478
  %s5544 = scalar_lea.vmem %s3, 16
  %v5545 = vld [vmem:[%s5544] sm:$0xf]
  %v5547 = vsel %vm20, %v3861, 0
  %v5550 = vsel %vm20, %v3862, 0
  %v5553 = vsel %vm20, %v3897, 0
  %v5556 = vsel %vm20, %v3898, 0
  %v5559 = vsel %vm733, %v5545, 0
  %5561 = vmatpush.msra.mxu0 0.0
  %5562 = vmatpush.msra.mxu0 0.0
  %5563 = vmatpush.msra.mxu0 0.0
  %5564 = vmatpush.msra.mxu0 0.0
  %5565 = vmatpush.msra.mxu0 0.0
  %5566 = vmatpush.msra.mxu0 0.0
  %5567 = vmatpush.msra.mxu0 0.0
  %5568 = vmatpush.msra.mxu0 0.0
  %5569 = vmatpush.msra.mxu0 0.0
  %5570 = vmatpush.msra.mxu0 0.0
  %5571 = vmatpush.msra.mxu0 0.0
  %5572 = vmatpush.msra.mxu0 0.0
  %5573 = vmatpush.msra.mxu0 0.0
  %5574 = vmatpush.msra.mxu0 0.0
  %5575 = vmatpush.msra.mxu0 0.0
  %5576 = vmatpush.msra.mxu0 %v5559
  %5577 = vmatmul.f32.gmra.mxu0 %v3983
  %v5578 = vpop.f32.mrf.mxu0
  %v5579 = vadd.f32 0.0, %v5578
  %5580 = vmatmul.f32.gmra.mxu0 %v3986
  %v5581 = vpop.f32.mrf.mxu0
  %v5582 = vadd.f32 0.0, %v5581
  %5583 = vmatmul.f32.gmra.mxu0 %v3989
  %v5584 = vpop.f32.mrf.mxu0
  %v5585 = vadd.f32 0.0, %v5584
  %5586 = vmatmul.f32.gmra.mxu0 %v3992
  %v5587 = vpop.f32.mrf.mxu0
  %v5588 = vadd.f32 0.0, %v5587
  %5589 = vmatmul.f32.gmra.mxu0 %v3995
  %v5590 = vpop.f32.mrf.mxu0
  %v5591 = vadd.f32 0.0, %v5590
  %5592 = vmatmul.f32.gmra.mxu0 %v3998
  %v5593 = vpop.f32.mrf.mxu0
  %v5594 = vadd.f32 0.0, %v5593
  %5595 = vmatmul.f32.gmra.mxu0 %v4001
  %v5596 = vpop.f32.mrf.mxu0
  %v5597 = vadd.f32 0.0, %v5596
  %5598 = vmatmul.f32.gmra.mxu0 %v4004
  %v5599 = vpop.f32.mrf.mxu0
  %v5600 = vadd.f32 0.0, %v5599
  %5601 = vmatmul.f32.gmra.mxu0 %v4007
  %v5602 = vpop.f32.mrf.mxu0
  %v5603 = vadd.f32 0.0, %v5602
  %5604 = vmatmul.f32.gmra.mxu0 %v4010
  %v5605 = vpop.f32.mrf.mxu0
  %v5606 = vadd.f32 0.0, %v5605
  %5607 = vmatmul.f32.gmra.mxu0 %v4013
  %v5608 = vpop.f32.mrf.mxu0
  %v5609 = vadd.f32 0.0, %v5608
  %5610 = vmatmul.f32.gmra.mxu0 %v4016
  %v5611 = vpop.f32.mrf.mxu0
  %v5612 = vadd.f32 0.0, %v5611
  %5613 = vmatmul.f32.gmra.mxu0 %v4019
  %v5614 = vpop.f32.mrf.mxu0
  %v5615 = vadd.f32 0.0, %v5614
  %5616 = vmatmul.f32.gmra.mxu0 %v4022
  %v5617 = vpop.f32.mrf.mxu0
  %v5618 = vadd.f32 0.0, %v5617
  %5619 = vmatmul.f32.gmra.mxu0 %v4025
  %v5620 = vpop.f32.mrf.mxu0
  %v5621 = vadd.f32 0.0, %v5620
  %5622 = vmatmul.f32.gmra.mxu0 %v4028
  %v5623 = vpop.f32.mrf.mxu0
  %v5624 = vadd.f32 0.0, %v5623
  %5625 = vmatmul.f32.gmra.mxu0 %v4031
  %v5626 = vpop.f32.mrf.mxu0
  %v5627 = vadd.f32 0.0, %v5626
  %5628 = vmatmul.f32.gmra.mxu0 %v4034
  %v5629 = vpop.f32.mrf.mxu0
  %v5630 = vadd.f32 0.0, %v5629
  %5631 = vmatmul.f32.gmra.mxu0 %v4037
  %v5632 = vpop.f32.mrf.mxu0
  %v5633 = vadd.f32 0.0, %v5632
  %5634 = vmatmul.f32.gmra.mxu0 %v4040
  %v5635 = vpop.f32.mrf.mxu0
  %v5636 = vadd.f32 0.0, %v5635
  %5637 = vmatmul.f32.gmra.mxu0 %v4043
  %v5638 = vpop.f32.mrf.mxu0
  %v5639 = vadd.f32 0.0, %v5638
  %5640 = vmatmul.f32.gmra.mxu0 %v4046
  %v5641 = vpop.f32.mrf.mxu0
  %v5642 = vadd.f32 0.0, %v5641
  %5643 = vmatmul.f32.gmra.mxu0 %v4049
  %v5644 = vpop.f32.mrf.mxu0
  %v5645 = vadd.f32 0.0, %v5644
  %5646 = vmatmul.f32.gmra.mxu0 %v4052
  %v5647 = vpop.f32.mrf.mxu0
  %v5648 = vadd.f32 0.0, %v5647
  %5649 = vmatmul.f32.gmra.mxu0 %v4055
  %v5650 = vpop.f32.mrf.mxu0
  %v5651 = vadd.f32 0.0, %v5650
  %5652 = vmatmul.f32.gmra.mxu0 %v4058
  %v5653 = vpop.f32.mrf.mxu0
  %v5654 = vadd.f32 0.0, %v5653
  %5655 = vmatmul.f32.gmra.mxu0 %v4061
  %v5656 = vpop.f32.mrf.mxu0
  %v5657 = vadd.f32 0.0, %v5656
  %5658 = vmatmul.f32.gmra.mxu0 %v4064
  %v5659 = vpop.f32.mrf.mxu0
  %v5660 = vadd.f32 0.0, %v5659
  %5661 = vmatmul.f32.gmra.mxu0 %v4067
  %v5662 = vpop.f32.mrf.mxu0
  %v5663 = vadd.f32 0.0, %v5662
  %5664 = vmatmul.f32.gmra.mxu0 %v4070
  %v5665 = vpop.f32.mrf.mxu0
  %v5666 = vadd.f32 0.0, %v5665
  %5667 = vmatmul.f32.gmra.mxu0 %v5547
  %v5668 = vpop.f32.mrf.mxu0
  %v5669 = vadd.f32 0.0, %v5668
  %5670 = vmatmul.f32.gmra.mxu0 %v5550
  %v5671 = vpop.f32.mrf.mxu0
  %v5672 = vadd.f32 0.0, %v5671
  %5673 = vmatmul.f32.gmra.mxu0 %v4079
  %v5674 = vpop.f32.mrf.mxu0
  %v5675 = vadd.f32 0.0, %v5674
  %5676 = vmatmul.f32.gmra.mxu0 %v4082
  %v5677 = vpop.f32.mrf.mxu0
  %v5678 = vadd.f32 0.0, %v5677
  %5679 = vmatmul.f32.gmra.mxu0 %v4085
  %v5680 = vpop.f32.mrf.mxu0
  %v5681 = vadd.f32 0.0, %v5680
  %5682 = vmatmul.f32.gmra.mxu0 %v4088
  %v5683 = vpop.f32.mrf.mxu0
  %v5684 = vadd.f32 0.0, %v5683
  %5685 = vmatmul.f32.gmra.mxu0 %v4091
  %v5686 = vpop.f32.mrf.mxu0
  %v5687 = vadd.f32 0.0, %v5686
  %5688 = vmatmul.f32.gmra.mxu0 %v4094
  %v5689 = vpop.f32.mrf.mxu0
  %v5690 = vadd.f32 0.0, %v5689
  %5691 = vmatmul.f32.gmra.mxu0 %v4097
  %v5692 = vpop.f32.mrf.mxu0
  %v5693 = vadd.f32 0.0, %v5692
  %5694 = vmatmul.f32.gmra.mxu0 %v4100
  %v5695 = vpop.f32.mrf.mxu0
  %v5696 = vadd.f32 0.0, %v5695
  %5697 = vmatmul.f32.gmra.mxu0 %v4103
  %v5698 = vpop.f32.mrf.mxu0
  %v5699 = vadd.f32 0.0, %v5698
  %5700 = vmatmul.f32.gmra.mxu0 %v4106
  %v5701 = vpop.f32.mrf.mxu0
  %v5702 = vadd.f32 0.0, %v5701
  %5703 = vmatmul.f32.gmra.mxu0 %v4109
  %v5704 = vpop.f32.mrf.mxu0
  %v5705 = vadd.f32 0.0, %v5704
  %5706 = vmatmul.f32.gmra.mxu0 %v4112
  %v5707 = vpop.f32.mrf.mxu0
  %v5708 = vadd.f32 0.0, %v5707
  %5709 = vmatmul.f32.gmra.mxu0 %v4115
  %v5710 = vpop.f32.mrf.mxu0
  %v5711 = vadd.f32 0.0, %v5710
  %5712 = vmatmul.f32.gmra.mxu0 %v4118
  %v5713 = vpop.f32.mrf.mxu0
  %v5714 = vadd.f32 0.0, %v5713
  %5715 = vmatmul.f32.gmra.mxu0 %v4121
  %v5716 = vpop.f32.mrf.mxu0
  %v5717 = vadd.f32 0.0, %v5716
  %5718 = vmatmul.f32.gmra.mxu0 %v4124
  %v5719 = vpop.f32.mrf.mxu0
  %v5720 = vadd.f32 0.0, %v5719
  %5721 = vmatmul.f32.gmra.mxu0 %v4127
  %v5722 = vpop.f32.mrf.mxu0
  %v5723 = vadd.f32 0.0, %v5722
  %5724 = vmatmul.f32.gmra.mxu0 %v4130
  %v5725 = vpop.f32.mrf.mxu0
  %v5726 = vadd.f32 0.0, %v5725
  %5727 = vmatmul.f32.gmra.mxu0 %v4133
  %v5728 = vpop.f32.mrf.mxu0
  %v5729 = vadd.f32 0.0, %v5728
  %5730 = vmatmul.f32.gmra.mxu0 %v4136
  %v5731 = vpop.f32.mrf.mxu0
  %v5732 = vadd.f32 0.0, %v5731
  %5733 = vmatmul.f32.gmra.mxu0 %v4139
  %v5734 = vpop.f32.mrf.mxu0
  %v5735 = vadd.f32 0.0, %v5734
  %5736 = vmatmul.f32.gmra.mxu0 %v4142
  %v5737 = vpop.f32.mrf.mxu0
  %v5738 = vadd.f32 0.0, %v5737
  %5739 = vmatmul.f32.gmra.mxu0 %v4145
  %v5740 = vpop.f32.mrf.mxu0
  %v5741 = vadd.f32 0.0, %v5740
  %5742 = vmatmul.f32.gmra.mxu0 %v4148
  %v5743 = vpop.f32.mrf.mxu0
  %v5744 = vadd.f32 0.0, %v5743
  %5745 = vmatmul.f32.gmra.mxu0 %v4151
  %v5746 = vpop.f32.mrf.mxu0
  %v5747 = vadd.f32 0.0, %v5746
  %5748 = vmatmul.f32.gmra.mxu0 %v4154
  %v5749 = vpop.f32.mrf.mxu0
  %v5750 = vadd.f32 0.0, %v5749
  %5751 = vmatmul.f32.gmra.mxu0 %v4157
  %v5752 = vpop.f32.mrf.mxu0
  %v5753 = vadd.f32 0.0, %v5752
  %5754 = vmatmul.f32.gmra.mxu0 %v4160
  %v5755 = vpop.f32.mrf.mxu0
  %v5756 = vadd.f32 0.0, %v5755
  %5757 = vmatmul.f32.gmra.mxu0 %v4163
  %v5758 = vpop.f32.mrf.mxu0
  %v5759 = vadd.f32 0.0, %v5758
  %5760 = vmatmul.f32.gmra.mxu0 %v4166
  %v5761 = vpop.f32.mrf.mxu0
  %v5762 = vadd.f32 0.0, %v5761
  %5763 = vmatmul.f32.gmra.mxu0 %v5553
  %v5764 = vpop.f32.mrf.mxu0
  %v5765 = vadd.f32 0.0, %v5764
  %5766 = vmatmul.f32.gmra.mxu0 %v5556
  %v5767 = vpop.f32.mrf.mxu0
  %v5768 = vadd.f32 0.0, %v5767
  %5769 = vdwg.mxu0
  %v5770 = vadd.f32 %v5480, %v5579
  %v5771 = vadd.f32 %v5481, %v5582
  %v5772 = vadd.f32 %v5482, %v5585
  %v5773 = vadd.f32 %v5483, %v5588
  %v5774 = vadd.f32 %v5484, %v5591
  %v5775 = vadd.f32 %v5485, %v5594
  %v5776 = vadd.f32 %v5486, %v5597
  %v5777 = vadd.f32 %v5487, %v5600
  %v5778 = vadd.f32 %v5488, %v5603
  %v5779 = vadd.f32 %v5489, %v5606
  %v5780 = vadd.f32 %v5490, %v5609
  %v5781 = vadd.f32 %v5491, %v5612
  %v5782 = vadd.f32 %v5492, %v5615
  %v5783 = vadd.f32 %v5493, %v5618
  %v5784 = vadd.f32 %v5494, %v5621
  %v5785 = vadd.f32 %v5495, %v5624
  %v5786 = vadd.f32 %v5496, %v5627
  %v5787 = vadd.f32 %v5497, %v5630
  %v5788 = vadd.f32 %v5498, %v5633
  %v5789 = vadd.f32 %v5499, %v5636
  %v5790 = vadd.f32 %v5500, %v5639
  %v5791 = vadd.f32 %v5501, %v5642
  %v5792 = vadd.f32 %v5502, %v5645
  %v5793 = vadd.f32 %v5503, %v5648
  %v5794 = vadd.f32 %v5504, %v5651
  %v5795 = vadd.f32 %v5505, %v5654
  %v5796 = vadd.f32 %v5506, %v5657
  %v5797 = vadd.f32 %v5507, %v5660
  %v5798 = vadd.f32 %v5508, %v5663
  %v5799 = vadd.f32 %v5509, %v5666
  %v5800 = vadd.f32 %v5510, %v5669
  %v5801 = vadd.f32 %v5511, %v5672
  %v5802 = vadd.f32 %v5512, %v5675
  %v5803 = vadd.f32 %v5513, %v5678
  %v5804 = vadd.f32 %v5514, %v5681
  %v5805 = vadd.f32 %v5515, %v5684
  %v5806 = vadd.f32 %v5516, %v5687
  %v5807 = vadd.f32 %v5517, %v5690
  %v5808 = vadd.f32 %v5518, %v5693
  %v5809 = vadd.f32 %v5519, %v5696
  %v5810 = vadd.f32 %v5520, %v5699
  %v5811 = vadd.f32 %v5521, %v5702
  %v5812 = vadd.f32 %v5522, %v5705
  %v5813 = vadd.f32 %v5523, %v5708
  %v5814 = vadd.f32 %v5524, %v5711
  %v5815 = vadd.f32 %v5525, %v5714
  %v5816 = vadd.f32 %v5526, %v5717
  %v5817 = vadd.f32 %v5527, %v5720
  %v5818 = vadd.f32 %v5528, %v5723
  %v5819 = vadd.f32 %v5529, %v5726
  %v5820 = vadd.f32 %v5530, %v5729
  %v5821 = vadd.f32 %v5531, %v5732
  %v5822 = vadd.f32 %v5532, %v5735
  %v5823 = vadd.f32 %v5533, %v5738
  %v5824 = vadd.f32 %v5534, %v5741
  %v5825 = vadd.f32 %v5535, %v5744
  %v5826 = vadd.f32 %v5536, %v5747
  %v5827 = vadd.f32 %v5537, %v5750
  %v5828 = vadd.f32 %v5538, %v5753
  %v5829 = vadd.f32 %v5539, %v5756
  %v5830 = vadd.f32 %v5540, %v5759
  %v5831 = vadd.f32 %v5541, %v5762
  %v5832 = vadd.f32 %v5542, %v5765
  %v5833 = vadd.f32 %v5543, %v5768
  %s5834 = scalar_lea.vmem %s3, 20
  %v5835 = vld [vmem:[%s5834] sm:$0xf]
  %v5837 = vsel %vm20, %v3933, 0
  %v5840 = vsel %vm20, %v3934, 0
  %v5843 = vsel %vm20, %v3969, 0
  %v5846 = vsel %vm20, %v3970, 0
  %v5849 = vsel %vm733, %v5835, 0
  %5851 = vmatpush.msra.mxu0 0.0
  %5852 = vmatpush.msra.mxu0 0.0
  %5853 = vmatpush.msra.mxu0 0.0
  %5854 = vmatpush.msra.mxu0 0.0
  %5855 = vmatpush.msra.mxu0 0.0
  %5856 = vmatpush.msra.mxu0 0.0
  %5857 = vmatpush.msra.mxu0 0.0
  %5858 = vmatpush.msra.mxu0 0.0
  %5859 = vmatpush.msra.mxu0 0.0
  %5860 = vmatpush.msra.mxu0 0.0
  %5861 = vmatpush.msra.mxu0 0.0
  %5862 = vmatpush.msra.mxu0 0.0
  %5863 = vmatpush.msra.mxu0 0.0
  %5864 = vmatpush.msra.mxu0 0.0
  %5865 = vmatpush.msra.mxu0 0.0
  %5866 = vmatpush.msra.mxu0 %v5849
  %5867 = vmatmul.f32.gmra.mxu0 %v4793
  %v5868 = vpop.f32.mrf.mxu0
  %v5869 = vadd.f32 0.0, %v5868
  %5870 = vmatmul.f32.gmra.mxu0 %v4796
  %v5871 = vpop.f32.mrf.mxu0
  %v5872 = vadd.f32 0.0, %v5871
  %5873 = vmatmul.f32.gmra.mxu0 %v4799
  %v5874 = vpop.f32.mrf.mxu0
  %v5875 = vadd.f32 0.0, %v5874
  %5876 = vmatmul.f32.gmra.mxu0 %v4802
  %v5877 = vpop.f32.mrf.mxu0
  %v5878 = vadd.f32 0.0, %v5877
  %5879 = vmatmul.f32.gmra.mxu0 %v4805
  %v5880 = vpop.f32.mrf.mxu0
  %v5881 = vadd.f32 0.0, %v5880
  %5882 = vmatmul.f32.gmra.mxu0 %v4808
  %v5883 = vpop.f32.mrf.mxu0
  %v5884 = vadd.f32 0.0, %v5883
  %5885 = vmatmul.f32.gmra.mxu0 %v4811
  %v5886 = vpop.f32.mrf.mxu0
  %v5887 = vadd.f32 0.0, %v5886
  %5888 = vmatmul.f32.gmra.mxu0 %v4814
  %v5889 = vpop.f32.mrf.mxu0
  %v5890 = vadd.f32 0.0, %v5889
  %5891 = vmatmul.f32.gmra.mxu0 %v4817
  %v5892 = vpop.f32.mrf.mxu0
  %v5893 = vadd.f32 0.0, %v5892
  %5894 = vmatmul.f32.gmra.mxu0 %v4820
  %v5895 = vpop.f32.mrf.mxu0
  %v5896 = vadd.f32 0.0, %v5895
  %5897 = vmatmul.f32.gmra.mxu0 %v4823
  %v5898 = vpop.f32.mrf.mxu0
  %v5899 = vadd.f32 0.0, %v5898
  %5900 = vmatmul.f32.gmra.mxu0 %v4826
  %v5901 = vpop.f32.mrf.mxu0
  %v5902 = vadd.f32 0.0, %v5901
  %5903 = vmatmul.f32.gmra.mxu0 %v4829
  %v5904 = vpop.f32.mrf.mxu0
  %v5905 = vadd.f32 0.0, %v5904
  %5906 = vmatmul.f32.gmra.mxu0 %v4832
  %v5907 = vpop.f32.mrf.mxu0
  %v5908 = vadd.f32 0.0, %v5907
  %5909 = vmatmul.f32.gmra.mxu0 %v4835
  %v5910 = vpop.f32.mrf.mxu0
  %v5911 = vadd.f32 0.0, %v5910
  %5912 = vmatmul.f32.gmra.mxu0 %v4838
  %v5913 = vpop.f32.mrf.mxu0
  %v5914 = vadd.f32 0.0, %v5913
  %5915 = vmatmul.f32.gmra.mxu0 %v4841
  %v5916 = vpop.f32.mrf.mxu0
  %v5917 = vadd.f32 0.0, %v5916
  %5918 = vmatmul.f32.gmra.mxu0 %v4844
  %v5919 = vpop.f32.mrf.mxu0
  %v5920 = vadd.f32 0.0, %v5919
  %5921 = vmatmul.f32.gmra.mxu0 %v4847
  %v5922 = vpop.f32.mrf.mxu0
  %v5923 = vadd.f32 0.0, %v5922
  %5924 = vmatmul.f32.gmra.mxu0 %v4850
  %v5925 = vpop.f32.mrf.mxu0
  %v5926 = vadd.f32 0.0, %v5925
  %5927 = vmatmul.f32.gmra.mxu0 %v4853
  %v5928 = vpop.f32.mrf.mxu0
  %v5929 = vadd.f32 0.0, %v5928
  %5930 = vmatmul.f32.gmra.mxu0 %v4856
  %v5931 = vpop.f32.mrf.mxu0
  %v5932 = vadd.f32 0.0, %v5931
  %5933 = vmatmul.f32.gmra.mxu0 %v4859
  %v5934 = vpop.f32.mrf.mxu0
  %v5935 = vadd.f32 0.0, %v5934
  %5936 = vmatmul.f32.gmra.mxu0 %v4862
  %v5937 = vpop.f32.mrf.mxu0
  %v5938 = vadd.f32 0.0, %v5937
  %5939 = vmatmul.f32.gmra.mxu0 %v4865
  %v5940 = vpop.f32.mrf.mxu0
  %v5941 = vadd.f32 0.0, %v5940
  %5942 = vmatmul.f32.gmra.mxu0 %v4868
  %v5943 = vpop.f32.mrf.mxu0
  %v5944 = vadd.f32 0.0, %v5943
  %5945 = vmatmul.f32.gmra.mxu0 %v4871
  %v5946 = vpop.f32.mrf.mxu0
  %v5947 = vadd.f32 0.0, %v5946
  %5948 = vmatmul.f32.gmra.mxu0 %v4874
  %v5949 = vpop.f32.mrf.mxu0
  %v5950 = vadd.f32 0.0, %v5949
  %5951 = vmatmul.f32.gmra.mxu0 %v4877
  %v5952 = vpop.f32.mrf.mxu0
  %v5953 = vadd.f32 0.0, %v5952
  %5954 = vmatmul.f32.gmra.mxu0 %v4880
  %v5955 = vpop.f32.mrf.mxu0
  %v5956 = vadd.f32 0.0, %v5955
  %5957 = vmatmul.f32.gmra.mxu0 %v5837
  %v5958 = vpop.f32.mrf.mxu0
  %v5959 = vadd.f32 0.0, %v5958
  %5960 = vmatmul.f32.gmra.mxu0 %v5840
  %v5961 = vpop.f32.mrf.mxu0
  %v5962 = vadd.f32 0.0, %v5961
  %5963 = vmatmul.f32.gmra.mxu0 %v4889
  %v5964 = vpop.f32.mrf.mxu0
  %v5965 = vadd.f32 0.0, %v5964
  %5966 = vmatmul.f32.gmra.mxu0 %v4892
  %v5967 = vpop.f32.mrf.mxu0
  %v5968 = vadd.f32 0.0, %v5967
  %5969 = vmatmul.f32.gmra.mxu0 %v4895
  %v5970 = vpop.f32.mrf.mxu0
  %v5971 = vadd.f32 0.0, %v5970
  %5972 = vmatmul.f32.gmra.mxu0 %v4898
  %v5973 = vpop.f32.mrf.mxu0
  %v5974 = vadd.f32 0.0, %v5973
  %5975 = vmatmul.f32.gmra.mxu0 %v4901
  %v5976 = vpop.f32.mrf.mxu0
  %v5977 = vadd.f32 0.0, %v5976
  %5978 = vmatmul.f32.gmra.mxu0 %v4904
  %v5979 = vpop.f32.mrf.mxu0
  %v5980 = vadd.f32 0.0, %v5979
  %5981 = vmatmul.f32.gmra.mxu0 %v4907
  %v5982 = vpop.f32.mrf.mxu0
  %v5983 = vadd.f32 0.0, %v5982
  %5984 = vmatmul.f32.gmra.mxu0 %v4910
  %v5985 = vpop.f32.mrf.mxu0
  %v5986 = vadd.f32 0.0, %v5985
  %5987 = vmatmul.f32.gmra.mxu0 %v4913
  %v5988 = vpop.f32.mrf.mxu0
  %v5989 = vadd.f32 0.0, %v5988
  %5990 = vmatmul.f32.gmra.mxu0 %v4916
  %v5991 = vpop.f32.mrf.mxu0
  %v5992 = vadd.f32 0.0, %v5991
  %5993 = vmatmul.f32.gmra.mxu0 %v4919
  %v5994 = vpop.f32.mrf.mxu0
  %v5995 = vadd.f32 0.0, %v5994
  %5996 = vmatmul.f32.gmra.mxu0 %v4922
  %v5997 = vpop.f32.mrf.mxu0
  %v5998 = vadd.f32 0.0, %v5997
  %5999 = vmatmul.f32.gmra.mxu0 %v4925
  %v6000 = vpop.f32.mrf.mxu0
  %v6001 = vadd.f32 0.0, %v6000
  %6002 = vmatmul.f32.gmra.mxu0 %v4928
  %v6003 = vpop.f32.mrf.mxu0
  %v6004 = vadd.f32 0.0, %v6003
  %6005 = vmatmul.f32.gmra.mxu0 %v4931
  %v6006 = vpop.f32.mrf.mxu0
  %v6007 = vadd.f32 0.0, %v6006
  %6008 = vmatmul.f32.gmra.mxu0 %v4934
  %v6009 = vpop.f32.mrf.mxu0
  %v6010 = vadd.f32 0.0, %v6009
  %6011 = vmatmul.f32.gmra.mxu0 %v4937
  %v6012 = vpop.f32.mrf.mxu0
  %v6013 = vadd.f32 0.0, %v6012
  %6014 = vmatmul.f32.gmra.mxu0 %v4940
  %v6015 = vpop.f32.mrf.mxu0
  %v6016 = vadd.f32 0.0, %v6015
  %6017 = vmatmul.f32.gmra.mxu0 %v4943
  %v6018 = vpop.f32.mrf.mxu0
  %v6019 = vadd.f32 0.0, %v6018
  %6020 = vmatmul.f32.gmra.mxu0 %v4946
  %v6021 = vpop.f32.mrf.mxu0
  %v6022 = vadd.f32 0.0, %v6021
  %6023 = vmatmul.f32.gmra.mxu0 %v4949
  %v6024 = vpop.f32.mrf.mxu0
  %v6025 = vadd.f32 0.0, %v6024
  %6026 = vmatmul.f32.gmra.mxu0 %v4952
  %v6027 = vpop.f32.mrf.mxu0
  %v6028 = vadd.f32 0.0, %v6027
  %6029 = vmatmul.f32.gmra.mxu0 %v4955
  %v6030 = vpop.f32.mrf.mxu0
  %v6031 = vadd.f32 0.0, %v6030
  %6032 = vmatmul.f32.gmra.mxu0 %v4958
  %v6033 = vpop.f32.mrf.mxu0
  %v6034 = vadd.f32 0.0, %v6033
  %6035 = vmatmul.f32.gmra.mxu0 %v4961
  %v6036 = vpop.f32.mrf.mxu0
  %v6037 = vadd.f32 0.0, %v6036
  %6038 = vmatmul.f32.gmra.mxu0 %v4964
  %v6039 = vpop.f32.mrf.mxu0
  %v6040 = vadd.f32 0.0, %v6039
  %6041 = vmatmul.f32.gmra.mxu0 %v4967
  %v6042 = vpop.f32.mrf.mxu0
  %v6043 = vadd.f32 0.0, %v6042
  %6044 = vmatmul.f32.gmra.mxu0 %v4970
  %v6045 = vpop.f32.mrf.mxu0
  %v6046 = vadd.f32 0.0, %v6045
  %6047 = vmatmul.f32.gmra.mxu0 %v4973
  %v6048 = vpop.f32.mrf.mxu0
  %v6049 = vadd.f32 0.0, %v6048
  %6050 = vmatmul.f32.gmra.mxu0 %v4976
  %v6051 = vpop.f32.mrf.mxu0
  %v6052 = vadd.f32 0.0, %v6051
  %6053 = vmatmul.f32.gmra.mxu0 %v5843
  %v6054 = vpop.f32.mrf.mxu0
  %v6055 = vadd.f32 0.0, %v6054
  %6056 = vmatmul.f32.gmra.mxu0 %v5846
  %v6057 = vpop.f32.mrf.mxu0
  %v6058 = vadd.f32 0.0, %v6057
  %6059 = vdwg.mxu0
  %v6060 = vadd.f32 %v5770, %v5869
  %v6061 = vadd.f32 %v5771, %v5872
  %v6062 = vadd.f32 %v5772, %v5875
  %v6063 = vadd.f32 %v5773, %v5878
  %v6064 = vadd.f32 %v5774, %v5881
  %v6065 = vadd.f32 %v5775, %v5884
  %v6066 = vadd.f32 %v5776, %v5887
  %v6067 = vadd.f32 %v5777, %v5890
  %v6068 = vadd.f32 %v5778, %v5893
  %v6069 = vadd.f32 %v5779, %v5896
  %v6070 = vadd.f32 %v5780, %v5899
  %v6071 = vadd.f32 %v5781, %v5902
  %v6072 = vadd.f32 %v5782, %v5905
  %v6073 = vadd.f32 %v5783, %v5908
  %v6074 = vadd.f32 %v5784, %v5911
  %v6075 = vadd.f32 %v5785, %v5914
  %v6076 = vadd.f32 %v5786, %v5917
  %v6077 = vadd.f32 %v5787, %v5920
  %v6078 = vadd.f32 %v5788, %v5923
  %v6079 = vadd.f32 %v5789, %v5926
  %v6080 = vadd.f32 %v5790, %v5929
  %v6081 = vadd.f32 %v5791, %v5932
  %v6082 = vadd.f32 %v5792, %v5935
  %v6083 = vadd.f32 %v5793, %v5938
  %v6084 = vadd.f32 %v5794, %v5941
  %v6085 = vadd.f32 %v5795, %v5944
  %v6086 = vadd.f32 %v5796, %v5947
  %v6087 = vadd.f32 %v5797, %v5950
  %v6088 = vadd.f32 %v5798, %v5953
  %v6089 = vadd.f32 %v5799, %v5956
  %v6090 = vadd.f32 %v5800, %v5959
  %v6091 = vadd.f32 %v5801, %v5962
  %v6092 = vadd.f32 %v5802, %v5965
  %v6093 = vadd.f32 %v5803, %v5968
  %v6094 = vadd.f32 %v5804, %v5971
  %v6095 = vadd.f32 %v5805, %v5974
  %v6096 = vadd.f32 %v5806, %v5977
  %v6097 = vadd.f32 %v5807, %v5980
  %v6098 = vadd.f32 %v5808, %v5983
  %v6099 = vadd.f32 %v5809, %v5986
  %v6100 = vadd.f32 %v5810, %v5989
  %v6101 = vadd.f32 %v5811, %v5992
  %v6102 = vadd.f32 %v5812, %v5995
  %v6103 = vadd.f32 %v5813, %v5998
  %v6104 = vadd.f32 %v5814, %v6001
  %v6105 = vadd.f32 %v5815, %v6004
  %v6106 = vadd.f32 %v5816, %v6007
  %v6107 = vadd.f32 %v5817, %v6010
  %v6108 = vadd.f32 %v5818, %v6013
  %v6109 = vadd.f32 %v5819, %v6016
  %v6110 = vadd.f32 %v5820, %v6019
  %v6111 = vadd.f32 %v5821, %v6022
  %v6112 = vadd.f32 %v5822, %v6025
  %v6113 = vadd.f32 %v5823, %v6028
  %v6114 = vadd.f32 %v5824, %v6031
  %v6115 = vadd.f32 %v5825, %v6034
  %v6116 = vadd.f32 %v5826, %v6037
  %v6117 = vadd.f32 %v5827, %v6040
  %v6118 = vadd.f32 %v5828, %v6043
  %v6119 = vadd.f32 %v5829, %v6046
  %v6120 = vadd.f32 %v5830, %v6049
  %v6121 = vadd.f32 %v5831, %v6052
  %v6122 = vadd.f32 %v5832, %v6055
  %v6123 = vadd.f32 %v5833, %v6058
  %s6124 = scalar_lea.vmem %s3, 24
  %v6125 = vld [vmem:[%s6124] sm:$0xf]
  %v6127 = vsel %vm20, %v3791, 0
  %v6130 = vsel %vm20, %v3792, 0
  %v6133 = vsel %vm20, %v3827, 0
  %v6136 = vsel %vm20, %v3828, 0
  %v6139 = vsel %vm733, %v6125, 0
  %6141 = vmatpush.msra.mxu0 0.0
  %6142 = vmatpush.msra.mxu0 0.0
  %6143 = vmatpush.msra.mxu0 0.0
  %6144 = vmatpush.msra.mxu0 0.0
  %6145 = vmatpush.msra.mxu0 0.0
  %6146 = vmatpush.msra.mxu0 0.0
  %6147 = vmatpush.msra.mxu0 0.0
  %6148 = vmatpush.msra.mxu0 0.0
  %6149 = vmatpush.msra.mxu0 0.0
  %6150 = vmatpush.msra.mxu0 0.0
  %6151 = vmatpush.msra.mxu0 0.0
  %6152 = vmatpush.msra.mxu0 0.0
  %6153 = vmatpush.msra.mxu0 0.0
  %6154 = vmatpush.msra.mxu0 0.0
  %6155 = vmatpush.msra.mxu0 0.0
  %6156 = vmatpush.msra.mxu0 %v6139
  %6157 = vmatmul.f32.gmra.mxu0 %v4393
  %v6158 = vpop.f32.mrf.mxu0
  %v6159 = vadd.f32 0.0, %v6158
  %6160 = vmatmul.f32.gmra.mxu0 %v4396
  %v6161 = vpop.f32.mrf.mxu0
  %v6162 = vadd.f32 0.0, %v6161
  %6163 = vmatmul.f32.gmra.mxu0 %v4399
  %v6164 = vpop.f32.mrf.mxu0
  %v6165 = vadd.f32 0.0, %v6164
  %6166 = vmatmul.f32.gmra.mxu0 %v4402
  %v6167 = vpop.f32.mrf.mxu0
  %v6168 = vadd.f32 0.0, %v6167
  %6169 = vmatmul.f32.gmra.mxu0 %v4405
  %v6170 = vpop.f32.mrf.mxu0
  %v6171 = vadd.f32 0.0, %v6170
  %6172 = vmatmul.f32.gmra.mxu0 %v4408
  %v6173 = vpop.f32.mrf.mxu0
  %v6174 = vadd.f32 0.0, %v6173
  %6175 = vmatmul.f32.gmra.mxu0 %v4411
  %v6176 = vpop.f32.mrf.mxu0
  %v6177 = vadd.f32 0.0, %v6176
  %6178 = vmatmul.f32.gmra.mxu0 %v4414
  %v6179 = vpop.f32.mrf.mxu0
  %v6180 = vadd.f32 0.0, %v6179
  %6181 = vmatmul.f32.gmra.mxu0 %v4417
  %v6182 = vpop.f32.mrf.mxu0
  %v6183 = vadd.f32 0.0, %v6182
  %6184 = vmatmul.f32.gmra.mxu0 %v4420
  %v6185 = vpop.f32.mrf.mxu0
  %v6186 = vadd.f32 0.0, %v6185
  %6187 = vmatmul.f32.gmra.mxu0 %v4423
  %v6188 = vpop.f32.mrf.mxu0
  %v6189 = vadd.f32 0.0, %v6188
  %6190 = vmatmul.f32.gmra.mxu0 %v4426
  %v6191 = vpop.f32.mrf.mxu0
  %v6192 = vadd.f32 0.0, %v6191
  %6193 = vmatmul.f32.gmra.mxu0 %v4429
  %v6194 = vpop.f32.mrf.mxu0
  %v6195 = vadd.f32 0.0, %v6194
  %6196 = vmatmul.f32.gmra.mxu0 %v4432
  %v6197 = vpop.f32.mrf.mxu0
  %v6198 = vadd.f32 0.0, %v6197
  %6199 = vmatmul.f32.gmra.mxu0 %v4435
  %v6200 = vpop.f32.mrf.mxu0
  %v6201 = vadd.f32 0.0, %v6200
  %6202 = vmatmul.f32.gmra.mxu0 %v4438
  %v6203 = vpop.f32.mrf.mxu0
  %v6204 = vadd.f32 0.0, %v6203
  %6205 = vmatmul.f32.gmra.mxu0 %v4441
  %v6206 = vpop.f32.mrf.mxu0
  %v6207 = vadd.f32 0.0, %v6206
  %6208 = vmatmul.f32.gmra.mxu0 %v4444
  %v6209 = vpop.f32.mrf.mxu0
  %v6210 = vadd.f32 0.0, %v6209
  %6211 = vmatmul.f32.gmra.mxu0 %v4447
  %v6212 = vpop.f32.mrf.mxu0
  %v6213 = vadd.f32 0.0, %v6212
  %6214 = vmatmul.f32.gmra.mxu0 %v4450
  %v6215 = vpop.f32.mrf.mxu0
  %v6216 = vadd.f32 0.0, %v6215
  %6217 = vmatmul.f32.gmra.mxu0 %v4453
  %v6218 = vpop.f32.mrf.mxu0
  %v6219 = vadd.f32 0.0, %v6218
  %6220 = vmatmul.f32.gmra.mxu0 %v4456
  %v6221 = vpop.f32.mrf.mxu0
  %v6222 = vadd.f32 0.0, %v6221
  %6223 = vmatmul.f32.gmra.mxu0 %v4459
  %v6224 = vpop.f32.mrf.mxu0
  %v6225 = vadd.f32 0.0, %v6224
  %6226 = vmatmul.f32.gmra.mxu0 %v4462
  %v6227 = vpop.f32.mrf.mxu0
  %v6228 = vadd.f32 0.0, %v6227
  %6229 = vmatmul.f32.gmra.mxu0 %v4465
  %v6230 = vpop.f32.mrf.mxu0
  %v6231 = vadd.f32 0.0, %v6230
  %6232 = vmatmul.f32.gmra.mxu0 %v4468
  %v6233 = vpop.f32.mrf.mxu0
  %v6234 = vadd.f32 0.0, %v6233
  %6235 = vmatmul.f32.gmra.mxu0 %v4471
  %v6236 = vpop.f32.mrf.mxu0
  %v6237 = vadd.f32 0.0, %v6236
  %6238 = vmatmul.f32.gmra.mxu0 %v4474
  %v6239 = vpop.f32.mrf.mxu0
  %v6240 = vadd.f32 0.0, %v6239
  %6241 = vmatmul.f32.gmra.mxu0 %v5257
  %v6242 = vpop.f32.mrf.mxu0
  %v6243 = vadd.f32 0.0, %v6242
  %6244 = vmatmul.f32.gmra.mxu0 %v5260
  %v6245 = vpop.f32.mrf.mxu0
  %v6246 = vadd.f32 0.0, %v6245
  %6247 = vmatmul.f32.gmra.mxu0 %v6127
  %v6248 = vpop.f32.mrf.mxu0
  %v6249 = vadd.f32 0.0, %v6248
  %6250 = vmatmul.f32.gmra.mxu0 %v6130
  %v6251 = vpop.f32.mrf.mxu0
  %v6252 = vadd.f32 0.0, %v6251
  %6253 = vmatmul.f32.gmra.mxu0 %v4489
  %v6254 = vpop.f32.mrf.mxu0
  %v6255 = vadd.f32 0.0, %v6254
  %6256 = vmatmul.f32.gmra.mxu0 %v4492
  %v6257 = vpop.f32.mrf.mxu0
  %v6258 = vadd.f32 0.0, %v6257
  %6259 = vmatmul.f32.gmra.mxu0 %v4495
  %v6260 = vpop.f32.mrf.mxu0
  %v6261 = vadd.f32 0.0, %v6260
  %6262 = vmatmul.f32.gmra.mxu0 %v4498
  %v6263 = vpop.f32.mrf.mxu0
  %v6264 = vadd.f32 0.0, %v6263
  %6265 = vmatmul.f32.gmra.mxu0 %v4501
  %v6266 = vpop.f32.mrf.mxu0
  %v6267 = vadd.f32 0.0, %v6266
  %6268 = vmatmul.f32.gmra.mxu0 %v4504
  %v6269 = vpop.f32.mrf.mxu0
  %v6270 = vadd.f32 0.0, %v6269
  %6271 = vmatmul.f32.gmra.mxu0 %v4507
  %v6272 = vpop.f32.mrf.mxu0
  %v6273 = vadd.f32 0.0, %v6272
  %6274 = vmatmul.f32.gmra.mxu0 %v4510
  %v6275 = vpop.f32.mrf.mxu0
  %v6276 = vadd.f32 0.0, %v6275
  %6277 = vmatmul.f32.gmra.mxu0 %v4513
  %v6278 = vpop.f32.mrf.mxu0
  %v6279 = vadd.f32 0.0, %v6278
  %6280 = vmatmul.f32.gmra.mxu0 %v4516
  %v6281 = vpop.f32.mrf.mxu0
  %v6282 = vadd.f32 0.0, %v6281
  %6283 = vmatmul.f32.gmra.mxu0 %v4519
  %v6284 = vpop.f32.mrf.mxu0
  %v6285 = vadd.f32 0.0, %v6284
  %6286 = vmatmul.f32.gmra.mxu0 %v4522
  %v6287 = vpop.f32.mrf.mxu0
  %v6288 = vadd.f32 0.0, %v6287
  %6289 = vmatmul.f32.gmra.mxu0 %v4525
  %v6290 = vpop.f32.mrf.mxu0
  %v6291 = vadd.f32 0.0, %v6290
  %6292 = vmatmul.f32.gmra.mxu0 %v4528
  %v6293 = vpop.f32.mrf.mxu0
  %v6294 = vadd.f32 0.0, %v6293
  %6295 = vmatmul.f32.gmra.mxu0 %v4531
  %v6296 = vpop.f32.mrf.mxu0
  %v6297 = vadd.f32 0.0, %v6296
  %6298 = vmatmul.f32.gmra.mxu0 %v4534
  %v6299 = vpop.f32.mrf.mxu0
  %v6300 = vadd.f32 0.0, %v6299
  %6301 = vmatmul.f32.gmra.mxu0 %v4537
  %v6302 = vpop.f32.mrf.mxu0
  %v6303 = vadd.f32 0.0, %v6302
  %6304 = vmatmul.f32.gmra.mxu0 %v4540
  %v6305 = vpop.f32.mrf.mxu0
  %v6306 = vadd.f32 0.0, %v6305
  %6307 = vmatmul.f32.gmra.mxu0 %v4543
  %v6308 = vpop.f32.mrf.mxu0
  %v6309 = vadd.f32 0.0, %v6308
  %6310 = vmatmul.f32.gmra.mxu0 %v4546
  %v6311 = vpop.f32.mrf.mxu0
  %v6312 = vadd.f32 0.0, %v6311
  %6313 = vmatmul.f32.gmra.mxu0 %v4549
  %v6314 = vpop.f32.mrf.mxu0
  %v6315 = vadd.f32 0.0, %v6314
  %6316 = vmatmul.f32.gmra.mxu0 %v4552
  %v6317 = vpop.f32.mrf.mxu0
  %v6318 = vadd.f32 0.0, %v6317
  %6319 = vmatmul.f32.gmra.mxu0 %v4555
  %v6320 = vpop.f32.mrf.mxu0
  %v6321 = vadd.f32 0.0, %v6320
  %6322 = vmatmul.f32.gmra.mxu0 %v4558
  %v6323 = vpop.f32.mrf.mxu0
  %v6324 = vadd.f32 0.0, %v6323
  %6325 = vmatmul.f32.gmra.mxu0 %v4561
  %v6326 = vpop.f32.mrf.mxu0
  %v6327 = vadd.f32 0.0, %v6326
  %6328 = vmatmul.f32.gmra.mxu0 %v4564
  %v6329 = vpop.f32.mrf.mxu0
  %v6330 = vadd.f32 0.0, %v6329
  %6331 = vmatmul.f32.gmra.mxu0 %v4567
  %v6332 = vpop.f32.mrf.mxu0
  %v6333 = vadd.f32 0.0, %v6332
  %6334 = vmatmul.f32.gmra.mxu0 %v4570
  %v6335 = vpop.f32.mrf.mxu0
  %v6336 = vadd.f32 0.0, %v6335
  %6337 = vmatmul.f32.gmra.mxu0 %v5263
  %v6338 = vpop.f32.mrf.mxu0
  %v6339 = vadd.f32 0.0, %v6338
  %6340 = vmatmul.f32.gmra.mxu0 %v5266
  %v6341 = vpop.f32.mrf.mxu0
  %v6342 = vadd.f32 0.0, %v6341
  %6343 = vmatmul.f32.gmra.mxu0 %v6133
  %v6344 = vpop.f32.mrf.mxu0
  %v6345 = vadd.f32 0.0, %v6344
  %6346 = vmatmul.f32.gmra.mxu0 %v6136
  %v6347 = vpop.f32.mrf.mxu0
  %v6348 = vadd.f32 0.0, %v6347
  %6349 = vdwg.mxu0
  %v6350 = vadd.f32 %v6060, %v6159
  %v6351 = vadd.f32 %v6061, %v6162
  %v6352 = vadd.f32 %v6062, %v6165
  %v6353 = vadd.f32 %v6063, %v6168
  %v6354 = vadd.f32 %v6064, %v6171
  %v6355 = vadd.f32 %v6065, %v6174
  %v6356 = vadd.f32 %v6066, %v6177
  %v6357 = vadd.f32 %v6067, %v6180
  %v6358 = vadd.f32 %v6068, %v6183
  %v6359 = vadd.f32 %v6069, %v6186
  %v6360 = vadd.f32 %v6070, %v6189
  %v6361 = vadd.f32 %v6071, %v6192
  %v6362 = vadd.f32 %v6072, %v6195
  %v6363 = vadd.f32 %v6073, %v6198
  %v6364 = vadd.f32 %v6074, %v6201
  %v6365 = vadd.f32 %v6075, %v6204
  %v6366 = vadd.f32 %v6076, %v6207
  %v6367 = vadd.f32 %v6077, %v6210
  %v6368 = vadd.f32 %v6078, %v6213
  %v6369 = vadd.f32 %v6079, %v6216
  %v6370 = vadd.f32 %v6080, %v6219
  %v6371 = vadd.f32 %v6081, %v6222
  %v6372 = vadd.f32 %v6082, %v6225
  %v6373 = vadd.f32 %v6083, %v6228
  %v6374 = vadd.f32 %v6084, %v6231
  %v6375 = vadd.f32 %v6085, %v6234
  %v6376 = vadd.f32 %v6086, %v6237
  %v6377 = vadd.f32 %v6087, %v6240
  %v6378 = vadd.f32 %v6088, %v6243
  %v6379 = vadd.f32 %v6089, %v6246
  %v6380 = vadd.f32 %v6090, %v6249
  %v6381 = vadd.f32 %v6091, %v6252
  %v6382 = vadd.f32 %v6092, %v6255
  %v6383 = vadd.f32 %v6093, %v6258
  %v6384 = vadd.f32 %v6094, %v6261
  %v6385 = vadd.f32 %v6095, %v6264
  %v6386 = vadd.f32 %v6096, %v6267
  %v6387 = vadd.f32 %v6097, %v6270
  %v6388 = vadd.f32 %v6098, %v6273
  %v6389 = vadd.f32 %v6099, %v6276
  %v6390 = vadd.f32 %v6100, %v6279
  %v6391 = vadd.f32 %v6101, %v6282
  %v6392 = vadd.f32 %v6102, %v6285
  %v6393 = vadd.f32 %v6103, %v6288
  %v6394 = vadd.f32 %v6104, %v6291
  %v6395 = vadd.f32 %v6105, %v6294
  %v6396 = vadd.f32 %v6106, %v6297
  %v6397 = vadd.f32 %v6107, %v6300
  %v6398 = vadd.f32 %v6108, %v6303
  %v6399 = vadd.f32 %v6109, %v6306
  %v6400 = vadd.f32 %v6110, %v6309
  %v6401 = vadd.f32 %v6111, %v6312
  %v6402 = vadd.f32 %v6112, %v6315
  %v6403 = vadd.f32 %v6113, %v6318
  %v6404 = vadd.f32 %v6114, %v6321
  %v6405 = vadd.f32 %v6115, %v6324
  %v6406 = vadd.f32 %v6116, %v6327
  %v6407 = vadd.f32 %v6117, %v6330
  %v6408 = vadd.f32 %v6118, %v6333
  %v6409 = vadd.f32 %v6119, %v6336
  %v6410 = vadd.f32 %v6120, %v6339
  %v6411 = vadd.f32 %v6121, %v6342
  %v6412 = vadd.f32 %v6122, %v6345
  %v6413 = vadd.f32 %v6123, %v6348
  %s6414 = scalar_lea.vmem %s3, 28
  %v6415 = vld [vmem:[%s6414] sm:$0xf]
  %v6417 = vsel %vm20, %v3863, 0
  %v6420 = vsel %vm20, %v3864, 0
  %v6423 = vsel %vm20, %v3899, 0
  %v6426 = vsel %vm20, %v3900, 0
  %v6429 = vsel %vm733, %v6415, 0
  %6431 = vmatpush.msra.mxu0 0.0
  %6432 = vmatpush.msra.mxu0 0.0
  %6433 = vmatpush.msra.mxu0 0.0
  %6434 = vmatpush.msra.mxu0 0.0
  %6435 = vmatpush.msra.mxu0 0.0
  %6436 = vmatpush.msra.mxu0 0.0
  %6437 = vmatpush.msra.mxu0 0.0
  %6438 = vmatpush.msra.mxu0 0.0
  %6439 = vmatpush.msra.mxu0 0.0
  %6440 = vmatpush.msra.mxu0 0.0
  %6441 = vmatpush.msra.mxu0 0.0
  %6442 = vmatpush.msra.mxu0 0.0
  %6443 = vmatpush.msra.mxu0 0.0
  %6444 = vmatpush.msra.mxu0 0.0
  %6445 = vmatpush.msra.mxu0 0.0
  %6446 = vmatpush.msra.mxu0 %v6429
  %6447 = vmatmul.f32.gmra.mxu0 %v3989
  %v6448 = vpop.f32.mrf.mxu0
  %v6449 = vadd.f32 0.0, %v6448
  %6450 = vmatmul.f32.gmra.mxu0 %v3992
  %v6451 = vpop.f32.mrf.mxu0
  %v6452 = vadd.f32 0.0, %v6451
  %6453 = vmatmul.f32.gmra.mxu0 %v3995
  %v6454 = vpop.f32.mrf.mxu0
  %v6455 = vadd.f32 0.0, %v6454
  %6456 = vmatmul.f32.gmra.mxu0 %v3998
  %v6457 = vpop.f32.mrf.mxu0
  %v6458 = vadd.f32 0.0, %v6457
  %6459 = vmatmul.f32.gmra.mxu0 %v4001
  %v6460 = vpop.f32.mrf.mxu0
  %v6461 = vadd.f32 0.0, %v6460
  %6462 = vmatmul.f32.gmra.mxu0 %v4004
  %v6463 = vpop.f32.mrf.mxu0
  %v6464 = vadd.f32 0.0, %v6463
  %6465 = vmatmul.f32.gmra.mxu0 %v4007
  %v6466 = vpop.f32.mrf.mxu0
  %v6467 = vadd.f32 0.0, %v6466
  %6468 = vmatmul.f32.gmra.mxu0 %v4010
  %v6469 = vpop.f32.mrf.mxu0
  %v6470 = vadd.f32 0.0, %v6469
  %6471 = vmatmul.f32.gmra.mxu0 %v4013
  %v6472 = vpop.f32.mrf.mxu0
  %v6473 = vadd.f32 0.0, %v6472
  %6474 = vmatmul.f32.gmra.mxu0 %v4016
  %v6475 = vpop.f32.mrf.mxu0
  %v6476 = vadd.f32 0.0, %v6475
  %6477 = vmatmul.f32.gmra.mxu0 %v4019
  %v6478 = vpop.f32.mrf.mxu0
  %v6479 = vadd.f32 0.0, %v6478
  %6480 = vmatmul.f32.gmra.mxu0 %v4022
  %v6481 = vpop.f32.mrf.mxu0
  %v6482 = vadd.f32 0.0, %v6481
  %6483 = vmatmul.f32.gmra.mxu0 %v4025
  %v6484 = vpop.f32.mrf.mxu0
  %v6485 = vadd.f32 0.0, %v6484
  %6486 = vmatmul.f32.gmra.mxu0 %v4028
  %v6487 = vpop.f32.mrf.mxu0
  %v6488 = vadd.f32 0.0, %v6487
  %6489 = vmatmul.f32.gmra.mxu0 %v4031
  %v6490 = vpop.f32.mrf.mxu0
  %v6491 = vadd.f32 0.0, %v6490
  %6492 = vmatmul.f32.gmra.mxu0 %v4034
  %v6493 = vpop.f32.mrf.mxu0
  %v6494 = vadd.f32 0.0, %v6493
  %6495 = vmatmul.f32.gmra.mxu0 %v4037
  %v6496 = vpop.f32.mrf.mxu0
  %v6497 = vadd.f32 0.0, %v6496
  %6498 = vmatmul.f32.gmra.mxu0 %v4040
  %v6499 = vpop.f32.mrf.mxu0
  %v6500 = vadd.f32 0.0, %v6499
  %6501 = vmatmul.f32.gmra.mxu0 %v4043
  %v6502 = vpop.f32.mrf.mxu0
  %v6503 = vadd.f32 0.0, %v6502
  %6504 = vmatmul.f32.gmra.mxu0 %v4046
  %v6505 = vpop.f32.mrf.mxu0
  %v6506 = vadd.f32 0.0, %v6505
  %6507 = vmatmul.f32.gmra.mxu0 %v4049
  %v6508 = vpop.f32.mrf.mxu0
  %v6509 = vadd.f32 0.0, %v6508
  %6510 = vmatmul.f32.gmra.mxu0 %v4052
  %v6511 = vpop.f32.mrf.mxu0
  %v6512 = vadd.f32 0.0, %v6511
  %6513 = vmatmul.f32.gmra.mxu0 %v4055
  %v6514 = vpop.f32.mrf.mxu0
  %v6515 = vadd.f32 0.0, %v6514
  %6516 = vmatmul.f32.gmra.mxu0 %v4058
  %v6517 = vpop.f32.mrf.mxu0
  %v6518 = vadd.f32 0.0, %v6517
  %6519 = vmatmul.f32.gmra.mxu0 %v4061
  %v6520 = vpop.f32.mrf.mxu0
  %v6521 = vadd.f32 0.0, %v6520
  %6522 = vmatmul.f32.gmra.mxu0 %v4064
  %v6523 = vpop.f32.mrf.mxu0
  %v6524 = vadd.f32 0.0, %v6523
  %6525 = vmatmul.f32.gmra.mxu0 %v4067
  %v6526 = vpop.f32.mrf.mxu0
  %v6527 = vadd.f32 0.0, %v6526
  %6528 = vmatmul.f32.gmra.mxu0 %v4070
  %v6529 = vpop.f32.mrf.mxu0
  %v6530 = vadd.f32 0.0, %v6529
  %6531 = vmatmul.f32.gmra.mxu0 %v5547
  %v6532 = vpop.f32.mrf.mxu0
  %v6533 = vadd.f32 0.0, %v6532
  %6534 = vmatmul.f32.gmra.mxu0 %v5550
  %v6535 = vpop.f32.mrf.mxu0
  %v6536 = vadd.f32 0.0, %v6535
  %6537 = vmatmul.f32.gmra.mxu0 %v6417
  %v6538 = vpop.f32.mrf.mxu0
  %v6539 = vadd.f32 0.0, %v6538
  %6540 = vmatmul.f32.gmra.mxu0 %v6420
  %v6541 = vpop.f32.mrf.mxu0
  %v6542 = vadd.f32 0.0, %v6541
  %6543 = vmatmul.f32.gmra.mxu0 %v4085
  %v6544 = vpop.f32.mrf.mxu0
  %v6545 = vadd.f32 0.0, %v6544
  %6546 = vmatmul.f32.gmra.mxu0 %v4088
  %v6547 = vpop.f32.mrf.mxu0
  %v6548 = vadd.f32 0.0, %v6547
  %6549 = vmatmul.f32.gmra.mxu0 %v4091
  %v6550 = vpop.f32.mrf.mxu0
  %v6551 = vadd.f32 0.0, %v6550
  %6552 = vmatmul.f32.gmra.mxu0 %v4094
  %v6553 = vpop.f32.mrf.mxu0
  %v6554 = vadd.f32 0.0, %v6553
  %6555 = vmatmul.f32.gmra.mxu0 %v4097
  %v6556 = vpop.f32.mrf.mxu0
  %v6557 = vadd.f32 0.0, %v6556
  %6558 = vmatmul.f32.gmra.mxu0 %v4100
  %v6559 = vpop.f32.mrf.mxu0
  %v6560 = vadd.f32 0.0, %v6559
  %6561 = vmatmul.f32.gmra.mxu0 %v4103
  %v6562 = vpop.f32.mrf.mxu0
  %v6563 = vadd.f32 0.0, %v6562
  %6564 = vmatmul.f32.gmra.mxu0 %v4106
  %v6565 = vpop.f32.mrf.mxu0
  %v6566 = vadd.f32 0.0, %v6565
  %6567 = vmatmul.f32.gmra.mxu0 %v4109
  %v6568 = vpop.f32.mrf.mxu0
  %v6569 = vadd.f32 0.0, %v6568
  %6570 = vmatmul.f32.gmra.mxu0 %v4112
  %v6571 = vpop.f32.mrf.mxu0
  %v6572 = vadd.f32 0.0, %v6571
  %6573 = vmatmul.f32.gmra.mxu0 %v4115
  %v6574 = vpop.f32.mrf.mxu0
  %v6575 = vadd.f32 0.0, %v6574
  %6576 = vmatmul.f32.gmra.mxu0 %v4118
  %v6577 = vpop.f32.mrf.mxu0
  %v6578 = vadd.f32 0.0, %v6577
  %6579 = vmatmul.f32.gmra.mxu0 %v4121
  %v6580 = vpop.f32.mrf.mxu0
  %v6581 = vadd.f32 0.0, %v6580
  %6582 = vmatmul.f32.gmra.mxu0 %v4124
  %v6583 = vpop.f32.mrf.mxu0
  %v6584 = vadd.f32 0.0, %v6583
  %6585 = vmatmul.f32.gmra.mxu0 %v4127
  %v6586 = vpop.f32.mrf.mxu0
  %v6587 = vadd.f32 0.0, %v6586
  %6588 = vmatmul.f32.gmra.mxu0 %v4130
  %v6589 = vpop.f32.mrf.mxu0
  %v6590 = vadd.f32 0.0, %v6589
  %6591 = vmatmul.f32.gmra.mxu0 %v4133
  %v6592 = vpop.f32.mrf.mxu0
  %v6593 = vadd.f32 0.0, %v6592
  %6594 = vmatmul.f32.gmra.mxu0 %v4136
  %v6595 = vpop.f32.mrf.mxu0
  %v6596 = vadd.f32 0.0, %v6595
  %6597 = vmatmul.f32.gmra.mxu0 %v4139
  %v6598 = vpop.f32.mrf.mxu0
  %v6599 = vadd.f32 0.0, %v6598
  %6600 = vmatmul.f32.gmra.mxu0 %v4142
  %v6601 = vpop.f32.mrf.mxu0
  %v6602 = vadd.f32 0.0, %v6601
  %6603 = vmatmul.f32.gmra.mxu0 %v4145
  %v6604 = vpop.f32.mrf.mxu0
  %v6605 = vadd.f32 0.0, %v6604
  %6606 = vmatmul.f32.gmra.mxu0 %v4148
  %v6607 = vpop.f32.mrf.mxu0
  %v6608 = vadd.f32 0.0, %v6607
  %6609 = vmatmul.f32.gmra.mxu0 %v4151
  %v6610 = vpop.f32.mrf.mxu0
  %v6611 = vadd.f32 0.0, %v6610
  %6612 = vmatmul.f32.gmra.mxu0 %v4154
  %v6613 = vpop.f32.mrf.mxu0
  %v6614 = vadd.f32 0.0, %v6613
  %6615 = vmatmul.f32.gmra.mxu0 %v4157
  %v6616 = vpop.f32.mrf.mxu0
  %v6617 = vadd.f32 0.0, %v6616
  %6618 = vmatmul.f32.gmra.mxu0 %v4160
  %v6619 = vpop.f32.mrf.mxu0
  %v6620 = vadd.f32 0.0, %v6619
  %6621 = vmatmul.f32.gmra.mxu0 %v4163
  %v6622 = vpop.f32.mrf.mxu0
  %v6623 = vadd.f32 0.0, %v6622
  %6624 = vmatmul.f32.gmra.mxu0 %v4166
  %v6625 = vpop.f32.mrf.mxu0
  %v6626 = vadd.f32 0.0, %v6625
  %6627 = vmatmul.f32.gmra.mxu0 %v5553
  %v6628 = vpop.f32.mrf.mxu0
  %v6629 = vadd.f32 0.0, %v6628
  %6630 = vmatmul.f32.gmra.mxu0 %v5556
  %v6631 = vpop.f32.mrf.mxu0
  %v6632 = vadd.f32 0.0, %v6631
  %6633 = vmatmul.f32.gmra.mxu0 %v6423
  %v6634 = vpop.f32.mrf.mxu0
  %v6635 = vadd.f32 0.0, %v6634
  %6636 = vmatmul.f32.gmra.mxu0 %v6426
  %v6637 = vpop.f32.mrf.mxu0
  %v6638 = vadd.f32 0.0, %v6637
  %6639 = vdwg.mxu0
  %v6640 = vadd.f32 %v6350, %v6449
  %v6641 = vadd.f32 %v6351, %v6452
  %v6642 = vadd.f32 %v6352, %v6455
  %v6643 = vadd.f32 %v6353, %v6458
  %v6644 = vadd.f32 %v6354, %v6461
  %v6645 = vadd.f32 %v6355, %v6464
  %v6646 = vadd.f32 %v6356, %v6467
  %v6647 = vadd.f32 %v6357, %v6470
  %v6648 = vadd.f32 %v6358, %v6473
  %v6649 = vadd.f32 %v6359, %v6476
  %v6650 = vadd.f32 %v6360, %v6479
  %v6651 = vadd.f32 %v6361, %v6482
  %v6652 = vadd.f32 %v6362, %v6485
  %v6653 = vadd.f32 %v6363, %v6488
  %v6654 = vadd.f32 %v6364, %v6491
  %v6655 = vadd.f32 %v6365, %v6494
  %v6656 = vadd.f32 %v6366, %v6497
  %v6657 = vadd.f32 %v6367, %v6500
  %v6658 = vadd.f32 %v6368, %v6503
  %v6659 = vadd.f32 %v6369, %v6506
  %v6660 = vadd.f32 %v6370, %v6509
  %v6661 = vadd.f32 %v6371, %v6512
  %v6662 = vadd.f32 %v6372, %v6515
  %v6663 = vadd.f32 %v6373, %v6518
  %v6664 = vadd.f32 %v6374, %v6521
  %v6665 = vadd.f32 %v6375, %v6524
  %v6666 = vadd.f32 %v6376, %v6527
  %v6667 = vadd.f32 %v6377, %v6530
  %v6668 = vadd.f32 %v6378, %v6533
  %v6669 = vadd.f32 %v6379, %v6536
  %v6670 = vadd.f32 %v6380, %v6539
  %v6671 = vadd.f32 %v6381, %v6542
  %v6672 = vadd.f32 %v6382, %v6545
  %v6673 = vadd.f32 %v6383, %v6548
  %v6674 = vadd.f32 %v6384, %v6551
  %v6675 = vadd.f32 %v6385, %v6554
  %v6676 = vadd.f32 %v6386, %v6557
  %v6677 = vadd.f32 %v6387, %v6560
  %v6678 = vadd.f32 %v6388, %v6563
  %v6679 = vadd.f32 %v6389, %v6566
  %v6680 = vadd.f32 %v6390, %v6569
  %v6681 = vadd.f32 %v6391, %v6572
  %v6682 = vadd.f32 %v6392, %v6575
  %v6683 = vadd.f32 %v6393, %v6578
  %v6684 = vadd.f32 %v6394, %v6581
  %v6685 = vadd.f32 %v6395, %v6584
  %v6686 = vadd.f32 %v6396, %v6587
  %v6687 = vadd.f32 %v6397, %v6590
  %v6688 = vadd.f32 %v6398, %v6593
  %v6689 = vadd.f32 %v6399, %v6596
  %v6690 = vadd.f32 %v6400, %v6599
  %v6691 = vadd.f32 %v6401, %v6602
  %v6692 = vadd.f32 %v6402, %v6605
  %v6693 = vadd.f32 %v6403, %v6608
  %v6694 = vadd.f32 %v6404, %v6611
  %v6695 = vadd.f32 %v6405, %v6614
  %v6696 = vadd.f32 %v6406, %v6617
  %v6697 = vadd.f32 %v6407, %v6620
  %v6698 = vadd.f32 %v6408, %v6623
  %v6699 = vadd.f32 %v6409, %v6626
  %v6700 = vadd.f32 %v6410, %v6629
  %v6701 = vadd.f32 %v6411, %v6632
  %v6702 = vadd.f32 %v6412, %v6635
  %v6703 = vadd.f32 %v6413, %v6638
  %s6704 = scalar_lea.vmem %s3, 32
  %v6705 = vld [vmem:[%s6704] sm:$0xf]
  %v6707 = vsel %vm20, %v3935, 0
  %v6710 = vsel %vm20, %v3936, 0
  %v6713 = vsel %vm20, %v3971, 0
  %v6716 = vsel %vm20, %v3972, 0
  %v6719 = vsel %vm733, %v6705, 0
  %6721 = vmatpush.msra.mxu0 0.0
  %6722 = vmatpush.msra.mxu0 0.0
  %6723 = vmatpush.msra.mxu0 0.0
  %6724 = vmatpush.msra.mxu0 0.0
  %6725 = vmatpush.msra.mxu0 0.0
  %6726 = vmatpush.msra.mxu0 0.0
  %6727 = vmatpush.msra.mxu0 0.0
  %6728 = vmatpush.msra.mxu0 0.0
  %6729 = vmatpush.msra.mxu0 0.0
  %6730 = vmatpush.msra.mxu0 0.0
  %6731 = vmatpush.msra.mxu0 0.0
  %6732 = vmatpush.msra.mxu0 0.0
  %6733 = vmatpush.msra.mxu0 0.0
  %6734 = vmatpush.msra.mxu0 0.0
  %6735 = vmatpush.msra.mxu0 0.0
  %6736 = vmatpush.msra.mxu0 %v6719
  %6737 = vmatmul.f32.gmra.mxu0 %v4799
  %v6738 = vpop.f32.mrf.mxu0
  %v6739 = vadd.f32 0.0, %v6738
  %6740 = vmatmul.f32.gmra.mxu0 %v4802
  %v6741 = vpop.f32.mrf.mxu0
  %v6742 = vadd.f32 0.0, %v6741
  %6743 = vmatmul.f32.gmra.mxu0 %v4805
  %v6744 = vpop.f32.mrf.mxu0
  %v6745 = vadd.f32 0.0, %v6744
  %6746 = vmatmul.f32.gmra.mxu0 %v4808
  %v6747 = vpop.f32.mrf.mxu0
  %v6748 = vadd.f32 0.0, %v6747
  %6749 = vmatmul.f32.gmra.mxu0 %v4811
  %v6750 = vpop.f32.mrf.mxu0
  %v6751 = vadd.f32 0.0, %v6750
  %6752 = vmatmul.f32.gmra.mxu0 %v4814
  %v6753 = vpop.f32.mrf.mxu0
  %v6754 = vadd.f32 0.0, %v6753
  %6755 = vmatmul.f32.gmra.mxu0 %v4817
  %v6756 = vpop.f32.mrf.mxu0
  %v6757 = vadd.f32 0.0, %v6756
  %6758 = vmatmul.f32.gmra.mxu0 %v4820
  %v6759 = vpop.f32.mrf.mxu0
  %v6760 = vadd.f32 0.0, %v6759
  %6761 = vmatmul.f32.gmra.mxu0 %v4823
  %v6762 = vpop.f32.mrf.mxu0
  %v6763 = vadd.f32 0.0, %v6762
  %6764 = vmatmul.f32.gmra.mxu0 %v4826
  %v6765 = vpop.f32.mrf.mxu0
  %v6766 = vadd.f32 0.0, %v6765
  %6767 = vmatmul.f32.gmra.mxu0 %v4829
  %v6768 = vpop.f32.mrf.mxu0
  %v6769 = vadd.f32 0.0, %v6768
  %6770 = vmatmul.f32.gmra.mxu0 %v4832
  %v6771 = vpop.f32.mrf.mxu0
  %v6772 = vadd.f32 0.0, %v6771
  %6773 = vmatmul.f32.gmra.mxu0 %v4835
  %v6774 = vpop.f32.mrf.mxu0
  %v6775 = vadd.f32 0.0, %v6774
  %6776 = vmatmul.f32.gmra.mxu0 %v4838
  %v6777 = vpop.f32.mrf.mxu0
  %v6778 = vadd.f32 0.0, %v6777
  %6779 = vmatmul.f32.gmra.mxu0 %v4841
  %v6780 = vpop.f32.mrf.mxu0
  %v6781 = vadd.f32 0.0, %v6780
  %6782 = vmatmul.f32.gmra.mxu0 %v4844
  %v6783 = vpop.f32.mrf.mxu0
  %v6784 = vadd.f32 0.0, %v6783
  %6785 = vmatmul.f32.gmra.mxu0 %v4847
  %v6786 = vpop.f32.mrf.mxu0
  %v6787 = vadd.f32 0.0, %v6786
  %6788 = vmatmul.f32.gmra.mxu0 %v4850
  %v6789 = vpop.f32.mrf.mxu0
  %v6790 = vadd.f32 0.0, %v6789
  %6791 = vmatmul.f32.gmra.mxu0 %v4853
  %v6792 = vpop.f32.mrf.mxu0
  %v6793 = vadd.f32 0.0, %v6792
  %6794 = vmatmul.f32.gmra.mxu0 %v4856
  %v6795 = vpop.f32.mrf.mxu0
  %v6796 = vadd.f32 0.0, %v6795
  %6797 = vmatmul.f32.gmra.mxu0 %v4859
  %v6798 = vpop.f32.mrf.mxu0
  %v6799 = vadd.f32 0.0, %v6798
  %6800 = vmatmul.f32.gmra.mxu0 %v4862
  %v6801 = vpop.f32.mrf.mxu0
  %v6802 = vadd.f32 0.0, %v6801
  %6803 = vmatmul.f32.gmra.mxu0 %v4865
  %v6804 = vpop.f32.mrf.mxu0
  %v6805 = vadd.f32 0.0, %v6804
  %6806 = vmatmul.f32.gmra.mxu0 %v4868
  %v6807 = vpop.f32.mrf.mxu0
  %v6808 = vadd.f32 0.0, %v6807
  %6809 = vmatmul.f32.gmra.mxu0 %v4871
  %v6810 = vpop.f32.mrf.mxu0
  %v6811 = vadd.f32 0.0, %v6810
  %6812 = vmatmul.f32.gmra.mxu0 %v4874
  %v6813 = vpop.f32.mrf.mxu0
  %v6814 = vadd.f32 0.0, %v6813
  %6815 = vmatmul.f32.gmra.mxu0 %v4877
  %v6816 = vpop.f32.mrf.mxu0
  %v6817 = vadd.f32 0.0, %v6816
  %6818 = vmatmul.f32.gmra.mxu0 %v4880
  %v6819 = vpop.f32.mrf.mxu0
  %v6820 = vadd.f32 0.0, %v6819
  %6821 = vmatmul.f32.gmra.mxu0 %v5837
  %v6822 = vpop.f32.mrf.mxu0
  %v6823 = vadd.f32 0.0, %v6822
  %6824 = vmatmul.f32.gmra.mxu0 %v5840
  %v6825 = vpop.f32.mrf.mxu0
  %v6826 = vadd.f32 0.0, %v6825
  %6827 = vmatmul.f32.gmra.mxu0 %v6707
  %v6828 = vpop.f32.mrf.mxu0
  %v6829 = vadd.f32 0.0, %v6828
  %6830 = vmatmul.f32.gmra.mxu0 %v6710
  %v6831 = vpop.f32.mrf.mxu0
  %v6832 = vadd.f32 0.0, %v6831
  %6833 = vmatmul.f32.gmra.mxu0 %v4895
  %v6834 = vpop.f32.mrf.mxu0
  %v6835 = vadd.f32 0.0, %v6834
  %6836 = vmatmul.f32.gmra.mxu0 %v4898
  %v6837 = vpop.f32.mrf.mxu0
  %v6838 = vadd.f32 0.0, %v6837
  %6839 = vmatmul.f32.gmra.mxu0 %v4901
  %v6840 = vpop.f32.mrf.mxu0
  %v6841 = vadd.f32 0.0, %v6840
  %6842 = vmatmul.f32.gmra.mxu0 %v4904
  %v6843 = vpop.f32.mrf.mxu0
  %v6844 = vadd.f32 0.0, %v6843
  %6845 = vmatmul.f32.gmra.mxu0 %v4907
  %v6846 = vpop.f32.mrf.mxu0
  %v6847 = vadd.f32 0.0, %v6846
  %6848 = vmatmul.f32.gmra.mxu0 %v4910
  %v6849 = vpop.f32.mrf.mxu0
  %v6850 = vadd.f32 0.0, %v6849
  %6851 = vmatmul.f32.gmra.mxu0 %v4913
  %v6852 = vpop.f32.mrf.mxu0
  %v6853 = vadd.f32 0.0, %v6852
  %6854 = vmatmul.f32.gmra.mxu0 %v4916
  %v6855 = vpop.f32.mrf.mxu0
  %v6856 = vadd.f32 0.0, %v6855
  %6857 = vmatmul.f32.gmra.mxu0 %v4919
  %v6858 = vpop.f32.mrf.mxu0
  %v6859 = vadd.f32 0.0, %v6858
  %6860 = vmatmul.f32.gmra.mxu0 %v4922
  %v6861 = vpop.f32.mrf.mxu0
  %v6862 = vadd.f32 0.0, %v6861
  %6863 = vmatmul.f32.gmra.mxu0 %v4925
  %v6864 = vpop.f32.mrf.mxu0
  %v6865 = vadd.f32 0.0, %v6864
  %6866 = vmatmul.f32.gmra.mxu0 %v4928
  %v6867 = vpop.f32.mrf.mxu0
  %v6868 = vadd.f32 0.0, %v6867
  %6869 = vmatmul.f32.gmra.mxu0 %v4931
  %v6870 = vpop.f32.mrf.mxu0
  %v6871 = vadd.f32 0.0, %v6870
  %6872 = vmatmul.f32.gmra.mxu0 %v4934
  %v6873 = vpop.f32.mrf.mxu0
  %v6874 = vadd.f32 0.0, %v6873
  %6875 = vmatmul.f32.gmra.mxu0 %v4937
  %v6876 = vpop.f32.mrf.mxu0
  %v6877 = vadd.f32 0.0, %v6876
  %6878 = vmatmul.f32.gmra.mxu0 %v4940
  %v6879 = vpop.f32.mrf.mxu0
  %v6880 = vadd.f32 0.0, %v6879
  %6881 = vmatmul.f32.gmra.mxu0 %v4943
  %v6882 = vpop.f32.mrf.mxu0
  %v6883 = vadd.f32 0.0, %v6882
  %6884 = vmatmul.f32.gmra.mxu0 %v4946
  %v6885 = vpop.f32.mrf.mxu0
  %v6886 = vadd.f32 0.0, %v6885
  %6887 = vmatmul.f32.gmra.mxu0 %v4949
  %v6888 = vpop.f32.mrf.mxu0
  %v6889 = vadd.f32 0.0, %v6888
  %6890 = vmatmul.f32.gmra.mxu0 %v4952
  %v6891 = vpop.f32.mrf.mxu0
  %v6892 = vadd.f32 0.0, %v6891
  %6893 = vmatmul.f32.gmra.mxu0 %v4955
  %v6894 = vpop.f32.mrf.mxu0
  %v6895 = vadd.f32 0.0, %v6894
  %6896 = vmatmul.f32.gmra.mxu0 %v4958
  %v6897 = vpop.f32.mrf.mxu0
  %v6898 = vadd.f32 0.0, %v6897
  %6899 = vmatmul.f32.gmra.mxu0 %v4961
  %v6900 = vpop.f32.mrf.mxu0
  %v6901 = vadd.f32 0.0, %v6900
  %6902 = vmatmul.f32.gmra.mxu0 %v4964
  %v6903 = vpop.f32.mrf.mxu0
  %v6904 = vadd.f32 0.0, %v6903
  %6905 = vmatmul.f32.gmra.mxu0 %v4967
  %v6906 = vpop.f32.mrf.mxu0
  %v6907 = vadd.f32 0.0, %v6906
  %6908 = vmatmul.f32.gmra.mxu0 %v4970
  %v6909 = vpop.f32.mrf.mxu0
  %v6910 = vadd.f32 0.0, %v6909
  %6911 = vmatmul.f32.gmra.mxu0 %v4973
  %v6912 = vpop.f32.mrf.mxu0
  %v6913 = vadd.f32 0.0, %v6912
  %6914 = vmatmul.f32.gmra.mxu0 %v4976
  %v6915 = vpop.f32.mrf.mxu0
  %v6916 = vadd.f32 0.0, %v6915
  %6917 = vmatmul.f32.gmra.mxu0 %v5843
  %v6918 = vpop.f32.mrf.mxu0
  %v6919 = vadd.f32 0.0, %v6918
  %6920 = vmatmul.f32.gmra.mxu0 %v5846
  %v6921 = vpop.f32.mrf.mxu0
  %v6922 = vadd.f32 0.0, %v6921
  %6923 = vmatmul.f32.gmra.mxu0 %v6713
  %v6924 = vpop.f32.mrf.mxu0
  %v6925 = vadd.f32 0.0, %v6924
  %6926 = vmatmul.f32.gmra.mxu0 %v6716
  %v6927 = vpop.f32.mrf.mxu0
  %v6928 = vadd.f32 0.0, %v6927
  %6929 = vdwg.mxu0
  %v6930 = vadd.f32 %v6640, %v6739
  %v6931 = vadd.f32 %v6641, %v6742
  %v6932 = vadd.f32 %v6642, %v6745
  %v6933 = vadd.f32 %v6643, %v6748
  %v6934 = vadd.f32 %v6644, %v6751
  %v6935 = vadd.f32 %v6645, %v6754
  %v6936 = vadd.f32 %v6646, %v6757
  %v6937 = vadd.f32 %v6647, %v6760
  %v6938 = vadd.f32 %v6648, %v6763
  %v6939 = vadd.f32 %v6649, %v6766
  %v6940 = vadd.f32 %v6650, %v6769
  %v6941 = vadd.f32 %v6651, %v6772
  %v6942 = vadd.f32 %v6652, %v6775
  %v6943 = vadd.f32 %v6653, %v6778
  %v6944 = vadd.f32 %v6654, %v6781
  %v6945 = vadd.f32 %v6655, %v6784
  %v6946 = vadd.f32 %v6656, %v6787
  %v6947 = vadd.f32 %v6657, %v6790
  %v6948 = vadd.f32 %v6658, %v6793
  %v6949 = vadd.f32 %v6659, %v6796
  %v6950 = vadd.f32 %v6660, %v6799
  %v6951 = vadd.f32 %v6661, %v6802
  %v6952 = vadd.f32 %v6662, %v6805
  %v6953 = vadd.f32 %v6663, %v6808
  %v6954 = vadd.f32 %v6664, %v6811
  %v6955 = vadd.f32 %v6665, %v6814
  %v6956 = vadd.f32 %v6666, %v6817
  %v6957 = vadd.f32 %v6667, %v6820
  %v6958 = vadd.f32 %v6668, %v6823
  %v6959 = vadd.f32 %v6669, %v6826
  %v6960 = vadd.f32 %v6670, %v6829
  %v6961 = vadd.f32 %v6671, %v6832
  %v6962 = vadd.f32 %v6672, %v6835
  %v6963 = vadd.f32 %v6673, %v6838
  %v6964 = vadd.f32 %v6674, %v6841
  %v6965 = vadd.f32 %v6675, %v6844
  %v6966 = vadd.f32 %v6676, %v6847
  %v6967 = vadd.f32 %v6677, %v6850
  %v6968 = vadd.f32 %v6678, %v6853
  %v6969 = vadd.f32 %v6679, %v6856
  %v6970 = vadd.f32 %v6680, %v6859
  %v6971 = vadd.f32 %v6681, %v6862
  %v6972 = vadd.f32 %v6682, %v6865
  %v6973 = vadd.f32 %v6683, %v6868
  %v6974 = vadd.f32 %v6684, %v6871
  %v6975 = vadd.f32 %v6685, %v6874
  %v6976 = vadd.f32 %v6686, %v6877
  %v6977 = vadd.f32 %v6687, %v6880
  %v6978 = vadd.f32 %v6688, %v6883
  %v6979 = vadd.f32 %v6689, %v6886
  %v6980 = vadd.f32 %v6690, %v6889
  %v6981 = vadd.f32 %v6691, %v6892
  %v6982 = vadd.f32 %v6692, %v6895
  %v6983 = vadd.f32 %v6693, %v6898
  %v6984 = vadd.f32 %v6694, %v6901
  %v6985 = vadd.f32 %v6695, %v6904
  %v6986 = vadd.f32 %v6696, %v6907
  %v6987 = vadd.f32 %v6697, %v6910
  %v6988 = vadd.f32 %v6698, %v6913
  %v6989 = vadd.f32 %v6699, %v6916
  %v6990 = vadd.f32 %v6700, %v6919
  %v6991 = vadd.f32 %v6701, %v6922
  %v6992 = vadd.f32 %v6702, %v6925
  %v6993 = vadd.f32 %v6703, %v6928
  %v6994 = vld [vmem:[%s4] sm:$0x1]
  %v6996 = vperm.slane %v6994, 0
  %v6998 = vadd.f32 %v6930, %v6996
  %v6999 = vadd.f32 %v6931, %v6996
  %v7000 = vadd.f32 %v6932, %v6996
  %v7001 = vadd.f32 %v6933, %v6996
  %v7002 = vadd.f32 %v6934, %v6996
  %v7003 = vadd.f32 %v6935, %v6996
  %v7004 = vadd.f32 %v6936, %v6996
  %v7005 = vadd.f32 %v6937, %v6996
  %v7006 = vadd.f32 %v6938, %v6996
  %v7007 = vadd.f32 %v6939, %v6996
  %v7008 = vadd.f32 %v6940, %v6996
  %v7009 = vadd.f32 %v6941, %v6996
  %v7010 = vadd.f32 %v6942, %v6996
  %v7011 = vadd.f32 %v6943, %v6996
  %v7012 = vadd.f32 %v6944, %v6996
  %v7013 = vadd.f32 %v6945, %v6996
  %v7014 = vadd.f32 %v6946, %v6996
  %v7015 = vadd.f32 %v6947, %v6996
  %v7016 = vadd.f32 %v6948, %v6996
  %v7017 = vadd.f32 %v6949, %v6996
  %v7018 = vadd.f32 %v6950, %v6996
  %v7019 = vadd.f32 %v6951, %v6996
  %v7020 = vadd.f32 %v6952, %v6996
  %v7021 = vadd.f32 %v6953, %v6996
  %v7022 = vadd.f32 %v6954, %v6996
  %v7023 = vadd.f32 %v6955, %v6996
  %v7024 = vadd.f32 %v6956, %v6996
  %v7025 = vadd.f32 %v6957, %v6996
  %v7026 = vadd.f32 %v6958, %v6996
  %v7027 = vadd.f32 %v6959, %v6996
  %v7028 = vadd.f32 %v6960, %v6996
  %v7029 = vadd.f32 %v6961, %v6996
  %v7030 = vadd.f32 %v6962, %v6996
  %v7031 = vadd.f32 %v6963, %v6996
  %v7032 = vadd.f32 %v6964, %v6996
  %v7033 = vadd.f32 %v6965, %v6996
  %v7034 = vadd.f32 %v6966, %v6996
  %v7035 = vadd.f32 %v6967, %v6996
  %v7036 = vadd.f32 %v6968, %v6996
  %v7037 = vadd.f32 %v6969, %v6996
  %v7038 = vadd.f32 %v6970, %v6996
  %v7039 = vadd.f32 %v6971, %v6996
  %v7040 = vadd.f32 %v6972, %v6996
  %v7041 = vadd.f32 %v6973, %v6996
  %v7042 = vadd.f32 %v6974, %v6996
  %v7043 = vadd.f32 %v6975, %v6996
  %v7044 = vadd.f32 %v6976, %v6996
  %v7045 = vadd.f32 %v6977, %v6996
  %v7046 = vadd.f32 %v6978, %v6996
  %v7047 = vadd.f32 %v6979, %v6996
  %v7048 = vadd.f32 %v6980, %v6996
  %v7049 = vadd.f32 %v6981, %v6996
  %v7050 = vadd.f32 %v6982, %v6996
  %v7051 = vadd.f32 %v6983, %v6996
  %v7052 = vadd.f32 %v6984, %v6996
  %v7053 = vadd.f32 %v6985, %v6996
  %v7054 = vadd.f32 %v6986, %v6996
  %v7055 = vadd.f32 %v6987, %v6996
  %v7056 = vadd.f32 %v6988, %v6996
  %v7057 = vadd.f32 %v6989, %v6996
  %v7058 = vadd.f32 %v6990, %v6996
  %v7059 = vadd.f32 %v6991, %v6996
  %v7060 = vadd.f32 %v6992, %v6996
  %v7061 = vadd.f32 %v6993, %v6996
  %v7062 = vadd.f32 %v6998, %v193
  %v7063 = vadd.f32 %v6999, %v194
  %v7064 = vadd.f32 %v7000, %v195
  %v7065 = vadd.f32 %v7001, %v196
  %v7066 = vadd.f32 %v7002, %v197
  %v7067 = vadd.f32 %v7003, %v198
  %v7068 = vadd.f32 %v7004, %v199
  %v7069 = vadd.f32 %v7005, %v200
  %v7070 = vadd.f32 %v7006, %v201
  %v7071 = vadd.f32 %v7007, %v202
  %v7072 = vadd.f32 %v7008, %v203
  %v7073 = vadd.f32 %v7009, %v204
  %v7074 = vadd.f32 %v7010, %v205
  %v7075 = vadd.f32 %v7011, %v206
  %v7076 = vadd.f32 %v7012, %v207
  %v7077 = vadd.f32 %v7013, %v208
  %v7078 = vadd.f32 %v7014, %v209
  %v7079 = vadd.f32 %v7015, %v210
  %v7080 = vadd.f32 %v7016, %v211
  %v7081 = vadd.f32 %v7017, %v212
  %v7082 = vadd.f32 %v7018, %v213
  %v7083 = vadd.f32 %v7019, %v214
  %v7084 = vadd.f32 %v7020, %v215
  %v7085 = vadd.f32 %v7021, %v216
  %v7086 = vadd.f32 %v7022, %v217
  %v7087 = vadd.f32 %v7023, %v218
  %v7088 = vadd.f32 %v7024, %v219
  %v7089 = vadd.f32 %v7025, %v220
  %v7090 = vadd.f32 %v7026, %v221
  %v7091 = vadd.f32 %v7027, %v222
  %v7092 = vadd.f32 %v7028, %v223
  %v7093 = vadd.f32 %v7029, %v224
  %v7094 = vadd.f32 %v7030, %v225
  %v7095 = vadd.f32 %v7031, %v226
  %v7096 = vadd.f32 %v7032, %v227
  %v7097 = vadd.f32 %v7033, %v228
  %v7098 = vadd.f32 %v7034, %v229
  %v7099 = vadd.f32 %v7035, %v230
  %v7100 = vadd.f32 %v7036, %v231
  %v7101 = vadd.f32 %v7037, %v232
  %v7102 = vadd.f32 %v7038, %v233
  %v7103 = vadd.f32 %v7039, %v234
  %v7104 = vadd.f32 %v7040, %v235
  %v7105 = vadd.f32 %v7041, %v236
  %v7106 = vadd.f32 %v7042, %v237
  %v7107 = vadd.f32 %v7043, %v238
  %v7108 = vadd.f32 %v7044, %v239
  %v7109 = vadd.f32 %v7045, %v240
  %v7110 = vadd.f32 %v7046, %v241
  %v7111 = vadd.f32 %v7047, %v242
  %v7112 = vadd.f32 %v7048, %v243
  %v7113 = vadd.f32 %v7049, %v244
  %v7114 = vadd.f32 %v7050, %v245
  %v7115 = vadd.f32 %v7051, %v246
  %v7116 = vadd.f32 %v7052, %v247
  %v7117 = vadd.f32 %v7053, %v248
  %v7118 = vadd.f32 %v7054, %v249
  %v7119 = vadd.f32 %v7055, %v250
  %v7120 = vadd.f32 %v7056, %v251
  %v7121 = vadd.f32 %v7057, %v252
  %v7122 = vadd.f32 %v7058, %v253
  %v7123 = vadd.f32 %v7059, %v254
  %v7124 = vadd.f32 %v7060, %v255
  %v7125 = vadd.f32 %v7061, %v256
  %v7126 = vmax.f32 %v7062, 0.0
  %v7127 = vmax.f32 %v7063, 0.0
  %v7128 = vmax.f32 %v7064, 0.0
  %v7129 = vmax.f32 %v7065, 0.0
  %v7130 = vmax.f32 %v7066, 0.0
  %v7131 = vmax.f32 %v7067, 0.0
  %v7132 = vmax.f32 %v7068, 0.0
  %v7133 = vmax.f32 %v7069, 0.0
  %v7134 = vmax.f32 %v7070, 0.0
  %v7135 = vmax.f32 %v7071, 0.0
  %v7136 = vmax.f32 %v7072, 0.0
  %v7137 = vmax.f32 %v7073, 0.0
  %v7138 = vmax.f32 %v7074, 0.0
  %v7139 = vmax.f32 %v7075, 0.0
  %v7140 = vmax.f32 %v7076, 0.0
  %v7141 = vmax.f32 %v7077, 0.0
  %v7142 = vmax.f32 %v7078, 0.0
  %v7143 = vmax.f32 %v7079, 0.0
  %v7144 = vmax.f32 %v7080, 0.0
  %v7145 = vmax.f32 %v7081, 0.0
  %v7146 = vmax.f32 %v7082, 0.0
  %v7147 = vmax.f32 %v7083, 0.0
  %v7148 = vmax.f32 %v7084, 0.0
  %v7149 = vmax.f32 %v7085, 0.0
  %v7150 = vmax.f32 %v7086, 0.0
  %v7151 = vmax.f32 %v7087, 0.0
  %v7152 = vmax.f32 %v7088, 0.0
  %v7153 = vmax.f32 %v7089, 0.0
  %v7154 = vmax.f32 %v7090, 0.0
  %v7155 = vmax.f32 %v7091, 0.0
  %v7156 = vmax.f32 %v7092, 0.0
  %v7157 = vmax.f32 %v7093, 0.0
  %v7158 = vmax.f32 %v7094, 0.0
  %v7159 = vmax.f32 %v7095, 0.0
  %v7160 = vmax.f32 %v7096, 0.0
  %v7161 = vmax.f32 %v7097, 0.0
  %v7162 = vmax.f32 %v7098, 0.0
  %v7163 = vmax.f32 %v7099, 0.0
  %v7164 = vmax.f32 %v7100, 0.0
  %v7165 = vmax.f32 %v7101, 0.0
  %v7166 = vmax.f32 %v7102, 0.0
  %v7167 = vmax.f32 %v7103, 0.0
  %v7168 = vmax.f32 %v7104, 0.0
  %v7169 = vmax.f32 %v7105, 0.0
  %v7170 = vmax.f32 %v7106, 0.0
  %v7171 = vmax.f32 %v7107, 0.0
  %v7172 = vmax.f32 %v7108, 0.0
  %v7173 = vmax.f32 %v7109, 0.0
  %v7174 = vmax.f32 %v7110, 0.0
  %v7175 = vmax.f32 %v7111, 0.0
  %v7176 = vmax.f32 %v7112, 0.0
  %v7177 = vmax.f32 %v7113, 0.0
  %v7178 = vmax.f32 %v7114, 0.0
  %v7179 = vmax.f32 %v7115, 0.0
  %v7180 = vmax.f32 %v7116, 0.0
  %v7181 = vmax.f32 %v7117, 0.0
  %v7182 = vmax.f32 %v7118, 0.0
  %v7183 = vmax.f32 %v7119, 0.0
  %v7184 = vmax.f32 %v7120, 0.0
  %v7185 = vmax.f32 %v7121, 0.0
  %v7186 = vmax.f32 %v7122, 0.0
  %v7187 = vmax.f32 %v7123, 0.0
  %v7188 = vmax.f32 %v7124, 0.0
  %v7189 = vmax.f32 %v7125, 0.0
  %7190 = vst.msk [vmem:[%s5] sm:$0xff] %vm20, %v7126
  %7191 = vst.msk [vmem:[%s5 + $0x8] sm:$0xff] %vm20, %v7127
  %7192 = vst.msk [vmem:[%s5 + $0x10] sm:$0xff] %vm20, %v7128
  %7193 = vst.msk [vmem:[%s5 + $0x18] sm:$0xff] %vm20, %v7129
  %7194 = vst.msk [vmem:[%s5 + $0x20] sm:$0xff] %vm20, %v7130
  %7195 = vst.msk [vmem:[%s5 + $0x28] sm:$0xff] %vm20, %v7131
  %7196 = vst.msk [vmem:[%s5 + $0x30] sm:$0xff] %vm20, %v7132
  %7197 = vst.msk [vmem:[%s5 + $0x38] sm:$0xff] %vm20, %v7133
  %7198 = vst.msk [vmem:[%s5 + $0x40] sm:$0xff] %vm20, %v7134
  %7199 = vst.msk [vmem:[%s5 + $0x48] sm:$0xff] %vm20, %v7135
  %7200 = vst.msk [vmem:[%s5 + $0x50] sm:$0xff] %vm20, %v7136
  %7201 = vst.msk [vmem:[%s5 + $0x58] sm:$0xff] %vm20, %v7137
  %7202 = vst.msk [vmem:[%s5 + $0x60] sm:$0xff] %vm20, %v7138
  %7203 = vst.msk [vmem:[%s5 + $0x68] sm:$0xff] %vm20, %v7139
  %7204 = vst.msk [vmem:[%s5 + $0x70] sm:$0xff] %vm20, %v7140
  %7205 = vst.msk [vmem:[%s5 + $0x78] sm:$0xff] %vm20, %v7141
  %7206 = vst.msk [vmem:[%s5 + $0x80] sm:$0xff] %vm20, %v7142
  %7207 = vst.msk [vmem:[%s5 + $0x88] sm:$0xff] %vm20, %v7143
  %7208 = vst.msk [vmem:[%s5 + $0x90] sm:$0xff] %vm20, %v7144
  %7209 = vst.msk [vmem:[%s5 + $0x98] sm:$0xff] %vm20, %v7145
  %7210 = vst.msk [vmem:[%s5 + $0xa0] sm:$0xff] %vm20, %v7146
  %7211 = vst.msk [vmem:[%s5 + $0xa8] sm:$0xff] %vm20, %v7147
  %7212 = vst.msk [vmem:[%s5 + $0xb0] sm:$0xff] %vm20, %v7148
  %7213 = vst.msk [vmem:[%s5 + $0xb8] sm:$0xff] %vm20, %v7149
  %7214 = vst.msk [vmem:[%s5 + $0xc0] sm:$0xff] %vm20, %v7150
  %7215 = vst.msk [vmem:[%s5 + $0xc8] sm:$0xff] %vm20, %v7151
  %7216 = vst.msk [vmem:[%s5 + $0xd0] sm:$0xff] %vm20, %v7152
  %7217 = vst.msk [vmem:[%s5 + $0xd8] sm:$0xff] %vm20, %v7153
  %7218 = vst.msk [vmem:[%s5 + $0xe0] sm:$0xff] %vm20, %v7154
  %7219 = vst.msk [vmem:[%s5 + $0xe8] sm:$0xff] %vm20, %v7155
  %7220 = vst.msk [vmem:[%s5 + $0xf0] sm:$0xff] %vm20, %v7156
  %7221 = vst.msk [vmem:[%s5 + $0xf8] sm:$0xff] %vm20, %v7157
  %7222 = vst.msk [vmem:[%s5 + $0x100] sm:$0xff] %vm20, %v7158
  %7223 = vst.msk [vmem:[%s5 + $0x108] sm:$0xff] %vm20, %v7159
  %7224 = vst.msk [vmem:[%s5 + $0x110] sm:$0xff] %vm20, %v7160
  %7225 = vst.msk [vmem:[%s5 + $0x118] sm:$0xff] %vm20, %v7161
  %7226 = vst.msk [vmem:[%s5 + $0x120] sm:$0xff] %vm20, %v7162
  %7227 = vst.msk [vmem:[%s5 + $0x128] sm:$0xff] %vm20, %v7163
  %7228 = vst.msk [vmem:[%s5 + $0x130] sm:$0xff] %vm20, %v7164
  %7229 = vst.msk [vmem:[%s5 + $0x138] sm:$0xff] %vm20, %v7165
  %7230 = vst.msk [vmem:[%s5 + $0x140] sm:$0xff] %vm20, %v7166
  %7231 = vst.msk [vmem:[%s5 + $0x148] sm:$0xff] %vm20, %v7167
  %7232 = vst.msk [vmem:[%s5 + $0x150] sm:$0xff] %vm20, %v7168
  %7233 = vst.msk [vmem:[%s5 + $0x158] sm:$0xff] %vm20, %v7169
  %7234 = vst.msk [vmem:[%s5 + $0x160] sm:$0xff] %vm20, %v7170
  %7235 = vst.msk [vmem:[%s5 + $0x168] sm:$0xff] %vm20, %v7171
  %7236 = vst.msk [vmem:[%s5 + $0x170] sm:$0xff] %vm20, %v7172
  %7237 = vst.msk [vmem:[%s5 + $0x178] sm:$0xff] %vm20, %v7173
  %7238 = vst.msk [vmem:[%s5 + $0x180] sm:$0xff] %vm20, %v7174
  %7239 = vst.msk [vmem:[%s5 + $0x188] sm:$0xff] %vm20, %v7175
  %7240 = vst.msk [vmem:[%s5 + $0x190] sm:$0xff] %vm20, %v7176
  %7241 = vst.msk [vmem:[%s5 + $0x198] sm:$0xff] %vm20, %v7177
  %7242 = vst.msk [vmem:[%s5 + $0x1a0] sm:$0xff] %vm20, %v7178
  %7243 = vst.msk [vmem:[%s5 + $0x1a8] sm:$0xff] %vm20, %v7179
  %7244 = vst.msk [vmem:[%s5 + $0x1b0] sm:$0xff] %vm20, %v7180
  %7245 = vst.msk [vmem:[%s5 + $0x1b8] sm:$0xff] %vm20, %v7181
  %7246 = vst.msk [vmem:[%s5 + $0x1c0] sm:$0xff] %vm20, %v7182
  %7247 = vst.msk [vmem:[%s5 + $0x1c8] sm:$0xff] %vm20, %v7183
  %7248 = vst.msk [vmem:[%s5 + $0x1d0] sm:$0xff] %vm20, %v7184
  %7249 = vst.msk [vmem:[%s5 + $0x1d8] sm:$0xff] %vm20, %v7185
  %7250 = vst.msk [vmem:[%s5 + $0x1e0] sm:$0xff] %vm20, %v7186
  %7251 = vst.msk [vmem:[%s5 + $0x1e8] sm:$0xff] %vm20, %v7187
  %7252 = vst.msk [vmem:[%s5 + $0x1f0] sm:$0xff] %vm20, %v7188
  %7253 = vst.msk [vmem:[%s5 + $0x1f8] sm:$0xff] %vm20, %v7189
  // Predicated region
  $region22: #{residual_block_nhwc.1} parent=0 // pred_check
    _
  $region23: #{residual_block_nhwc.1} parent=0 // pred_check_branch
    %7255 = sbr.rel (0) target = $region25
  $region24: #{residual_block_nhwc.1} parent=0 // pred_region
    _
  $region25: #{residual_block_nhwc.1} parent=0 // pred_fallthru
    _
  // Predicated region
  $region26: #{residual_block_nhwc.1} parent=0 // pred_check
    _
  $region27: #{residual_block_nhwc.1} parent=0 // pred_check_branch
    %7257 = sbr.rel (0) target = $region29
  $region28: #{residual_block_nhwc.1} parent=0 // pred_region
    _
  $region29: #{residual_block_nhwc.1} parent=0 // pred_fallthru
    _

</llo_original>
